<compile_context>
chip_gen: v6e
topology: v6e:2x2x1
jax: 0.10.0
libtpu: 0.0.40
codegen_flags: <defaults>
</compile_context>

<pallas_src>
import functools

import jax
import jax.numpy as jnp
from jax import lax
from jax.experimental import pallas as pl
from jax.experimental.pallas import tpu as pltpu


def _mha_kernel(x_ref, wq_ref, wkv_ref, wp_ref, bp_ref, o_ref,
                kv_scr, q_scr, heads_scr, *, num_heads, head_size, q_tile):
    H, hs, TQ = num_heads, head_size, q_tile
    T = x_ref.shape[1]
    C = x_ref.shape[2]
    TK = TQ                                                   # KV tile == query tile
    qi = pl.program_id(1)

    # ---- K/V projection: once per batch (q axis is innermost & "arbitrary"). ----
    @pl.when(qi == 0)
    def _():
        x_full = x_ref[0].astype(jnp.bfloat16)                # (T, C) bf16
        kv_scr[...] = jnp.dot(x_full, wkv_ref[...],
                              preferred_element_type=jnp.float32).astype(jnp.bfloat16)

    # ---- Q projection for this query tile (scale pre-folded into W_q). ----
    q_start = pl.multiple_of(qi * TQ, TQ)
    x_q = x_ref[0, pl.ds(q_start, TQ), :].astype(jnp.bfloat16)          # (TQ, C) bf16
    q_scr[...] = jnp.dot(x_q, wq_ref[...],
                         preferred_element_type=jnp.float32).astype(jnp.bfloat16)

    # Causal-mask index helpers (built once per grid step, finite negative).
    row = lax.broadcasted_iota(jnp.int32, (TQ, TK), 0) + q_start
    col_base = lax.broadcasted_iota(jnp.int32, (TQ, TK), 1)
    neg = jnp.float32(-1e30)

    # Number of KV tiles under the causal diagonal for this query tile.
    if T == TQ:
        n_kv = 1                                              # static single-tile path
    else:
        n_kv = qi + 1                                         # skip tiles above diagonal

    for h in range(H):                                        # small static loop (H = 6)
        lo = h * hs
        q_h = q_scr[:, lo:lo + hs]                            # (TQ, hs) bf16 (VMEM load)

        def kv_step(t, carry, lo=lo, q_h=q_h):
            m, l, acc = carry
            k_off = pl.multiple_of(t * TK, TK)
            k_t = kv_scr[pl.ds(k_off, TK), lo:lo + hs]            # (TK, hs) bf16
            v_t = kv_scr[pl.ds(k_off, TK), C + lo:C + lo + hs]    # (TK, hs) bf16

            # Scores: contract the head dims directly (no explicit transpose).
            s = lax.dot_general(q_h, k_t, (((1,), (1,)), ((), ())),
                                preferred_element_type=jnp.float32)   # (TQ, TK) f32
            s = jnp.where(col_base + k_off <= row, s, neg)

            # Online softmax update (all f32).
            m_new = jnp.maximum(m, jnp.max(s, axis=-1, keepdims=True))
            alpha = jnp.exp(m - m_new)
            p = jnp.exp(s - m_new)
            l_new = alpha * l + jnp.sum(p, axis=-1, keepdims=True)
            acc_new = alpha * acc + jnp.dot(p.astype(jnp.bfloat16), v_t,
                                            preferred_element_type=jnp.float32)
            return m_new, l_new, acc_new

        m0 = jnp.full((TQ, 1), neg, jnp.float32)
        l0 = jnp.zeros((TQ, 1), jnp.float32)
        a0 = jnp.zeros((TQ, hs), jnp.float32)
        m, l, acc = lax.fori_loop(0, n_kv, kv_step, (m0, l0, a0))

        # Normalize the small (TQ, hs) head output, not the (TQ, T) prob matrix.
        inv = pl.reciprocal(l, approx=True)
        heads_scr[:, lo:lo + hs] = (acc * inv).astype(jnp.bfloat16)

    # ---- Single depth-C output projection + bias (replaces 6 depth-64 matmuls). ----
    out = jnp.dot(heads_scr[...], wp_ref[...], preferred_element_type=jnp.float32)
    o_ref[0] = (out + bp_ref[...]).astype(o_ref.dtype)


def multi_head_attention(x, wq, wk, wv, wp, bp):
    """x: (B, T, C) f32; wq/wk/wv: (H, C, hs); wp: (C, C) = (in, out); bp: (1, C) or (C,)."""
    B, T, C = x.shape
    H, _, hs = wq.shape
    assert H * hs == C, "num_heads * head_size must equal n_embd"

    # Query/KV tile: 256 rows fills the v6e/v7x MXU; 128 otherwise; full T if tiny.
    if T >= 256 and T % 256 == 0:
        TQ = 256
    elif T % 128 == 0:
        TQ = 128
    else:
        TQ = T
    NQ = T // TQ

    def stack(w):                                             # (H, C, hs) -> (C, H*hs)
        return jnp.transpose(w, (1, 0, 2)).reshape(C, H * hs)

    scale = C ** (-0.5)                                       # matches PyTorch: uses n_embd
    w_q = (stack(wq) * scale).astype(jnp.bfloat16)            # (C, C), scale folded in
    w_kv = jnp.concatenate([stack(wk), stack(wv)], axis=1).astype(jnp.bfloat16)  # (C, 2C)
    wp_b = wp.astype(jnp.bfloat16)
    bp_b = bp.reshape(1, C).astype(jnp.float32)

    kernel = functools.partial(_mha_kernel, num_heads=H, head_size=hs, q_tile=TQ)

    return pl.pallas_call(
        kernel,
        out_shape=jax.ShapeDtypeStruct((B, T, C), x.dtype),
        grid_spec=pltpu.PrefetchScalarGridSpec(
            num_scalar_prefetch=0,
            grid=(B, NQ),
            in_specs=[
                pl.BlockSpec((1, T, C), lambda b, q: (b, 0, 0)),    # x: full seq, one batch
                pl.BlockSpec((C, C), lambda b, q: (0, 0)),          # W_q (pre-scaled)
                pl.BlockSpec((C, 2 * C), lambda b, q: (0, 0)),      # W_kv
                pl.BlockSpec((C, C), lambda b, q: (0, 0)),          # W_proj
                pl.BlockSpec((1, C), lambda b, q: (0, 0)),          # bias
            ],
            out_specs=pl.BlockSpec((1, TQ, C), lambda b, q: (b, q, 0)),
            scratch_shapes=[
                pltpu.VMEM((T, 2 * C), jnp.bfloat16),   # cached K/V projections
                pltpu.VMEM((TQ, C), jnp.bfloat16),      # Q projection for this tile
                pltpu.VMEM((TQ, C), jnp.bfloat16),      # concatenated head outputs
            ],
        ),
        compiler_params=pltpu.CompilerParams(
            # q axis must be sequential (scratch-carried K/V cache); batch axis
            # stays "parallel" so megacore (v7x) still splits work.
            dimension_semantics=("parallel", "arbitrary"),
        ),
    )(x, w_q, w_kv, wp_b, bp_b)


def _reference(x, wq, wk, wv, wp, bp):
    """Pure-JAX f32 reference mirroring the PyTorch module (eval mode)."""
    B, T, C = x.shape
    H = wq.shape[0]
    keep = jnp.tril(jnp.ones((T, T), dtype=bool))
    outs = []
    for h in range(H):
        q = x @ wq[h]
        k = x @ wk[h]
        v = x @ wv[h]
        s = (q @ jnp.swapaxes(k, -2, -1)) * (C ** -0.5)
        s = jnp.where(keep, s, -jnp.inf)
        p = jax.nn.softmax(s, axis=-1)
        outs.append(p @ v)
    concat = jnp.concatenate(outs, axis=-1)
    return concat @ wp + bp.reshape(1, C)


if __name__ == "__main__":
    # Module-consistent small shapes: B=2, T=128 (<= block_size=256),
    # n_embd=384, num_heads=6, head_size=64 (num_heads * head_size == n_embd).
    B, T, C = 2, 128, 384
    H = 6
    hs = C // H

    key = jax.random.PRNGKey(0)
    kx, kq, kk, kv, kp, kb = jax.random.split(key, 6)

    bound = 1.0 / (C ** 0.5)  # PyTorch Linear default init bound
    x = jax.random.normal(kx, (B, T, C), dtype=jnp.float32)
    wq = jax.random.uniform(kq, (H, C, hs), jnp.float32, -bound, bound)
    wk = jax.random.uniform(kk, (H, C, hs), jnp.float32, -bound, bound)
    wv = jax.random.uniform(kv, (H, C, hs), jnp.float32, -bound, bound)
    wp = jax.random.uniform(kp, (C, C), jnp.float32, -bound, bound)
    bp = jax.random.uniform(kb, (1, C), jnp.float32, -bound, bound)

    out = multi_head_attention(x, wq, wk, wv, wp, bp)
    out = jax.block_until_ready(out)

    ref = _reference(x, wq, wk, wv, wp, bp)
    assert out.shape == (B, T, C)
    max_err = float(jnp.max(jnp.abs(out - ref)))
    # bf16 matmul operands + approx reciprocal -> compare at bf16-level tolerance
    assert jnp.allclose(out, ref, atol=1e-2, rtol=1e-2), f"mismatch vs reference, max_err={max_err}"

    print("KERNEL_OK")
</pallas_src>

<mosaic_0001>
module attributes {stable_mosaic.version = 11 : i64} {
  func.func @_mha_kernel(%arg0: i32, %arg1: i32, %arg2: memref<1x128x384xf32, #tpu.memory_space<vmem>>, %arg3: memref<384x384xbf16, #tpu.memory_space<vmem>>, %arg4: memref<384x768xbf16, #tpu.memory_space<vmem>>, %arg5: memref<384x384xbf16, #tpu.memory_space<vmem>>, %arg6: memref<1x384xf32, #tpu.memory_space<vmem>>, %arg7: memref<1x128x384xf32, #tpu.memory_space<vmem>>, %arg8: memref<128x768xbf16, #tpu.memory_space<vmem>>, %arg9: memref<128x384xbf16, #tpu.memory_space<vmem>>, %arg10: memref<128x384xbf16, #tpu.memory_space<vmem>>) attributes {dimension_semantics = [#tpu.dimension_semantics<parallel>, #tpu.dimension_semantics<arbitrary>], iteration_bounds = array<i64: 2, 1>, scalar_prefetch = 0 : i64, scratch_operands = 3 : i64, tpu.core_type = #tpu.core_type<tc>, window_params = [{transform_indices = @transform_0, window_bounds = array<i64: 1, 128, 384>}, {pipeline_mode = #tpu.pipeline_mode<synchronous>, transform_indices = @transform_1, window_bounds = array<i64: 384, 384>}, {pipeline_mode = #tpu.pipeline_mode<synchronous>, transform_indices = @transform_2, window_bounds = array<i64: 384, 768>}, {pipeline_mode = #tpu.pipeline_mode<synchronous>, transform_indices = @transform_3, window_bounds = array<i64: 384, 384>}, {pipeline_mode = #tpu.pipeline_mode<synchronous>, transform_indices = @transform_4, window_bounds = array<i64: 1, 384>}, {transform_indices = @transform_5, window_bounds = array<i64: 1, 128, 384>}]} {
    %c0_i32 = arith.constant 0 : i32
    %0 = arith.cmpi eq, %arg1, %c0_i32 : i32
    %1 = arith.extui %0 : i1 to i32
    %c0_i32_0 = arith.constant 0 : i32
    %2 = arith.cmpi ne, %1, %c0_i32_0 : i32
    scf.if %2 {
      %c0_106 = arith.constant 0 : index
      %c0_107 = arith.constant 0 : index
      %c0_108 = arith.constant 0 : index
      %254 = vector.load %arg2[%c0_106, %c0_107, %c0_108] : memref<1x128x384xf32, #tpu.memory_space<vmem>>, vector<1x128x384xf32>
      %255 = vector.shape_cast %254 : vector<1x128x384xf32> to vector<128x384xf32>
      %256 = arith.truncf %255 : vector<128x384xf32> to vector<128x384xbf16>
      %c0_109 = arith.constant 0 : index
      %c0_110 = arith.constant 0 : index
      %257 = vector.load %arg4[%c0_109, %c0_110] : memref<384x768xbf16, #tpu.memory_space<vmem>>, vector<384x768xbf16>
      %cst_111 = arith.constant dense<0.000000e+00> : vector<128x768xf32>
      %258 = tpu.matmul %256, %257, %cst_111 {dimension_numbers = #tpu.dot_dimension_numbers<[1], [0], [0], [1], [0, 0, 1, 1], [], []>} : vector<128x384xbf16>, vector<384x768xbf16>, vector<128x768xf32> -> vector<128x768xf32>
      %259 = arith.truncf %258 : vector<128x768xf32> to vector<128x768xbf16>
      %c0_112 = arith.constant 0 : index
      %c0_113 = arith.constant 0 : index
      %260 = vector.load %arg8[%c0_112, %c0_113] : memref<128x768xbf16, #tpu.memory_space<vmem>>, vector<128x768xbf16>
      tpu.vector_store %arg8[%c0_112, %c0_113], %259 {strides = array<i32>} : memref<128x768xbf16, #tpu.memory_space<vmem>>, vector<128x768xbf16>,
    } else {
    }
    %c128_i32 = arith.constant 128 : i32
    %3 = arith.muli %arg1, %c128_i32 : i32
    %4 = tpu.assume_multiple %3, 128 : i32
    %c0 = arith.constant 0 : index
    %5 = arith.index_cast %4 : i32 to index
    %c0_1 = arith.constant 0 : index
    %6 = vector.load %arg2[%c0, %5, %c0_1] : memref<1x128x384xf32, #tpu.memory_space<vmem>>, vector<1x128x384xf32>
    %7 = vector.shape_cast %6 : vector<1x128x384xf32> to vector<128x384xf32>
    %8 = arith.truncf %7 : vector<128x384xf32> to vector<128x384xbf16>
    %c0_2 = arith.constant 0 : index
    %c0_3 = arith.constant 0 : index
    %9 = vector.load %arg3[%c0_2, %c0_3] : memref<384x384xbf16, #tpu.memory_space<vmem>>, vector<384x384xbf16>
    %cst = arith.constant dense<0.000000e+00> : vector<128x384xf32>
    %10 = tpu.matmul %8, %9, %cst {dimension_numbers = #tpu.dot_dimension_numbers<[1], [0], [0], [1], [0, 0, 1, 1], [], []>} : vector<128x384xbf16>, vector<384x384xbf16>, vector<128x384xf32> -> vector<128x384xf32>
    %11 = arith.truncf %10 : vector<128x384xf32> to vector<128x384xbf16>
    %c0_4 = arith.constant 0 : index
    %c0_5 = arith.constant 0 : index
    %12 = vector.load %arg9[%c0_4, %c0_5] : memref<128x384xbf16, #tpu.memory_space<vmem>>, vector<128x384xbf16>
    tpu.vector_store %arg9[%c0_4, %c0_5], %11 {strides = array<i32>} : memref<128x384xbf16, #tpu.memory_space<vmem>>, vector<128x384xbf16>,
    %13 = tpu.iota {dimensions = array<i32: 0>} : vector<128x128xi32>
    %14 = vector.broadcast %4 : i32 to vector<128x128xi32>
    %15 = arith.addi %13, %14 : vector<128x128xi32>
    %16 = tpu.iota {dimensions = array<i32: 1>} : vector<128x128xi32>
    %c0_6 = arith.constant 0 : index
    %c0_7 = arith.constant 0 : index
    %17 = vector.load %arg9[%c0_6, %c0_7] : memref<128x384xbf16, #tpu.memory_space<vmem>>, vector<128x64xbf16>
    %cst_8 = arith.constant -1.000000e+30 : f32
    %18 = vector.broadcast %cst_8 : f32 to vector<128x1xf32>
    %cst_9 = arith.constant 0.000000e+00 : f32
    %19 = vector.broadcast %cst_9 : f32 to vector<128x1xf32>
    %cst_10 = arith.constant 0.000000e+00 : f32
    %20 = vector.broadcast %cst_10 : f32 to vector<128x64xf32>
    %cst_11 = arith.constant -1.000000e+30 : f32
    %c0_i32_12 = arith.constant 0 : i32
    %c128_i32_13 = arith.constant 128 : i32
    %21 = arith.muli %c0_i32_12, %c128_i32_13 : i32
    %22 = tpu.assume_multiple %21, 128 : i32
    %23 = arith.index_cast %22 : i32 to index
    %c0_14 = arith.constant 0 : index
    %24 = vector.load %arg8[%23, %c0_14] : memref<128x768xbf16, #tpu.memory_space<vmem>>, vector<128x64xbf16>
    %25 = arith.index_cast %22 : i32 to index
    %c384 = arith.constant 384 : index
    %26 = vector.load %arg8[%25, %c384] : memref<128x768xbf16, #tpu.memory_space<vmem>>, vector<128x64xbf16>
    %cst_15 = arith.constant dense<0.000000e+00> : vector<128x128xf32>
    %27 = tpu.matmul %17, %24, %cst_15 {dimension_numbers = #tpu.dot_dimension_numbers<[1], [1], [0], [0], [0, 0, 1, 0], [], []>} : vector<128x64xbf16>, vector<128x64xbf16>, vector<128x128xf32> -> vector<128x128xf32>
    %28 = vector.broadcast %22 : i32 to vector<128x128xi32>
    %29 = arith.addi %16, %28 : vector<128x128xi32>
    %30 = arith.cmpi sle, %29, %15 : vector<128x128xi32>
    %31 = vector.broadcast %cst_11 : f32 to vector<128x128xf32>
    %32 = arith.select %30, %27, %31 : vector<128x128xi1>, vector<128x128xf32>
    %cst_16 = arith.constant dense<0xFF800000> : vector<128xf32>
    %33 = vector.multi_reduction <maximumf>, %32, %cst_16 [1] : vector<128x128xf32> to vector<128xf32>
    %34 = vector.shape_cast %33 : vector<128xf32> to vector<128x1xf32>
    %35 = arith.maximumf %18, %34 : vector<128x1xf32>
    %36 = arith.subf %18, %35 : vector<128x1xf32>
    %37 = math.exp %36 : vector<128x1xf32>
    %38 = vector.broadcast %35 : vector<128x1xf32> to vector<128x128xf32>
    %39 = arith.subf %32, %38 : vector<128x128xf32>
    %40 = math.exp %39 : vector<128x128xf32>
    %41 = arith.mulf %37, %19 : vector<128x1xf32>
    %cst_17 = arith.constant dense<0.000000e+00> : vector<128xf32>
    %42 = vector.multi_reduction <add>, %40, %cst_17 [1] : vector<128x128xf32> to vector<128xf32>
    %43 = vector.shape_cast %42 : vector<128xf32> to vector<128x1xf32>
    %44 = arith.addf %41, %43 : vector<128x1xf32>
    %45 = vector.broadcast %37 : vector<128x1xf32> to vector<128x64xf32>
    %46 = arith.mulf %45, %20 : vector<128x64xf32>
    %47 = arith.truncf %40 : vector<128x128xf32> to vector<128x128xbf16>
    %cst_18 = arith.constant dense<0.000000e+00> : vector<128x64xf32>
    %48 = tpu.matmul %47, %26, %cst_18 {dimension_numbers = #tpu.dot_dimension_numbers<[1], [0], [0], [1], [0, 0, 1, 1], [], []>} : vector<128x128xbf16>, vector<128x64xbf16>, vector<128x64xf32> -> vector<128x64xf32>
    %49 = arith.addf %46, %48 : vector<128x64xf32>
    %c1_i32 = arith.constant 1 : i32
    %50 = tpu.reciprocal %44 {approx = true} : vector<128x1xf32> -> vector<128x1xf32>
    %51 = vector.broadcast %50 : vector<128x1xf32> to vector<128x64xf32>
    %52 = arith.mulf %49, %51 : vector<128x64xf32>
    %53 = arith.truncf %52 : vector<128x64xf32> to vector<128x64xbf16>
    %c0_19 = arith.constant 0 : index
    %c0_20 = arith.constant 0 : index
    %54 = vector.load %arg10[%c0_19, %c0_20] : memref<128x384xbf16, #tpu.memory_space<vmem>>, vector<128x64xbf16>
    tpu.vector_store %arg10[%c0_19, %c0_20], %53 {strides = array<i32>} : memref<128x384xbf16, #tpu.memory_space<vmem>>, vector<128x64xbf16>,
    %c0_21 = arith.constant 0 : index
    %c64 = arith.constant 64 : index
    %55 = vector.load %arg9[%c0_21, %c64] : memref<128x384xbf16, #tpu.memory_space<vmem>>, vector<128x64xbf16>
    %cst_22 = arith.constant -1.000000e+30 : f32
    %56 = vector.broadcast %cst_22 : f32 to vector<128x1xf32>
    %cst_23 = arith.constant 0.000000e+00 : f32
    %57 = vector.broadcast %cst_23 : f32 to vector<128x1xf32>
    %cst_24 = arith.constant 0.000000e+00 : f32
    %58 = vector.broadcast %cst_24 : f32 to vector<128x64xf32>
    %cst_25 = arith.constant -1.000000e+30 : f32
    %c0_i32_26 = arith.constant 0 : i32
    %c128_i32_27 = arith.constant 128 : i32
    %59 = arith.muli %c0_i32_26, %c128_i32_27 : i32
    %60 = tpu.assume_multiple %59, 128 : i32
    %61 = arith.index_cast %60 : i32 to index
    %c64_28 = arith.constant 64 : index
    %62 = vector.load %arg8[%61, %c64_28] : memref<128x768xbf16, #tpu.memory_space<vmem>>, vector<128x64xbf16>
    %63 = arith.index_cast %60 : i32 to index
    %c448 = arith.constant 448 : index
    %64 = vector.load %arg8[%63, %c448] : memref<128x768xbf16, #tpu.memory_space<vmem>>, vector<128x64xbf16>
    %cst_29 = arith.constant dense<0.000000e+00> : vector<128x128xf32>
    %65 = tpu.matmul %55, %62, %cst_29 {dimension_numbers = #tpu.dot_dimension_numbers<[1], [1], [0], [0], [0, 0, 1, 0], [], []>} : vector<128x64xbf16>, vector<128x64xbf16>, vector<128x128xf32> -> vector<128x128xf32>
    %66 = vector.broadcast %60 : i32 to vector<128x128xi32>
    %67 = arith.addi %16, %66 : vector<128x128xi32>
    %68 = arith.cmpi sle, %67, %15 : vector<128x128xi32>
    %69 = vector.broadcast %cst_25 : f32 to vector<128x128xf32>
    %70 = arith.select %68, %65, %69 : vector<128x128xi1>, vector<128x128xf32>
    %cst_30 = arith.constant dense<0xFF800000> : vector<128xf32>
    %71 = vector.multi_reduction <maximumf>, %70, %cst_30 [1] : vector<128x128xf32> to vector<128xf32>
    %72 = vector.shape_cast %71 : vector<128xf32> to vector<128x1xf32>
    %73 = arith.maximumf %56, %72 : vector<128x1xf32>
    %74 = arith.subf %56, %73 : vector<128x1xf32>
    %75 = math.exp %74 : vector<128x1xf32>
    %76 = vector.broadcast %73 : vector<128x1xf32> to vector<128x128xf32>
    %77 = arith.subf %70, %76 : vector<128x128xf32>
    %78 = math.exp %77 : vector<128x128xf32>
    %79 = arith.mulf %75, %57 : vector<128x1xf32>
    %cst_31 = arith.constant dense<0.000000e+00> : vector<128xf32>
    %80 = vector.multi_reduction <add>, %78, %cst_31 [1] : vector<128x128xf32> to vector<128xf32>
    %81 = vector.shape_cast %80 : vector<128xf32> to vector<128x1xf32>
    %82 = arith.addf %79, %81 : vector<128x1xf32>
    %83 = vector.broadcast %75 : vector<128x1xf32> to vector<128x64xf32>
    %84 = arith.mulf %83, %58 : vector<128x64xf32>
    %85 = arith.truncf %78 : vector<128x128xf32> to vector<128x128xbf16>
    %cst_32 = arith.constant dense<0.000000e+00> : vector<128x64xf32>
    %86 = tpu.matmul %85, %64, %cst_32 {dimension_numbers = #tpu.dot_dimension_numbers<[1], [0], [0], [1], [0, 0, 1, 1], [], []>} : vector<128x128xbf16>, vector<128x64xbf16>, vector<128x64xf32> -> vector<128x64xf32>
    %87 = arith.addf %84, %86 : vector<128x64xf32>
    %c1_i32_33 = arith.constant 1 : i32
    %88 = tpu.reciprocal %82 {approx = true} : vector<128x1xf32> -> vector<128x1xf32>
    %89 = vector.broadcast %88 : vector<128x1xf32> to vector<128x64xf32>
    %90 = arith.mulf %87, %89 : vector<128x64xf32>
    %91 = arith.truncf %90 : vector<128x64xf32> to vector<128x64xbf16>
    %c0_34 = arith.constant 0 : index
    %c64_35 = arith.constant 64 : index
    %92 = vector.load %arg10[%c0_34, %c64_35] : memref<128x384xbf16, #tpu.memory_space<vmem>>, vector<128x64xbf16>
    tpu.vector_store %arg10[%c0_34, %c64_35], %91 {strides = array<i32>} : memref<128x384xbf16, #tpu.memory_space<vmem>>, vector<128x64xbf16>,
    %c0_36 = arith.constant 0 : index
    %c128 = arith.constant 128 : index
    %93 = vector.load %arg9[%c0_36, %c128] : memref<128x384xbf16, #tpu.memory_space<vmem>>, vector<128x64xbf16>
    %cst_37 = arith.constant -1.000000e+30 : f32
    %94 = vector.broadcast %cst_37 : f32 to vector<128x1xf32>
    %cst_38 = arith.constant 0.000000e+00 : f32
    %95 = vector.broadcast %cst_38 : f32 to vector<128x1xf32>
    %cst_39 = arith.constant 0.000000e+00 : f32
    %96 = vector.broadcast %cst_39 : f32 to vector<128x64xf32>
    %cst_40 = arith.constant -1.000000e+30 : f32
    %c0_i32_41 = arith.constant 0 : i32
    %c128_i32_42 = arith.constant 128 : i32
    %97 = arith.muli %c0_i32_41, %c128_i32_42 : i32
    %98 = tpu.assume_multiple %97, 128 : i32
    %99 = arith.index_cast %98 : i32 to index
    %c128_43 = arith.constant 128 : index
    %100 = vector.load %arg8[%99, %c128_43] : memref<128x768xbf16, #tpu.memory_space<vmem>>, vector<128x64xbf16>
    %101 = arith.index_cast %98 : i32 to index
    %c512 = arith.constant 512 : index
    %102 = vector.load %arg8[%101, %c512] : memref<128x768xbf16, #tpu.memory_space<vmem>>, vector<128x64xbf16>
    %cst_44 = arith.constant dense<0.000000e+00> : vector<128x128xf32>
    %103 = tpu.matmul %93, %100, %cst_44 {dimension_numbers = #tpu.dot_dimension_numbers<[1], [1], [0], [0], [0, 0, 1, 0], [], []>} : vector<128x64xbf16>, vector<128x64xbf16>, vector<128x128xf32> -> vector<128x128xf32>
    %104 = vector.broadcast %98 : i32 to vector<128x128xi32>
    %105 = arith.addi %16, %104 : vector<128x128xi32>
    %106 = arith.cmpi sle, %105, %15 : vector<128x128xi32>
    %107 = vector.broadcast %cst_40 : f32 to vector<128x128xf32>
    %108 = arith.select %106, %103, %107 : vector<128x128xi1>, vector<128x128xf32>
    %cst_45 = arith.constant dense<0xFF800000> : vector<128xf32>
    %109 = vector.multi_reduction <maximumf>, %108, %cst_45 [1] : vector<128x128xf32> to vector<128xf32>
    %110 = vector.shape_cast %109 : vector<128xf32> to vector<128x1xf32>
    %111 = arith.maximumf %94, %110 : vector<128x1xf32>
    %112 = arith.subf %94, %111 : vector<128x1xf32>
    %113 = math.exp %112 : vector<128x1xf32>
    %114 = vector.broadcast %111 : vector<128x1xf32> to vector<128x128xf32>
    %115 = arith.subf %108, %114 : vector<128x128xf32>
    %116 = math.exp %115 : vector<128x128xf32>
    %117 = arith.mulf %113, %95 : vector<128x1xf32>
    %cst_46 = arith.constant dense<0.000000e+00> : vector<128xf32>
    %118 = vector.multi_reduction <add>, %116, %cst_46 [1] : vector<128x128xf32> to vector<128xf32>
    %119 = vector.shape_cast %118 : vector<128xf32> to vector<128x1xf32>
    %120 = arith.addf %117, %119 : vector<128x1xf32>
    %121 = vector.broadcast %113 : vector<128x1xf32> to vector<128x64xf32>
    %122 = arith.mulf %121, %96 : vector<128x64xf32>
    %123 = arith.truncf %116 : vector<128x128xf32> to vector<128x128xbf16>
    %cst_47 = arith.constant dense<0.000000e+00> : vector<128x64xf32>
    %124 = tpu.matmul %123, %102, %cst_47 {dimension_numbers = #tpu.dot_dimension_numbers<[1], [0], [0], [1], [0, 0, 1, 1], [], []>} : vector<128x128xbf16>, vector<128x64xbf16>, vector<128x64xf32> -> vector<128x64xf32>
    %125 = arith.addf %122, %124 : vector<128x64xf32>
    %c1_i32_48 = arith.constant 1 : i32
    %126 = tpu.reciprocal %120 {approx = true} : vector<128x1xf32> -> vector<128x1xf32>
    %127 = vector.broadcast %126 : vector<128x1xf32> to vector<128x64xf32>
    %128 = arith.mulf %125, %127 : vector<128x64xf32>
    %129 = arith.truncf %128 : vector<128x64xf32> to vector<128x64xbf16>
    %c0_49 = arith.constant 0 : index
    %c128_50 = arith.constant 128 : index
    %130 = vector.load %arg10[%c0_49, %c128_50] : memref<128x384xbf16, #tpu.memory_space<vmem>>, vector<128x64xbf16>
    tpu.vector_store %arg10[%c0_49, %c128_50], %129 {strides = array<i32>} : memref<128x384xbf16, #tpu.memory_space<vmem>>, vector<128x64xbf16>,
    %c0_51 = arith.constant 0 : index
    %c192 = arith.constant 192 : index
    %131 = vector.load %arg9[%c0_51, %c192] : memref<128x384xbf16, #tpu.memory_space<vmem>>, vector<128x64xbf16>
    %cst_52 = arith.constant -1.000000e+30 : f32
    %132 = vector.broadcast %cst_52 : f32 to vector<128x1xf32>
    %cst_53 = arith.constant 0.000000e+00 : f32
    %133 = vector.broadcast %cst_53 : f32 to vector<128x1xf32>
    %cst_54 = arith.constant 0.000000e+00 : f32
    %134 = vector.broadcast %cst_54 : f32 to vector<128x64xf32>
    %cst_55 = arith.constant -1.000000e+30 : f32
    %c0_i32_56 = arith.constant 0 : i32
    %c128_i32_57 = arith.constant 128 : i32
    %135 = arith.muli %c0_i32_56, %c128_i32_57 : i32
    %136 = tpu.assume_multiple %135, 128 : i32
    %137 = arith.index_cast %136 : i32 to index
    %c192_58 = arith.constant 192 : index
    %138 = vector.load %arg8[%137, %c192_58] : memref<128x768xbf16, #tpu.memory_space<vmem>>, vector<128x64xbf16>
    %139 = arith.index_cast %136 : i32 to index
    %c576 = arith.constant 576 : index
    %140 = vector.load %arg8[%139, %c576] : memref<128x768xbf16, #tpu.memory_space<vmem>>, vector<128x64xbf16>
    %cst_59 = arith.constant dense<0.000000e+00> : vector<128x128xf32>
    %141 = tpu.matmul %131, %138, %cst_59 {dimension_numbers = #tpu.dot_dimension_numbers<[1], [1], [0], [0], [0, 0, 1, 0], [], []>} : vector<128x64xbf16>, vector<128x64xbf16>, vector<128x128xf32> -> vector<128x128xf32>
    %142 = vector.broadcast %136 : i32 to vector<128x128xi32>
    %143 = arith.addi %16, %142 : vector<128x128xi32>
    %144 = arith.cmpi sle, %143, %15 : vector<128x128xi32>
    %145 = vector.broadcast %cst_55 : f32 to vector<128x128xf32>
    %146 = arith.select %144, %141, %145 : vector<128x128xi1>, vector<128x128xf32>
    %cst_60 = arith.constant dense<0xFF800000> : vector<128xf32>
    %147 = vector.multi_reduction <maximumf>, %146, %cst_60 [1] : vector<128x128xf32> to vector<128xf32>
    %148 = vector.shape_cast %147 : vector<128xf32> to vector<128x1xf32>
    %149 = arith.maximumf %132, %148 : vector<128x1xf32>
    %150 = arith.subf %132, %149 : vector<128x1xf32>
    %151 = math.exp %150 : vector<128x1xf32>
    %152 = vector.broadcast %149 : vector<128x1xf32> to vector<128x128xf32>
    %153 = arith.subf %146, %152 : vector<128x128xf32>
    %154 = math.exp %153 : vector<128x128xf32>
    %155 = arith.mulf %151, %133 : vector<128x1xf32>
    %cst_61 = arith.constant dense<0.000000e+00> : vector<128xf32>
    %156 = vector.multi_reduction <add>, %154, %cst_61 [1] : vector<128x128xf32> to vector<128xf32>
    %157 = vector.shape_cast %156 : vector<128xf32> to vector<128x1xf32>
    %158 = arith.addf %155, %157 : vector<128x1xf32>
    %159 = vector.broadcast %151 : vector<128x1xf32> to vector<128x64xf32>
    %160 = arith.mulf %159, %134 : vector<128x64xf32>
    %161 = arith.truncf %154 : vector<128x128xf32> to vector<128x128xbf16>
    %cst_62 = arith.constant dense<0.000000e+00> : vector<128x64xf32>
    %162 = tpu.matmul %161, %140, %cst_62 {dimension_numbers = #tpu.dot_dimension_numbers<[1], [0], [0], [1], [0, 0, 1, 1], [], []>} : vector<128x128xbf16>, vector<128x64xbf16>, vector<128x64xf32> -> vector<128x64xf32>
    %163 = arith.addf %160, %162 : vector<128x64xf32>
    %c1_i32_63 = arith.constant 1 : i32
    %164 = tpu.reciprocal %158 {approx = true} : vector<128x1xf32> -> vector<128x1xf32>
    %165 = vector.broadcast %164 : vector<128x1xf32> to vector<128x64xf32>
    %166 = arith.mulf %163, %165 : vector<128x64xf32>
    %167 = arith.truncf %166 : vector<128x64xf32> to vector<128x64xbf16>
    %c0_64 = arith.constant 0 : index
    %c192_65 = arith.constant 192 : index
    %168 = vector.load %arg10[%c0_64, %c192_65] : memref<128x384xbf16, #tpu.memory_space<vmem>>, vector<128x64xbf16>
    tpu.vector_store %arg10[%c0_64, %c192_65], %167 {strides = array<i32>} : memref<128x384xbf16, #tpu.memory_space<vmem>>, vector<128x64xbf16>,
    %c0_66 = arith.constant 0 : index
    %c256 = arith.constant 256 : index
    %169 = vector.load %arg9[%c0_66, %c256] : memref<128x384xbf16, #tpu.memory_space<vmem>>, vector<128x64xbf16>
    %cst_67 = arith.constant -1.000000e+30 : f32
    %170 = vector.broadcast %cst_67 : f32 to vector<128x1xf32>
    %cst_68 = arith.constant 0.000000e+00 : f32
    %171 = vector.broadcast %cst_68 : f32 to vector<128x1xf32>
    %cst_69 = arith.constant 0.000000e+00 : f32
    %172 = vector.broadcast %cst_69 : f32 to vector<128x64xf32>
    %cst_70 = arith.constant -1.000000e+30 : f32
    %c0_i32_71 = arith.constant 0 : i32
    %c128_i32_72 = arith.constant 128 : i32
    %173 = arith.muli %c0_i32_71, %c128_i32_72 : i32
    %174 = tpu.assume_multiple %173, 128 : i32
    %175 = arith.index_cast %174 : i32 to index
    %c256_73 = arith.constant 256 : index
    %176 = vector.load %arg8[%175, %c256_73] : memref<128x768xbf16, #tpu.memory_space<vmem>>, vector<128x64xbf16>
    %177 = arith.index_cast %174 : i32 to index
    %c640 = arith.constant 640 : index
    %178 = vector.load %arg8[%177, %c640] : memref<128x768xbf16, #tpu.memory_space<vmem>>, vector<128x64xbf16>
    %cst_74 = arith.constant dense<0.000000e+00> : vector<128x128xf32>
    %179 = tpu.matmul %169, %176, %cst_74 {dimension_numbers = #tpu.dot_dimension_numbers<[1], [1], [0], [0], [0, 0, 1, 0], [], []>} : vector<128x64xbf16>, vector<128x64xbf16>, vector<128x128xf32> -> vector<128x128xf32>
    %180 = vector.broadcast %174 : i32 to vector<128x128xi32>
    %181 = arith.addi %16, %180 : vector<128x128xi32>
    %182 = arith.cmpi sle, %181, %15 : vector<128x128xi32>
    %183 = vector.broadcast %cst_70 : f32 to vector<128x128xf32>
    %184 = arith.select %182, %179, %183 : vector<128x128xi1>, vector<128x128xf32>
    %cst_75 = arith.constant dense<0xFF800000> : vector<128xf32>
    %185 = vector.multi_reduction <maximumf>, %184, %cst_75 [1] : vector<128x128xf32> to vector<128xf32>
    %186 = vector.shape_cast %185 : vector<128xf32> to vector<128x1xf32>
    %187 = arith.maximumf %170, %186 : vector<128x1xf32>
    %188 = arith.subf %170, %187 : vector<128x1xf32>
    %189 = math.exp %188 : vector<128x1xf32>
    %190 = vector.broadcast %187 : vector<128x1xf32> to vector<128x128xf32>
    %191 = arith.subf %184, %190 : vector<128x128xf32>
    %192 = math.exp %191 : vector<128x128xf32>
    %193 = arith.mulf %189, %171 : vector<128x1xf32>
    %cst_76 = arith.constant dense<0.000000e+00> : vector<128xf32>
    %194 = vector.multi_reduction <add>, %192, %cst_76 [1] : vector<128x128xf32> to vector<128xf32>
    %195 = vector.shape_cast %194 : vector<128xf32> to vector<128x1xf32>
    %196 = arith.addf %193, %195 : vector<128x1xf32>
    %197 = vector.broadcast %189 : vector<128x1xf32> to vector<128x64xf32>
    %198 = arith.mulf %197, %172 : vector<128x64xf32>
    %199 = arith.truncf %192 : vector<128x128xf32> to vector<128x128xbf16>
    %cst_77 = arith.constant dense<0.000000e+00> : vector<128x64xf32>
    %200 = tpu.matmul %199, %178, %cst_77 {dimension_numbers = #tpu.dot_dimension_numbers<[1], [0], [0], [1], [0, 0, 1, 1], [], []>} : vector<128x128xbf16>, vector<128x64xbf16>, vector<128x64xf32> -> vector<128x64xf32>
    %201 = arith.addf %198, %200 : vector<128x64xf32>
    %c1_i32_78 = arith.constant 1 : i32
    %202 = tpu.reciprocal %196 {approx = true} : vector<128x1xf32> -> vector<128x1xf32>
    %203 = vector.broadcast %202 : vector<128x1xf32> to vector<128x64xf32>
    %204 = arith.mulf %201, %203 : vector<128x64xf32>
    %205 = arith.truncf %204 : vector<128x64xf32> to vector<128x64xbf16>
    %c0_79 = arith.constant 0 : index
    %c256_80 = arith.constant 256 : index
    %206 = vector.load %arg10[%c0_79, %c256_80] : memref<128x384xbf16, #tpu.memory_space<vmem>>, vector<128x64xbf16>
    tpu.vector_store %arg10[%c0_79, %c256_80], %205 {strides = array<i32>} : memref<128x384xbf16, #tpu.memory_space<vmem>>, vector<128x64xbf16>,
    %c0_81 = arith.constant 0 : index
    %c320 = arith.constant 320 : index
    %207 = vector.load %arg9[%c0_81, %c320] : memref<128x384xbf16, #tpu.memory_space<vmem>>, vector<128x64xbf16>
    %cst_82 = arith.constant -1.000000e+30 : f32
    %208 = vector.broadcast %cst_82 : f32 to vector<128x1xf32>
    %cst_83 = arith.constant 0.000000e+00 : f32
    %209 = vector.broadcast %cst_83 : f32 to vector<128x1xf32>
    %cst_84 = arith.constant 0.000000e+00 : f32
    %210 = vector.broadcast %cst_84 : f32 to vector<128x64xf32>
    %cst_85 = arith.constant -1.000000e+30 : f32
    %c0_i32_86 = arith.constant 0 : i32
    %c128_i32_87 = arith.constant 128 : i32
    %211 = arith.muli %c0_i32_86, %c128_i32_87 : i32
    %212 = tpu.assume_multiple %211, 128 : i32
    %213 = arith.index_cast %212 : i32 to index
    %c320_88 = arith.constant 320 : index
    %214 = vector.load %arg8[%213, %c320_88] : memref<128x768xbf16, #tpu.memory_space<vmem>>, vector<128x64xbf16>
    %215 = arith.index_cast %212 : i32 to index
    %c704 = arith.constant 704 : index
    %216 = vector.load %arg8[%215, %c704] : memref<128x768xbf16, #tpu.memory_space<vmem>>, vector<128x64xbf16>
    %cst_89 = arith.constant dense<0.000000e+00> : vector<128x128xf32>
    %217 = tpu.matmul %207, %214, %cst_89 {dimension_numbers = #tpu.dot_dimension_numbers<[1], [1], [0], [0], [0, 0, 1, 0], [], []>} : vector<128x64xbf16>, vector<128x64xbf16>, vector<128x128xf32> -> vector<128x128xf32>
    %218 = vector.broadcast %212 : i32 to vector<128x128xi32>
    %219 = arith.addi %16, %218 : vector<128x128xi32>
    %220 = arith.cmpi sle, %219, %15 : vector<128x128xi32>
    %221 = vector.broadcast %cst_85 : f32 to vector<128x128xf32>
    %222 = arith.select %220, %217, %221 : vector<128x128xi1>, vector<128x128xf32>
    %cst_90 = arith.constant dense<0xFF800000> : vector<128xf32>
    %223 = vector.multi_reduction <maximumf>, %222, %cst_90 [1] : vector<128x128xf32> to vector<128xf32>
    %224 = vector.shape_cast %223 : vector<128xf32> to vector<128x1xf32>
    %225 = arith.maximumf %208, %224 : vector<128x1xf32>
    %226 = arith.subf %208, %225 : vector<128x1xf32>
    %227 = math.exp %226 : vector<128x1xf32>
    %228 = vector.broadcast %225 : vector<128x1xf32> to vector<128x128xf32>
    %229 = arith.subf %222, %228 : vector<128x128xf32>
    %230 = math.exp %229 : vector<128x128xf32>
    %231 = arith.mulf %227, %209 : vector<128x1xf32>
    %cst_91 = arith.constant dense<0.000000e+00> : vector<128xf32>
    %232 = vector.multi_reduction <add>, %230, %cst_91 [1] : vector<128x128xf32> to vector<128xf32>
    %233 = vector.shape_cast %232 : vector<128xf32> to vector<128x1xf32>
    %234 = arith.addf %231, %233 : vector<128x1xf32>
    %235 = vector.broadcast %227 : vector<128x1xf32> to vector<128x64xf32>
    %236 = arith.mulf %235, %210 : vector<128x64xf32>
    %237 = arith.truncf %230 : vector<128x128xf32> to vector<128x128xbf16>
    %cst_92 = arith.constant dense<0.000000e+00> : vector<128x64xf32>
    %238 = tpu.matmul %237, %216, %cst_92 {dimension_numbers = #tpu.dot_dimension_numbers<[1], [0], [0], [1], [0, 0, 1, 1], [], []>} : vector<128x128xbf16>, vector<128x64xbf16>, vector<128x64xf32> -> vector<128x64xf32>
    %239 = arith.addf %236, %238 : vector<128x64xf32>
    %c1_i32_93 = arith.constant 1 : i32
    %240 = tpu.reciprocal %234 {approx = true} : vector<128x1xf32> -> vector<128x1xf32>
    %241 = vector.broadcast %240 : vector<128x1xf32> to vector<128x64xf32>
    %242 = arith.mulf %239, %241 : vector<128x64xf32>
    %243 = arith.truncf %242 : vector<128x64xf32> to vector<128x64xbf16>
    %c0_94 = arith.constant 0 : index
    %c320_95 = arith.constant 320 : index
    %244 = vector.load %arg10[%c0_94, %c320_95] : memref<128x384xbf16, #tpu.memory_space<vmem>>, vector<128x64xbf16>
    tpu.vector_store %arg10[%c0_94, %c320_95], %243 {strides = array<i32>} : memref<128x384xbf16, #tpu.memory_space<vmem>>, vector<128x64xbf16>,
    %c0_96 = arith.constant 0 : index
    %c0_97 = arith.constant 0 : index
    %245 = vector.load %arg10[%c0_96, %c0_97] : memref<128x384xbf16, #tpu.memory_space<vmem>>, vector<128x384xbf16>
    %c0_98 = arith.constant 0 : index
    %c0_99 = arith.constant 0 : index
    %246 = vector.load %arg5[%c0_98, %c0_99] : memref<384x384xbf16, #tpu.memory_space<vmem>>, vector<384x384xbf16>
    %cst_100 = arith.constant dense<0.000000e+00> : vector<128x384xf32>
    %247 = tpu.matmul %245, %246, %cst_100 {dimension_numbers = #tpu.dot_dimension_numbers<[1], [0], [0], [1], [0, 0, 1, 1], [], []>} : vector<128x384xbf16>, vector<384x384xbf16>, vector<128x384xf32> -> vector<128x384xf32>
    %c0_101 = arith.constant 0 : index
    %c0_102 = arith.constant 0 : index
    %248 = vector.load %arg6[%c0_101, %c0_102] : memref<1x384xf32, #tpu.memory_space<vmem>>, vector<1x384xf32>
    %249 = vector.broadcast %248 : vector<1x384xf32> to vector<128x384xf32>
    %250 = arith.addf %247, %249 : vector<128x384xf32>
    %c0_103 = arith.constant 0 : index
    %c0_104 = arith.constant 0 : index
    %c0_105 = arith.constant 0 : index
    %251 = vector.load %arg7[%c0_103, %c0_104, %c0_105] : memref<1x128x384xf32, #tpu.memory_space<vmem>>, vector<1x128x384xf32>
    %252 = vector.shape_cast %251 : vector<1x128x384xf32> to vector<128x384xf32>
    %253 = vector.shape_cast %250 : vector<128x384xf32> to vector<1x128x384xf32>
    tpu.vector_store %arg7[%c0_103, %c0_104, %c0_105], %253 {strides = array<i32>} : memref<1x128x384xf32, #tpu.memory_space<vmem>>, vector<1x128x384xf32>,
    return
  }
  func.func @transform_0(%arg0: i32, %arg1: i32) -> (i32, i32, i32) {
    %c0_i32 = arith.constant 0 : i32
    %c0_i32_0 = arith.constant 0 : i32
    %c0_i32_1 = arith.constant 0 : i32
    return %arg0, %c0_i32, %c0_i32_0 : i32, i32, i32
  }
  func.func @transform_1(%arg0: i32, %arg1: i32) -> (i32, i32) {
    %c0_i32 = arith.constant 0 : i32
    %c0_i32_0 = arith.constant 0 : i32
    %c0_i32_1 = arith.constant 0 : i32
    return %c0_i32, %c0_i32_0 : i32, i32
  }
  func.func @transform_2(%arg0: i32, %arg1: i32) -> (i32, i32) {
    %c0_i32 = arith.constant 0 : i32
    %c0_i32_0 = arith.constant 0 : i32
    %c0_i32_1 = arith.constant 0 : i32
    return %c0_i32, %c0_i32_0 : i32, i32
  }
  func.func @transform_3(%arg0: i32, %arg1: i32) -> (i32, i32) {
    %c0_i32 = arith.constant 0 : i32
    %c0_i32_0 = arith.constant 0 : i32
    %c0_i32_1 = arith.constant 0 : i32
    return %c0_i32, %c0_i32_0 : i32, i32
  }
  func.func @transform_4(%arg0: i32, %arg1: i32) -> (i32, i32) {
    %c0_i32 = arith.constant 0 : i32
    %c0_i32_0 = arith.constant 0 : i32
    %c0_i32_1 = arith.constant 0 : i32
    return %c0_i32, %c0_i32_0 : i32, i32
  }
  func.func @transform_5(%arg0: i32, %arg1: i32) -> (i32, i32, i32) {
    %c0_i32 = arith.constant 0 : i32
    %c0_i32_0 = arith.constant 0 : i32
    return %arg0, %arg1, %c0_i32 : i32, i32, i32
  }
}

</mosaic_0001>

<llo_original>
// kernel: tpu_custom_call.1
$region0: #{tpu_custom_call.1}
  #allocation0 [shape = 'u32[]', space=smem, size = 0x4, offset = 0x4, fixed_abs, tag = 'smem constant byte address 0x4 - core index']
  #allocation1 [shape = 'u32[144,128]{1,0:T(1,128)}', space=vmem, size = 0x12000, scoped, tag = 'internal scratch']
  #allocation2 [shape = 'bf16[128,768]{1,0:T(8,128)(2,1)}', space=vmem, size = 0x30000, scoped, tag = 'scratch operand']
  #allocation3 [shape = 'bf16[128,384]{1,0:T(8,128)(2,1)}', space=vmem, size = 0x18000, scoped, tag = 'scratch operand']
  #allocation4 [shape = 'bf16[128,384]{1,0:T(8,128)(2,1)}', space=vmem, size = 0x18000, scoped, tag = 'scratch operand']
  %s0 = inlined_call_operand.hbm [shape: f32[2,128,384], index: 0, kind: input, shape index: {}]
  %s1 = inlined_call_operand.hbm [shape: bf16[384,384], index: 1, kind: input, shape index: {}]
  %s2 = inlined_call_operand.hbm [shape: bf16[384,768], index: 2, kind: input, shape index: {}]
  %s3 = inlined_call_operand.hbm [shape: bf16[384,384], index: 3, kind: input, shape index: {}]
  %s4 = inlined_call_operand.vmem [shape: f32[1,384], index: 4, kind: input, shape index: {}]
  %s5 = inlined_call_operand.hbm [shape: f32[2,128,384], index: 5, kind: output, shape index: {}]
  %s6 = sld [smem:[#allocation0]]
  $region73: #{tpu_custom_call.1} parent=0
    _
  %s8 = ssub.s32 1, %s6
  %s9 = scalar_select 0, %s8, %s6
  $region1: #{tpu_custom_call.1} parent=0
    #allocation5 [shape = 'u8[393216]{0}', space=vmem, size = 0x60000, scoped, tag = 'input window, operand 0']
    #allocation6 [shape = 's32[2]{0}', space=sflag, size = 0x8, scoped, tag = 'scoped memory for tpu_custom_call.1']
    #allocation7 [shape = 's32[2]{0}', space=sflag, size = 0x8, scoped, tag = 'scoped memory for tpu_custom_call.1']
    #allocation8 [shape = 'u8[294912]{0}', space=vmem, size = 0x48000, scoped, tag = 'input window, operand 1, single buffered']
    #allocation9 [shape = 's32[1]{0}', space=sflag, size = 0x4, scoped, tag = 'scoped memory for tpu_custom_call.1']
    #allocation10 [shape = 'u8[589824]{0}', space=vmem, size = 0x90000, scoped, tag = 'input window, operand 2, single buffered']
    #allocation11 [shape = 'u8[294912]{0}', space=vmem, size = 0x48000, scoped, tag = 'input window, operand 3, single buffered']
    #allocation12 [shape = 's32[1]{0}', space=sflag, size = 0x4, scoped, tag = 'scoped memory for tpu_custom_call.1']
    #allocation13 [shape = 'u8[393216]{0}', space=vmem, size = 0x60000, scoped, tag = 'output window, operand 0']
    %10 = vsyncpa [#allocation6], 0
    %s11 = scalar_lea.sflag [#allocation6], 1
    %12 = vsyncpa %s11, 0
    %13 = vsyncpa [#allocation9], 0
    %14 = vsyncpa [#allocation12], 0
    %15 = vsyncpa [#allocation7], 0
    %s16 = scalar_lea.sflag [#allocation7], 1
    %17 = vsyncpa %s16, 0
    loop: start=0, step=1, limit=4
    $region2: #{tpu_custom_call.1} parent=1 // loop_pre_header
      _
    $region3: #{tpu_custom_call.1} parent=1 // loop_header
      %s19 = sphi 0, %s23
      %p20 = scmp.ge.s32.totalorder %s19, 4
      %s26 = sphi 0, %s38
      %s27 = sphi 0, %s34
      %s28 = sphi 0, %s26
      %s29 = sphi 0, %s27
      %s30 = sphi 0, %s28
      %s31 = sphi 0, %s29
      %s41 = sphi 0, %s43
      %s44 = sphi 0, %s41
      %s45 = sphi 0, %s44
      %s61 = sphi 0, %s45
      %s65 = sphi 0, %s65
      %s67 = sphi 0, %s65
      %s68 = sphi 0, %s67
      %s82 = sphi 0, %s68
      %s86 = sphi 0, %s86
      %s88 = sphi 0, %s86
      %s89 = sphi 0, %s88
      %s103 = sphi 0, %s89
      %s107 = sphi 0, %s107
      %s109 = sphi 0, %s107
      %s110 = sphi 0, %s109
      %s124 = sphi 0, %s110
      %s128 = sphi 0, %s128
      %s130 = sphi 0, %s128
      %s131 = sphi 0, %s130
      %s145 = sphi 0, %s131
      %s153 = sphi 0, %s155
      %s156 = sphi 0, %s153
      %s157 = sphi 0, %s156
      %s173 = sphi 0, %s157
    $region4: #{tpu_custom_call.1} parent=1 // loop_header_branch
      %22 = sbr.rel (%p20) target = $region8
    $region5: #{tpu_custom_call.1} parent=1 // loop_body
      %s24 = ssub.s32 %s19, 1
      %s25 = ssub.s32 %s19, 2
      %s32 = sadd.s32 1, %s27
      %p33 = scmp.ge.s32.totalorder %s32, 1
      %s34 = scalar_select %p33, 0, %s32
      %s35 = sadd.s32 1, %s26
      %s36 = scalar_select %p33, %s35, %s26
      %p37 = scmp.ge.s32.totalorder %s36, 2
      %s38 = scalar_select %p37, 0, %s36
      %s39 = ssub.s32 %s26, %s38
      %p40 = scmp.eq.s32.totalorder %s39, 0
      %s42 = sadd.s32 %s41, 1
      %s43 = scalar_select %p40, %s41, %s42
      %p46 = pneg %p40
      %p47 = scmp.eq.s32.totalorder %s19, 1
      %p48 = por %p46, %p47
      %p49 = scmp.ne.s32.totalorder %s41, %s44
      %p50 = scmp.eq.s32.totalorder %s19, 0
      %p51 = por %p49, %p50
      %p52 = scmp.ne.s32.totalorder %s41, %s44
      %p53 = scmp.eq.s32.totalorder %s24, 1
      %p54 = por %p52, %p53
      %p55 = scmp.ne.s32.totalorder %s44, %s45
      %p56 = scmp.eq.s32.totalorder %s24, 0
      %p57 = por %p55, %p56
      %p58 = scmp.ne.s32.totalorder %s44, %s45
      %p59 = scmp.eq.s32.totalorder %s25, 1
      %p60 = por %p58, %p59
      %p62 = scmp.ne.s32.totalorder %s45, %s61
      %p63 = scmp.eq.s32.totalorder %s25, 0
      %p64 = por %p62, %p63
      %s66 = sadd.s32 %s65, 1
      %p69 = scmp.eq.s32.totalorder %s19, 1
      %p70 = scmp.ne.s32.totalorder %s65, %s67
      %p71 = scmp.eq.s32.totalorder %s19, 0
      %p72 = por %p70, %p71
      %p73 = scmp.ne.s32.totalorder %s65, %s67
      %p74 = scmp.eq.s32.totalorder %s24, 1
      %p75 = por %p73, %p74
      %p76 = scmp.ne.s32.totalorder %s67, %s68
      %p77 = scmp.eq.s32.totalorder %s24, 0
      %p78 = por %p76, %p77
      %p79 = scmp.ne.s32.totalorder %s67, %s68
      %p80 = scmp.eq.s32.totalorder %s25, 1
      %p81 = por %p79, %p80
      %p83 = scmp.ne.s32.totalorder %s68, %s82
      %p84 = scmp.eq.s32.totalorder %s25, 0
      %p85 = por %p83, %p84
      %s87 = sadd.s32 %s86, 1
      %p90 = scmp.eq.s32.totalorder %s19, 1
      %p91 = scmp.ne.s32.totalorder %s86, %s88
      %p92 = scmp.eq.s32.totalorder %s19, 0
      %p93 = por %p91, %p92
      %p94 = scmp.ne.s32.totalorder %s86, %s88
      %p95 = scmp.eq.s32.totalorder %s24, 1
      %p96 = por %p94, %p95
      %p97 = scmp.ne.s32.totalorder %s88, %s89
      %p98 = scmp.eq.s32.totalorder %s24, 0
      %p99 = por %p97, %p98
      %p100 = scmp.ne.s32.totalorder %s88, %s89
      %p101 = scmp.eq.s32.totalorder %s25, 1
      %p102 = por %p100, %p101
      %p104 = scmp.ne.s32.totalorder %s89, %s103
      %p105 = scmp.eq.s32.totalorder %s25, 0
      %p106 = por %p104, %p105
      %s108 = sadd.s32 %s107, 1
      %p111 = scmp.eq.s32.totalorder %s19, 1
      %p112 = scmp.ne.s32.totalorder %s107, %s109
      %p113 = scmp.eq.s32.totalorder %s19, 0
      %p114 = por %p112, %p113
      %p115 = scmp.ne.s32.totalorder %s107, %s109
      %p116 = scmp.eq.s32.totalorder %s24, 1
      %p117 = por %p115, %p116
      %p118 = scmp.ne.s32.totalorder %s109, %s110
      %p119 = scmp.eq.s32.totalorder %s24, 0
      %p120 = por %p118, %p119
      %p121 = scmp.ne.s32.totalorder %s109, %s110
      %p122 = scmp.eq.s32.totalorder %s25, 1
      %p123 = por %p121, %p122
      %p125 = scmp.ne.s32.totalorder %s110, %s124
      %p126 = scmp.eq.s32.totalorder %s25, 0
      %p127 = por %p125, %p126
      %s129 = sadd.s32 %s128, 1
      %p132 = scmp.eq.s32.totalorder %s19, 1
      %p133 = scmp.ne.s32.totalorder %s128, %s130
      %p134 = scmp.eq.s32.totalorder %s19, 0
      %p135 = por %p133, %p134
      %p136 = scmp.ne.s32.totalorder %s128, %s130
      %p137 = scmp.eq.s32.totalorder %s24, 1
      %p138 = por %p136, %p137
      %p139 = scmp.ne.s32.totalorder %s130, %s131
      %p140 = scmp.eq.s32.totalorder %s24, 0
      %p141 = por %p139, %p140
      %p142 = scmp.ne.s32.totalorder %s130, %s131
      %p143 = scmp.eq.s32.totalorder %s25, 1
      %p144 = por %p142, %p143
      %p146 = scmp.ne.s32.totalorder %s131, %s145
      %p147 = scmp.eq.s32.totalorder %s25, 0
      %p148 = por %p146, %p147
      %s149 = ssub.s32 %s26, %s38
      %s150 = ssub.s32 %s27, %s34
      %s151 = sor.u32 %s149, %s150
      %p152 = scmp.eq.s32.totalorder %s151, 0
      %s154 = sadd.s32 %s153, 1
      %s155 = scalar_select %p152, %s153, %s154
      %p158 = pneg %p152
      %p159 = scmp.eq.s32.totalorder %s19, 1
      %p160 = por %p158, %p159
      %p161 = scmp.ne.s32.totalorder %s153, %s156
      %p162 = scmp.eq.s32.totalorder %s19, 0
      %p163 = por %p161, %p162
      %p164 = scmp.ne.s32.totalorder %s153, %s156
      %p165 = scmp.eq.s32.totalorder %s24, 1
      %p166 = por %p164, %p165
      %p167 = scmp.ne.s32.totalorder %s156, %s157
      %p168 = scmp.eq.s32.totalorder %s24, 0
      %p169 = por %p167, %p168
      %p170 = scmp.ne.s32.totalorder %s156, %s157
      %p171 = scmp.eq.s32.totalorder %s25, 1
      %p172 = por %p170, %p171
      %p174 = scmp.ne.s32.totalorder %s157, %s173
      %p175 = scmp.eq.s32.totalorder %s25, 0
      %p176 = por %p174, %p175
      %p177 = scmp.le.s32.totalorder 1, %s19
      %p178 = scmp.lt.s32.totalorder %s19, 3
      %p179 = pnand %p177, %p178
      %p180 = pneg %p179
      // Predicated region
      $region9: #{tpu_custom_call.1} parent=5 // pred_check
        _
      $region10: #{tpu_custom_call.1} parent=5 // pred_check_branch
        %182 = sbr.rel (%p179) target = $region12
      $region11: #{tpu_custom_call.1} parent=5 // pred_region
        %s183 = ssub.s32 %s19, 1
        // Predicated region
        $region13: #{tpu_custom_call.1} parent=11 // pred_check
          %p184 = pneg %p78
        $region14: #{tpu_custom_call.1} parent=11 // pred_check_branch
          %186 = sbr.rel (%p184) target = $region16
        $region15: #{tpu_custom_call.1} parent=11 // pred_region
          %s188 = ssub.s32 9216, 9216
          %189 = vsyncadd [#allocation9], %s188
          %s190 = sshll.u32 [#allocation8], 4
          %s191 = int_to_ptr.vmem [resolvable:$true] %s190
          %196 = dma.hbm_to_vmem [thread:$0]  %s1, 9216, %s191, [#allocation9], 192, 192, 12
        $region16: #{tpu_custom_call.1} parent=11 // pred_fallthru
          _
        // Predicated region
        $region17: #{tpu_custom_call.1} parent=11 // pred_check
          %p197 = pneg %p99
        $region18: #{tpu_custom_call.1} parent=11 // pred_check_branch
          %199 = sbr.rel (%p197) target = $region20
        $region19: #{tpu_custom_call.1} parent=11 // pred_region
          %s201 = ssub.s32 18432, 18432
          %202 = vsyncadd [#allocation9], %s201
          %s203 = sshll.u32 [#allocation10], 4
          %s204 = int_to_ptr.vmem [resolvable:$true] %s203
          %209 = dma.hbm_to_vmem [thread:$0]  %s2, 18432, %s204, [#allocation9], 384, 384, 24
        $region20: #{tpu_custom_call.1} parent=11 // pred_fallthru
          _
        // Predicated region
        $region21: #{tpu_custom_call.1} parent=11 // pred_check
          %p210 = pneg %p120
        $region22: #{tpu_custom_call.1} parent=11 // pred_check_branch
          %212 = sbr.rel (%p210) target = $region24
        $region23: #{tpu_custom_call.1} parent=11 // pred_region
          %s214 = ssub.s32 9216, 9216
          %215 = vsyncadd [#allocation12], %s214
          %s216 = sshll.u32 [#allocation11], 4
          %s217 = int_to_ptr.vmem [resolvable:$true] %s216
          %222 = dma.hbm_to_vmem [thread:$0]  %s3, 9216, %s217, [#allocation12], 192, 192, 12
        $region24: #{tpu_custom_call.1} parent=11 // pred_fallthru
          _
        // Predicated region
        $region25: #{tpu_custom_call.1} parent=11 // pred_check
          %p223 = pneg %p141
        $region26: #{tpu_custom_call.1} parent=11 // pred_check_branch
          %225 = sbr.rel (%p223) target = $region28
        $region27: #{tpu_custom_call.1} parent=11 // pred_region
          _
        $region28: #{tpu_custom_call.1} parent=11 // pred_fallthru
          _
      $region12: #{tpu_custom_call.1} parent=5 // pred_fallthru
        _
      %p226 = scmp.lt.s32.totalorder %s19, 2
      // Predicated region
      $region29: #{tpu_custom_call.1} parent=5 // pred_check
        %p227 = pneg %p226
      $region30: #{tpu_custom_call.1} parent=5 // pred_check_branch
        %229 = sbr.rel (%p227) target = $region32
      $region31: #{tpu_custom_call.1} parent=5 // pred_region
        // Predicated region
        $region33: #{tpu_custom_call.1} parent=31 // pred_check
          %p230 = pneg %p51
        $region34: #{tpu_custom_call.1} parent=31 // pred_check_branch
          %232 = sbr.rel (%p230) target = $region36
        $region35: #{tpu_custom_call.1} parent=31 // pred_region
          %s233 = sand.u32 %s41, 1
          %s234 = scalar_lea.sflag [#allocation6], %s233
          %s235 = sand.u32 %s41, 1
          %s236 = smul.addr %s235, 384
          %s237 = scalar_lea.vmem [#allocation5], %s236
          %s239 = ssub.s32 6144, 6144
          %240 = vsyncadd %s234, %s239
          %s241 = smul.addr %s26, 48
          %s242 = smul.addr %s241, 128
          %s243 = scalar_lea.hbm %s0, %s242
          %s244 = sshll.u32 %s237, 4
          %s245 = int_to_ptr.vmem [resolvable:$true] %s244
          %250 = dma.hbm_to_vmem [thread:$0]  %s243, 6144, %s245, %s234, 384, 384, 24
        $region36: #{tpu_custom_call.1} parent=31 // pred_fallthru
          _
      $region32: #{tpu_custom_call.1} parent=5 // pred_fallthru
        _
      %p251 = scmp.le.s32.totalorder 1, %s19
      %p252 = scmp.lt.s32.totalorder %s19, 3
      %p253 = pnand %p251, %p252
      %p254 = pneg %p253
      // Predicated region
      $region37: #{tpu_custom_call.1} parent=5 // pred_check
        _
      $region38: #{tpu_custom_call.1} parent=5 // pred_check_branch
        %256 = sbr.rel (%p253) target = $region40
      $region39: #{tpu_custom_call.1} parent=5 // pred_region
        %s257 = ssub.s32 %s19, 1
        %s258 = sand.u32 %s44, 1
        %s259 = scalar_lea.sflag [#allocation6], %s258
        %s260 = sand.u32 %s44, 1
        %s261 = smul.addr %s260, 384
        %s262 = scalar_lea.vmem [#allocation5], %s261
        // Predicated region
        $region41: #{tpu_custom_call.1} parent=39 // pred_check
          %p263 = pneg %p57
        $region42: #{tpu_custom_call.1} parent=39 // pred_check_branch
          %265 = sbr.rel (%p263) target = $region44
        $region43: #{tpu_custom_call.1} parent=39 // pred_region
          %266 = dma.done %s259, 6144
        $region44: #{tpu_custom_call.1} parent=39 // pred_fallthru
          _
        // Predicated region
        $region45: #{tpu_custom_call.1} parent=39 // pred_check
          %p267 = pneg %p78
        $region46: #{tpu_custom_call.1} parent=39 // pred_check_branch
          %269 = sbr.rel (%p267) target = $region48
        $region47: #{tpu_custom_call.1} parent=39 // pred_region
          %270 = dma.done [#allocation9], 9216
        $region48: #{tpu_custom_call.1} parent=39 // pred_fallthru
          _
        // Predicated region
        $region49: #{tpu_custom_call.1} parent=39 // pred_check
          %p271 = pneg %p99
        $region50: #{tpu_custom_call.1} parent=39 // pred_check_branch
          %273 = sbr.rel (%p271) target = $region52
        $region51: #{tpu_custom_call.1} parent=39 // pred_region
          %274 = dma.done [#allocation9], 18432
        $region52: #{tpu_custom_call.1} parent=39 // pred_fallthru
          _
        // Predicated region
        $region53: #{tpu_custom_call.1} parent=39 // pred_check
          %p275 = pneg %p120
        $region54: #{tpu_custom_call.1} parent=39 // pred_check_branch
          %277 = sbr.rel (%p275) target = $region56
        $region55: #{tpu_custom_call.1} parent=39 // pred_region
          %278 = dma.done [#allocation12], 9216
        $region56: #{tpu_custom_call.1} parent=39 // pred_fallthru
          _
        %s279 = sand.u32 %s44, 1
        %s280 = scalar_lea.sflag [#allocation6], %s279
        %s281 = sand.u32 %s44, 1
        %s282 = smul.addr %s281, 384
        %s283 = scalar_lea.vmem [#allocation5], %s282
        %p284 = pneg %p57
        %p285 = pneg %p54
        %p286 = pneg %p78
        %p287 = pneg %p75
        %p288 = pneg %p99
        %p289 = pneg %p96
        %p290 = pneg %p120
        %p291 = pneg %p117
        %p292 = pneg %p141
        %p293 = pneg %p138
        %p294 = pneg %p169
        %p295 = pneg %p166
        %s296 = sand.u32 %s156, 1
        %s297 = scalar_lea.sflag [#allocation7], %s296
        %s298 = sand.u32 %s156, 1
        %s299 = smul.addr %s298, 384
        %s300 = scalar_lea.vmem [#allocation13], %s299
        %s301 = smul.u32 16, %s29
        %p303 = scmp.eq.s32.totalorder %s29, 0
        // Predicated region
        $region57: #{tpu_custom_call.1} parent=39 // pred_check
          %p304 = pneg %p303
        $region58: #{tpu_custom_call.1} parent=39 // pred_check_branch
          %306 = sbr.rel (%p304) target = $region60
        $region59: #{tpu_custom_call.1} parent=39 // pred_region
          %v307 = vld [vmem:[%s262] sm:$0xff]
          %v308 = vld [vmem:[%s262 + $0x8] sm:$0xff]
          %v309 = vld [vmem:[%s262 + $0x10] sm:$0xff]
          %v310 = vld [vmem:[%s262 + $0x18] sm:$0xff]
          %v311 = vld [vmem:[%s262 + $0x20] sm:$0xff]
          %v312 = vld [vmem:[%s262 + $0x28] sm:$0xff]
          %v313 = vld [vmem:[%s262 + $0x30] sm:$0xff]
          %v314 = vld [vmem:[%s262 + $0x38] sm:$0xff]
          %v315 = vld [vmem:[%s262 + $0x40] sm:$0xff]
          %v316 = vld [vmem:[%s262 + $0x48] sm:$0xff]
          %v317 = vld [vmem:[%s262 + $0x50] sm:$0xff]
          %v318 = vld [vmem:[%s262 + $0x58] sm:$0xff]
          %v319 = vld [vmem:[%s262 + $0x60] sm:$0xff]
          %v320 = vld [vmem:[%s262 + $0x68] sm:$0xff]
          %v321 = vld [vmem:[%s262 + $0x70] sm:$0xff]
          %v322 = vld [vmem:[%s262 + $0x78] sm:$0xff]
          %v323 = vld [vmem:[%s262 + $0x80] sm:$0xff]
          %v324 = vld [vmem:[%s262 + $0x88] sm:$0xff]
          %v325 = vld [vmem:[%s262 + $0x90] sm:$0xff]
          %v326 = vld [vmem:[%s262 + $0x98] sm:$0xff]
          %v327 = vld [vmem:[%s262 + $0xa0] sm:$0xff]
          %v328 = vld [vmem:[%s262 + $0xa8] sm:$0xff]
          %v329 = vld [vmem:[%s262 + $0xb0] sm:$0xff]
          %v330 = vld [vmem:[%s262 + $0xb8] sm:$0xff]
          %v331 = vld [vmem:[%s262 + $0xc0] sm:$0xff]
          %v332 = vld [vmem:[%s262 + $0xc8] sm:$0xff]
          %v333 = vld [vmem:[%s262 + $0xd0] sm:$0xff]
          %v334 = vld [vmem:[%s262 + $0xd8] sm:$0xff]
          %v335 = vld [vmem:[%s262 + $0xe0] sm:$0xff]
          %v336 = vld [vmem:[%s262 + $0xe8] sm:$0xff]
          %v337 = vld [vmem:[%s262 + $0xf0] sm:$0xff]
          %v338 = vld [vmem:[%s262 + $0xf8] sm:$0xff]
          %v339 = vld [vmem:[%s262 + $0x100] sm:$0xff]
          %v340 = vld [vmem:[%s262 + $0x108] sm:$0xff]
          %v341 = vld [vmem:[%s262 + $0x110] sm:$0xff]
          %v342 = vld [vmem:[%s262 + $0x118] sm:$0xff]
          %v343 = vld [vmem:[%s262 + $0x120] sm:$0xff]
          %v344 = vld [vmem:[%s262 + $0x128] sm:$0xff]
          %v345 = vld [vmem:[%s262 + $0x130] sm:$0xff]
          %v346 = vld [vmem:[%s262 + $0x138] sm:$0xff]
          %v347 = vld [vmem:[%s262 + $0x140] sm:$0xff]
          %v348 = vld [vmem:[%s262 + $0x148] sm:$0xff]
          %v349 = vld [vmem:[%s262 + $0x150] sm:$0xff]
          %v350 = vld [vmem:[%s262 + $0x158] sm:$0xff]
          %v351 = vld [vmem:[%s262 + $0x160] sm:$0xff]
          %v352 = vld [vmem:[%s262 + $0x168] sm:$0xff]
          %v353 = vld [vmem:[%s262 + $0x170] sm:$0xff]
          %v354 = vld [vmem:[%s262 + $0x178] sm:$0xff]
          %v355 = vpack.c.bf16 %v310, %v307
          %v356 = vpack.c.bf16 %v311, %v308
          %v357 = vpack.c.bf16 %v312, %v309
          %v358 = vpack.c.bf16 %v316, %v313
          %v359 = vpack.c.bf16 %v317, %v314
          %v360 = vpack.c.bf16 %v318, %v315
          %v361 = vpack.c.bf16 %v322, %v319
          %v362 = vpack.c.bf16 %v323, %v320
          %v363 = vpack.c.bf16 %v324, %v321
          %v364 = vpack.c.bf16 %v328, %v325
          %v365 = vpack.c.bf16 %v329, %v326
          %v366 = vpack.c.bf16 %v330, %v327
          %v367 = vpack.c.bf16 %v334, %v331
          %v368 = vpack.c.bf16 %v335, %v332
          %v369 = vpack.c.bf16 %v336, %v333
          %v370 = vpack.c.bf16 %v340, %v337
          %v371 = vpack.c.bf16 %v341, %v338
          %v372 = vpack.c.bf16 %v342, %v339
          %v373 = vpack.c.bf16 %v346, %v343
          %v374 = vpack.c.bf16 %v347, %v344
          %v375 = vpack.c.bf16 %v348, %v345
          %v376 = vpack.c.bf16 %v352, %v349
          %v377 = vpack.c.bf16 %v353, %v350
          %v378 = vpack.c.bf16 %v354, %v351
          %v379 = vld [vmem:[#allocation10] sm:$0xff]
          %v380 = vld [vmem:[#allocation10 + $0x8] sm:$0xff]
          %v381 = vld [vmem:[#allocation10 + $0x10] sm:$0xff]
          %v382 = vld [vmem:[#allocation10 + $0x18] sm:$0xff]
          %v383 = vld [vmem:[#allocation10 + $0x20] sm:$0xff]
          %v384 = vld [vmem:[#allocation10 + $0x28] sm:$0xff]
          %v385 = vld [vmem:[#allocation10 + $0x30] sm:$0xff]
          %v386 = vld [vmem:[#allocation10 + $0x38] sm:$0xff]
          %v387 = vld [vmem:[#allocation10 + $0x40] sm:$0xff]
          %v388 = vld [vmem:[#allocation10 + $0x48] sm:$0xff]
          %v389 = vld [vmem:[#allocation10 + $0x50] sm:$0xff]
          %v390 = vld [vmem:[#allocation10 + $0x58] sm:$0xff]
          %v391 = vld [vmem:[#allocation10 + $0x60] sm:$0xff]
          %v392 = vld [vmem:[#allocation10 + $0x68] sm:$0xff]
          %v393 = vld [vmem:[#allocation10 + $0x70] sm:$0xff]
          %v394 = vld [vmem:[#allocation10 + $0x78] sm:$0xff]
          %v395 = vld [vmem:[#allocation10 + $0x80] sm:$0xff]
          %v396 = vld [vmem:[#allocation10 + $0x88] sm:$0xff]
          %v397 = vld [vmem:[#allocation10 + $0x90] sm:$0xff]
          %v398 = vld [vmem:[#allocation10 + $0x98] sm:$0xff]
          %v399 = vld [vmem:[#allocation10 + $0xa0] sm:$0xff]
          %v400 = vld [vmem:[#allocation10 + $0xa8] sm:$0xff]
          %v401 = vld [vmem:[#allocation10 + $0xb0] sm:$0xff]
          %v402 = vld [vmem:[#allocation10 + $0xb8] sm:$0xff]
          %v403 = vld [vmem:[#allocation10 + $0xc0] sm:$0xff]
          %v404 = vld [vmem:[#allocation10 + $0xc8] sm:$0xff]
          %v405 = vld [vmem:[#allocation10 + $0xd0] sm:$0xff]
          %v406 = vld [vmem:[#allocation10 + $0xd8] sm:$0xff]
          %v407 = vld [vmem:[#allocation10 + $0xe0] sm:$0xff]
          %v408 = vld [vmem:[#allocation10 + $0xe8] sm:$0xff]
          %v409 = vld [vmem:[#allocation10 + $0xf0] sm:$0xff]
          %v410 = vld [vmem:[#allocation10 + $0xf8] sm:$0xff]
          %v411 = vld [vmem:[#allocation10 + $0x100] sm:$0xff]
          %v412 = vld [vmem:[#allocation10 + $0x108] sm:$0xff]
          %v413 = vld [vmem:[#allocation10 + $0x110] sm:$0xff]
          %v414 = vld [vmem:[#allocation10 + $0x118] sm:$0xff]
          %v415 = vld [vmem:[#allocation10 + $0x120] sm:$0xff]
          %v416 = vld [vmem:[#allocation10 + $0x128] sm:$0xff]
          %v417 = vld [vmem:[#allocation10 + $0x130] sm:$0xff]
          %v418 = vld [vmem:[#allocation10 + $0x138] sm:$0xff]
          %v419 = vld [vmem:[#allocation10 + $0x140] sm:$0xff]
          %v420 = vld [vmem:[#allocation10 + $0x148] sm:$0xff]
          %v421 = vld [vmem:[#allocation10 + $0x150] sm:$0xff]
          %v422 = vld [vmem:[#allocation10 + $0x158] sm:$0xff]
          %v423 = vld [vmem:[#allocation10 + $0x160] sm:$0xff]
          %v424 = vld [vmem:[#allocation10 + $0x168] sm:$0xff]
          %v425 = vld [vmem:[#allocation10 + $0x170] sm:$0xff]
          %v426 = vld [vmem:[#allocation10 + $0x178] sm:$0xff]
          %v427 = vld [vmem:[#allocation10 + $0x180] sm:$0xff]
          %v428 = vld [vmem:[#allocation10 + $0x188] sm:$0xff]
          %v429 = vld [vmem:[#allocation10 + $0x190] sm:$0xff]
          %v430 = vld [vmem:[#allocation10 + $0x198] sm:$0xff]
          %v431 = vld [vmem:[#allocation10 + $0x1a0] sm:$0xff]
          %v432 = vld [vmem:[#allocation10 + $0x1a8] sm:$0xff]
          %v433 = vld [vmem:[#allocation10 + $0x1b0] sm:$0xff]
          %v434 = vld [vmem:[#allocation10 + $0x1b8] sm:$0xff]
          %v435 = vld [vmem:[#allocation10 + $0x1c0] sm:$0xff]
          %v436 = vld [vmem:[#allocation10 + $0x1c8] sm:$0xff]
          %v437 = vld [vmem:[#allocation10 + $0x1d0] sm:$0xff]
          %v438 = vld [vmem:[#allocation10 + $0x1d8] sm:$0xff]
          %v439 = vld [vmem:[#allocation10 + $0x1e0] sm:$0xff]
          %v440 = vld [vmem:[#allocation10 + $0x1e8] sm:$0xff]
          %v441 = vld [vmem:[#allocation10 + $0x1f0] sm:$0xff]
          %v442 = vld [vmem:[#allocation10 + $0x1f8] sm:$0xff]
          %v443 = vld [vmem:[#allocation10 + $0x200] sm:$0xff]
          %v444 = vld [vmem:[#allocation10 + $0x208] sm:$0xff]
          %v445 = vld [vmem:[#allocation10 + $0x210] sm:$0xff]
          %v446 = vld [vmem:[#allocation10 + $0x218] sm:$0xff]
          %v447 = vld [vmem:[#allocation10 + $0x220] sm:$0xff]
          %v448 = vld [vmem:[#allocation10 + $0x228] sm:$0xff]
          %v449 = vld [vmem:[#allocation10 + $0x230] sm:$0xff]
          %v450 = vld [vmem:[#allocation10 + $0x238] sm:$0xff]
          %v451 = vld [vmem:[#allocation10 + $0x240] sm:$0xff]
          %v452 = vld [vmem:[#allocation10 + $0x248] sm:$0xff]
          %v453 = vld [vmem:[#allocation10 + $0x250] sm:$0xff]
          %v454 = vld [vmem:[#allocation10 + $0x258] sm:$0xff]
          %v455 = vld [vmem:[#allocation10 + $0x260] sm:$0xff]
          %v456 = vld [vmem:[#allocation10 + $0x268] sm:$0xff]
          %v457 = vld [vmem:[#allocation10 + $0x270] sm:$0xff]
          %v458 = vld [vmem:[#allocation10 + $0x278] sm:$0xff]
          %v459 = vld [vmem:[#allocation10 + $0x280] sm:$0xff]
          %v460 = vld [vmem:[#allocation10 + $0x288] sm:$0xff]
          %v461 = vld [vmem:[#allocation10 + $0x290] sm:$0xff]
          %v462 = vld [vmem:[#allocation10 + $0x298] sm:$0xff]
          %v463 = vld [vmem:[#allocation10 + $0x2a0] sm:$0xff]
          %v464 = vld [vmem:[#allocation10 + $0x2a8] sm:$0xff]
          %v465 = vld [vmem:[#allocation10 + $0x2b0] sm:$0xff]
          %v466 = vld [vmem:[#allocation10 + $0x2b8] sm:$0xff]
          %v467 = vld [vmem:[#allocation10 + $0x2c0] sm:$0xff]
          %v468 = vld [vmem:[#allocation10 + $0x2c8] sm:$0xff]
          %v469 = vld [vmem:[#allocation10 + $0x2d0] sm:$0xff]
          %v470 = vld [vmem:[#allocation10 + $0x2d8] sm:$0xff]
          %v471 = vld [vmem:[#allocation10 + $0x2e0] sm:$0xff]
          %v472 = vld [vmem:[#allocation10 + $0x2e8] sm:$0xff]
          %v473 = vld [vmem:[#allocation10 + $0x2f0] sm:$0xff]
          %v474 = vld [vmem:[#allocation10 + $0x2f8] sm:$0xff]
          %v475 = vld [vmem:[#allocation10 + $0x300] sm:$0xff]
          %v476 = vld [vmem:[#allocation10 + $0x308] sm:$0xff]
          %v477 = vld [vmem:[#allocation10 + $0x310] sm:$0xff]
          %v478 = vld [vmem:[#allocation10 + $0x318] sm:$0xff]
          %v479 = vld [vmem:[#allocation10 + $0x320] sm:$0xff]
          %v480 = vld [vmem:[#allocation10 + $0x328] sm:$0xff]
          %v481 = vld [vmem:[#allocation10 + $0x330] sm:$0xff]
          %v482 = vld [vmem:[#allocation10 + $0x338] sm:$0xff]
          %v483 = vld [vmem:[#allocation10 + $0x340] sm:$0xff]
          %v484 = vld [vmem:[#allocation10 + $0x348] sm:$0xff]
          %v485 = vld [vmem:[#allocation10 + $0x350] sm:$0xff]
          %v486 = vld [vmem:[#allocation10 + $0x358] sm:$0xff]
          %v487 = vld [vmem:[#allocation10 + $0x360] sm:$0xff]
          %v488 = vld [vmem:[#allocation10 + $0x368] sm:$0xff]
          %v489 = vld [vmem:[#allocation10 + $0x370] sm:$0xff]
          %v490 = vld [vmem:[#allocation10 + $0x378] sm:$0xff]
          %v491 = vld [vmem:[#allocation10 + $0x380] sm:$0xff]
          %v492 = vld [vmem:[#allocation10 + $0x388] sm:$0xff]
          %v493 = vld [vmem:[#allocation10 + $0x390] sm:$0xff]
          %v494 = vld [vmem:[#allocation10 + $0x398] sm:$0xff]
          %v495 = vld [vmem:[#allocation10 + $0x3a0] sm:$0xff]
          %v496 = vld [vmem:[#allocation10 + $0x3a8] sm:$0xff]
          %v497 = vld [vmem:[#allocation10 + $0x3b0] sm:$0xff]
          %v498 = vld [vmem:[#allocation10 + $0x3b8] sm:$0xff]
          %v499 = vld [vmem:[#allocation10 + $0x3c0] sm:$0xff]
          %v500 = vld [vmem:[#allocation10 + $0x3c8] sm:$0xff]
          %v501 = vld [vmem:[#allocation10 + $0x3d0] sm:$0xff]
          %v502 = vld [vmem:[#allocation10 + $0x3d8] sm:$0xff]
          %v503 = vld [vmem:[#allocation10 + $0x3e0] sm:$0xff]
          %v504 = vld [vmem:[#allocation10 + $0x3e8] sm:$0xff]
          %v505 = vld [vmem:[#allocation10 + $0x3f0] sm:$0xff]
          %v506 = vld [vmem:[#allocation10 + $0x3f8] sm:$0xff]
          %v507 = vld [vmem:[#allocation10 + $0x400] sm:$0xff]
          %v508 = vld [vmem:[#allocation10 + $0x408] sm:$0xff]
          %v509 = vld [vmem:[#allocation10 + $0x410] sm:$0xff]
          %v510 = vld [vmem:[#allocation10 + $0x418] sm:$0xff]
          %v511 = vld [vmem:[#allocation10 + $0x420] sm:$0xff]
          %v512 = vld [vmem:[#allocation10 + $0x428] sm:$0xff]
          %v513 = vld [vmem:[#allocation10 + $0x430] sm:$0xff]
          %v514 = vld [vmem:[#allocation10 + $0x438] sm:$0xff]
          %v515 = vld [vmem:[#allocation10 + $0x440] sm:$0xff]
          %v516 = vld [vmem:[#allocation10 + $0x448] sm:$0xff]
          %v517 = vld [vmem:[#allocation10 + $0x450] sm:$0xff]
          %v518 = vld [vmem:[#allocation10 + $0x458] sm:$0xff]
          %v519 = vld [vmem:[#allocation10 + $0x460] sm:$0xff]
          %v520 = vld [vmem:[#allocation10 + $0x468] sm:$0xff]
          %v521 = vld [vmem:[#allocation10 + $0x470] sm:$0xff]
          %v522 = vld [vmem:[#allocation10 + $0x478] sm:$0xff]
          %v667 = vunpack.c.l.b16 %v379
          %v668 = vunpack.c.h.b16 %v379
          %v669 = vunpack.c.l.b16 %v380
          %v670 = vunpack.c.h.b16 %v380
          %v671 = vunpack.c.l.b16 %v381
          %v672 = vunpack.c.h.b16 %v381
          %v673 = vunpack.c.l.b16 %v382
          %v674 = vunpack.c.h.b16 %v382
          %v675 = vunpack.c.l.b16 %v383
          %v676 = vunpack.c.h.b16 %v383
          %v677 = vunpack.c.l.b16 %v384
          %v678 = vunpack.c.h.b16 %v384
          %v679 = vunpack.c.l.b16 %v385
          %v680 = vunpack.c.h.b16 %v385
          %v681 = vunpack.c.l.b16 %v386
          %v682 = vunpack.c.h.b16 %v386
          %v683 = vunpack.c.l.b16 %v387
          %v684 = vunpack.c.h.b16 %v387
          %v685 = vunpack.c.l.b16 %v388
          %v686 = vunpack.c.h.b16 %v388
          %v687 = vunpack.c.l.b16 %v389
          %v688 = vunpack.c.h.b16 %v389
          %v689 = vunpack.c.l.b16 %v390
          %v690 = vunpack.c.h.b16 %v390
          %v691 = vunpack.c.l.b16 %v391
          %v692 = vunpack.c.h.b16 %v391
          %v693 = vunpack.c.l.b16 %v392
          %v694 = vunpack.c.h.b16 %v392
          %v695 = vunpack.c.l.b16 %v393
          %v696 = vunpack.c.h.b16 %v393
          %v697 = vunpack.c.l.b16 %v394
          %v698 = vunpack.c.h.b16 %v394
          %v699 = vunpack.c.l.b16 %v395
          %v700 = vunpack.c.h.b16 %v395
          %v701 = vunpack.c.l.b16 %v396
          %v702 = vunpack.c.h.b16 %v396
          %v703 = vunpack.c.l.b16 %v397
          %v704 = vunpack.c.h.b16 %v397
          %v705 = vunpack.c.l.b16 %v398
          %v706 = vunpack.c.h.b16 %v398
          %v707 = vunpack.c.l.b16 %v399
          %v708 = vunpack.c.h.b16 %v399
          %v709 = vunpack.c.l.b16 %v400
          %v710 = vunpack.c.h.b16 %v400
          %v711 = vunpack.c.l.b16 %v401
          %v712 = vunpack.c.h.b16 %v401
          %v713 = vunpack.c.l.b16 %v402
          %v714 = vunpack.c.h.b16 %v402
          %v715 = vunpack.c.l.b16 %v403
          %v716 = vunpack.c.h.b16 %v403
          %v717 = vunpack.c.l.b16 %v404
          %v718 = vunpack.c.h.b16 %v404
          %v719 = vunpack.c.l.b16 %v405
          %v720 = vunpack.c.h.b16 %v405
          %v721 = vunpack.c.l.b16 %v406
          %v722 = vunpack.c.h.b16 %v406
          %v723 = vunpack.c.l.b16 %v407
          %v724 = vunpack.c.h.b16 %v407
          %v725 = vunpack.c.l.b16 %v408
          %v726 = vunpack.c.h.b16 %v408
          %v727 = vunpack.c.l.b16 %v409
          %v728 = vunpack.c.h.b16 %v409
          %v729 = vunpack.c.l.b16 %v410
          %v730 = vunpack.c.h.b16 %v410
          %v731 = vunpack.c.l.b16 %v411
          %v732 = vunpack.c.h.b16 %v411
          %v733 = vunpack.c.l.b16 %v412
          %v734 = vunpack.c.h.b16 %v412
          %v735 = vunpack.c.l.b16 %v413
          %v736 = vunpack.c.h.b16 %v413
          %v737 = vunpack.c.l.b16 %v414
          %v738 = vunpack.c.h.b16 %v414
          %v739 = vunpack.c.l.b16 %v415
          %v740 = vunpack.c.h.b16 %v415
          %v741 = vunpack.c.l.b16 %v416
          %v742 = vunpack.c.h.b16 %v416
          %v743 = vunpack.c.l.b16 %v417
          %v744 = vunpack.c.h.b16 %v417
          %v745 = vunpack.c.l.b16 %v418
          %v746 = vunpack.c.h.b16 %v418
          %v747 = vunpack.c.l.b16 %v419
          %v748 = vunpack.c.h.b16 %v419
          %v749 = vunpack.c.l.b16 %v420
          %v750 = vunpack.c.h.b16 %v420
          %v751 = vunpack.c.l.b16 %v421
          %v752 = vunpack.c.h.b16 %v421
          %v753 = vunpack.c.l.b16 %v422
          %v754 = vunpack.c.h.b16 %v422
          %v755 = vunpack.c.l.b16 %v423
          %v756 = vunpack.c.h.b16 %v423
          %v757 = vunpack.c.l.b16 %v424
          %v758 = vunpack.c.h.b16 %v424
          %v759 = vunpack.c.l.b16 %v425
          %v760 = vunpack.c.h.b16 %v425
          %v761 = vunpack.c.l.b16 %v426
          %v762 = vunpack.c.h.b16 %v426
          %v763 = vunpack.c.l.b16 %v427
          %v764 = vunpack.c.h.b16 %v427
          %v765 = vunpack.c.l.b16 %v428
          %v766 = vunpack.c.h.b16 %v428
          %v767 = vunpack.c.l.b16 %v429
          %v768 = vunpack.c.h.b16 %v429
          %v769 = vunpack.c.l.b16 %v430
          %v770 = vunpack.c.h.b16 %v430
          %v771 = vunpack.c.l.b16 %v431
          %v772 = vunpack.c.h.b16 %v431
          %v773 = vunpack.c.l.b16 %v432
          %v774 = vunpack.c.h.b16 %v432
          %v775 = vunpack.c.l.b16 %v433
          %v776 = vunpack.c.h.b16 %v433
          %v777 = vunpack.c.l.b16 %v434
          %v778 = vunpack.c.h.b16 %v434
          %v779 = vunpack.c.l.b16 %v435
          %v780 = vunpack.c.h.b16 %v435
          %v781 = vunpack.c.l.b16 %v436
          %v782 = vunpack.c.h.b16 %v436
          %v783 = vunpack.c.l.b16 %v437
          %v784 = vunpack.c.h.b16 %v437
          %v785 = vunpack.c.l.b16 %v438
          %v786 = vunpack.c.h.b16 %v438
          %v787 = vunpack.c.l.b16 %v439
          %v788 = vunpack.c.h.b16 %v439
          %v789 = vunpack.c.l.b16 %v440
          %v790 = vunpack.c.h.b16 %v440
          %v791 = vunpack.c.l.b16 %v441
          %v792 = vunpack.c.h.b16 %v441
          %v793 = vunpack.c.l.b16 %v442
          %v794 = vunpack.c.h.b16 %v442
          %v795 = vunpack.c.l.b16 %v443
          %v796 = vunpack.c.h.b16 %v443
          %v797 = vunpack.c.l.b16 %v444
          %v798 = vunpack.c.h.b16 %v444
          %v799 = vunpack.c.l.b16 %v445
          %v800 = vunpack.c.h.b16 %v445
          %v801 = vunpack.c.l.b16 %v446
          %v802 = vunpack.c.h.b16 %v446
          %v803 = vunpack.c.l.b16 %v447
          %v804 = vunpack.c.h.b16 %v447
          %v805 = vunpack.c.l.b16 %v448
          %v806 = vunpack.c.h.b16 %v448
          %v807 = vunpack.c.l.b16 %v449
          %v808 = vunpack.c.h.b16 %v449
          %v809 = vunpack.c.l.b16 %v450
          %v810 = vunpack.c.h.b16 %v450
          %v811 = vunpack.c.l.b16 %v451
          %v812 = vunpack.c.h.b16 %v451
          %v813 = vunpack.c.l.b16 %v452
          %v814 = vunpack.c.h.b16 %v452
          %v815 = vunpack.c.l.b16 %v453
          %v816 = vunpack.c.h.b16 %v453
          %v817 = vunpack.c.l.b16 %v454
          %v818 = vunpack.c.h.b16 %v454
          %v819 = vunpack.c.l.b16 %v455
          %v820 = vunpack.c.h.b16 %v455
          %v821 = vunpack.c.l.b16 %v456
          %v822 = vunpack.c.h.b16 %v456
          %v823 = vunpack.c.l.b16 %v457
          %v824 = vunpack.c.h.b16 %v457
          %v825 = vunpack.c.l.b16 %v458
          %v826 = vunpack.c.h.b16 %v458
          %v827 = vunpack.c.l.b16 %v459
          %v828 = vunpack.c.h.b16 %v459
          %v829 = vunpack.c.l.b16 %v460
          %v830 = vunpack.c.h.b16 %v460
          %v831 = vunpack.c.l.b16 %v461
          %v832 = vunpack.c.h.b16 %v461
          %v833 = vunpack.c.l.b16 %v462
          %v834 = vunpack.c.h.b16 %v462
          %v835 = vunpack.c.l.b16 %v463
          %v836 = vunpack.c.h.b16 %v463
          %v837 = vunpack.c.l.b16 %v464
          %v838 = vunpack.c.h.b16 %v464
          %v839 = vunpack.c.l.b16 %v465
          %v840 = vunpack.c.h.b16 %v465
          %v841 = vunpack.c.l.b16 %v466
          %v842 = vunpack.c.h.b16 %v466
          %v843 = vunpack.c.l.b16 %v467
          %v844 = vunpack.c.h.b16 %v467
          %v845 = vunpack.c.l.b16 %v468
          %v846 = vunpack.c.h.b16 %v468
          %v847 = vunpack.c.l.b16 %v469
          %v848 = vunpack.c.h.b16 %v469
          %v849 = vunpack.c.l.b16 %v470
          %v850 = vunpack.c.h.b16 %v470
          %v851 = vunpack.c.l.b16 %v471
          %v852 = vunpack.c.h.b16 %v471
          %v853 = vunpack.c.l.b16 %v472
          %v854 = vunpack.c.h.b16 %v472
          %v855 = vunpack.c.l.b16 %v473
          %v856 = vunpack.c.h.b16 %v473
          %v857 = vunpack.c.l.b16 %v474
          %v858 = vunpack.c.h.b16 %v474
          %v859 = vunpack.c.l.b16 %v475
          %v860 = vunpack.c.h.b16 %v475
          %v861 = vunpack.c.l.b16 %v476
          %v862 = vunpack.c.h.b16 %v476
          %v863 = vunpack.c.l.b16 %v477
          %v864 = vunpack.c.h.b16 %v477
          %v865 = vunpack.c.l.b16 %v478
          %v866 = vunpack.c.h.b16 %v478
          %v867 = vunpack.c.l.b16 %v479
          %v868 = vunpack.c.h.b16 %v479
          %v869 = vunpack.c.l.b16 %v480
          %v870 = vunpack.c.h.b16 %v480
          %v871 = vunpack.c.l.b16 %v481
          %v872 = vunpack.c.h.b16 %v481
          %v873 = vunpack.c.l.b16 %v482
          %v874 = vunpack.c.h.b16 %v482
          %v875 = vunpack.c.l.b16 %v483
          %v876 = vunpack.c.h.b16 %v483
          %v877 = vunpack.c.l.b16 %v484
          %v878 = vunpack.c.h.b16 %v484
          %v879 = vunpack.c.l.b16 %v485
          %v880 = vunpack.c.h.b16 %v485
          %v881 = vunpack.c.l.b16 %v486
          %v882 = vunpack.c.h.b16 %v486
          %v883 = vunpack.c.l.b16 %v487
          %v884 = vunpack.c.h.b16 %v487
          %v885 = vunpack.c.l.b16 %v488
          %v886 = vunpack.c.h.b16 %v488
          %v887 = vunpack.c.l.b16 %v489
          %v888 = vunpack.c.h.b16 %v489
          %v889 = vunpack.c.l.b16 %v490
          %v890 = vunpack.c.h.b16 %v490
          %v891 = vunpack.c.l.b16 %v491
          %v892 = vunpack.c.h.b16 %v491
          %v893 = vunpack.c.l.b16 %v492
          %v894 = vunpack.c.h.b16 %v492
          %v895 = vunpack.c.l.b16 %v493
          %v896 = vunpack.c.h.b16 %v493
          %v897 = vunpack.c.l.b16 %v494
          %v898 = vunpack.c.h.b16 %v494
          %v899 = vunpack.c.l.b16 %v495
          %v900 = vunpack.c.h.b16 %v495
          %v901 = vunpack.c.l.b16 %v496
          %v902 = vunpack.c.h.b16 %v496
          %v903 = vunpack.c.l.b16 %v497
          %v904 = vunpack.c.h.b16 %v497
          %v905 = vunpack.c.l.b16 %v498
          %v906 = vunpack.c.h.b16 %v498
          %v907 = vunpack.c.l.b16 %v499
          %v908 = vunpack.c.h.b16 %v499
          %v909 = vunpack.c.l.b16 %v500
          %v910 = vunpack.c.h.b16 %v500
          %v911 = vunpack.c.l.b16 %v501
          %v912 = vunpack.c.h.b16 %v501
          %v913 = vunpack.c.l.b16 %v502
          %v914 = vunpack.c.h.b16 %v502
          %v915 = vunpack.c.l.b16 %v503
          %v916 = vunpack.c.h.b16 %v503
          %v917 = vunpack.c.l.b16 %v504
          %v918 = vunpack.c.h.b16 %v504
          %v919 = vunpack.c.l.b16 %v505
          %v920 = vunpack.c.h.b16 %v505
          %v921 = vunpack.c.l.b16 %v506
          %v922 = vunpack.c.h.b16 %v506
          %v923 = vunpack.c.l.b16 %v507
          %v924 = vunpack.c.h.b16 %v507
          %v925 = vunpack.c.l.b16 %v508
          %v926 = vunpack.c.h.b16 %v508
          %v927 = vunpack.c.l.b16 %v509
          %v928 = vunpack.c.h.b16 %v509
          %v929 = vunpack.c.l.b16 %v510
          %v930 = vunpack.c.h.b16 %v510
          %v931 = vunpack.c.l.b16 %v511
          %v932 = vunpack.c.h.b16 %v511
          %v933 = vunpack.c.l.b16 %v512
          %v934 = vunpack.c.h.b16 %v512
          %v935 = vunpack.c.l.b16 %v513
          %v936 = vunpack.c.h.b16 %v513
          %v937 = vunpack.c.l.b16 %v514
          %v938 = vunpack.c.h.b16 %v514
          %v939 = vunpack.c.l.b16 %v515
          %v940 = vunpack.c.h.b16 %v515
          %v941 = vunpack.c.l.b16 %v516
          %v942 = vunpack.c.h.b16 %v516
          %v943 = vunpack.c.l.b16 %v517
          %v944 = vunpack.c.h.b16 %v517
          %v945 = vunpack.c.l.b16 %v518
          %v946 = vunpack.c.h.b16 %v518
          %v947 = vunpack.c.l.b16 %v519
          %v948 = vunpack.c.h.b16 %v519
          %v949 = vunpack.c.l.b16 %v520
          %v950 = vunpack.c.h.b16 %v520
          %v951 = vunpack.c.l.b16 %v521
          %v952 = vunpack.c.h.b16 %v521
          %v953 = vunpack.c.l.b16 %v522
          %v954 = vunpack.c.h.b16 %v522
          %v955 = vpack.c.b16 %v673, %v667
          %v956 = vpack.c.b16 %v674, %v668
          %v957 = vpack.c.b16 %v675, %v669
          %v958 = vpack.c.b16 %v676, %v670
          %v959 = vpack.c.b16 %v677, %v671
          %v960 = vpack.c.b16 %v678, %v672
          %v961 = vpack.c.b16 %v685, %v679
          %v962 = vpack.c.b16 %v686, %v680
          %v963 = vpack.c.b16 %v687, %v681
          %v964 = vpack.c.b16 %v688, %v682
          %v965 = vpack.c.b16 %v689, %v683
          %v966 = vpack.c.b16 %v690, %v684
          %v967 = vpack.c.b16 %v697, %v691
          %v968 = vpack.c.b16 %v698, %v692
          %v969 = vpack.c.b16 %v699, %v693
          %v970 = vpack.c.b16 %v700, %v694
          %v971 = vpack.c.b16 %v701, %v695
          %v972 = vpack.c.b16 %v702, %v696
          %v973 = vpack.c.b16 %v709, %v703
          %v974 = vpack.c.b16 %v710, %v704
          %v975 = vpack.c.b16 %v711, %v705
          %v976 = vpack.c.b16 %v712, %v706
          %v977 = vpack.c.b16 %v713, %v707
          %v978 = vpack.c.b16 %v714, %v708
          %v979 = vpack.c.b16 %v721, %v715
          %v980 = vpack.c.b16 %v722, %v716
          %v981 = vpack.c.b16 %v723, %v717
          %v982 = vpack.c.b16 %v724, %v718
          %v983 = vpack.c.b16 %v725, %v719
          %v984 = vpack.c.b16 %v726, %v720
          %v985 = vpack.c.b16 %v733, %v727
          %v986 = vpack.c.b16 %v734, %v728
          %v987 = vpack.c.b16 %v735, %v729
          %v988 = vpack.c.b16 %v736, %v730
          %v989 = vpack.c.b16 %v737, %v731
          %v990 = vpack.c.b16 %v738, %v732
          %v991 = vpack.c.b16 %v745, %v739
          %v992 = vpack.c.b16 %v746, %v740
          %v993 = vpack.c.b16 %v747, %v741
          %v994 = vpack.c.b16 %v748, %v742
          %v995 = vpack.c.b16 %v749, %v743
          %v996 = vpack.c.b16 %v750, %v744
          %v997 = vpack.c.b16 %v757, %v751
          %v998 = vpack.c.b16 %v758, %v752
          %v999 = vpack.c.b16 %v759, %v753
          %v1000 = vpack.c.b16 %v760, %v754
          %v1001 = vpack.c.b16 %v761, %v755
          %v1002 = vpack.c.b16 %v762, %v756
          %v1003 = vpack.c.b16 %v769, %v763
          %v1004 = vpack.c.b16 %v770, %v764
          %v1005 = vpack.c.b16 %v771, %v765
          %v1006 = vpack.c.b16 %v772, %v766
          %v1007 = vpack.c.b16 %v773, %v767
          %v1008 = vpack.c.b16 %v774, %v768
          %v1009 = vpack.c.b16 %v781, %v775
          %v1010 = vpack.c.b16 %v782, %v776
          %v1011 = vpack.c.b16 %v783, %v777
          %v1012 = vpack.c.b16 %v784, %v778
          %v1013 = vpack.c.b16 %v785, %v779
          %v1014 = vpack.c.b16 %v786, %v780
          %v1015 = vpack.c.b16 %v793, %v787
          %v1016 = vpack.c.b16 %v794, %v788
          %v1017 = vpack.c.b16 %v795, %v789
          %v1018 = vpack.c.b16 %v796, %v790
          %v1019 = vpack.c.b16 %v797, %v791
          %v1020 = vpack.c.b16 %v798, %v792
          %v1021 = vpack.c.b16 %v805, %v799
          %v1022 = vpack.c.b16 %v806, %v800
          %v1023 = vpack.c.b16 %v807, %v801
          %v1024 = vpack.c.b16 %v808, %v802
          %v1025 = vpack.c.b16 %v809, %v803
          %v1026 = vpack.c.b16 %v810, %v804
          %v1027 = vpack.c.b16 %v817, %v811
          %v1028 = vpack.c.b16 %v818, %v812
          %v1029 = vpack.c.b16 %v819, %v813
          %v1030 = vpack.c.b16 %v820, %v814
          %v1031 = vpack.c.b16 %v821, %v815
          %v1032 = vpack.c.b16 %v822, %v816
          %v1033 = vpack.c.b16 %v829, %v823
          %v1034 = vpack.c.b16 %v830, %v824
          %v1035 = vpack.c.b16 %v831, %v825
          %v1036 = vpack.c.b16 %v832, %v826
          %v1037 = vpack.c.b16 %v833, %v827
          %v1038 = vpack.c.b16 %v834, %v828
          %v1039 = vpack.c.b16 %v841, %v835
          %v1040 = vpack.c.b16 %v842, %v836
          %v1041 = vpack.c.b16 %v843, %v837
          %v1042 = vpack.c.b16 %v844, %v838
          %v1043 = vpack.c.b16 %v845, %v839
          %v1044 = vpack.c.b16 %v846, %v840
          %v1045 = vpack.c.b16 %v853, %v847
          %v1046 = vpack.c.b16 %v854, %v848
          %v1047 = vpack.c.b16 %v855, %v849
          %v1048 = vpack.c.b16 %v856, %v850
          %v1049 = vpack.c.b16 %v857, %v851
          %v1050 = vpack.c.b16 %v858, %v852
          %v1051 = vpack.c.b16 %v865, %v859
          %v1052 = vpack.c.b16 %v866, %v860
          %v1053 = vpack.c.b16 %v867, %v861
          %v1054 = vpack.c.b16 %v868, %v862
          %v1055 = vpack.c.b16 %v869, %v863
          %v1056 = vpack.c.b16 %v870, %v864
          %v1057 = vpack.c.b16 %v877, %v871
          %v1058 = vpack.c.b16 %v878, %v872
          %v1059 = vpack.c.b16 %v879, %v873
          %v1060 = vpack.c.b16 %v880, %v874
          %v1061 = vpack.c.b16 %v881, %v875
          %v1062 = vpack.c.b16 %v882, %v876
          %v1063 = vpack.c.b16 %v889, %v883
          %v1064 = vpack.c.b16 %v890, %v884
          %v1065 = vpack.c.b16 %v891, %v885
          %v1066 = vpack.c.b16 %v892, %v886
          %v1067 = vpack.c.b16 %v893, %v887
          %v1068 = vpack.c.b16 %v894, %v888
          %v1069 = vpack.c.b16 %v901, %v895
          %v1070 = vpack.c.b16 %v902, %v896
          %v1071 = vpack.c.b16 %v903, %v897
          %v1072 = vpack.c.b16 %v904, %v898
          %v1073 = vpack.c.b16 %v905, %v899
          %v1074 = vpack.c.b16 %v906, %v900
          %v1075 = vpack.c.b16 %v913, %v907
          %v1076 = vpack.c.b16 %v914, %v908
          %v1077 = vpack.c.b16 %v915, %v909
          %v1078 = vpack.c.b16 %v916, %v910
          %v1079 = vpack.c.b16 %v917, %v911
          %v1080 = vpack.c.b16 %v918, %v912
          %v1081 = vpack.c.b16 %v925, %v919
          %v1082 = vpack.c.b16 %v926, %v920
          %v1083 = vpack.c.b16 %v927, %v921
          %v1084 = vpack.c.b16 %v928, %v922
          %v1085 = vpack.c.b16 %v929, %v923
          %v1086 = vpack.c.b16 %v930, %v924
          %v1087 = vpack.c.b16 %v937, %v931
          %v1088 = vpack.c.b16 %v938, %v932
          %v1089 = vpack.c.b16 %v939, %v933
          %v1090 = vpack.c.b16 %v940, %v934
          %v1091 = vpack.c.b16 %v941, %v935
          %v1092 = vpack.c.b16 %v942, %v936
          %v1093 = vpack.c.b16 %v949, %v943
          %v1094 = vpack.c.b16 %v950, %v944
          %v1095 = vpack.c.b16 %v951, %v945
          %v1096 = vpack.c.b16 %v952, %v946
          %v1097 = vpack.c.b16 %v953, %v947
          %v1098 = vpack.c.b16 %v954, %v948
          %1243 = vmatprep.subr.bf16.mxu0 %v998
          %1244 = vmatpush1.bf16.msra.mxu0 %v997
          %1245 = vmatprep.subr.bf16.mxu0 %v992
          %1246 = vmatpush1.bf16.msra.mxu0 %v991
          %1247 = vmatprep.subr.bf16.mxu0 %v986
          %1248 = vmatpush1.bf16.msra.mxu0 %v985
          %1249 = vmatprep.subr.bf16.mxu0 %v980
          %1250 = vmatpush1.bf16.msra.mxu0 %v979
          %1251 = vmatprep.subr.bf16.mxu0 %v974
          %1252 = vmatpush1.bf16.msra.mxu0 %v973
          %1253 = vmatprep.subr.bf16.mxu0 %v968
          %1254 = vmatpush1.bf16.msra.mxu0 %v967
          %1255 = vmatprep.subr.bf16.mxu0 %v962
          %1256 = vmatpush1.bf16.msra.mxu0 %v961
          %1257 = vmatprep.subr.bf16.mxu0 %v956
          %1258 = vmatpush1.bf16.msra.mxu0 %v955
          %1259 = vmatprep.subr.bf16.mxu0 %v1046
          %1260 = vmatpush2.bf16.msra.mxu0 %v1045
          %1261 = vmatprep.subr.bf16.mxu0 %v1040
          %1262 = vmatpush2.bf16.msra.mxu0 %v1039
          %1263 = vmatprep.subr.bf16.mxu0 %v1034
          %1264 = vmatpush2.bf16.msra.mxu0 %v1033
          %1265 = vmatprep.subr.bf16.mxu0 %v1028
          %1266 = vmatpush2.bf16.msra.mxu0 %v1027
          %1267 = vmatprep.subr.bf16.mxu0 %v1022
          %1268 = vmatpush2.bf16.msra.mxu0 %v1021
          %1269 = vmatprep.subr.bf16.mxu0 %v1016
          %1270 = vmatpush2.bf16.msra.mxu0 %v1015
          %1271 = vmatprep.subr.bf16.mxu0 %v1010
          %1272 = vmatpush2.bf16.msra.mxu0 %v1009
          %1273 = vmatprep.subr.bf16.mxu0 %v1004
          %1274 = vmatpush2.bf16.msra.mxu0 %v1003
          %1275 = vmatprep.mubr.bf16.mxu0 %v356
          %1276 = vmatmul.mubr.bf16.gmra.mxu0 %v355
          %v1277 = vpop.f32.mrf.mxu0
          %v1278 = vadd.f32 0.0, %v1277
          %v1279 = vpop.f32.mrf.mxu0
          %v1280 = vadd.f32 0.0, %v1279
          %v1281 = vpop.f32.mrf.mxu0
          %v1282 = vadd.f32 0.0, %v1281
          %v1283 = vpop.f32.mrf.mxu0
          %v1284 = vadd.f32 0.0, %v1283
          %1285 = vmatprep.mubr.bf16.mxu0 %v359
          %1286 = vmatmul.mubr.bf16.gmra.mxu0 %v358
          %v1287 = vpop.f32.mrf.mxu0
          %v1288 = vadd.f32 0.0, %v1287
          %v1289 = vpop.f32.mrf.mxu0
          %v1290 = vadd.f32 0.0, %v1289
          %v1291 = vpop.f32.mrf.mxu0
          %v1292 = vadd.f32 0.0, %v1291
          %v1293 = vpop.f32.mrf.mxu0
          %v1294 = vadd.f32 0.0, %v1293
          %1295 = vmatprep.mubr.bf16.mxu0 %v362
          %1296 = vmatmul.mubr.bf16.gmra.mxu0 %v361
          %v1297 = vpop.f32.mrf.mxu0
          %v1298 = vadd.f32 0.0, %v1297
          %v1299 = vpop.f32.mrf.mxu0
          %v1300 = vadd.f32 0.0, %v1299
          %v1301 = vpop.f32.mrf.mxu0
          %v1302 = vadd.f32 0.0, %v1301
          %v1303 = vpop.f32.mrf.mxu0
          %v1304 = vadd.f32 0.0, %v1303
          %1305 = vmatprep.mubr.bf16.mxu0 %v365
          %1306 = vmatmul.mubr.bf16.gmra.mxu0 %v364
          %v1307 = vpop.f32.mrf.mxu0
          %v1308 = vadd.f32 0.0, %v1307
          %v1309 = vpop.f32.mrf.mxu0
          %v1310 = vadd.f32 0.0, %v1309
          %v1311 = vpop.f32.mrf.mxu0
          %v1312 = vadd.f32 0.0, %v1311
          %v1313 = vpop.f32.mrf.mxu0
          %v1314 = vadd.f32 0.0, %v1313
          %1315 = vmatprep.mubr.bf16.mxu0 %v368
          %1316 = vmatmul.mubr.bf16.gmra.mxu0 %v367
          %v1317 = vpop.f32.mrf.mxu0
          %v1318 = vadd.f32 0.0, %v1317
          %v1319 = vpop.f32.mrf.mxu0
          %v1320 = vadd.f32 0.0, %v1319
          %v1321 = vpop.f32.mrf.mxu0
          %v1322 = vadd.f32 0.0, %v1321
          %v1323 = vpop.f32.mrf.mxu0
          %v1324 = vadd.f32 0.0, %v1323
          %1325 = vmatprep.mubr.bf16.mxu0 %v371
          %1326 = vmatmul.mubr.bf16.gmra.mxu0 %v370
          %v1327 = vpop.f32.mrf.mxu0
          %v1328 = vadd.f32 0.0, %v1327
          %v1329 = vpop.f32.mrf.mxu0
          %v1330 = vadd.f32 0.0, %v1329
          %v1331 = vpop.f32.mrf.mxu0
          %v1332 = vadd.f32 0.0, %v1331
          %v1333 = vpop.f32.mrf.mxu0
          %v1334 = vadd.f32 0.0, %v1333
          %1335 = vmatprep.mubr.bf16.mxu0 %v374
          %1336 = vmatmul.mubr.bf16.gmra.mxu0 %v373
          %v1337 = vpop.f32.mrf.mxu0
          %v1338 = vadd.f32 0.0, %v1337
          %v1339 = vpop.f32.mrf.mxu0
          %v1340 = vadd.f32 0.0, %v1339
          %v1341 = vpop.f32.mrf.mxu0
          %v1342 = vadd.f32 0.0, %v1341
          %v1343 = vpop.f32.mrf.mxu0
          %v1344 = vadd.f32 0.0, %v1343
          %1345 = vmatprep.mubr.bf16.mxu0 %v377
          %1346 = vmatmul.mubr.bf16.gmra.mxu0 %v376
          %v1347 = vpop.f32.mrf.mxu0
          %v1348 = vadd.f32 0.0, %v1347
          %v1349 = vpop.f32.mrf.mxu0
          %v1350 = vadd.f32 0.0, %v1349
          %v1351 = vpop.f32.mrf.mxu0
          %v1352 = vadd.f32 0.0, %v1351
          %v1353 = vpop.f32.mrf.mxu0
          %v1354 = vadd.f32 0.0, %v1353
          %1355 = vdwg.mxu0
          %1356 = vmatprep.subr.bf16.mxu0 %v1094
          %1357 = vmatpush1.bf16.msra.mxu0 %v1093
          %1358 = vmatprep.subr.bf16.mxu0 %v1088
          %1359 = vmatpush1.bf16.msra.mxu0 %v1087
          %1360 = vmatprep.subr.bf16.mxu0 %v1082
          %1361 = vmatpush1.bf16.msra.mxu0 %v1081
          %1362 = vmatprep.subr.bf16.mxu0 %v1076
          %1363 = vmatpush1.bf16.msra.mxu0 %v1075
          %1364 = vmatprep.subr.bf16.mxu0 %v1070
          %1365 = vmatpush1.bf16.msra.mxu0 %v1069
          %1366 = vmatprep.subr.bf16.mxu0 %v1064
          %1367 = vmatpush1.bf16.msra.mxu0 %v1063
          %1368 = vmatprep.subr.bf16.mxu0 %v1058
          %1369 = vmatpush1.bf16.msra.mxu0 %v1057
          %1370 = vmatprep.subr.bf16.mxu0 %v1052
          %1371 = vmatpush1.bf16.msra.mxu0 %v1051
          %1372 = vmatprep.subr.bf16.mxu0 0
          %1373 = vmatpush2.bf16.msra.mxu0 0
          %1374 = vmatprep.subr.bf16.mxu0 0
          %1375 = vmatpush2.bf16.msra.mxu0 0
          %1376 = vmatprep.subr.bf16.mxu0 0
          %1377 = vmatpush2.bf16.msra.mxu0 0
          %1378 = vmatprep.subr.bf16.mxu0 0
          %1379 = vmatpush2.bf16.msra.mxu0 0
          %1380 = vmatprep.subr.bf16.mxu0 0
          %1381 = vmatpush2.bf16.msra.mxu0 0
          %1382 = vmatprep.subr.bf16.mxu0 0
          %1383 = vmatpush2.bf16.msra.mxu0 0
          %1384 = vmatprep.subr.bf16.mxu0 0
          %1385 = vmatpush2.bf16.msra.mxu0 0
          %1386 = vmatprep.subr.bf16.mxu0 0
          %1387 = vmatpush2.bf16.msra.mxu0 0
          %1388 = vmatprep.mubr.bf16.mxu0 0
          %1389 = vmatmul.mubr.bf16.gmra.mxu0 %v357
          %v1390 = vpop.f32.mrf.mxu0
          %v1391 = vadd.f32 %v1278, %v1390
          %v1392 = vpop.f32.mrf.mxu0
          %v1393 = vadd.f32 %v1280, %v1392
          %v1394 = vpop.f32.mrf.mxu0
          %v1395 = vadd.f32 %v1282, %v1394
          %v1396 = vpop.f32.mrf.mxu0
          %v1397 = vadd.f32 %v1284, %v1396
          %1398 = vmatprep.mubr.bf16.mxu0 0
          %1399 = vmatmul.mubr.bf16.gmra.mxu0 %v360
          %v1400 = vpop.f32.mrf.mxu0
          %v1401 = vadd.f32 %v1288, %v1400
          %v1402 = vpop.f32.mrf.mxu0
          %v1403 = vadd.f32 %v1290, %v1402
          %v1404 = vpop.f32.mrf.mxu0
          %v1405 = vadd.f32 %v1292, %v1404
          %v1406 = vpop.f32.mrf.mxu0
          %v1407 = vadd.f32 %v1294, %v1406
          %1408 = vmatprep.mubr.bf16.mxu0 0
          %1409 = vmatmul.mubr.bf16.gmra.mxu0 %v363
          %v1410 = vpop.f32.mrf.mxu0
          %v1411 = vadd.f32 %v1298, %v1410
          %v1412 = vpop.f32.mrf.mxu0
          %v1413 = vadd.f32 %v1300, %v1412
          %v1414 = vpop.f32.mrf.mxu0
          %v1415 = vadd.f32 %v1302, %v1414
          %v1416 = vpop.f32.mrf.mxu0
          %v1417 = vadd.f32 %v1304, %v1416
          %1418 = vmatprep.mubr.bf16.mxu0 0
          %1419 = vmatmul.mubr.bf16.gmra.mxu0 %v366
          %v1420 = vpop.f32.mrf.mxu0
          %v1421 = vadd.f32 %v1308, %v1420
          %v1422 = vpop.f32.mrf.mxu0
          %v1423 = vadd.f32 %v1310, %v1422
          %v1424 = vpop.f32.mrf.mxu0
          %v1425 = vadd.f32 %v1312, %v1424
          %v1426 = vpop.f32.mrf.mxu0
          %v1427 = vadd.f32 %v1314, %v1426
          %1428 = vmatprep.mubr.bf16.mxu0 0
          %1429 = vmatmul.mubr.bf16.gmra.mxu0 %v369
          %v1430 = vpop.f32.mrf.mxu0
          %v1431 = vadd.f32 %v1318, %v1430
          %v1432 = vpop.f32.mrf.mxu0
          %v1433 = vadd.f32 %v1320, %v1432
          %v1434 = vpop.f32.mrf.mxu0
          %v1435 = vadd.f32 %v1322, %v1434
          %v1436 = vpop.f32.mrf.mxu0
          %v1437 = vadd.f32 %v1324, %v1436
          %1438 = vmatprep.mubr.bf16.mxu0 0
          %1439 = vmatmul.mubr.bf16.gmra.mxu0 %v372
          %v1440 = vpop.f32.mrf.mxu0
          %v1441 = vadd.f32 %v1328, %v1440
          %v1442 = vpop.f32.mrf.mxu0
          %v1443 = vadd.f32 %v1330, %v1442
          %v1444 = vpop.f32.mrf.mxu0
          %v1445 = vadd.f32 %v1332, %v1444
          %v1446 = vpop.f32.mrf.mxu0
          %v1447 = vadd.f32 %v1334, %v1446
          %1448 = vmatprep.mubr.bf16.mxu0 0
          %1449 = vmatmul.mubr.bf16.gmra.mxu0 %v375
          %v1450 = vpop.f32.mrf.mxu0
          %v1451 = vadd.f32 %v1338, %v1450
          %v1452 = vpop.f32.mrf.mxu0
          %v1453 = vadd.f32 %v1340, %v1452
          %v1454 = vpop.f32.mrf.mxu0
          %v1455 = vadd.f32 %v1342, %v1454
          %v1456 = vpop.f32.mrf.mxu0
          %v1457 = vadd.f32 %v1344, %v1456
          %1458 = vmatprep.mubr.bf16.mxu0 0
          %1459 = vmatmul.mubr.bf16.gmra.mxu0 %v378
          %v1460 = vpop.f32.mrf.mxu0
          %v1461 = vadd.f32 %v1348, %v1460
          %v1462 = vpop.f32.mrf.mxu0
          %v1463 = vadd.f32 %v1350, %v1462
          %v1464 = vpop.f32.mrf.mxu0
          %v1465 = vadd.f32 %v1352, %v1464
          %v1466 = vpop.f32.mrf.mxu0
          %v1467 = vadd.f32 %v1354, %v1466
          %1468 = vdwg.mxu0
          %1469 = vmatprep.subr.bf16.mxu0 %v1000
          %1470 = vmatpush1.bf16.msra.mxu0 %v999
          %1471 = vmatprep.subr.bf16.mxu0 %v994
          %1472 = vmatpush1.bf16.msra.mxu0 %v993
          %1473 = vmatprep.subr.bf16.mxu0 %v988
          %1474 = vmatpush1.bf16.msra.mxu0 %v987
          %1475 = vmatprep.subr.bf16.mxu0 %v982
          %1476 = vmatpush1.bf16.msra.mxu0 %v981
          %1477 = vmatprep.subr.bf16.mxu0 %v976
          %1478 = vmatpush1.bf16.msra.mxu0 %v975
          %1479 = vmatprep.subr.bf16.mxu0 %v970
          %1480 = vmatpush1.bf16.msra.mxu0 %v969
          %1481 = vmatprep.subr.bf16.mxu0 %v964
          %1482 = vmatpush1.bf16.msra.mxu0 %v963
          %1483 = vmatprep.subr.bf16.mxu0 %v958
          %1484 = vmatpush1.bf16.msra.mxu0 %v957
          %1485 = vmatprep.subr.bf16.mxu0 %v1048
          %1486 = vmatpush2.bf16.msra.mxu0 %v1047
          %1487 = vmatprep.subr.bf16.mxu0 %v1042
          %1488 = vmatpush2.bf16.msra.mxu0 %v1041
          %1489 = vmatprep.subr.bf16.mxu0 %v1036
          %1490 = vmatpush2.bf16.msra.mxu0 %v1035
          %1491 = vmatprep.subr.bf16.mxu0 %v1030
          %1492 = vmatpush2.bf16.msra.mxu0 %v1029
          %1493 = vmatprep.subr.bf16.mxu0 %v1024
          %1494 = vmatpush2.bf16.msra.mxu0 %v1023
          %1495 = vmatprep.subr.bf16.mxu0 %v1018
          %1496 = vmatpush2.bf16.msra.mxu0 %v1017
          %1497 = vmatprep.subr.bf16.mxu0 %v1012
          %1498 = vmatpush2.bf16.msra.mxu0 %v1011
          %1499 = vmatprep.subr.bf16.mxu0 %v1006
          %1500 = vmatpush2.bf16.msra.mxu0 %v1005
          %1501 = vmatprep.mubr.bf16.mxu0 %v356
          %1502 = vmatmul.mubr.bf16.gmra.mxu0 %v355
          %v1503 = vpop.f32.mrf.mxu0
          %v1504 = vadd.f32 0.0, %v1503
          %v1505 = vpop.f32.mrf.mxu0
          %v1506 = vadd.f32 0.0, %v1505
          %v1507 = vpop.f32.mrf.mxu0
          %v1508 = vadd.f32 0.0, %v1507
          %v1509 = vpop.f32.mrf.mxu0
          %v1510 = vadd.f32 0.0, %v1509
          %1511 = vmatprep.mubr.bf16.mxu0 %v359
          %1512 = vmatmul.mubr.bf16.gmra.mxu0 %v358
          %v1513 = vpop.f32.mrf.mxu0
          %v1514 = vadd.f32 0.0, %v1513
          %v1515 = vpop.f32.mrf.mxu0
          %v1516 = vadd.f32 0.0, %v1515
          %v1517 = vpop.f32.mrf.mxu0
          %v1518 = vadd.f32 0.0, %v1517
          %v1519 = vpop.f32.mrf.mxu0
          %v1520 = vadd.f32 0.0, %v1519
          %1521 = vmatprep.mubr.bf16.mxu0 %v362
          %1522 = vmatmul.mubr.bf16.gmra.mxu0 %v361
          %v1523 = vpop.f32.mrf.mxu0
          %v1524 = vadd.f32 0.0, %v1523
          %v1525 = vpop.f32.mrf.mxu0
          %v1526 = vadd.f32 0.0, %v1525
          %v1527 = vpop.f32.mrf.mxu0
          %v1528 = vadd.f32 0.0, %v1527
          %v1529 = vpop.f32.mrf.mxu0
          %v1530 = vadd.f32 0.0, %v1529
          %1531 = vmatprep.mubr.bf16.mxu0 %v365
          %1532 = vmatmul.mubr.bf16.gmra.mxu0 %v364
          %v1533 = vpop.f32.mrf.mxu0
          %v1534 = vadd.f32 0.0, %v1533
          %v1535 = vpop.f32.mrf.mxu0
          %v1536 = vadd.f32 0.0, %v1535
          %v1537 = vpop.f32.mrf.mxu0
          %v1538 = vadd.f32 0.0, %v1537
          %v1539 = vpop.f32.mrf.mxu0
          %v1540 = vadd.f32 0.0, %v1539
          %1541 = vmatprep.mubr.bf16.mxu0 %v368
          %1542 = vmatmul.mubr.bf16.gmra.mxu0 %v367
          %v1543 = vpop.f32.mrf.mxu0
          %v1544 = vadd.f32 0.0, %v1543
          %v1545 = vpop.f32.mrf.mxu0
          %v1546 = vadd.f32 0.0, %v1545
          %v1547 = vpop.f32.mrf.mxu0
          %v1548 = vadd.f32 0.0, %v1547
          %v1549 = vpop.f32.mrf.mxu0
          %v1550 = vadd.f32 0.0, %v1549
          %1551 = vmatprep.mubr.bf16.mxu0 %v371
          %1552 = vmatmul.mubr.bf16.gmra.mxu0 %v370
          %v1553 = vpop.f32.mrf.mxu0
          %v1554 = vadd.f32 0.0, %v1553
          %v1555 = vpop.f32.mrf.mxu0
          %v1556 = vadd.f32 0.0, %v1555
          %v1557 = vpop.f32.mrf.mxu0
          %v1558 = vadd.f32 0.0, %v1557
          %v1559 = vpop.f32.mrf.mxu0
          %v1560 = vadd.f32 0.0, %v1559
          %1561 = vmatprep.mubr.bf16.mxu0 %v374
          %1562 = vmatmul.mubr.bf16.gmra.mxu0 %v373
          %v1563 = vpop.f32.mrf.mxu0
          %v1564 = vadd.f32 0.0, %v1563
          %v1565 = vpop.f32.mrf.mxu0
          %v1566 = vadd.f32 0.0, %v1565
          %v1567 = vpop.f32.mrf.mxu0
          %v1568 = vadd.f32 0.0, %v1567
          %v1569 = vpop.f32.mrf.mxu0
          %v1570 = vadd.f32 0.0, %v1569
          %1571 = vmatprep.mubr.bf16.mxu0 %v377
          %1572 = vmatmul.mubr.bf16.gmra.mxu0 %v376
          %v1573 = vpop.f32.mrf.mxu0
          %v1574 = vadd.f32 0.0, %v1573
          %v1575 = vpop.f32.mrf.mxu0
          %v1576 = vadd.f32 0.0, %v1575
          %v1577 = vpop.f32.mrf.mxu0
          %v1578 = vadd.f32 0.0, %v1577
          %v1579 = vpop.f32.mrf.mxu0
          %v1580 = vadd.f32 0.0, %v1579
          %1581 = vdwg.mxu0
          %1582 = vmatprep.subr.bf16.mxu0 %v1096
          %1583 = vmatpush1.bf16.msra.mxu0 %v1095
          %1584 = vmatprep.subr.bf16.mxu0 %v1090
          %1585 = vmatpush1.bf16.msra.mxu0 %v1089
          %1586 = vmatprep.subr.bf16.mxu0 %v1084
          %1587 = vmatpush1.bf16.msra.mxu0 %v1083
          %1588 = vmatprep.subr.bf16.mxu0 %v1078
          %1589 = vmatpush1.bf16.msra.mxu0 %v1077
          %1590 = vmatprep.subr.bf16.mxu0 %v1072
          %1591 = vmatpush1.bf16.msra.mxu0 %v1071
          %1592 = vmatprep.subr.bf16.mxu0 %v1066
          %1593 = vmatpush1.bf16.msra.mxu0 %v1065
          %1594 = vmatprep.subr.bf16.mxu0 %v1060
          %1595 = vmatpush1.bf16.msra.mxu0 %v1059
          %1596 = vmatprep.subr.bf16.mxu0 %v1054
          %1597 = vmatpush1.bf16.msra.mxu0 %v1053
          %1598 = vmatprep.subr.bf16.mxu0 0
          %1599 = vmatpush2.bf16.msra.mxu0 0
          %1600 = vmatprep.subr.bf16.mxu0 0
          %1601 = vmatpush2.bf16.msra.mxu0 0
          %1602 = vmatprep.subr.bf16.mxu0 0
          %1603 = vmatpush2.bf16.msra.mxu0 0
          %1604 = vmatprep.subr.bf16.mxu0 0
          %1605 = vmatpush2.bf16.msra.mxu0 0
          %1606 = vmatprep.subr.bf16.mxu0 0
          %1607 = vmatpush2.bf16.msra.mxu0 0
          %1608 = vmatprep.subr.bf16.mxu0 0
          %1609 = vmatpush2.bf16.msra.mxu0 0
          %1610 = vmatprep.subr.bf16.mxu0 0
          %1611 = vmatpush2.bf16.msra.mxu0 0
          %1612 = vmatprep.subr.bf16.mxu0 0
          %1613 = vmatpush2.bf16.msra.mxu0 0
          %1614 = vmatprep.mubr.bf16.mxu0 0
          %1615 = vmatmul.mubr.bf16.gmra.mxu0 %v357
          %v1616 = vpop.f32.mrf.mxu0
          %v1617 = vadd.f32 %v1504, %v1616
          %v1618 = vpop.f32.mrf.mxu0
          %v1619 = vadd.f32 %v1506, %v1618
          %v1620 = vpop.f32.mrf.mxu0
          %v1621 = vadd.f32 %v1508, %v1620
          %v1622 = vpop.f32.mrf.mxu0
          %v1623 = vadd.f32 %v1510, %v1622
          %1624 = vmatprep.mubr.bf16.mxu0 0
          %1625 = vmatmul.mubr.bf16.gmra.mxu0 %v360
          %v1626 = vpop.f32.mrf.mxu0
          %v1627 = vadd.f32 %v1514, %v1626
          %v1628 = vpop.f32.mrf.mxu0
          %v1629 = vadd.f32 %v1516, %v1628
          %v1630 = vpop.f32.mrf.mxu0
          %v1631 = vadd.f32 %v1518, %v1630
          %v1632 = vpop.f32.mrf.mxu0
          %v1633 = vadd.f32 %v1520, %v1632
          %1634 = vmatprep.mubr.bf16.mxu0 0
          %1635 = vmatmul.mubr.bf16.gmra.mxu0 %v363
          %v1636 = vpop.f32.mrf.mxu0
          %v1637 = vadd.f32 %v1524, %v1636
          %v1638 = vpop.f32.mrf.mxu0
          %v1639 = vadd.f32 %v1526, %v1638
          %v1640 = vpop.f32.mrf.mxu0
          %v1641 = vadd.f32 %v1528, %v1640
          %v1642 = vpop.f32.mrf.mxu0
          %v1643 = vadd.f32 %v1530, %v1642
          %1644 = vmatprep.mubr.bf16.mxu0 0
          %1645 = vmatmul.mubr.bf16.gmra.mxu0 %v366
          %v1646 = vpop.f32.mrf.mxu0
          %v1647 = vadd.f32 %v1534, %v1646
          %v1648 = vpop.f32.mrf.mxu0
          %v1649 = vadd.f32 %v1536, %v1648
          %v1650 = vpop.f32.mrf.mxu0
          %v1651 = vadd.f32 %v1538, %v1650
          %v1652 = vpop.f32.mrf.mxu0
          %v1653 = vadd.f32 %v1540, %v1652
          %1654 = vmatprep.mubr.bf16.mxu0 0
          %1655 = vmatmul.mubr.bf16.gmra.mxu0 %v369
          %v1656 = vpop.f32.mrf.mxu0
          %v1657 = vadd.f32 %v1544, %v1656
          %v1658 = vpop.f32.mrf.mxu0
          %v1659 = vadd.f32 %v1546, %v1658
          %v1660 = vpop.f32.mrf.mxu0
          %v1661 = vadd.f32 %v1548, %v1660
          %v1662 = vpop.f32.mrf.mxu0
          %v1663 = vadd.f32 %v1550, %v1662
          %1664 = vmatprep.mubr.bf16.mxu0 0
          %1665 = vmatmul.mubr.bf16.gmra.mxu0 %v372
          %v1666 = vpop.f32.mrf.mxu0
          %v1667 = vadd.f32 %v1554, %v1666
          %v1668 = vpop.f32.mrf.mxu0
          %v1669 = vadd.f32 %v1556, %v1668
          %v1670 = vpop.f32.mrf.mxu0
          %v1671 = vadd.f32 %v1558, %v1670
          %v1672 = vpop.f32.mrf.mxu0
          %v1673 = vadd.f32 %v1560, %v1672
          %1674 = vmatprep.mubr.bf16.mxu0 0
          %1675 = vmatmul.mubr.bf16.gmra.mxu0 %v375
          %v1676 = vpop.f32.mrf.mxu0
          %v1677 = vadd.f32 %v1564, %v1676
          %v1678 = vpop.f32.mrf.mxu0
          %v1679 = vadd.f32 %v1566, %v1678
          %v1680 = vpop.f32.mrf.mxu0
          %v1681 = vadd.f32 %v1568, %v1680
          %v1682 = vpop.f32.mrf.mxu0
          %v1683 = vadd.f32 %v1570, %v1682
          %1684 = vmatprep.mubr.bf16.mxu0 0
          %1685 = vmatmul.mubr.bf16.gmra.mxu0 %v378
          %v1686 = vpop.f32.mrf.mxu0
          %v1687 = vadd.f32 %v1574, %v1686
          %v1688 = vpop.f32.mrf.mxu0
          %v1689 = vadd.f32 %v1576, %v1688
          %v1690 = vpop.f32.mrf.mxu0
          %v1691 = vadd.f32 %v1578, %v1690
          %v1692 = vpop.f32.mrf.mxu0
          %v1693 = vadd.f32 %v1580, %v1692
          %1694 = vdwg.mxu0
          %1695 = vmatprep.subr.bf16.mxu0 %v1002
          %1696 = vmatpush1.bf16.msra.mxu0 %v1001
          %1697 = vmatprep.subr.bf16.mxu0 %v996
          %1698 = vmatpush1.bf16.msra.mxu0 %v995
          %1699 = vmatprep.subr.bf16.mxu0 %v990
          %1700 = vmatpush1.bf16.msra.mxu0 %v989
          %1701 = vmatprep.subr.bf16.mxu0 %v984
          %1702 = vmatpush1.bf16.msra.mxu0 %v983
          %1703 = vmatprep.subr.bf16.mxu0 %v978
          %1704 = vmatpush1.bf16.msra.mxu0 %v977
          %1705 = vmatprep.subr.bf16.mxu0 %v972
          %1706 = vmatpush1.bf16.msra.mxu0 %v971
          %1707 = vmatprep.subr.bf16.mxu0 %v966
          %1708 = vmatpush1.bf16.msra.mxu0 %v965
          %1709 = vmatprep.subr.bf16.mxu0 %v960
          %1710 = vmatpush1.bf16.msra.mxu0 %v959
          %1711 = vmatprep.subr.bf16.mxu0 %v1050
          %1712 = vmatpush2.bf16.msra.mxu0 %v1049
          %1713 = vmatprep.subr.bf16.mxu0 %v1044
          %1714 = vmatpush2.bf16.msra.mxu0 %v1043
          %1715 = vmatprep.subr.bf16.mxu0 %v1038
          %1716 = vmatpush2.bf16.msra.mxu0 %v1037
          %1717 = vmatprep.subr.bf16.mxu0 %v1032
          %1718 = vmatpush2.bf16.msra.mxu0 %v1031
          %1719 = vmatprep.subr.bf16.mxu0 %v1026
          %1720 = vmatpush2.bf16.msra.mxu0 %v1025
          %1721 = vmatprep.subr.bf16.mxu0 %v1020
          %1722 = vmatpush2.bf16.msra.mxu0 %v1019
          %1723 = vmatprep.subr.bf16.mxu0 %v1014
          %1724 = vmatpush2.bf16.msra.mxu0 %v1013
          %1725 = vmatprep.subr.bf16.mxu0 %v1008
          %1726 = vmatpush2.bf16.msra.mxu0 %v1007
          %1727 = vmatprep.mubr.bf16.mxu0 %v356
          %1728 = vmatmul.mubr.bf16.gmra.mxu0 %v355
          %v1729 = vpop.f32.mrf.mxu0
          %v1730 = vadd.f32 0.0, %v1729
          %v1731 = vpop.f32.mrf.mxu0
          %v1732 = vadd.f32 0.0, %v1731
          %v1733 = vpop.f32.mrf.mxu0
          %v1734 = vadd.f32 0.0, %v1733
          %v1735 = vpop.f32.mrf.mxu0
          %v1736 = vadd.f32 0.0, %v1735
          %1737 = vmatprep.mubr.bf16.mxu0 %v359
          %1738 = vmatmul.mubr.bf16.gmra.mxu0 %v358
          %v1739 = vpop.f32.mrf.mxu0
          %v1740 = vadd.f32 0.0, %v1739
          %v1741 = vpop.f32.mrf.mxu0
          %v1742 = vadd.f32 0.0, %v1741
          %v1743 = vpop.f32.mrf.mxu0
          %v1744 = vadd.f32 0.0, %v1743
          %v1745 = vpop.f32.mrf.mxu0
          %v1746 = vadd.f32 0.0, %v1745
          %1747 = vmatprep.mubr.bf16.mxu0 %v362
          %1748 = vmatmul.mubr.bf16.gmra.mxu0 %v361
          %v1749 = vpop.f32.mrf.mxu0
          %v1750 = vadd.f32 0.0, %v1749
          %v1751 = vpop.f32.mrf.mxu0
          %v1752 = vadd.f32 0.0, %v1751
          %v1753 = vpop.f32.mrf.mxu0
          %v1754 = vadd.f32 0.0, %v1753
          %v1755 = vpop.f32.mrf.mxu0
          %v1756 = vadd.f32 0.0, %v1755
          %1757 = vmatprep.mubr.bf16.mxu0 %v365
          %1758 = vmatmul.mubr.bf16.gmra.mxu0 %v364
          %v1759 = vpop.f32.mrf.mxu0
          %v1760 = vadd.f32 0.0, %v1759
          %v1761 = vpop.f32.mrf.mxu0
          %v1762 = vadd.f32 0.0, %v1761
          %v1763 = vpop.f32.mrf.mxu0
          %v1764 = vadd.f32 0.0, %v1763
          %v1765 = vpop.f32.mrf.mxu0
          %v1766 = vadd.f32 0.0, %v1765
          %1767 = vmatprep.mubr.bf16.mxu0 %v368
          %1768 = vmatmul.mubr.bf16.gmra.mxu0 %v367
          %v1769 = vpop.f32.mrf.mxu0
          %v1770 = vadd.f32 0.0, %v1769
          %v1771 = vpop.f32.mrf.mxu0
          %v1772 = vadd.f32 0.0, %v1771
          %v1773 = vpop.f32.mrf.mxu0
          %v1774 = vadd.f32 0.0, %v1773
          %v1775 = vpop.f32.mrf.mxu0
          %v1776 = vadd.f32 0.0, %v1775
          %1777 = vmatprep.mubr.bf16.mxu0 %v371
          %1778 = vmatmul.mubr.bf16.gmra.mxu0 %v370
          %v1779 = vpop.f32.mrf.mxu0
          %v1780 = vadd.f32 0.0, %v1779
          %v1781 = vpop.f32.mrf.mxu0
          %v1782 = vadd.f32 0.0, %v1781
          %v1783 = vpop.f32.mrf.mxu0
          %v1784 = vadd.f32 0.0, %v1783
          %v1785 = vpop.f32.mrf.mxu0
          %v1786 = vadd.f32 0.0, %v1785
          %1787 = vmatprep.mubr.bf16.mxu0 %v374
          %1788 = vmatmul.mubr.bf16.gmra.mxu0 %v373
          %v1789 = vpop.f32.mrf.mxu0
          %v1790 = vadd.f32 0.0, %v1789
          %v1791 = vpop.f32.mrf.mxu0
          %v1792 = vadd.f32 0.0, %v1791
          %v1793 = vpop.f32.mrf.mxu0
          %v1794 = vadd.f32 0.0, %v1793
          %v1795 = vpop.f32.mrf.mxu0
          %v1796 = vadd.f32 0.0, %v1795
          %1797 = vmatprep.mubr.bf16.mxu0 %v377
          %1798 = vmatmul.mubr.bf16.gmra.mxu0 %v376
          %v1799 = vpop.f32.mrf.mxu0
          %v1800 = vadd.f32 0.0, %v1799
          %v1801 = vpop.f32.mrf.mxu0
          %v1802 = vadd.f32 0.0, %v1801
          %v1803 = vpop.f32.mrf.mxu0
          %v1804 = vadd.f32 0.0, %v1803
          %v1805 = vpop.f32.mrf.mxu0
          %v1806 = vadd.f32 0.0, %v1805
          %1807 = vdwg.mxu0
          %1808 = vmatprep.subr.bf16.mxu0 %v1098
          %1809 = vmatpush1.bf16.msra.mxu0 %v1097
          %1810 = vmatprep.subr.bf16.mxu0 %v1092
          %1811 = vmatpush1.bf16.msra.mxu0 %v1091
          %1812 = vmatprep.subr.bf16.mxu0 %v1086
          %1813 = vmatpush1.bf16.msra.mxu0 %v1085
          %1814 = vmatprep.subr.bf16.mxu0 %v1080
          %1815 = vmatpush1.bf16.msra.mxu0 %v1079
          %1816 = vmatprep.subr.bf16.mxu0 %v1074
          %1817 = vmatpush1.bf16.msra.mxu0 %v1073
          %1818 = vmatprep.subr.bf16.mxu0 %v1068
          %1819 = vmatpush1.bf16.msra.mxu0 %v1067
          %1820 = vmatprep.subr.bf16.mxu0 %v1062
          %1821 = vmatpush1.bf16.msra.mxu0 %v1061
          %1822 = vmatprep.subr.bf16.mxu0 %v1056
          %1823 = vmatpush1.bf16.msra.mxu0 %v1055
          %1824 = vmatprep.subr.bf16.mxu0 0
          %1825 = vmatpush2.bf16.msra.mxu0 0
          %1826 = vmatprep.subr.bf16.mxu0 0
          %1827 = vmatpush2.bf16.msra.mxu0 0
          %1828 = vmatprep.subr.bf16.mxu0 0
          %1829 = vmatpush2.bf16.msra.mxu0 0
          %1830 = vmatprep.subr.bf16.mxu0 0
          %1831 = vmatpush2.bf16.msra.mxu0 0
          %1832 = vmatprep.subr.bf16.mxu0 0
          %1833 = vmatpush2.bf16.msra.mxu0 0
          %1834 = vmatprep.subr.bf16.mxu0 0
          %1835 = vmatpush2.bf16.msra.mxu0 0
          %1836 = vmatprep.subr.bf16.mxu0 0
          %1837 = vmatpush2.bf16.msra.mxu0 0
          %1838 = vmatprep.subr.bf16.mxu0 0
          %1839 = vmatpush2.bf16.msra.mxu0 0
          %1840 = vmatprep.mubr.bf16.mxu0 0
          %1841 = vmatmul.mubr.bf16.gmra.mxu0 %v357
          %v1842 = vpop.f32.mrf.mxu0
          %v1843 = vadd.f32 %v1730, %v1842
          %v1844 = vpop.f32.mrf.mxu0
          %v1845 = vadd.f32 %v1732, %v1844
          %v1846 = vpop.f32.mrf.mxu0
          %v1847 = vadd.f32 %v1734, %v1846
          %v1848 = vpop.f32.mrf.mxu0
          %v1849 = vadd.f32 %v1736, %v1848
          %1850 = vmatprep.mubr.bf16.mxu0 0
          %1851 = vmatmul.mubr.bf16.gmra.mxu0 %v360
          %v1852 = vpop.f32.mrf.mxu0
          %v1853 = vadd.f32 %v1740, %v1852
          %v1854 = vpop.f32.mrf.mxu0
          %v1855 = vadd.f32 %v1742, %v1854
          %v1856 = vpop.f32.mrf.mxu0
          %v1857 = vadd.f32 %v1744, %v1856
          %v1858 = vpop.f32.mrf.mxu0
          %v1859 = vadd.f32 %v1746, %v1858
          %1860 = vmatprep.mubr.bf16.mxu0 0
          %1861 = vmatmul.mubr.bf16.gmra.mxu0 %v363
          %v1862 = vpop.f32.mrf.mxu0
          %v1863 = vadd.f32 %v1750, %v1862
          %v1864 = vpop.f32.mrf.mxu0
          %v1865 = vadd.f32 %v1752, %v1864
          %v1866 = vpop.f32.mrf.mxu0
          %v1867 = vadd.f32 %v1754, %v1866
          %v1868 = vpop.f32.mrf.mxu0
          %v1869 = vadd.f32 %v1756, %v1868
          %1870 = vmatprep.mubr.bf16.mxu0 0
          %1871 = vmatmul.mubr.bf16.gmra.mxu0 %v366
          %v1872 = vpop.f32.mrf.mxu0
          %v1873 = vadd.f32 %v1760, %v1872
          %v1874 = vpop.f32.mrf.mxu0
          %v1875 = vadd.f32 %v1762, %v1874
          %v1876 = vpop.f32.mrf.mxu0
          %v1877 = vadd.f32 %v1764, %v1876
          %v1878 = vpop.f32.mrf.mxu0
          %v1879 = vadd.f32 %v1766, %v1878
          %1880 = vmatprep.mubr.bf16.mxu0 0
          %1881 = vmatmul.mubr.bf16.gmra.mxu0 %v369
          %v1882 = vpop.f32.mrf.mxu0
          %v1883 = vadd.f32 %v1770, %v1882
          %v1884 = vpop.f32.mrf.mxu0
          %v1885 = vadd.f32 %v1772, %v1884
          %v1886 = vpop.f32.mrf.mxu0
          %v1887 = vadd.f32 %v1774, %v1886
          %v1888 = vpop.f32.mrf.mxu0
          %v1889 = vadd.f32 %v1776, %v1888
          %1890 = vmatprep.mubr.bf16.mxu0 0
          %1891 = vmatmul.mubr.bf16.gmra.mxu0 %v372
          %v1892 = vpop.f32.mrf.mxu0
          %v1893 = vadd.f32 %v1780, %v1892
          %v1894 = vpop.f32.mrf.mxu0
          %v1895 = vadd.f32 %v1782, %v1894
          %v1896 = vpop.f32.mrf.mxu0
          %v1897 = vadd.f32 %v1784, %v1896
          %v1898 = vpop.f32.mrf.mxu0
          %v1899 = vadd.f32 %v1786, %v1898
          %1900 = vmatprep.mubr.bf16.mxu0 0
          %1901 = vmatmul.mubr.bf16.gmra.mxu0 %v375
          %v1902 = vpop.f32.mrf.mxu0
          %v1903 = vadd.f32 %v1790, %v1902
          %v1904 = vpop.f32.mrf.mxu0
          %v1905 = vadd.f32 %v1792, %v1904
          %v1906 = vpop.f32.mrf.mxu0
          %v1907 = vadd.f32 %v1794, %v1906
          %v1908 = vpop.f32.mrf.mxu0
          %v1909 = vadd.f32 %v1796, %v1908
          %1910 = vmatprep.mubr.bf16.mxu0 0
          %1911 = vmatmul.mubr.bf16.gmra.mxu0 %v378
          %v1912 = vpop.f32.mrf.mxu0
          %v1913 = vadd.f32 %v1800, %v1912
          %v1914 = vpop.f32.mrf.mxu0
          %v1915 = vadd.f32 %v1802, %v1914
          %v1916 = vpop.f32.mrf.mxu0
          %v1917 = vadd.f32 %v1804, %v1916
          %v1918 = vpop.f32.mrf.mxu0
          %v1919 = vadd.f32 %v1806, %v1918
          %1920 = vdwg.mxu0
          %v1921 = vpack.c.bf16 %v1395, %v1391
          %v1922 = vpack.c.bf16 %v1397, %v1393
          %v1923 = vpack.c.bf16 %v1621, %v1617
          %v1924 = vpack.c.bf16 %v1623, %v1619
          %v1925 = vpack.c.bf16 %v1847, %v1843
          %v1926 = vpack.c.bf16 %v1849, %v1845
          %v1927 = vpack.c.bf16 %v1405, %v1401
          %v1928 = vpack.c.bf16 %v1407, %v1403
          %v1929 = vpack.c.bf16 %v1631, %v1627
          %v1930 = vpack.c.bf16 %v1633, %v1629
          %v1931 = vpack.c.bf16 %v1857, %v1853
          %v1932 = vpack.c.bf16 %v1859, %v1855
          %v1933 = vpack.c.bf16 %v1415, %v1411
          %v1934 = vpack.c.bf16 %v1417, %v1413
          %v1935 = vpack.c.bf16 %v1641, %v1637
          %v1936 = vpack.c.bf16 %v1643, %v1639
          %v1937 = vpack.c.bf16 %v1867, %v1863
          %v1938 = vpack.c.bf16 %v1869, %v1865
          %v1939 = vpack.c.bf16 %v1425, %v1421
          %v1940 = vpack.c.bf16 %v1427, %v1423
          %v1941 = vpack.c.bf16 %v1651, %v1647
          %v1942 = vpack.c.bf16 %v1653, %v1649
          %v1943 = vpack.c.bf16 %v1877, %v1873
          %v1944 = vpack.c.bf16 %v1879, %v1875
          %v1945 = vpack.c.bf16 %v1435, %v1431
          %v1946 = vpack.c.bf16 %v1437, %v1433
          %v1947 = vpack.c.bf16 %v1661, %v1657
          %v1948 = vpack.c.bf16 %v1663, %v1659
          %v1949 = vpack.c.bf16 %v1887, %v1883
          %v1950 = vpack.c.bf16 %v1889, %v1885
          %v1951 = vpack.c.bf16 %v1445, %v1441
          %v1952 = vpack.c.bf16 %v1447, %v1443
          %v1953 = vpack.c.bf16 %v1671, %v1667
          %v1954 = vpack.c.bf16 %v1673, %v1669
          %v1955 = vpack.c.bf16 %v1897, %v1893
          %v1956 = vpack.c.bf16 %v1899, %v1895
          %v1957 = vpack.c.bf16 %v1455, %v1451
          %v1958 = vpack.c.bf16 %v1457, %v1453
          %v1959 = vpack.c.bf16 %v1681, %v1677
          %v1960 = vpack.c.bf16 %v1683, %v1679
          %v1961 = vpack.c.bf16 %v1907, %v1903
          %v1962 = vpack.c.bf16 %v1909, %v1905
          %v1963 = vpack.c.bf16 %v1465, %v1461
          %v1964 = vpack.c.bf16 %v1467, %v1463
          %v1965 = vpack.c.bf16 %v1691, %v1687
          %v1966 = vpack.c.bf16 %v1693, %v1689
          %v1967 = vpack.c.bf16 %v1917, %v1913
          %v1968 = vpack.c.bf16 %v1919, %v1915
          %v2017 = vunpack.c.l.b16 %v1921
          %v2018 = vunpack.c.l.b16 %v1922
          %v2019 = vunpack.c.l.b16 %v1923
          %v2020 = vunpack.c.l.b16 %v1924
          %v2021 = vunpack.c.l.b16 %v1925
          %v2022 = vunpack.c.l.b16 %v1926
          %v2023 = vunpack.c.h.b16 %v1921
          %v2024 = vunpack.c.h.b16 %v1922
          %v2025 = vunpack.c.h.b16 %v1923
          %v2026 = vunpack.c.h.b16 %v1924
          %v2027 = vunpack.c.h.b16 %v1925
          %v2028 = vunpack.c.h.b16 %v1926
          %v2029 = vunpack.c.l.b16 %v1927
          %v2030 = vunpack.c.l.b16 %v1928
          %v2031 = vunpack.c.l.b16 %v1929
          %v2032 = vunpack.c.l.b16 %v1930
          %v2033 = vunpack.c.l.b16 %v1931
          %v2034 = vunpack.c.l.b16 %v1932
          %v2035 = vunpack.c.h.b16 %v1927
          %v2036 = vunpack.c.h.b16 %v1928
          %v2037 = vunpack.c.h.b16 %v1929
          %v2038 = vunpack.c.h.b16 %v1930
          %v2039 = vunpack.c.h.b16 %v1931
          %v2040 = vunpack.c.h.b16 %v1932
          %v2041 = vunpack.c.l.b16 %v1933
          %v2042 = vunpack.c.l.b16 %v1934
          %v2043 = vunpack.c.l.b16 %v1935
          %v2044 = vunpack.c.l.b16 %v1936
          %v2045 = vunpack.c.l.b16 %v1937
          %v2046 = vunpack.c.l.b16 %v1938
          %v2047 = vunpack.c.h.b16 %v1933
          %v2048 = vunpack.c.h.b16 %v1934
          %v2049 = vunpack.c.h.b16 %v1935
          %v2050 = vunpack.c.h.b16 %v1936
          %v2051 = vunpack.c.h.b16 %v1937
          %v2052 = vunpack.c.h.b16 %v1938
          %v2053 = vunpack.c.l.b16 %v1939
          %v2054 = vunpack.c.l.b16 %v1940
          %v2055 = vunpack.c.l.b16 %v1941
          %v2056 = vunpack.c.l.b16 %v1942
          %v2057 = vunpack.c.l.b16 %v1943
          %v2058 = vunpack.c.l.b16 %v1944
          %v2059 = vunpack.c.h.b16 %v1939
          %v2060 = vunpack.c.h.b16 %v1940
          %v2061 = vunpack.c.h.b16 %v1941
          %v2062 = vunpack.c.h.b16 %v1942
          %v2063 = vunpack.c.h.b16 %v1943
          %v2064 = vunpack.c.h.b16 %v1944
          %v2065 = vunpack.c.l.b16 %v1945
          %v2066 = vunpack.c.l.b16 %v1946
          %v2067 = vunpack.c.l.b16 %v1947
          %v2068 = vunpack.c.l.b16 %v1948
          %v2069 = vunpack.c.l.b16 %v1949
          %v2070 = vunpack.c.l.b16 %v1950
          %v2071 = vunpack.c.h.b16 %v1945
          %v2072 = vunpack.c.h.b16 %v1946
          %v2073 = vunpack.c.h.b16 %v1947
          %v2074 = vunpack.c.h.b16 %v1948
          %v2075 = vunpack.c.h.b16 %v1949
          %v2076 = vunpack.c.h.b16 %v1950
          %v2077 = vunpack.c.l.b16 %v1951
          %v2078 = vunpack.c.l.b16 %v1952
          %v2079 = vunpack.c.l.b16 %v1953
          %v2080 = vunpack.c.l.b16 %v1954
          %v2081 = vunpack.c.l.b16 %v1955
          %v2082 = vunpack.c.l.b16 %v1956
          %v2083 = vunpack.c.h.b16 %v1951
          %v2084 = vunpack.c.h.b16 %v1952
          %v2085 = vunpack.c.h.b16 %v1953
          %v2086 = vunpack.c.h.b16 %v1954
          %v2087 = vunpack.c.h.b16 %v1955
          %v2088 = vunpack.c.h.b16 %v1956
          %v2089 = vunpack.c.l.b16 %v1957
          %v2090 = vunpack.c.l.b16 %v1958
          %v2091 = vunpack.c.l.b16 %v1959
          %v2092 = vunpack.c.l.b16 %v1960
          %v2093 = vunpack.c.l.b16 %v1961
          %v2094 = vunpack.c.l.b16 %v1962
          %v2095 = vunpack.c.h.b16 %v1957
          %v2096 = vunpack.c.h.b16 %v1958
          %v2097 = vunpack.c.h.b16 %v1959
          %v2098 = vunpack.c.h.b16 %v1960
          %v2099 = vunpack.c.h.b16 %v1961
          %v2100 = vunpack.c.h.b16 %v1962
          %v2101 = vunpack.c.l.b16 %v1963
          %v2102 = vunpack.c.l.b16 %v1964
          %v2103 = vunpack.c.l.b16 %v1965
          %v2104 = vunpack.c.l.b16 %v1966
          %v2105 = vunpack.c.l.b16 %v1967
          %v2106 = vunpack.c.l.b16 %v1968
          %v2107 = vunpack.c.h.b16 %v1963
          %v2108 = vunpack.c.h.b16 %v1964
          %v2109 = vunpack.c.h.b16 %v1965
          %v2110 = vunpack.c.h.b16 %v1966
          %v2111 = vunpack.c.h.b16 %v1967
          %v2112 = vunpack.c.h.b16 %v1968
          %v2113 = vpack.c.b16 %v2018, %v2017
          %v2114 = vpack.c.b16 %v2020, %v2019
          %v2115 = vpack.c.b16 %v2022, %v2021
          %v2116 = vpack.c.b16 %v2024, %v2023
          %v2117 = vpack.c.b16 %v2026, %v2025
          %v2118 = vpack.c.b16 %v2028, %v2027
          %v2119 = vpack.c.b16 %v2030, %v2029
          %v2120 = vpack.c.b16 %v2032, %v2031
          %v2121 = vpack.c.b16 %v2034, %v2033
          %v2122 = vpack.c.b16 %v2036, %v2035
          %v2123 = vpack.c.b16 %v2038, %v2037
          %v2124 = vpack.c.b16 %v2040, %v2039
          %v2125 = vpack.c.b16 %v2042, %v2041
          %v2126 = vpack.c.b16 %v2044, %v2043
          %v2127 = vpack.c.b16 %v2046, %v2045
          %v2128 = vpack.c.b16 %v2048, %v2047
          %v2129 = vpack.c.b16 %v2050, %v2049
          %v2130 = vpack.c.b16 %v2052, %v2051
          %v2131 = vpack.c.b16 %v2054, %v2053
          %v2132 = vpack.c.b16 %v2056, %v2055
          %v2133 = vpack.c.b16 %v2058, %v2057
          %v2134 = vpack.c.b16 %v2060, %v2059
          %v2135 = vpack.c.b16 %v2062, %v2061
          %v2136 = vpack.c.b16 %v2064, %v2063
          %v2137 = vpack.c.b16 %v2066, %v2065
          %v2138 = vpack.c.b16 %v2068, %v2067
          %v2139 = vpack.c.b16 %v2070, %v2069
          %v2140 = vpack.c.b16 %v2072, %v2071
          %v2141 = vpack.c.b16 %v2074, %v2073
          %v2142 = vpack.c.b16 %v2076, %v2075
          %v2143 = vpack.c.b16 %v2078, %v2077
          %v2144 = vpack.c.b16 %v2080, %v2079
          %v2145 = vpack.c.b16 %v2082, %v2081
          %v2146 = vpack.c.b16 %v2084, %v2083
          %v2147 = vpack.c.b16 %v2086, %v2085
          %v2148 = vpack.c.b16 %v2088, %v2087
          %v2149 = vpack.c.b16 %v2090, %v2089
          %v2150 = vpack.c.b16 %v2092, %v2091
          %v2151 = vpack.c.b16 %v2094, %v2093
          %v2152 = vpack.c.b16 %v2096, %v2095
          %v2153 = vpack.c.b16 %v2098, %v2097
          %v2154 = vpack.c.b16 %v2100, %v2099
          %v2155 = vpack.c.b16 %v2102, %v2101
          %v2156 = vpack.c.b16 %v2104, %v2103
          %v2157 = vpack.c.b16 %v2106, %v2105
          %v2158 = vpack.c.b16 %v2108, %v2107
          %v2159 = vpack.c.b16 %v2110, %v2109
          %v2160 = vpack.c.b16 %v2112, %v2111
          %2209 = vst [vmem:[#allocation2] sm:$0xff] %v2113
          %2210 = vst [vmem:[#allocation2 + $0x8] sm:$0xff] %v2114
          %2211 = vst [vmem:[#allocation2 + $0x10] sm:$0xff] %v2115
          %2212 = vst [vmem:[#allocation2 + $0x18] sm:$0xff] %v2116
          %2213 = vst [vmem:[#allocation2 + $0x20] sm:$0xff] %v2117
          %2214 = vst [vmem:[#allocation2 + $0x28] sm:$0xff] %v2118
          %2215 = vst [vmem:[#allocation2 + $0x30] sm:$0xff] %v2119
          %2216 = vst [vmem:[#allocation2 + $0x38] sm:$0xff] %v2120
          %2217 = vst [vmem:[#allocation2 + $0x40] sm:$0xff] %v2121
          %2218 = vst [vmem:[#allocation2 + $0x48] sm:$0xff] %v2122
          %2219 = vst [vmem:[#allocation2 + $0x50] sm:$0xff] %v2123
          %2220 = vst [vmem:[#allocation2 + $0x58] sm:$0xff] %v2124
          %2221 = vst [vmem:[#allocation2 + $0x60] sm:$0xff] %v2125
          %2222 = vst [vmem:[#allocation2 + $0x68] sm:$0xff] %v2126
          %2223 = vst [vmem:[#allocation2 + $0x70] sm:$0xff] %v2127
          %2224 = vst [vmem:[#allocation2 + $0x78] sm:$0xff] %v2128
          %2225 = vst [vmem:[#allocation2 + $0x80] sm:$0xff] %v2129
          %2226 = vst [vmem:[#allocation2 + $0x88] sm:$0xff] %v2130
          %2227 = vst [vmem:[#allocation2 + $0x90] sm:$0xff] %v2131
          %2228 = vst [vmem:[#allocation2 + $0x98] sm:$0xff] %v2132
          %2229 = vst [vmem:[#allocation2 + $0xa0] sm:$0xff] %v2133
          %2230 = vst [vmem:[#allocation2 + $0xa8] sm:$0xff] %v2134
          %2231 = vst [vmem:[#allocation2 + $0xb0] sm:$0xff] %v2135
          %2232 = vst [vmem:[#allocation2 + $0xb8] sm:$0xff] %v2136
          %2233 = vst [vmem:[#allocation2 + $0xc0] sm:$0xff] %v2137
          %2234 = vst [vmem:[#allocation2 + $0xc8] sm:$0xff] %v2138
          %2235 = vst [vmem:[#allocation2 + $0xd0] sm:$0xff] %v2139
          %2236 = vst [vmem:[#allocation2 + $0xd8] sm:$0xff] %v2140
          %2237 = vst [vmem:[#allocation2 + $0xe0] sm:$0xff] %v2141
          %2238 = vst [vmem:[#allocation2 + $0xe8] sm:$0xff] %v2142
          %2239 = vst [vmem:[#allocation2 + $0xf0] sm:$0xff] %v2143
          %2240 = vst [vmem:[#allocation2 + $0xf8] sm:$0xff] %v2144
          %2241 = vst [vmem:[#allocation2 + $0x100] sm:$0xff] %v2145
          %2242 = vst [vmem:[#allocation2 + $0x108] sm:$0xff] %v2146
          %2243 = vst [vmem:[#allocation2 + $0x110] sm:$0xff] %v2147
          %2244 = vst [vmem:[#allocation2 + $0x118] sm:$0xff] %v2148
          %2245 = vst [vmem:[#allocation2 + $0x120] sm:$0xff] %v2149
          %2246 = vst [vmem:[#allocation2 + $0x128] sm:$0xff] %v2150
          %2247 = vst [vmem:[#allocation2 + $0x130] sm:$0xff] %v2151
          %2248 = vst [vmem:[#allocation2 + $0x138] sm:$0xff] %v2152
          %2249 = vst [vmem:[#allocation2 + $0x140] sm:$0xff] %v2153
          %2250 = vst [vmem:[#allocation2 + $0x148] sm:$0xff] %v2154
          %2251 = vst [vmem:[#allocation2 + $0x150] sm:$0xff] %v2155
          %2252 = vst [vmem:[#allocation2 + $0x158] sm:$0xff] %v2156
          %2253 = vst [vmem:[#allocation2 + $0x160] sm:$0xff] %v2157
          %2254 = vst [vmem:[#allocation2 + $0x168] sm:$0xff] %v2158
          %2255 = vst [vmem:[#allocation2 + $0x170] sm:$0xff] %v2159
          %2256 = vst [vmem:[#allocation2 + $0x178] sm:$0xff] %v2160
        $region60: #{tpu_custom_call.1} parent=39 // pred_fallthru
          _
        %s2257 = smul.u32 %s29, 128
        %s2258 = sshra.s32 %s2257, 3
        %s2259 = sand.u32 %s2257, 7
        %s2260 = smul.u32 %s2258, 3
        %s2261 = smul.addr %s2260, 8
        %s2262 = scalar_lea.vmem %s262, %s2261 [#allocation5]
        %v2263 = vld [vmem:[%s2262] sm:$0xff]
        %v2264 = vld [vmem:[%s2262 + $0x8] sm:$0xff]
        %v2265 = vld [vmem:[%s2262 + $0x10] sm:$0xff]
        %v2266 = vld [vmem:[%s2262 + $0x18] sm:$0xff]
        %v2267 = vld [vmem:[%s2262 + $0x20] sm:$0xff]
        %v2268 = vld [vmem:[%s2262 + $0x28] sm:$0xff]
        %v2269 = vld [vmem:[%s2262 + $0x30] sm:$0xff]
        %v2270 = vld [vmem:[%s2262 + $0x38] sm:$0xff]
        %v2271 = vld [vmem:[%s2262 + $0x40] sm:$0xff]
        %v2272 = vld [vmem:[%s2262 + $0x48] sm:$0xff]
        %v2273 = vld [vmem:[%s2262 + $0x50] sm:$0xff]
        %v2274 = vld [vmem:[%s2262 + $0x58] sm:$0xff]
        %v2275 = vld [vmem:[%s2262 + $0x60] sm:$0xff]
        %v2276 = vld [vmem:[%s2262 + $0x68] sm:$0xff]
        %v2277 = vld [vmem:[%s2262 + $0x70] sm:$0xff]
        %v2278 = vld [vmem:[%s2262 + $0x78] sm:$0xff]
        %v2279 = vld [vmem:[%s2262 + $0x80] sm:$0xff]
        %v2280 = vld [vmem:[%s2262 + $0x88] sm:$0xff]
        %v2281 = vld [vmem:[%s2262 + $0x90] sm:$0xff]
        %v2282 = vld [vmem:[%s2262 + $0x98] sm:$0xff]
        %v2283 = vld [vmem:[%s2262 + $0xa0] sm:$0xff]
        %v2284 = vld [vmem:[%s2262 + $0xa8] sm:$0xff]
        %v2285 = vld [vmem:[%s2262 + $0xb0] sm:$0xff]
        %v2286 = vld [vmem:[%s2262 + $0xb8] sm:$0xff]
        %v2287 = vld [vmem:[%s2262 + $0xc0] sm:$0xff]
        %v2288 = vld [vmem:[%s2262 + $0xc8] sm:$0xff]
        %v2289 = vld [vmem:[%s2262 + $0xd0] sm:$0xff]
        %v2290 = vld [vmem:[%s2262 + $0xd8] sm:$0xff]
        %v2291 = vld [vmem:[%s2262 + $0xe0] sm:$0xff]
        %v2292 = vld [vmem:[%s2262 + $0xe8] sm:$0xff]
        %v2293 = vld [vmem:[%s2262 + $0xf0] sm:$0xff]
        %v2294 = vld [vmem:[%s2262 + $0xf8] sm:$0xff]
        %v2295 = vld [vmem:[%s2262 + $0x100] sm:$0xff]
        %v2296 = vld [vmem:[%s2262 + $0x108] sm:$0xff]
        %v2297 = vld [vmem:[%s2262 + $0x110] sm:$0xff]
        %v2298 = vld [vmem:[%s2262 + $0x118] sm:$0xff]
        %v2299 = vld [vmem:[%s2262 + $0x120] sm:$0xff]
        %v2300 = vld [vmem:[%s2262 + $0x128] sm:$0xff]
        %v2301 = vld [vmem:[%s2262 + $0x130] sm:$0xff]
        %v2302 = vld [vmem:[%s2262 + $0x138] sm:$0xff]
        %v2303 = vld [vmem:[%s2262 + $0x140] sm:$0xff]
        %v2304 = vld [vmem:[%s2262 + $0x148] sm:$0xff]
        %v2305 = vld [vmem:[%s2262 + $0x150] sm:$0xff]
        %v2306 = vld [vmem:[%s2262 + $0x158] sm:$0xff]
        %v2307 = vld [vmem:[%s2262 + $0x160] sm:$0xff]
        %v2308 = vld [vmem:[%s2262 + $0x168] sm:$0xff]
        %v2309 = vld [vmem:[%s2262 + $0x170] sm:$0xff]
        %v2310 = vld [vmem:[%s2262 + $0x178] sm:$0xff]
        %v2311 = vpack.c.bf16 %v2266, %v2263
        %v2312 = vpack.c.bf16 %v2267, %v2264
        %v2313 = vpack.c.bf16 %v2268, %v2265
        %v2314 = vpack.c.bf16 %v2272, %v2269
        %v2315 = vpack.c.bf16 %v2273, %v2270
        %v2316 = vpack.c.bf16 %v2274, %v2271
        %v2317 = vpack.c.bf16 %v2278, %v2275
        %v2318 = vpack.c.bf16 %v2279, %v2276
        %v2319 = vpack.c.bf16 %v2280, %v2277
        %v2320 = vpack.c.bf16 %v2284, %v2281
        %v2321 = vpack.c.bf16 %v2285, %v2282
        %v2322 = vpack.c.bf16 %v2286, %v2283
        %v2323 = vpack.c.bf16 %v2290, %v2287
        %v2324 = vpack.c.bf16 %v2291, %v2288
        %v2325 = vpack.c.bf16 %v2292, %v2289
        %v2326 = vpack.c.bf16 %v2296, %v2293
        %v2327 = vpack.c.bf16 %v2297, %v2294
        %v2328 = vpack.c.bf16 %v2298, %v2295
        %v2329 = vpack.c.bf16 %v2302, %v2299
        %v2330 = vpack.c.bf16 %v2303, %v2300
        %v2331 = vpack.c.bf16 %v2304, %v2301
        %v2332 = vpack.c.bf16 %v2308, %v2305
        %v2333 = vpack.c.bf16 %v2309, %v2306
        %v2334 = vpack.c.bf16 %v2310, %v2307
        %v2335 = vld [vmem:[#allocation8] sm:$0xff]
        %v2336 = vld [vmem:[#allocation8 + $0x8] sm:$0xf]
        %v2337 = vld [vmem:[#allocation8 + $0xc] sm:$0xff]
        %v2338 = vld [vmem:[#allocation8 + $0x14] sm:$0xf]
        %v2339 = vld [vmem:[#allocation8 + $0x18] sm:$0xff]
        %v2340 = vld [vmem:[#allocation8 + $0x20] sm:$0xf]
        %v2341 = vld [vmem:[#allocation8 + $0x24] sm:$0xff]
        %v2342 = vld [vmem:[#allocation8 + $0x2c] sm:$0xf]
        %v2343 = vld [vmem:[#allocation8 + $0x30] sm:$0xff]
        %v2344 = vld [vmem:[#allocation8 + $0x38] sm:$0xf]
        %v2345 = vld [vmem:[#allocation8 + $0x3c] sm:$0xff]
        %v2346 = vld [vmem:[#allocation8 + $0x44] sm:$0xf]
        %v2347 = vld [vmem:[#allocation8 + $0x48] sm:$0xff]
        %v2348 = vld [vmem:[#allocation8 + $0x50] sm:$0xf]
        %v2349 = vld [vmem:[#allocation8 + $0x54] sm:$0xff]
        %v2350 = vld [vmem:[#allocation8 + $0x5c] sm:$0xf]
        %v2351 = vld [vmem:[#allocation8 + $0x60] sm:$0xff]
        %v2352 = vld [vmem:[#allocation8 + $0x68] sm:$0xf]
        %v2353 = vld [vmem:[#allocation8 + $0x6c] sm:$0xff]
        %v2354 = vld [vmem:[#allocation8 + $0x74] sm:$0xf]
        %v2355 = vld [vmem:[#allocation8 + $0x78] sm:$0xff]
        %v2356 = vld [vmem:[#allocation8 + $0x80] sm:$0xf]
        %v2357 = vld [vmem:[#allocation8 + $0x84] sm:$0xff]
        %v2358 = vld [vmem:[#allocation8 + $0x8c] sm:$0xf]
        %v2359 = vld [vmem:[#allocation8 + $0x90] sm:$0xff]
        %v2360 = vld [vmem:[#allocation8 + $0x98] sm:$0xf]
        %v2361 = vld [vmem:[#allocation8 + $0x9c] sm:$0xff]
        %v2362 = vld [vmem:[#allocation8 + $0xa4] sm:$0xf]
        %v2363 = vld [vmem:[#allocation8 + $0xa8] sm:$0xff]
        %v2364 = vld [vmem:[#allocation8 + $0xb0] sm:$0xf]
        %v2365 = vld [vmem:[#allocation8 + $0xb4] sm:$0xff]
        %v2366 = vld [vmem:[#allocation8 + $0xbc] sm:$0xf]
        %v2367 = vld [vmem:[#allocation8 + $0xc0] sm:$0xff]
        %v2368 = vld [vmem:[#allocation8 + $0xc8] sm:$0xf]
        %v2369 = vld [vmem:[#allocation8 + $0xcc] sm:$0xff]
        %v2370 = vld [vmem:[#allocation8 + $0xd4] sm:$0xf]
        %v2371 = vld [vmem:[#allocation8 + $0xd8] sm:$0xff]
        %v2372 = vld [vmem:[#allocation8 + $0xe0] sm:$0xf]
        %v2373 = vld [vmem:[#allocation8 + $0xe4] sm:$0xff]
        %v2374 = vld [vmem:[#allocation8 + $0xec] sm:$0xf]
        %v2375 = vld [vmem:[#allocation8 + $0xf0] sm:$0xff]
        %v2376 = vld [vmem:[#allocation8 + $0xf8] sm:$0xf]
        %v2377 = vld [vmem:[#allocation8 + $0xfc] sm:$0xff]
        %v2378 = vld [vmem:[#allocation8 + $0x104] sm:$0xf]
        %v2379 = vld [vmem:[#allocation8 + $0x108] sm:$0xff]
        %v2380 = vld [vmem:[#allocation8 + $0x110] sm:$0xf]
        %v2381 = vld [vmem:[#allocation8 + $0x114] sm:$0xff]
        %v2382 = vld [vmem:[#allocation8 + $0x11c] sm:$0xf]
        %v2383 = vld [vmem:[#allocation8 + $0x120] sm:$0xff]
        %v2384 = vld [vmem:[#allocation8 + $0x128] sm:$0xf]
        %v2385 = vld [vmem:[#allocation8 + $0x12c] sm:$0xff]
        %v2386 = vld [vmem:[#allocation8 + $0x134] sm:$0xf]
        %v2387 = vld [vmem:[#allocation8 + $0x138] sm:$0xff]
        %v2388 = vld [vmem:[#allocation8 + $0x140] sm:$0xf]
        %v2389 = vld [vmem:[#allocation8 + $0x144] sm:$0xff]
        %v2390 = vld [vmem:[#allocation8 + $0x14c] sm:$0xf]
        %v2391 = vld [vmem:[#allocation8 + $0x150] sm:$0xff]
        %v2392 = vld [vmem:[#allocation8 + $0x158] sm:$0xf]
        %v2393 = vld [vmem:[#allocation8 + $0x15c] sm:$0xff]
        %v2394 = vld [vmem:[#allocation8 + $0x164] sm:$0xf]
        %v2395 = vld [vmem:[#allocation8 + $0x168] sm:$0xff]
        %v2396 = vld [vmem:[#allocation8 + $0x170] sm:$0xf]
        %v2397 = vld [vmem:[#allocation8 + $0x174] sm:$0xff]
        %v2398 = vld [vmem:[#allocation8 + $0x17c] sm:$0xf]
        %v2399 = vld [vmem:[#allocation8 + $0x180] sm:$0xff]
        %v2400 = vld [vmem:[#allocation8 + $0x188] sm:$0xf]
        %v2401 = vld [vmem:[#allocation8 + $0x18c] sm:$0xff]
        %v2402 = vld [vmem:[#allocation8 + $0x194] sm:$0xf]
        %v2403 = vld [vmem:[#allocation8 + $0x198] sm:$0xff]
        %v2404 = vld [vmem:[#allocation8 + $0x1a0] sm:$0xf]
        %v2405 = vld [vmem:[#allocation8 + $0x1a4] sm:$0xff]
        %v2406 = vld [vmem:[#allocation8 + $0x1ac] sm:$0xf]
        %v2407 = vld [vmem:[#allocation8 + $0x1b0] sm:$0xff]
        %v2408 = vld [vmem:[#allocation8 + $0x1b8] sm:$0xf]
        %v2409 = vld [vmem:[#allocation8 + $0x1bc] sm:$0xff]
        %v2410 = vld [vmem:[#allocation8 + $0x1c4] sm:$0xf]
        %v2411 = vld [vmem:[#allocation8 + $0x1c8] sm:$0xff]
        %v2412 = vld [vmem:[#allocation8 + $0x1d0] sm:$0xf]
        %v2413 = vld [vmem:[#allocation8 + $0x1d4] sm:$0xff]
        %v2414 = vld [vmem:[#allocation8 + $0x1dc] sm:$0xf]
        %v2415 = vld [vmem:[#allocation8 + $0x1e0] sm:$0xff]
        %v2416 = vld [vmem:[#allocation8 + $0x1e8] sm:$0xf]
        %v2417 = vld [vmem:[#allocation8 + $0x1ec] sm:$0xff]
        %v2418 = vld [vmem:[#allocation8 + $0x1f4] sm:$0xf]
        %v2419 = vld [vmem:[#allocation8 + $0x1f8] sm:$0xff]
        %v2420 = vld [vmem:[#allocation8 + $0x200] sm:$0xf]
        %v2421 = vld [vmem:[#allocation8 + $0x204] sm:$0xff]
        %v2422 = vld [vmem:[#allocation8 + $0x20c] sm:$0xf]
        %v2423 = vld [vmem:[#allocation8 + $0x210] sm:$0xff]
        %v2424 = vld [vmem:[#allocation8 + $0x218] sm:$0xf]
        %v2425 = vld [vmem:[#allocation8 + $0x21c] sm:$0xff]
        %v2426 = vld [vmem:[#allocation8 + $0x224] sm:$0xf]
        %v2427 = vld [vmem:[#allocation8 + $0x228] sm:$0xff]
        %v2428 = vld [vmem:[#allocation8 + $0x230] sm:$0xf]
        %v2429 = vld [vmem:[#allocation8 + $0x234] sm:$0xff]
        %v2430 = vld [vmem:[#allocation8 + $0x23c] sm:$0xf]
        %v2527 = vunpack.c.l.b16 %v2335
        %v2528 = vunpack.c.h.b16 %v2335
        %v2529 = vunpack.c.l.b16 %v2336
        %v2530 = vunpack.c.l.b16 %v2337
        %v2531 = vunpack.c.h.b16 %v2337
        %v2532 = vunpack.c.l.b16 %v2338
        %v2533 = vunpack.c.l.b16 %v2339
        %v2534 = vunpack.c.h.b16 %v2339
        %v2535 = vunpack.c.l.b16 %v2340
        %v2536 = vunpack.c.l.b16 %v2341
        %v2537 = vunpack.c.h.b16 %v2341
        %v2538 = vunpack.c.l.b16 %v2342
        %v2539 = vunpack.c.l.b16 %v2343
        %v2540 = vunpack.c.h.b16 %v2343
        %v2541 = vunpack.c.l.b16 %v2344
        %v2542 = vunpack.c.l.b16 %v2345
        %v2543 = vunpack.c.h.b16 %v2345
        %v2544 = vunpack.c.l.b16 %v2346
        %v2545 = vunpack.c.l.b16 %v2347
        %v2546 = vunpack.c.h.b16 %v2347
        %v2547 = vunpack.c.l.b16 %v2348
        %v2548 = vunpack.c.l.b16 %v2349
        %v2549 = vunpack.c.h.b16 %v2349
        %v2550 = vunpack.c.l.b16 %v2350
        %v2551 = vunpack.c.l.b16 %v2351
        %v2552 = vunpack.c.h.b16 %v2351
        %v2553 = vunpack.c.l.b16 %v2352
        %v2554 = vunpack.c.l.b16 %v2353
        %v2555 = vunpack.c.h.b16 %v2353
        %v2556 = vunpack.c.l.b16 %v2354
        %v2557 = vunpack.c.l.b16 %v2355
        %v2558 = vunpack.c.h.b16 %v2355
        %v2559 = vunpack.c.l.b16 %v2356
        %v2560 = vunpack.c.l.b16 %v2357
        %v2561 = vunpack.c.h.b16 %v2357
        %v2562 = vunpack.c.l.b16 %v2358
        %v2563 = vunpack.c.l.b16 %v2359
        %v2564 = vunpack.c.h.b16 %v2359
        %v2565 = vunpack.c.l.b16 %v2360
        %v2566 = vunpack.c.l.b16 %v2361
        %v2567 = vunpack.c.h.b16 %v2361
        %v2568 = vunpack.c.l.b16 %v2362
        %v2569 = vunpack.c.l.b16 %v2363
        %v2570 = vunpack.c.h.b16 %v2363
        %v2571 = vunpack.c.l.b16 %v2364
        %v2572 = vunpack.c.l.b16 %v2365
        %v2573 = vunpack.c.h.b16 %v2365
        %v2574 = vunpack.c.l.b16 %v2366
        %v2575 = vunpack.c.l.b16 %v2367
        %v2576 = vunpack.c.h.b16 %v2367
        %v2577 = vunpack.c.l.b16 %v2368
        %v2578 = vunpack.c.l.b16 %v2369
        %v2579 = vunpack.c.h.b16 %v2369
        %v2580 = vunpack.c.l.b16 %v2370
        %v2581 = vunpack.c.l.b16 %v2371
        %v2582 = vunpack.c.h.b16 %v2371
        %v2583 = vunpack.c.l.b16 %v2372
        %v2584 = vunpack.c.l.b16 %v2373
        %v2585 = vunpack.c.h.b16 %v2373
        %v2586 = vunpack.c.l.b16 %v2374
        %v2587 = vunpack.c.l.b16 %v2375
        %v2588 = vunpack.c.h.b16 %v2375
        %v2589 = vunpack.c.l.b16 %v2376
        %v2590 = vunpack.c.l.b16 %v2377
        %v2591 = vunpack.c.h.b16 %v2377
        %v2592 = vunpack.c.l.b16 %v2378
        %v2593 = vunpack.c.l.b16 %v2379
        %v2594 = vunpack.c.h.b16 %v2379
        %v2595 = vunpack.c.l.b16 %v2380
        %v2596 = vunpack.c.l.b16 %v2381
        %v2597 = vunpack.c.h.b16 %v2381
        %v2598 = vunpack.c.l.b16 %v2382
        %v2599 = vunpack.c.l.b16 %v2383
        %v2600 = vunpack.c.h.b16 %v2383
        %v2601 = vunpack.c.l.b16 %v2384
        %v2602 = vunpack.c.l.b16 %v2385
        %v2603 = vunpack.c.h.b16 %v2385
        %v2604 = vunpack.c.l.b16 %v2386
        %v2605 = vunpack.c.l.b16 %v2387
        %v2606 = vunpack.c.h.b16 %v2387
        %v2607 = vunpack.c.l.b16 %v2388
        %v2608 = vunpack.c.l.b16 %v2389
        %v2609 = vunpack.c.h.b16 %v2389
        %v2610 = vunpack.c.l.b16 %v2390
        %v2611 = vunpack.c.l.b16 %v2391
        %v2612 = vunpack.c.h.b16 %v2391
        %v2613 = vunpack.c.l.b16 %v2392
        %v2614 = vunpack.c.l.b16 %v2393
        %v2615 = vunpack.c.h.b16 %v2393
        %v2616 = vunpack.c.l.b16 %v2394
        %v2617 = vunpack.c.l.b16 %v2395
        %v2618 = vunpack.c.h.b16 %v2395
        %v2619 = vunpack.c.l.b16 %v2396
        %v2620 = vunpack.c.l.b16 %v2397
        %v2621 = vunpack.c.h.b16 %v2397
        %v2622 = vunpack.c.l.b16 %v2398
        %v2623 = vunpack.c.l.b16 %v2399
        %v2624 = vunpack.c.h.b16 %v2399
        %v2625 = vunpack.c.l.b16 %v2400
        %v2626 = vunpack.c.l.b16 %v2401
        %v2627 = vunpack.c.h.b16 %v2401
        %v2628 = vunpack.c.l.b16 %v2402
        %v2629 = vunpack.c.l.b16 %v2403
        %v2630 = vunpack.c.h.b16 %v2403
        %v2631 = vunpack.c.l.b16 %v2404
        %v2632 = vunpack.c.l.b16 %v2405
        %v2633 = vunpack.c.h.b16 %v2405
        %v2634 = vunpack.c.l.b16 %v2406
        %v2635 = vunpack.c.l.b16 %v2407
        %v2636 = vunpack.c.h.b16 %v2407
        %v2637 = vunpack.c.l.b16 %v2408
        %v2638 = vunpack.c.l.b16 %v2409
        %v2639 = vunpack.c.h.b16 %v2409
        %v2640 = vunpack.c.l.b16 %v2410
        %v2641 = vunpack.c.l.b16 %v2411
        %v2642 = vunpack.c.h.b16 %v2411
        %v2643 = vunpack.c.l.b16 %v2412
        %v2644 = vunpack.c.l.b16 %v2413
        %v2645 = vunpack.c.h.b16 %v2413
        %v2646 = vunpack.c.l.b16 %v2414
        %v2647 = vunpack.c.l.b16 %v2415
        %v2648 = vunpack.c.h.b16 %v2415
        %v2649 = vunpack.c.l.b16 %v2416
        %v2650 = vunpack.c.l.b16 %v2417
        %v2651 = vunpack.c.h.b16 %v2417
        %v2652 = vunpack.c.l.b16 %v2418
        %v2653 = vunpack.c.l.b16 %v2419
        %v2654 = vunpack.c.h.b16 %v2419
        %v2655 = vunpack.c.l.b16 %v2420
        %v2656 = vunpack.c.l.b16 %v2421
        %v2657 = vunpack.c.h.b16 %v2421
        %v2658 = vunpack.c.l.b16 %v2422
        %v2659 = vunpack.c.l.b16 %v2423
        %v2660 = vunpack.c.h.b16 %v2423
        %v2661 = vunpack.c.l.b16 %v2424
        %v2662 = vunpack.c.l.b16 %v2425
        %v2663 = vunpack.c.h.b16 %v2425
        %v2664 = vunpack.c.l.b16 %v2426
        %v2665 = vunpack.c.l.b16 %v2427
        %v2666 = vunpack.c.h.b16 %v2427
        %v2667 = vunpack.c.l.b16 %v2428
        %v2668 = vunpack.c.l.b16 %v2429
        %v2669 = vunpack.c.h.b16 %v2429
        %v2670 = vunpack.c.l.b16 %v2430
        %v2671 = vpack.c.b16 %v2530, %v2527
        %v2672 = vpack.c.b16 %v2531, %v2528
        %v2673 = vpack.c.b16 %v2532, %v2529
        %v2674 = vpack.c.b16 %v2536, %v2533
        %v2675 = vpack.c.b16 %v2537, %v2534
        %v2676 = vpack.c.b16 %v2538, %v2535
        %v2677 = vpack.c.b16 %v2542, %v2539
        %v2678 = vpack.c.b16 %v2543, %v2540
        %v2679 = vpack.c.b16 %v2544, %v2541
        %v2680 = vpack.c.b16 %v2548, %v2545
        %v2681 = vpack.c.b16 %v2549, %v2546
        %v2682 = vpack.c.b16 %v2550, %v2547
        %v2683 = vpack.c.b16 %v2554, %v2551
        %v2684 = vpack.c.b16 %v2555, %v2552
        %v2685 = vpack.c.b16 %v2556, %v2553
        %v2686 = vpack.c.b16 %v2560, %v2557
        %v2687 = vpack.c.b16 %v2561, %v2558
        %v2688 = vpack.c.b16 %v2562, %v2559
        %v2689 = vpack.c.b16 %v2566, %v2563
        %v2690 = vpack.c.b16 %v2567, %v2564
        %v2691 = vpack.c.b16 %v2568, %v2565
        %v2692 = vpack.c.b16 %v2572, %v2569
        %v2693 = vpack.c.b16 %v2573, %v2570
        %v2694 = vpack.c.b16 %v2574, %v2571
        %v2695 = vpack.c.b16 %v2578, %v2575
        %v2696 = vpack.c.b16 %v2579, %v2576
        %v2697 = vpack.c.b16 %v2580, %v2577
        %v2698 = vpack.c.b16 %v2584, %v2581
        %v2699 = vpack.c.b16 %v2585, %v2582
        %v2700 = vpack.c.b16 %v2586, %v2583
        %v2701 = vpack.c.b16 %v2590, %v2587
        %v2702 = vpack.c.b16 %v2591, %v2588
        %v2703 = vpack.c.b16 %v2592, %v2589
        %v2704 = vpack.c.b16 %v2596, %v2593
        %v2705 = vpack.c.b16 %v2597, %v2594
        %v2706 = vpack.c.b16 %v2598, %v2595
        %v2707 = vpack.c.b16 %v2602, %v2599
        %v2708 = vpack.c.b16 %v2603, %v2600
        %v2709 = vpack.c.b16 %v2604, %v2601
        %v2710 = vpack.c.b16 %v2608, %v2605
        %v2711 = vpack.c.b16 %v2609, %v2606
        %v2712 = vpack.c.b16 %v2610, %v2607
        %v2713 = vpack.c.b16 %v2614, %v2611
        %v2714 = vpack.c.b16 %v2615, %v2612
        %v2715 = vpack.c.b16 %v2616, %v2613
        %v2716 = vpack.c.b16 %v2620, %v2617
        %v2717 = vpack.c.b16 %v2621, %v2618
        %v2718 = vpack.c.b16 %v2622, %v2619
        %v2719 = vpack.c.b16 %v2626, %v2623
        %v2720 = vpack.c.b16 %v2627, %v2624
        %v2721 = vpack.c.b16 %v2628, %v2625
        %v2722 = vpack.c.b16 %v2632, %v2629
        %v2723 = vpack.c.b16 %v2633, %v2630
        %v2724 = vpack.c.b16 %v2634, %v2631
        %v2725 = vpack.c.b16 %v2638, %v2635
        %v2726 = vpack.c.b16 %v2639, %v2636
        %v2727 = vpack.c.b16 %v2640, %v2637
        %v2728 = vpack.c.b16 %v2644, %v2641
        %v2729 = vpack.c.b16 %v2645, %v2642
        %v2730 = vpack.c.b16 %v2646, %v2643
        %v2731 = vpack.c.b16 %v2650, %v2647
        %v2732 = vpack.c.b16 %v2651, %v2648
        %v2733 = vpack.c.b16 %v2652, %v2649
        %v2734 = vpack.c.b16 %v2656, %v2653
        %v2735 = vpack.c.b16 %v2657, %v2654
        %v2736 = vpack.c.b16 %v2658, %v2655
        %v2737 = vpack.c.b16 %v2662, %v2659
        %v2738 = vpack.c.b16 %v2663, %v2660
        %v2739 = vpack.c.b16 %v2664, %v2661
        %v2740 = vpack.c.b16 %v2668, %v2665
        %v2741 = vpack.c.b16 %v2669, %v2666
        %v2742 = vpack.c.b16 %v2670, %v2667
        %2815 = vmatprep.subr.bf16.mxu0 %v2693
        %2816 = vmatpush1.bf16.msra.mxu0 %v2692
        %2817 = vmatprep.subr.bf16.mxu0 %v2690
        %2818 = vmatpush1.bf16.msra.mxu0 %v2689
        %2819 = vmatprep.subr.bf16.mxu0 %v2687
        %2820 = vmatpush1.bf16.msra.mxu0 %v2686
        %2821 = vmatprep.subr.bf16.mxu0 %v2684
        %2822 = vmatpush1.bf16.msra.mxu0 %v2683
        %2823 = vmatprep.subr.bf16.mxu0 %v2681
        %2824 = vmatpush1.bf16.msra.mxu0 %v2680
        %2825 = vmatprep.subr.bf16.mxu0 %v2678
        %2826 = vmatpush1.bf16.msra.mxu0 %v2677
        %2827 = vmatprep.subr.bf16.mxu0 %v2675
        %2828 = vmatpush1.bf16.msra.mxu0 %v2674
        %2829 = vmatprep.subr.bf16.mxu0 %v2672
        %2830 = vmatpush1.bf16.msra.mxu0 %v2671
        %2831 = vmatprep.subr.bf16.mxu0 %v2717
        %2832 = vmatpush2.bf16.msra.mxu0 %v2716
        %2833 = vmatprep.subr.bf16.mxu0 %v2714
        %2834 = vmatpush2.bf16.msra.mxu0 %v2713
        %2835 = vmatprep.subr.bf16.mxu0 %v2711
        %2836 = vmatpush2.bf16.msra.mxu0 %v2710
        %2837 = vmatprep.subr.bf16.mxu0 %v2708
        %2838 = vmatpush2.bf16.msra.mxu0 %v2707
        %2839 = vmatprep.subr.bf16.mxu0 %v2705
        %2840 = vmatpush2.bf16.msra.mxu0 %v2704
        %2841 = vmatprep.subr.bf16.mxu0 %v2702
        %2842 = vmatpush2.bf16.msra.mxu0 %v2701
        %2843 = vmatprep.subr.bf16.mxu0 %v2699
        %2844 = vmatpush2.bf16.msra.mxu0 %v2698
        %2845 = vmatprep.subr.bf16.mxu0 %v2696
        %2846 = vmatpush2.bf16.msra.mxu0 %v2695
        %2847 = vmatprep.mubr.bf16.mxu0 %v2312
        %2848 = vmatmul.mubr.bf16.gmra.mxu0 %v2311
        %v2849 = vpop.f32.mrf.mxu0
        %v2850 = vadd.f32 0.0, %v2849
        %v2851 = vpop.f32.mrf.mxu0
        %v2852 = vadd.f32 0.0, %v2851
        %v2853 = vpop.f32.mrf.mxu0
        %v2854 = vadd.f32 0.0, %v2853
        %v2855 = vpop.f32.mrf.mxu0
        %v2856 = vadd.f32 0.0, %v2855
        %2857 = vmatprep.mubr.bf16.mxu0 %v2315
        %2858 = vmatmul.mubr.bf16.gmra.mxu0 %v2314
        %v2859 = vpop.f32.mrf.mxu0
        %v2860 = vadd.f32 0.0, %v2859
        %v2861 = vpop.f32.mrf.mxu0
        %v2862 = vadd.f32 0.0, %v2861
        %v2863 = vpop.f32.mrf.mxu0
        %v2864 = vadd.f32 0.0, %v2863
        %v2865 = vpop.f32.mrf.mxu0
        %v2866 = vadd.f32 0.0, %v2865
        %2867 = vmatprep.mubr.bf16.mxu0 %v2318
        %2868 = vmatmul.mubr.bf16.gmra.mxu0 %v2317
        %v2869 = vpop.f32.mrf.mxu0
        %v2870 = vadd.f32 0.0, %v2869
        %v2871 = vpop.f32.mrf.mxu0
        %v2872 = vadd.f32 0.0, %v2871
        %v2873 = vpop.f32.mrf.mxu0
        %v2874 = vadd.f32 0.0, %v2873
        %v2875 = vpop.f32.mrf.mxu0
        %v2876 = vadd.f32 0.0, %v2875
        %2877 = vmatprep.mubr.bf16.mxu0 %v2321
        %2878 = vmatmul.mubr.bf16.gmra.mxu0 %v2320
        %v2879 = vpop.f32.mrf.mxu0
        %v2880 = vadd.f32 0.0, %v2879
        %v2881 = vpop.f32.mrf.mxu0
        %v2882 = vadd.f32 0.0, %v2881
        %v2883 = vpop.f32.mrf.mxu0
        %v2884 = vadd.f32 0.0, %v2883
        %v2885 = vpop.f32.mrf.mxu0
        %v2886 = vadd.f32 0.0, %v2885
        %2887 = vmatprep.mubr.bf16.mxu0 %v2324
        %2888 = vmatmul.mubr.bf16.gmra.mxu0 %v2323
        %v2889 = vpop.f32.mrf.mxu0
        %v2890 = vadd.f32 0.0, %v2889
        %v2891 = vpop.f32.mrf.mxu0
        %v2892 = vadd.f32 0.0, %v2891
        %v2893 = vpop.f32.mrf.mxu0
        %v2894 = vadd.f32 0.0, %v2893
        %v2895 = vpop.f32.mrf.mxu0
        %v2896 = vadd.f32 0.0, %v2895
        %2897 = vmatprep.mubr.bf16.mxu0 %v2327
        %2898 = vmatmul.mubr.bf16.gmra.mxu0 %v2326
        %v2899 = vpop.f32.mrf.mxu0
        %v2900 = vadd.f32 0.0, %v2899
        %v2901 = vpop.f32.mrf.mxu0
        %v2902 = vadd.f32 0.0, %v2901
        %v2903 = vpop.f32.mrf.mxu0
        %v2904 = vadd.f32 0.0, %v2903
        %v2905 = vpop.f32.mrf.mxu0
        %v2906 = vadd.f32 0.0, %v2905
        %2907 = vmatprep.mubr.bf16.mxu0 %v2330
        %2908 = vmatmul.mubr.bf16.gmra.mxu0 %v2329
        %v2909 = vpop.f32.mrf.mxu0
        %v2910 = vadd.f32 0.0, %v2909
        %v2911 = vpop.f32.mrf.mxu0
        %v2912 = vadd.f32 0.0, %v2911
        %v2913 = vpop.f32.mrf.mxu0
        %v2914 = vadd.f32 0.0, %v2913
        %v2915 = vpop.f32.mrf.mxu0
        %v2916 = vadd.f32 0.0, %v2915
        %2917 = vmatprep.mubr.bf16.mxu0 %v2333
        %2918 = vmatmul.mubr.bf16.gmra.mxu0 %v2332
        %v2919 = vpop.f32.mrf.mxu0
        %v2920 = vadd.f32 0.0, %v2919
        %v2921 = vpop.f32.mrf.mxu0
        %v2922 = vadd.f32 0.0, %v2921
        %v2923 = vpop.f32.mrf.mxu0
        %v2924 = vadd.f32 0.0, %v2923
        %v2925 = vpop.f32.mrf.mxu0
        %v2926 = vadd.f32 0.0, %v2925
        %2927 = vdwg.mxu0
        %2928 = vmatprep.subr.bf16.mxu0 %v2741
        %2929 = vmatpush1.bf16.msra.mxu0 %v2740
        %2930 = vmatprep.subr.bf16.mxu0 %v2738
        %2931 = vmatpush1.bf16.msra.mxu0 %v2737
        %2932 = vmatprep.subr.bf16.mxu0 %v2735
        %2933 = vmatpush1.bf16.msra.mxu0 %v2734
        %2934 = vmatprep.subr.bf16.mxu0 %v2732
        %2935 = vmatpush1.bf16.msra.mxu0 %v2731
        %2936 = vmatprep.subr.bf16.mxu0 %v2729
        %2937 = vmatpush1.bf16.msra.mxu0 %v2728
        %2938 = vmatprep.subr.bf16.mxu0 %v2726
        %2939 = vmatpush1.bf16.msra.mxu0 %v2725
        %2940 = vmatprep.subr.bf16.mxu0 %v2723
        %2941 = vmatpush1.bf16.msra.mxu0 %v2722
        %2942 = vmatprep.subr.bf16.mxu0 %v2720
        %2943 = vmatpush1.bf16.msra.mxu0 %v2719
        %2944 = vmatprep.subr.bf16.mxu0 0
        %2945 = vmatpush2.bf16.msra.mxu0 0
        %2946 = vmatprep.subr.bf16.mxu0 0
        %2947 = vmatpush2.bf16.msra.mxu0 0
        %2948 = vmatprep.subr.bf16.mxu0 0
        %2949 = vmatpush2.bf16.msra.mxu0 0
        %2950 = vmatprep.subr.bf16.mxu0 0
        %2951 = vmatpush2.bf16.msra.mxu0 0
        %2952 = vmatprep.subr.bf16.mxu0 0
        %2953 = vmatpush2.bf16.msra.mxu0 0
        %2954 = vmatprep.subr.bf16.mxu0 0
        %2955 = vmatpush2.bf16.msra.mxu0 0
        %2956 = vmatprep.subr.bf16.mxu0 0
        %2957 = vmatpush2.bf16.msra.mxu0 0
        %2958 = vmatprep.subr.bf16.mxu0 0
        %2959 = vmatpush2.bf16.msra.mxu0 0
        %2960 = vmatprep.mubr.bf16.mxu0 0
        %2961 = vmatmul.mubr.bf16.gmra.mxu0 %v2313
        %v2962 = vpop.f32.mrf.mxu0
        %v2963 = vadd.f32 %v2850, %v2962
        %v2964 = vpop.f32.mrf.mxu0
        %v2965 = vadd.f32 %v2852, %v2964
        %v2966 = vpop.f32.mrf.mxu0
        %v2967 = vadd.f32 %v2854, %v2966
        %v2968 = vpop.f32.mrf.mxu0
        %v2969 = vadd.f32 %v2856, %v2968
        %2970 = vmatprep.mubr.bf16.mxu0 0
        %2971 = vmatmul.mubr.bf16.gmra.mxu0 %v2316
        %v2972 = vpop.f32.mrf.mxu0
        %v2973 = vadd.f32 %v2860, %v2972
        %v2974 = vpop.f32.mrf.mxu0
        %v2975 = vadd.f32 %v2862, %v2974
        %v2976 = vpop.f32.mrf.mxu0
        %v2977 = vadd.f32 %v2864, %v2976
        %v2978 = vpop.f32.mrf.mxu0
        %v2979 = vadd.f32 %v2866, %v2978
        %2980 = vmatprep.mubr.bf16.mxu0 0
        %2981 = vmatmul.mubr.bf16.gmra.mxu0 %v2319
        %v2982 = vpop.f32.mrf.mxu0
        %v2983 = vadd.f32 %v2870, %v2982
        %v2984 = vpop.f32.mrf.mxu0
        %v2985 = vadd.f32 %v2872, %v2984
        %v2986 = vpop.f32.mrf.mxu0
        %v2987 = vadd.f32 %v2874, %v2986
        %v2988 = vpop.f32.mrf.mxu0
        %v2989 = vadd.f32 %v2876, %v2988
        %2990 = vmatprep.mubr.bf16.mxu0 0
        %2991 = vmatmul.mubr.bf16.gmra.mxu0 %v2322
        %v2992 = vpop.f32.mrf.mxu0
        %v2993 = vadd.f32 %v2880, %v2992
        %v2994 = vpop.f32.mrf.mxu0
        %v2995 = vadd.f32 %v2882, %v2994
        %v2996 = vpop.f32.mrf.mxu0
        %v2997 = vadd.f32 %v2884, %v2996
        %v2998 = vpop.f32.mrf.mxu0
        %v2999 = vadd.f32 %v2886, %v2998
        %3000 = vmatprep.mubr.bf16.mxu0 0
        %3001 = vmatmul.mubr.bf16.gmra.mxu0 %v2325
        %v3002 = vpop.f32.mrf.mxu0
        %v3003 = vadd.f32 %v2890, %v3002
        %v3004 = vpop.f32.mrf.mxu0
        %v3005 = vadd.f32 %v2892, %v3004
        %v3006 = vpop.f32.mrf.mxu0
        %v3007 = vadd.f32 %v2894, %v3006
        %v3008 = vpop.f32.mrf.mxu0
        %v3009 = vadd.f32 %v2896, %v3008
        %3010 = vmatprep.mubr.bf16.mxu0 0
        %3011 = vmatmul.mubr.bf16.gmra.mxu0 %v2328
        %v3012 = vpop.f32.mrf.mxu0
        %v3013 = vadd.f32 %v2900, %v3012
        %v3014 = vpop.f32.mrf.mxu0
        %v3015 = vadd.f32 %v2902, %v3014
        %v3016 = vpop.f32.mrf.mxu0
        %v3017 = vadd.f32 %v2904, %v3016
        %v3018 = vpop.f32.mrf.mxu0
        %v3019 = vadd.f32 %v2906, %v3018
        %3020 = vmatprep.mubr.bf16.mxu0 0
        %3021 = vmatmul.mubr.bf16.gmra.mxu0 %v2331
        %v3022 = vpop.f32.mrf.mxu0
        %v3023 = vadd.f32 %v2910, %v3022
        %v3024 = vpop.f32.mrf.mxu0
        %v3025 = vadd.f32 %v2912, %v3024
        %v3026 = vpop.f32.mrf.mxu0
        %v3027 = vadd.f32 %v2914, %v3026
        %v3028 = vpop.f32.mrf.mxu0
        %v3029 = vadd.f32 %v2916, %v3028
        %3030 = vmatprep.mubr.bf16.mxu0 0
        %3031 = vmatmul.mubr.bf16.gmra.mxu0 %v2334
        %v3032 = vpop.f32.mrf.mxu0
        %v3033 = vadd.f32 %v2920, %v3032
        %v3034 = vpop.f32.mrf.mxu0
        %v3035 = vadd.f32 %v2922, %v3034
        %v3036 = vpop.f32.mrf.mxu0
        %v3037 = vadd.f32 %v2924, %v3036
        %v3038 = vpop.f32.mrf.mxu0
        %v3039 = vadd.f32 %v2926, %v3038
        %3040 = vdwg.mxu0
        %3041 = vmatprep.subr.bf16.mxu0 0
        %3042 = vmatpush1.bf16.msra.mxu0 %v2694
        %3043 = vmatprep.subr.bf16.mxu0 0
        %3044 = vmatpush1.bf16.msra.mxu0 %v2691
        %3045 = vmatprep.subr.bf16.mxu0 0
        %3046 = vmatpush1.bf16.msra.mxu0 %v2688
        %3047 = vmatprep.subr.bf16.mxu0 0
        %3048 = vmatpush1.bf16.msra.mxu0 %v2685
        %3049 = vmatprep.subr.bf16.mxu0 0
        %3050 = vmatpush1.bf16.msra.mxu0 %v2682
        %3051 = vmatprep.subr.bf16.mxu0 0
        %3052 = vmatpush1.bf16.msra.mxu0 %v2679
        %3053 = vmatprep.subr.bf16.mxu0 0
        %3054 = vmatpush1.bf16.msra.mxu0 %v2676
        %3055 = vmatprep.subr.bf16.mxu0 0
        %3056 = vmatpush1.bf16.msra.mxu0 %v2673
        %3057 = vmatprep.subr.bf16.mxu0 0
        %3058 = vmatpush2.bf16.msra.mxu0 %v2718
        %3059 = vmatprep.subr.bf16.mxu0 0
        %3060 = vmatpush2.bf16.msra.mxu0 %v2715
        %3061 = vmatprep.subr.bf16.mxu0 0
        %3062 = vmatpush2.bf16.msra.mxu0 %v2712
        %3063 = vmatprep.subr.bf16.mxu0 0
        %3064 = vmatpush2.bf16.msra.mxu0 %v2709
        %3065 = vmatprep.subr.bf16.mxu0 0
        %3066 = vmatpush2.bf16.msra.mxu0 %v2706
        %3067 = vmatprep.subr.bf16.mxu0 0
        %3068 = vmatpush2.bf16.msra.mxu0 %v2703
        %3069 = vmatprep.subr.bf16.mxu0 0
        %3070 = vmatpush2.bf16.msra.mxu0 %v2700
        %3071 = vmatprep.subr.bf16.mxu0 0
        %3072 = vmatpush2.bf16.msra.mxu0 %v2697
        %3073 = vmatprep.mubr.bf16.mxu0 %v2312
        %3074 = vmatmul.mubr.bf16.gmra.mxu0 %v2311
        %v3075 = vpop.f32.mrf.mxu0
        %v3076 = vadd.f32 0.0, %v3075
        %v3077 = vpop.f32.mrf.mxu0
        %v3078 = vpop.f32.mrf.mxu0
        %v3079 = vadd.f32 0.0, %v3078
        %v3080 = vpop.f32.mrf.mxu0
        %3081 = vmatprep.mubr.bf16.mxu0 %v2315
        %3082 = vmatmul.mubr.bf16.gmra.mxu0 %v2314
        %v3083 = vpop.f32.mrf.mxu0
        %v3084 = vadd.f32 0.0, %v3083
        %v3085 = vpop.f32.mrf.mxu0
        %v3086 = vpop.f32.mrf.mxu0
        %v3087 = vadd.f32 0.0, %v3086
        %v3088 = vpop.f32.mrf.mxu0
        %3089 = vmatprep.mubr.bf16.mxu0 %v2318
        %3090 = vmatmul.mubr.bf16.gmra.mxu0 %v2317
        %v3091 = vpop.f32.mrf.mxu0
        %v3092 = vadd.f32 0.0, %v3091
        %v3093 = vpop.f32.mrf.mxu0
        %v3094 = vpop.f32.mrf.mxu0
        %v3095 = vadd.f32 0.0, %v3094
        %v3096 = vpop.f32.mrf.mxu0
        %3097 = vmatprep.mubr.bf16.mxu0 %v2321
        %3098 = vmatmul.mubr.bf16.gmra.mxu0 %v2320
        %v3099 = vpop.f32.mrf.mxu0
        %v3100 = vadd.f32 0.0, %v3099
        %v3101 = vpop.f32.mrf.mxu0
        %v3102 = vpop.f32.mrf.mxu0
        %v3103 = vadd.f32 0.0, %v3102
        %v3104 = vpop.f32.mrf.mxu0
        %3105 = vmatprep.mubr.bf16.mxu0 %v2324
        %3106 = vmatmul.mubr.bf16.gmra.mxu0 %v2323
        %v3107 = vpop.f32.mrf.mxu0
        %v3108 = vadd.f32 0.0, %v3107
        %v3109 = vpop.f32.mrf.mxu0
        %v3110 = vpop.f32.mrf.mxu0
        %v3111 = vadd.f32 0.0, %v3110
        %v3112 = vpop.f32.mrf.mxu0
        %3113 = vmatprep.mubr.bf16.mxu0 %v2327
        %3114 = vmatmul.mubr.bf16.gmra.mxu0 %v2326
        %v3115 = vpop.f32.mrf.mxu0
        %v3116 = vadd.f32 0.0, %v3115
        %v3117 = vpop.f32.mrf.mxu0
        %v3118 = vpop.f32.mrf.mxu0
        %v3119 = vadd.f32 0.0, %v3118
        %v3120 = vpop.f32.mrf.mxu0
        %3121 = vmatprep.mubr.bf16.mxu0 %v2330
        %3122 = vmatmul.mubr.bf16.gmra.mxu0 %v2329
        %v3123 = vpop.f32.mrf.mxu0
        %v3124 = vadd.f32 0.0, %v3123
        %v3125 = vpop.f32.mrf.mxu0
        %v3126 = vpop.f32.mrf.mxu0
        %v3127 = vadd.f32 0.0, %v3126
        %v3128 = vpop.f32.mrf.mxu0
        %3129 = vmatprep.mubr.bf16.mxu0 %v2333
        %3130 = vmatmul.mubr.bf16.gmra.mxu0 %v2332
        %v3131 = vpop.f32.mrf.mxu0
        %v3132 = vadd.f32 0.0, %v3131
        %v3133 = vpop.f32.mrf.mxu0
        %v3134 = vpop.f32.mrf.mxu0
        %v3135 = vadd.f32 0.0, %v3134
        %v3136 = vpop.f32.mrf.mxu0
        %3137 = vdwg.mxu0
        %3138 = vmatprep.subr.bf16.mxu0 0
        %3139 = vmatpush1.bf16.msra.mxu0 %v2742
        %3140 = vmatprep.subr.bf16.mxu0 0
        %3141 = vmatpush1.bf16.msra.mxu0 %v2739
        %3142 = vmatprep.subr.bf16.mxu0 0
        %3143 = vmatpush1.bf16.msra.mxu0 %v2736
        %3144 = vmatprep.subr.bf16.mxu0 0
        %3145 = vmatpush1.bf16.msra.mxu0 %v2733
        %3146 = vmatprep.subr.bf16.mxu0 0
        %3147 = vmatpush1.bf16.msra.mxu0 %v2730
        %3148 = vmatprep.subr.bf16.mxu0 0
        %3149 = vmatpush1.bf16.msra.mxu0 %v2727
        %3150 = vmatprep.subr.bf16.mxu0 0
        %3151 = vmatpush1.bf16.msra.mxu0 %v2724
        %3152 = vmatprep.subr.bf16.mxu0 0
        %3153 = vmatpush1.bf16.msra.mxu0 %v2721
        %3154 = vmatprep.subr.bf16.mxu0 0
        %3155 = vmatpush2.bf16.msra.mxu0 0
        %3156 = vmatprep.subr.bf16.mxu0 0
        %3157 = vmatpush2.bf16.msra.mxu0 0
        %3158 = vmatprep.subr.bf16.mxu0 0
        %3159 = vmatpush2.bf16.msra.mxu0 0
        %3160 = vmatprep.subr.bf16.mxu0 0
        %3161 = vmatpush2.bf16.msra.mxu0 0
        %3162 = vmatprep.subr.bf16.mxu0 0
        %3163 = vmatpush2.bf16.msra.mxu0 0
        %3164 = vmatprep.subr.bf16.mxu0 0
        %3165 = vmatpush2.bf16.msra.mxu0 0
        %3166 = vmatprep.subr.bf16.mxu0 0
        %3167 = vmatpush2.bf16.msra.mxu0 0
        %3168 = vmatprep.subr.bf16.mxu0 0
        %3169 = vmatpush2.bf16.msra.mxu0 0
        %3170 = vmatprep.mubr.bf16.mxu0 0
        %3171 = vmatmul.mubr.bf16.gmra.mxu0 %v2313
        %v3172 = vpop.f32.mrf.mxu0
        %v3173 = vadd.f32 %v3076, %v3172
        %v3174 = vpop.f32.mrf.mxu0
        %v3175 = vpop.f32.mrf.mxu0
        %v3176 = vadd.f32 %v3079, %v3175
        %v3177 = vpop.f32.mrf.mxu0
        %3178 = vmatprep.mubr.bf16.mxu0 0
        %3179 = vmatmul.mubr.bf16.gmra.mxu0 %v2316
        %v3180 = vpop.f32.mrf.mxu0
        %v3181 = vadd.f32 %v3084, %v3180
        %v3182 = vpop.f32.mrf.mxu0
        %v3183 = vpop.f32.mrf.mxu0
        %v3184 = vadd.f32 %v3087, %v3183
        %v3185 = vpop.f32.mrf.mxu0
        %3186 = vmatprep.mubr.bf16.mxu0 0
        %3187 = vmatmul.mubr.bf16.gmra.mxu0 %v2319
        %v3188 = vpop.f32.mrf.mxu0
        %v3189 = vadd.f32 %v3092, %v3188
        %v3190 = vpop.f32.mrf.mxu0
        %v3191 = vpop.f32.mrf.mxu0
        %v3192 = vadd.f32 %v3095, %v3191
        %v3193 = vpop.f32.mrf.mxu0
        %3194 = vmatprep.mubr.bf16.mxu0 0
        %3195 = vmatmul.mubr.bf16.gmra.mxu0 %v2322
        %v3196 = vpop.f32.mrf.mxu0
        %v3197 = vadd.f32 %v3100, %v3196
        %v3198 = vpop.f32.mrf.mxu0
        %v3199 = vpop.f32.mrf.mxu0
        %v3200 = vadd.f32 %v3103, %v3199
        %v3201 = vpop.f32.mrf.mxu0
        %3202 = vmatprep.mubr.bf16.mxu0 0
        %3203 = vmatmul.mubr.bf16.gmra.mxu0 %v2325
        %v3204 = vpop.f32.mrf.mxu0
        %v3205 = vadd.f32 %v3108, %v3204
        %v3206 = vpop.f32.mrf.mxu0
        %v3207 = vpop.f32.mrf.mxu0
        %v3208 = vadd.f32 %v3111, %v3207
        %v3209 = vpop.f32.mrf.mxu0
        %3210 = vmatprep.mubr.bf16.mxu0 0
        %3211 = vmatmul.mubr.bf16.gmra.mxu0 %v2328
        %v3212 = vpop.f32.mrf.mxu0
        %v3213 = vadd.f32 %v3116, %v3212
        %v3214 = vpop.f32.mrf.mxu0
        %v3215 = vpop.f32.mrf.mxu0
        %v3216 = vadd.f32 %v3119, %v3215
        %v3217 = vpop.f32.mrf.mxu0
        %3218 = vmatprep.mubr.bf16.mxu0 0
        %3219 = vmatmul.mubr.bf16.gmra.mxu0 %v2331
        %v3220 = vpop.f32.mrf.mxu0
        %v3221 = vadd.f32 %v3124, %v3220
        %v3222 = vpop.f32.mrf.mxu0
        %v3223 = vpop.f32.mrf.mxu0
        %v3224 = vadd.f32 %v3127, %v3223
        %v3225 = vpop.f32.mrf.mxu0
        %3226 = vmatprep.mubr.bf16.mxu0 0
        %3227 = vmatmul.mubr.bf16.gmra.mxu0 %v2334
        %v3228 = vpop.f32.mrf.mxu0
        %v3229 = vadd.f32 %v3132, %v3228
        %v3230 = vpop.f32.mrf.mxu0
        %v3231 = vpop.f32.mrf.mxu0
        %v3232 = vadd.f32 %v3135, %v3231
        %v3233 = vpop.f32.mrf.mxu0
        %3234 = vdwg.mxu0
        %v3235 = vpack.c.bf16 %v2967, %v2963
        %v3236 = vpack.c.bf16 %v2969, %v2965
        %v3237 = vpack.c.bf16 %v3176, %v3173
        %v3238 = vpack.c.bf16 %v2977, %v2973
        %v3239 = vpack.c.bf16 %v2979, %v2975
        %v3240 = vpack.c.bf16 %v3184, %v3181
        %v3241 = vpack.c.bf16 %v2987, %v2983
        %v3242 = vpack.c.bf16 %v2989, %v2985
        %v3243 = vpack.c.bf16 %v3192, %v3189
        %v3244 = vpack.c.bf16 %v2997, %v2993
        %v3245 = vpack.c.bf16 %v2999, %v2995
        %v3246 = vpack.c.bf16 %v3200, %v3197
        %v3247 = vpack.c.bf16 %v3007, %v3003
        %v3248 = vpack.c.bf16 %v3009, %v3005
        %v3249 = vpack.c.bf16 %v3208, %v3205
        %v3250 = vpack.c.bf16 %v3017, %v3013
        %v3251 = vpack.c.bf16 %v3019, %v3015
        %v3252 = vpack.c.bf16 %v3216, %v3213
        %v3253 = vpack.c.bf16 %v3027, %v3023
        %v3254 = vpack.c.bf16 %v3029, %v3025
        %v3255 = vpack.c.bf16 %v3224, %v3221
        %v3256 = vpack.c.bf16 %v3037, %v3033
        %v3257 = vpack.c.bf16 %v3039, %v3035
        %v3258 = vpack.c.bf16 %v3232, %v3229
        %v3283 = vunpack.c.l.b16 %v3235
        %v3284 = vunpack.c.l.b16 %v3236
        %v3285 = vunpack.c.l.b16 %v3237
        %v3286 = vunpack.c.h.b16 %v3235
        %v3287 = vunpack.c.h.b16 %v3236
        %v3288 = vunpack.c.h.b16 %v3237
        %v3289 = vunpack.c.l.b16 %v3238
        %v3290 = vunpack.c.l.b16 %v3239
        %v3291 = vunpack.c.l.b16 %v3240
        %v3292 = vunpack.c.h.b16 %v3238
        %v3293 = vunpack.c.h.b16 %v3239
        %v3294 = vunpack.c.h.b16 %v3240
        %v3295 = vunpack.c.l.b16 %v3241
        %v3296 = vunpack.c.l.b16 %v3242
        %v3297 = vunpack.c.l.b16 %v3243
        %v3298 = vunpack.c.h.b16 %v3241
        %v3299 = vunpack.c.h.b16 %v3242
        %v3300 = vunpack.c.h.b16 %v3243
        %v3301 = vunpack.c.l.b16 %v3244
        %v3302 = vunpack.c.l.b16 %v3245
        %v3303 = vunpack.c.l.b16 %v3246
        %v3304 = vunpack.c.h.b16 %v3244
        %v3305 = vunpack.c.h.b16 %v3245
        %v3306 = vunpack.c.h.b16 %v3246
        %v3307 = vunpack.c.l.b16 %v3247
        %v3308 = vunpack.c.l.b16 %v3248
        %v3309 = vunpack.c.l.b16 %v3249
        %v3310 = vunpack.c.h.b16 %v3247
        %v3311 = vunpack.c.h.b16 %v3248
        %v3312 = vunpack.c.h.b16 %v3249
        %v3313 = vunpack.c.l.b16 %v3250
        %v3314 = vunpack.c.l.b16 %v3251
        %v3315 = vunpack.c.l.b16 %v3252
        %v3316 = vunpack.c.h.b16 %v3250
        %v3317 = vunpack.c.h.b16 %v3251
        %v3318 = vunpack.c.h.b16 %v3252
        %v3319 = vunpack.c.l.b16 %v3253
        %v3320 = vunpack.c.l.b16 %v3254
        %v3321 = vunpack.c.l.b16 %v3255
        %v3322 = vunpack.c.h.b16 %v3253
        %v3323 = vunpack.c.h.b16 %v3254
        %v3324 = vunpack.c.h.b16 %v3255
        %v3325 = vunpack.c.l.b16 %v3256
        %v3326 = vunpack.c.l.b16 %v3257
        %v3327 = vunpack.c.l.b16 %v3258
        %v3328 = vunpack.c.h.b16 %v3256
        %v3329 = vunpack.c.h.b16 %v3257
        %v3330 = vunpack.c.h.b16 %v3258
        %v3331 = vpack.c.b16 %v3284, %v3283
        %v3332 = vpack.c.b16 %v3285, %v3285
        %v3333 = vpack.c.b16 %v3287, %v3286
        %v3334 = vpack.c.b16 %v3288, %v3288
        %v3335 = vpack.c.b16 %v3290, %v3289
        %v3336 = vpack.c.b16 %v3291, %v3291
        %v3337 = vpack.c.b16 %v3293, %v3292
        %v3338 = vpack.c.b16 %v3294, %v3294
        %v3339 = vpack.c.b16 %v3296, %v3295
        %v3340 = vpack.c.b16 %v3297, %v3297
        %v3341 = vpack.c.b16 %v3299, %v3298
        %v3342 = vpack.c.b16 %v3300, %v3300
        %v3343 = vpack.c.b16 %v3302, %v3301
        %v3344 = vpack.c.b16 %v3303, %v3303
        %v3345 = vpack.c.b16 %v3305, %v3304
        %v3346 = vpack.c.b16 %v3306, %v3306
        %v3347 = vpack.c.b16 %v3308, %v3307
        %v3348 = vpack.c.b16 %v3309, %v3309
        %v3349 = vpack.c.b16 %v3311, %v3310
        %v3350 = vpack.c.b16 %v3312, %v3312
        %v3351 = vpack.c.b16 %v3314, %v3313
        %v3352 = vpack.c.b16 %v3315, %v3315
        %v3353 = vpack.c.b16 %v3317, %v3316
        %v3354 = vpack.c.b16 %v3318, %v3318
        %v3355 = vpack.c.b16 %v3320, %v3319
        %v3356 = vpack.c.b16 %v3321, %v3321
        %v3357 = vpack.c.b16 %v3323, %v3322
        %v3358 = vpack.c.b16 %v3324, %v3324
        %v3359 = vpack.c.b16 %v3326, %v3325
        %v3360 = vpack.c.b16 %v3327, %v3327
        %v3361 = vpack.c.b16 %v3329, %v3328
        %v3362 = vpack.c.b16 %v3330, %v3330
        %3395 = vst [vmem:[#allocation3] sm:$0xff] %v3331
        %3396 = vst [vmem:[#allocation3 + $0x8] sm:$0xf] %v3332
        %3397 = vst [vmem:[#allocation3 + $0xc] sm:$0xff] %v3333
        %3398 = vst [vmem:[#allocation3 + $0x14] sm:$0xf] %v3334
        %3399 = vst [vmem:[#allocation3 + $0x18] sm:$0xff] %v3335
        %3400 = vst [vmem:[#allocation3 + $0x20] sm:$0xf] %v3336
        %3401 = vst [vmem:[#allocation3 + $0x24] sm:$0xff] %v3337
        %3402 = vst [vmem:[#allocation3 + $0x2c] sm:$0xf] %v3338
        %3403 = vst [vmem:[#allocation3 + $0x30] sm:$0xff] %v3339
        %3404 = vst [vmem:[#allocation3 + $0x38] sm:$0xf] %v3340
        %3405 = vst [vmem:[#allocation3 + $0x3c] sm:$0xff] %v3341
        %3406 = vst [vmem:[#allocation3 + $0x44] sm:$0xf] %v3342
        %3407 = vst [vmem:[#allocation3 + $0x48] sm:$0xff] %v3343
        %3408 = vst [vmem:[#allocation3 + $0x50] sm:$0xf] %v3344
        %3409 = vst [vmem:[#allocation3 + $0x54] sm:$0xff] %v3345
        %3410 = vst [vmem:[#allocation3 + $0x5c] sm:$0xf] %v3346
        %3411 = vst [vmem:[#allocation3 + $0x60] sm:$0xff] %v3347
        %3412 = vst [vmem:[#allocation3 + $0x68] sm:$0xf] %v3348
        %3413 = vst [vmem:[#allocation3 + $0x6c] sm:$0xff] %v3349
        %3414 = vst [vmem:[#allocation3 + $0x74] sm:$0xf] %v3350
        %3415 = vst [vmem:[#allocation3 + $0x78] sm:$0xff] %v3351
        %3416 = vst [vmem:[#allocation3 + $0x80] sm:$0xf] %v3352
        %3417 = vst [vmem:[#allocation3 + $0x84] sm:$0xff] %v3353
        %3418 = vst [vmem:[#allocation3 + $0x8c] sm:$0xf] %v3354
        %3419 = vst [vmem:[#allocation3 + $0x90] sm:$0xff] %v3355
        %3420 = vst [vmem:[#allocation3 + $0x98] sm:$0xf] %v3356
        %3421 = vst [vmem:[#allocation3 + $0x9c] sm:$0xff] %v3357
        %3422 = vst [vmem:[#allocation3 + $0xa4] sm:$0xf] %v3358
        %3423 = vst [vmem:[#allocation3 + $0xa8] sm:$0xff] %v3359
        %3424 = vst [vmem:[#allocation3 + $0xb0] sm:$0xf] %v3360
        %3425 = vst [vmem:[#allocation3 + $0xb4] sm:$0xff] %v3361
        %3426 = vst [vmem:[#allocation3 + $0xbc] sm:$0xf] %v3362
        %v3427 = vlaneseq
        %v3428 = vshrl.u32 %v3427, 7
        %v3429 = vadd.s32 %v3428, 8
        %v3430 = vadd.s32 %v3428, 16
        %v3431 = vadd.s32 %v3428, 24
        %v3432 = vadd.s32 %v3428, 32
        %v3433 = vadd.s32 %v3428, 40
        %v3434 = vadd.s32 %v3428, 48
        %v3435 = vadd.s32 %v3428, 56
        %v3436 = vadd.s32 %v3428, 64
        %v3437 = vadd.s32 %v3428, 72
        %v3438 = vadd.s32 %v3428, 80
        %v3439 = vadd.s32 %v3428, 88
        %v3440 = vadd.s32 %v3428, 96
        %v3441 = vadd.s32 %v3428, 104
        %v3442 = vadd.s32 %v3428, 112
        %v3443 = vadd.s32 %v3428, 120
        %v3444 = vstv %s2257
        %v3445 = vadd.s32 %v3428, %v3444
        %v3446 = vadd.s32 %v3429, %v3444
        %v3447 = vadd.s32 %v3430, %v3444
        %v3448 = vadd.s32 %v3431, %v3444
        %v3449 = vadd.s32 %v3432, %v3444
        %v3450 = vadd.s32 %v3433, %v3444
        %v3451 = vadd.s32 %v3434, %v3444
        %v3452 = vadd.s32 %v3435, %v3444
        %v3453 = vadd.s32 %v3436, %v3444
        %v3454 = vadd.s32 %v3437, %v3444
        %v3455 = vadd.s32 %v3438, %v3444
        %v3456 = vadd.s32 %v3439, %v3444
        %v3457 = vadd.s32 %v3440, %v3444
        %v3458 = vadd.s32 %v3441, %v3444
        %v3459 = vadd.s32 %v3442, %v3444
        %v3460 = vadd.s32 %v3443, %v3444
        %v3461 = vlaneseq
        %v3462 = vand.u32 %v3461, 127
        %v3463 = vld [vmem:[#allocation3] sm:$0xf]
        %v3464 = vld [vmem:[#allocation3 + $0xc] sm:$0xf]
        %v3465 = vld [vmem:[#allocation3 + $0x18] sm:$0xf]
        %v3466 = vld [vmem:[#allocation3 + $0x24] sm:$0xf]
        %v3467 = vld [vmem:[#allocation3 + $0x30] sm:$0xf]
        %v3468 = vld [vmem:[#allocation3 + $0x3c] sm:$0xf]
        %v3469 = vld [vmem:[#allocation3 + $0x48] sm:$0xf]
        %v3470 = vld [vmem:[#allocation3 + $0x54] sm:$0xf]
        %v3471 = vld [vmem:[#allocation3 + $0x60] sm:$0xf]
        %v3472 = vld [vmem:[#allocation3 + $0x6c] sm:$0xf]
        %v3473 = vld [vmem:[#allocation3 + $0x78] sm:$0xf]
        %v3474 = vld [vmem:[#allocation3 + $0x84] sm:$0xf]
        %v3475 = vld [vmem:[#allocation3 + $0x90] sm:$0xf]
        %v3476 = vld [vmem:[#allocation3 + $0x9c] sm:$0xf]
        %v3477 = vld [vmem:[#allocation3 + $0xa8] sm:$0xf]
        %v3478 = vld [vmem:[#allocation3 + $0xb4] sm:$0xf]
        %s3479 = smul.u32 0, 6
        %s3480 = smul.addr %s3479, 4
        %s3481 = scalar_lea.vmem [#allocation2], %s3480
        %v3482 = vld [vmem:[%s3481] sm:$0xf]
        %v3483 = vld [vmem:[%s3481 + $0x18] sm:$0xf]
        %v3484 = vld [vmem:[%s3481 + $0x30] sm:$0xf]
        %v3485 = vld [vmem:[%s3481 + $0x48] sm:$0xf]
        %v3486 = vld [vmem:[%s3481 + $0x60] sm:$0xf]
        %v3487 = vld [vmem:[%s3481 + $0x78] sm:$0xf]
        %v3488 = vld [vmem:[%s3481 + $0x90] sm:$0xf]
        %v3489 = vld [vmem:[%s3481 + $0xa8] sm:$0xf]
        %v3490 = vld [vmem:[%s3481 + $0xc0] sm:$0xf]
        %v3491 = vld [vmem:[%s3481 + $0xd8] sm:$0xf]
        %v3492 = vld [vmem:[%s3481 + $0xf0] sm:$0xf]
        %v3493 = vld [vmem:[%s3481 + $0x108] sm:$0xf]
        %v3494 = vld [vmem:[%s3481 + $0x120] sm:$0xf]
        %v3495 = vld [vmem:[%s3481 + $0x138] sm:$0xf]
        %v3496 = vld [vmem:[%s3481 + $0x150] sm:$0xf]
        %v3497 = vld [vmem:[%s3481 + $0x168] sm:$0xf]
        %v3498 = vld [vmem:[%s3481 + $0xc] sm:$0xf]
        %v3499 = vld [vmem:[%s3481 + $0x24] sm:$0xf]
        %v3500 = vld [vmem:[%s3481 + $0x3c] sm:$0xf]
        %v3501 = vld [vmem:[%s3481 + $0x54] sm:$0xf]
        %v3502 = vld [vmem:[%s3481 + $0x6c] sm:$0xf]
        %v3503 = vld [vmem:[%s3481 + $0x84] sm:$0xf]
        %v3504 = vld [vmem:[%s3481 + $0x9c] sm:$0xf]
        %v3505 = vld [vmem:[%s3481 + $0xb4] sm:$0xf]
        %v3506 = vld [vmem:[%s3481 + $0xcc] sm:$0xf]
        %v3507 = vld [vmem:[%s3481 + $0xe4] sm:$0xf]
        %v3508 = vld [vmem:[%s3481 + $0xfc] sm:$0xf]
        %v3509 = vld [vmem:[%s3481 + $0x114] sm:$0xf]
        %v3510 = vld [vmem:[%s3481 + $0x12c] sm:$0xf]
        %v3511 = vld [vmem:[%s3481 + $0x144] sm:$0xf]
        %v3512 = vld [vmem:[%s3481 + $0x15c] sm:$0xf]
        %v3513 = vld [vmem:[%s3481 + $0x174] sm:$0xf]
        %v3530 = vunpack.c.l.b16 %v3463
        %v3531 = vunpack.c.l.b16 %v3464
        %v3532 = vunpack.c.l.b16 %v3465
        %v3533 = vunpack.c.l.b16 %v3466
        %v3534 = vunpack.c.l.b16 %v3467
        %v3535 = vunpack.c.l.b16 %v3468
        %v3536 = vunpack.c.l.b16 %v3469
        %v3537 = vunpack.c.l.b16 %v3470
        %v3538 = vunpack.c.l.b16 %v3471
        %v3539 = vunpack.c.l.b16 %v3472
        %v3540 = vunpack.c.l.b16 %v3473
        %v3541 = vunpack.c.l.b16 %v3474
        %v3542 = vunpack.c.l.b16 %v3475
        %v3543 = vunpack.c.l.b16 %v3476
        %v3544 = vunpack.c.l.b16 %v3477
        %v3545 = vunpack.c.l.b16 %v3478
        %v3546 = vpack.c.b16 %v3531, %v3530
        %v3547 = vpack.c.b16 %v3533, %v3532
        %v3548 = vpack.c.b16 %v3535, %v3534
        %v3549 = vpack.c.b16 %v3537, %v3536
        %v3550 = vpack.c.b16 %v3539, %v3538
        %v3551 = vpack.c.b16 %v3541, %v3540
        %v3552 = vpack.c.b16 %v3543, %v3542
        %v3553 = vpack.c.b16 %v3545, %v3544
        %v3570 = vunpack.c.l.b16 %v3482
        %v3571 = vunpack.c.l.b16 %v3483
        %v3572 = vunpack.c.l.b16 %v3484
        %v3573 = vunpack.c.l.b16 %v3485
        %v3574 = vunpack.c.l.b16 %v3486
        %v3575 = vunpack.c.l.b16 %v3487
        %v3576 = vunpack.c.l.b16 %v3488
        %v3577 = vunpack.c.l.b16 %v3489
        %v3578 = vunpack.c.l.b16 %v3490
        %v3579 = vunpack.c.l.b16 %v3491
        %v3580 = vunpack.c.l.b16 %v3492
        %v3581 = vunpack.c.l.b16 %v3493
        %v3582 = vunpack.c.l.b16 %v3494
        %v3583 = vunpack.c.l.b16 %v3495
        %v3584 = vunpack.c.l.b16 %v3496
        %v3585 = vunpack.c.l.b16 %v3497
        %v3586 = vpack.c.b16 %v3571, %v3570
        %v3587 = vpack.c.b16 %v3573, %v3572
        %v3588 = vpack.c.b16 %v3575, %v3574
        %v3589 = vpack.c.b16 %v3577, %v3576
        %v3590 = vpack.c.b16 %v3579, %v3578
        %v3591 = vpack.c.b16 %v3581, %v3580
        %v3592 = vpack.c.b16 %v3583, %v3582
        %v3593 = vpack.c.b16 %v3585, %v3584
        %vm3594 = vcmask 523264
        %v3596 = vsel %vm3594, %v3546, 0
        %v3599 = vsel %vm3594, %v3547, 0
        %v3602 = vsel %vm3594, %v3548, 0
        %v3605 = vsel %vm3594, %v3549, 0
        %v3608 = vsel %vm3594, %v3550, 0
        %v3611 = vsel %vm3594, %v3551, 0
        %v3614 = vsel %vm3594, %v3552, 0
        %v3617 = vsel %vm3594, %v3553, 0
        %v3620 = vsel %vm3594, %v3586, 0
        %v3623 = vsel %vm3594, %v3587, 0
        %v3626 = vsel %vm3594, %v3588, 0
        %v3629 = vsel %vm3594, %v3589, 0
        %v3632 = vsel %vm3594, %v3590, 0
        %v3635 = vsel %vm3594, %v3591, 0
        %v3638 = vsel %vm3594, %v3592, 0
        %v3641 = vsel %vm3594, %v3593, 0
        %3643 = vmatprep.subr.bf16.mxu0 0
        %3644 = vmatpush1.bf16.xpose.msra.mxu0 %v3641
        %3645 = vmatprep.subr.bf16.mxu0 0
        %3646 = vmatpush1.bf16.xpose.msra.mxu0 %v3638
        %3647 = vmatprep.subr.bf16.mxu0 0
        %3648 = vmatpush1.bf16.xpose.msra.mxu0 %v3635
        %3649 = vmatprep.subr.bf16.mxu0 0
        %3650 = vmatpush1.bf16.xpose.msra.mxu0 %v3632
        %3651 = vmatprep.subr.bf16.mxu0 0
        %3652 = vmatpush1.bf16.xpose.msra.mxu0 %v3629
        %3653 = vmatprep.subr.bf16.mxu0 0
        %3654 = vmatpush1.bf16.xpose.msra.mxu0 %v3626
        %3655 = vmatprep.subr.bf16.mxu0 0
        %3656 = vmatpush1.bf16.xpose.msra.mxu0 %v3623
        %3657 = vmatprep.subr.bf16.mxu0 0
        %3658 = vmatpush1.bf16.xpose.msra.mxu0 %v3620
        %3659 = vmatprep.subr.bf16.mxu0 0
        %3660 = vmatpush2.bf16.xpose.msra.mxu0 0
        %3661 = vmatprep.subr.bf16.mxu0 0
        %3662 = vmatpush2.bf16.xpose.msra.mxu0 0
        %3663 = vmatprep.subr.bf16.mxu0 0
        %3664 = vmatpush2.bf16.xpose.msra.mxu0 0
        %3665 = vmatprep.subr.bf16.mxu0 0
        %3666 = vmatpush2.bf16.xpose.msra.mxu0 0
        %3667 = vmatprep.subr.bf16.mxu0 0
        %3668 = vmatpush2.bf16.xpose.msra.mxu0 0
        %3669 = vmatprep.subr.bf16.mxu0 0
        %3670 = vmatpush2.bf16.xpose.msra.mxu0 0
        %3671 = vmatprep.subr.bf16.mxu0 0
        %3672 = vmatpush2.bf16.xpose.msra.mxu0 0
        %3673 = vmatprep.subr.bf16.mxu0 0
        %3674 = vmatpush2.bf16.xpose.msra.mxu0 0
        %3675 = vmatprep.mubr.bf16.mxu0 0
        %3676 = vmatmul.mubr.bf16.gmra.mxu0 %v3596
        %v3677 = vpop.f32.mrf.mxu0
        %v3678 = vadd.f32 0.0, %v3677
        %v3679 = vpop.f32.mrf.mxu0
        %v3680 = vpop.f32.mrf.mxu0
        %v3681 = vadd.f32 0.0, %v3680
        %v3682 = vpop.f32.mrf.mxu0
        %3683 = vmatprep.mubr.bf16.mxu0 0
        %3684 = vmatmul.mubr.bf16.gmra.mxu0 %v3599
        %v3685 = vpop.f32.mrf.mxu0
        %v3686 = vadd.f32 0.0, %v3685
        %v3687 = vpop.f32.mrf.mxu0
        %v3688 = vpop.f32.mrf.mxu0
        %v3689 = vadd.f32 0.0, %v3688
        %v3690 = vpop.f32.mrf.mxu0
        %3691 = vmatprep.mubr.bf16.mxu0 0
        %3692 = vmatmul.mubr.bf16.gmra.mxu0 %v3602
        %v3693 = vpop.f32.mrf.mxu0
        %v3694 = vadd.f32 0.0, %v3693
        %v3695 = vpop.f32.mrf.mxu0
        %v3696 = vpop.f32.mrf.mxu0
        %v3697 = vadd.f32 0.0, %v3696
        %v3698 = vpop.f32.mrf.mxu0
        %3699 = vmatprep.mubr.bf16.mxu0 0
        %3700 = vmatmul.mubr.bf16.gmra.mxu0 %v3605
        %v3701 = vpop.f32.mrf.mxu0
        %v3702 = vadd.f32 0.0, %v3701
        %v3703 = vpop.f32.mrf.mxu0
        %v3704 = vpop.f32.mrf.mxu0
        %v3705 = vadd.f32 0.0, %v3704
        %v3706 = vpop.f32.mrf.mxu0
        %3707 = vmatprep.mubr.bf16.mxu0 0
        %3708 = vmatmul.mubr.bf16.gmra.mxu0 %v3608
        %v3709 = vpop.f32.mrf.mxu0
        %v3710 = vadd.f32 0.0, %v3709
        %v3711 = vpop.f32.mrf.mxu0
        %v3712 = vpop.f32.mrf.mxu0
        %v3713 = vadd.f32 0.0, %v3712
        %v3714 = vpop.f32.mrf.mxu0
        %3715 = vmatprep.mubr.bf16.mxu0 0
        %3716 = vmatmul.mubr.bf16.gmra.mxu0 %v3611
        %v3717 = vpop.f32.mrf.mxu0
        %v3718 = vadd.f32 0.0, %v3717
        %v3719 = vpop.f32.mrf.mxu0
        %v3720 = vpop.f32.mrf.mxu0
        %v3721 = vadd.f32 0.0, %v3720
        %v3722 = vpop.f32.mrf.mxu0
        %3723 = vmatprep.mubr.bf16.mxu0 0
        %3724 = vmatmul.mubr.bf16.gmra.mxu0 %v3614
        %v3725 = vpop.f32.mrf.mxu0
        %v3726 = vadd.f32 0.0, %v3725
        %v3727 = vpop.f32.mrf.mxu0
        %v3728 = vpop.f32.mrf.mxu0
        %v3729 = vadd.f32 0.0, %v3728
        %v3730 = vpop.f32.mrf.mxu0
        %3731 = vmatprep.mubr.bf16.mxu0 0
        %3732 = vmatmul.mubr.bf16.gmra.mxu0 %v3617
        %v3733 = vpop.f32.mrf.mxu0
        %v3734 = vadd.f32 0.0, %v3733
        %v3735 = vpop.f32.mrf.mxu0
        %v3736 = vpop.f32.mrf.mxu0
        %v3737 = vadd.f32 0.0, %v3736
        %v3738 = vpop.f32.mrf.mxu0
        %3739 = vdwg.mxu0
        %v3740 = vstv 0
        %v3741 = vadd.s32 %v3462, %v3740
        %vm3742 = vcmp.le.s32.totalorder %v3741, %v3445
        %vm3743 = vcmp.le.s32.totalorder %v3741, %v3446
        %vm3744 = vcmp.le.s32.totalorder %v3741, %v3447
        %vm3745 = vcmp.le.s32.totalorder %v3741, %v3448
        %vm3746 = vcmp.le.s32.totalorder %v3741, %v3449
        %vm3747 = vcmp.le.s32.totalorder %v3741, %v3450
        %vm3748 = vcmp.le.s32.totalorder %v3741, %v3451
        %vm3749 = vcmp.le.s32.totalorder %v3741, %v3452
        %vm3750 = vcmp.le.s32.totalorder %v3741, %v3453
        %vm3751 = vcmp.le.s32.totalorder %v3741, %v3454
        %vm3752 = vcmp.le.s32.totalorder %v3741, %v3455
        %vm3753 = vcmp.le.s32.totalorder %v3741, %v3456
        %vm3754 = vcmp.le.s32.totalorder %v3741, %v3457
        %vm3755 = vcmp.le.s32.totalorder %v3741, %v3458
        %vm3756 = vcmp.le.s32.totalorder %v3741, %v3459
        %vm3757 = vcmp.le.s32.totalorder %v3741, %v3460
        %v3758 = vsel %vm3742, %v3678, -1e+30
        %v3759 = vsel %vm3743, %v3681, -1e+30
        %v3760 = vsel %vm3744, %v3686, -1e+30
        %v3761 = vsel %vm3745, %v3689, -1e+30
        %v3762 = vsel %vm3746, %v3694, -1e+30
        %v3763 = vsel %vm3747, %v3697, -1e+30
        %v3764 = vsel %vm3748, %v3702, -1e+30
        %v3765 = vsel %vm3749, %v3705, -1e+30
        %v3766 = vsel %vm3750, %v3710, -1e+30
        %v3767 = vsel %vm3751, %v3713, -1e+30
        %v3768 = vsel %vm3752, %v3718, -1e+30
        %v3769 = vsel %vm3753, %v3721, -1e+30
        %v3770 = vsel %vm3754, %v3726, -1e+30
        %v3771 = vsel %vm3755, %v3729, -1e+30
        %v3772 = vsel %vm3756, %v3734, -1e+30
        %v3773 = vsel %vm3757, %v3737, -1e+30
        %3774 = vmax.xlane.f32.xlu0 %v3758
        %v3775 = vpop.xlane.xlu0 %3774
        %3776 = vmax.xlane.f32.xlu0 %v3759
        %v3777 = vpop.xlane.xlu0 %3776
        %3778 = vmax.xlane.f32.xlu0 %v3760
        %v3779 = vpop.xlane.xlu0 %3778
        %3780 = vmax.xlane.f32.xlu0 %v3761
        %v3781 = vpop.xlane.xlu0 %3780
        %3782 = vmax.xlane.f32.xlu0 %v3762
        %v3783 = vpop.xlane.xlu0 %3782
        %3784 = vmax.xlane.f32.xlu0 %v3763
        %v3785 = vpop.xlane.xlu0 %3784
        %3786 = vmax.xlane.f32.xlu0 %v3764
        %v3787 = vpop.xlane.xlu0 %3786
        %3788 = vmax.xlane.f32.xlu0 %v3765
        %v3789 = vpop.xlane.xlu0 %3788
        %3790 = vmax.xlane.f32.xlu0 %v3766
        %v3791 = vpop.xlane.xlu0 %3790
        %3792 = vmax.xlane.f32.xlu0 %v3767
        %v3793 = vpop.xlane.xlu0 %3792
        %3794 = vmax.xlane.f32.xlu0 %v3768
        %v3795 = vpop.xlane.xlu0 %3794
        %3796 = vmax.xlane.f32.xlu0 %v3769
        %v3797 = vpop.xlane.xlu0 %3796
        %3798 = vmax.xlane.f32.xlu0 %v3770
        %v3799 = vpop.xlane.xlu0 %3798
        %3800 = vmax.xlane.f32.xlu0 %v3771
        %v3801 = vpop.xlane.xlu0 %3800
        %3802 = vmax.xlane.f32.xlu0 %v3772
        %v3803 = vpop.xlane.xlu0 %3802
        %3804 = vmax.xlane.f32.xlu0 %v3773
        %v3805 = vpop.xlane.xlu0 %3804
        %v3806 = vmax.f32 %v3775, -1e+30
        %v3807 = vmax.f32 %v3777, -1e+30
        %v3808 = vmax.f32 %v3779, -1e+30
        %v3809 = vmax.f32 %v3781, -1e+30
        %v3810 = vmax.f32 %v3783, -1e+30
        %v3811 = vmax.f32 %v3785, -1e+30
        %v3812 = vmax.f32 %v3787, -1e+30
        %v3813 = vmax.f32 %v3789, -1e+30
        %v3814 = vmax.f32 %v3791, -1e+30
        %v3815 = vmax.f32 %v3793, -1e+30
        %v3816 = vmax.f32 %v3795, -1e+30
        %v3817 = vmax.f32 %v3797, -1e+30
        %v3818 = vmax.f32 %v3799, -1e+30
        %v3819 = vmax.f32 %v3801, -1e+30
        %v3820 = vmax.f32 %v3803, -1e+30
        %v3821 = vmax.f32 %v3805, -1e+30
        %v3822 = vsub.f32 -1e+30, %v3806
        %v3823 = vsub.f32 -1e+30, %v3807
        %v3824 = vsub.f32 -1e+30, %v3808
        %v3825 = vsub.f32 -1e+30, %v3809
        %v3826 = vsub.f32 -1e+30, %v3810
        %v3827 = vsub.f32 -1e+30, %v3811
        %v3828 = vsub.f32 -1e+30, %v3812
        %v3829 = vsub.f32 -1e+30, %v3813
        %v3830 = vsub.f32 -1e+30, %v3814
        %v3831 = vsub.f32 -1e+30, %v3815
        %v3832 = vsub.f32 -1e+30, %v3816
        %v3833 = vsub.f32 -1e+30, %v3817
        %v3834 = vsub.f32 -1e+30, %v3818
        %v3835 = vsub.f32 -1e+30, %v3819
        %v3836 = vsub.f32 -1e+30, %v3820
        %v3837 = vsub.f32 -1e+30, %v3821
        %v3838 = vmul.f32 %v3822, 1.442695
        %v3839 = vpow.pop %v3838
        %v3840 = vmul.f32 %v3823, 1.442695
        %v3841 = vpow.pop %v3840
        %v3842 = vmul.f32 %v3824, 1.442695
        %v3843 = vpow.pop %v3842
        %v3844 = vmul.f32 %v3825, 1.442695
        %v3845 = vpow.pop %v3844
        %v3846 = vmul.f32 %v3826, 1.442695
        %v3847 = vpow.pop %v3846
        %v3848 = vmul.f32 %v3827, 1.442695
        %v3849 = vpow.pop %v3848
        %v3850 = vmul.f32 %v3828, 1.442695
        %v3851 = vpow.pop %v3850
        %v3852 = vmul.f32 %v3829, 1.442695
        %v3853 = vpow.pop %v3852
        %v3854 = vmul.f32 %v3830, 1.442695
        %v3855 = vpow.pop %v3854
        %v3856 = vmul.f32 %v3831, 1.442695
        %v3857 = vpow.pop %v3856
        %v3858 = vmul.f32 %v3832, 1.442695
        %v3859 = vpow.pop %v3858
        %v3860 = vmul.f32 %v3833, 1.442695
        %v3861 = vpow.pop %v3860
        %v3862 = vmul.f32 %v3834, 1.442695
        %v3863 = vpow.pop %v3862
        %v3864 = vmul.f32 %v3835, 1.442695
        %v3865 = vpow.pop %v3864
        %v3866 = vmul.f32 %v3836, 1.442695
        %v3867 = vpow.pop %v3866
        %v3868 = vmul.f32 %v3837, 1.442695
        %v3869 = vpow.pop %v3868
        %v3870 = vsub.f32 %v3758, %v3806
        %v3871 = vsub.f32 %v3759, %v3807
        %v3872 = vsub.f32 %v3760, %v3808
        %v3873 = vsub.f32 %v3761, %v3809
        %v3874 = vsub.f32 %v3762, %v3810
        %v3875 = vsub.f32 %v3763, %v3811
        %v3876 = vsub.f32 %v3764, %v3812
        %v3877 = vsub.f32 %v3765, %v3813
        %v3878 = vsub.f32 %v3766, %v3814
        %v3879 = vsub.f32 %v3767, %v3815
        %v3880 = vsub.f32 %v3768, %v3816
        %v3881 = vsub.f32 %v3769, %v3817
        %v3882 = vsub.f32 %v3770, %v3818
        %v3883 = vsub.f32 %v3771, %v3819
        %v3884 = vsub.f32 %v3772, %v3820
        %v3885 = vsub.f32 %v3773, %v3821
        %v3886 = vmul.f32 %v3870, 1.442695
        %v3887 = vpow.pop %v3886
        %v3888 = vmul.f32 %v3871, 1.442695
        %v3889 = vpow.pop %v3888
        %v3890 = vmul.f32 %v3872, 1.442695
        %v3891 = vpow.pop %v3890
        %v3892 = vmul.f32 %v3873, 1.442695
        %v3893 = vpow.pop %v3892
        %v3894 = vmul.f32 %v3874, 1.442695
        %v3895 = vpow.pop %v3894
        %v3896 = vmul.f32 %v3875, 1.442695
        %v3897 = vpow.pop %v3896
        %v3898 = vmul.f32 %v3876, 1.442695
        %v3899 = vpow.pop %v3898
        %v3900 = vmul.f32 %v3877, 1.442695
        %v3901 = vpow.pop %v3900
        %v3902 = vmul.f32 %v3878, 1.442695
        %v3903 = vpow.pop %v3902
        %v3904 = vmul.f32 %v3879, 1.442695
        %v3905 = vpow.pop %v3904
        %v3906 = vmul.f32 %v3880, 1.442695
        %v3907 = vpow.pop %v3906
        %v3908 = vmul.f32 %v3881, 1.442695
        %v3909 = vpow.pop %v3908
        %v3910 = vmul.f32 %v3882, 1.442695
        %v3911 = vpow.pop %v3910
        %v3912 = vmul.f32 %v3883, 1.442695
        %v3913 = vpow.pop %v3912
        %v3914 = vmul.f32 %v3884, 1.442695
        %v3915 = vpow.pop %v3914
        %v3916 = vmul.f32 %v3885, 1.442695
        %v3917 = vpow.pop %v3916
        %v3918 = vmul.f32 %v3839, 0.0
        %v3919 = vmul.f32 %v3841, 0.0
        %v3920 = vmul.f32 %v3843, 0.0
        %v3921 = vmul.f32 %v3845, 0.0
        %v3922 = vmul.f32 %v3847, 0.0
        %v3923 = vmul.f32 %v3849, 0.0
        %v3924 = vmul.f32 %v3851, 0.0
        %v3925 = vmul.f32 %v3853, 0.0
        %v3926 = vmul.f32 %v3855, 0.0
        %v3927 = vmul.f32 %v3857, 0.0
        %v3928 = vmul.f32 %v3859, 0.0
        %v3929 = vmul.f32 %v3861, 0.0
        %v3930 = vmul.f32 %v3863, 0.0
        %v3931 = vmul.f32 %v3865, 0.0
        %v3932 = vmul.f32 %v3867, 0.0
        %v3933 = vmul.f32 %v3869, 0.0
        %3934 = vadd.xlane.f32.xlu0 %v3887
        %v3935 = vpop.xlane.xlu0 %3934
        %3936 = vadd.xlane.f32.xlu0 %v3889
        %v3937 = vpop.xlane.xlu0 %3936
        %3938 = vadd.xlane.f32.xlu0 %v3891
        %v3939 = vpop.xlane.xlu0 %3938
        %3940 = vadd.xlane.f32.xlu0 %v3893
        %v3941 = vpop.xlane.xlu0 %3940
        %3942 = vadd.xlane.f32.xlu0 %v3895
        %v3943 = vpop.xlane.xlu0 %3942
        %3944 = vadd.xlane.f32.xlu0 %v3897
        %v3945 = vpop.xlane.xlu0 %3944
        %3946 = vadd.xlane.f32.xlu0 %v3899
        %v3947 = vpop.xlane.xlu0 %3946
        %3948 = vadd.xlane.f32.xlu0 %v3901
        %v3949 = vpop.xlane.xlu0 %3948
        %3950 = vadd.xlane.f32.xlu0 %v3903
        %v3951 = vpop.xlane.xlu0 %3950
        %3952 = vadd.xlane.f32.xlu0 %v3905
        %v3953 = vpop.xlane.xlu0 %3952
        %3954 = vadd.xlane.f32.xlu0 %v3907
        %v3955 = vpop.xlane.xlu0 %3954
        %3956 = vadd.xlane.f32.xlu0 %v3909
        %v3957 = vpop.xlane.xlu0 %3956
        %3958 = vadd.xlane.f32.xlu0 %v3911
        %v3959 = vpop.xlane.xlu0 %3958
        %3960 = vadd.xlane.f32.xlu0 %v3913
        %v3961 = vpop.xlane.xlu0 %3960
        %3962 = vadd.xlane.f32.xlu0 %v3915
        %v3963 = vpop.xlane.xlu0 %3962
        %3964 = vadd.xlane.f32.xlu0 %v3917
        %v3965 = vpop.xlane.xlu0 %3964
        %v3966 = vadd.f32 %v3918, %v3935
        %v3967 = vadd.f32 %v3919, %v3937
        %v3968 = vadd.f32 %v3920, %v3939
        %v3969 = vadd.f32 %v3921, %v3941
        %v3970 = vadd.f32 %v3922, %v3943
        %v3971 = vadd.f32 %v3923, %v3945
        %v3972 = vadd.f32 %v3924, %v3947
        %v3973 = vadd.f32 %v3925, %v3949
        %v3974 = vadd.f32 %v3926, %v3951
        %v3975 = vadd.f32 %v3927, %v3953
        %v3976 = vadd.f32 %v3928, %v3955
        %v3977 = vadd.f32 %v3929, %v3957
        %v3978 = vadd.f32 %v3930, %v3959
        %v3979 = vadd.f32 %v3931, %v3961
        %v3980 = vadd.f32 %v3932, %v3963
        %v3981 = vadd.f32 %v3933, %v3965
        %v3982 = vpack.c.bf16 %v3889, %v3887
        %v3983 = vpack.c.bf16 %v3893, %v3891
        %v3984 = vpack.c.bf16 %v3897, %v3895
        %v3985 = vpack.c.bf16 %v3901, %v3899
        %v3986 = vpack.c.bf16 %v3905, %v3903
        %v3987 = vpack.c.bf16 %v3909, %v3907
        %v3988 = vpack.c.bf16 %v3913, %v3911
        %v3989 = vpack.c.bf16 %v3917, %v3915
        %v4006 = vunpack.c.l.b16 %v3498
        %v4007 = vunpack.c.l.b16 %v3499
        %v4008 = vunpack.c.l.b16 %v3500
        %v4009 = vunpack.c.l.b16 %v3501
        %v4010 = vunpack.c.l.b16 %v3502
        %v4011 = vunpack.c.l.b16 %v3503
        %v4012 = vunpack.c.l.b16 %v3504
        %v4013 = vunpack.c.l.b16 %v3505
        %v4014 = vunpack.c.l.b16 %v3506
        %v4015 = vunpack.c.l.b16 %v3507
        %v4016 = vunpack.c.l.b16 %v3508
        %v4017 = vunpack.c.l.b16 %v3509
        %v4018 = vunpack.c.l.b16 %v3510
        %v4019 = vunpack.c.l.b16 %v3511
        %v4020 = vunpack.c.l.b16 %v3512
        %v4021 = vunpack.c.l.b16 %v3513
        %v4022 = vpack.c.b16 %v4007, %v4006
        %v4023 = vpack.c.b16 %v4009, %v4008
        %v4024 = vpack.c.b16 %v4011, %v4010
        %v4025 = vpack.c.b16 %v4013, %v4012
        %v4026 = vpack.c.b16 %v4015, %v4014
        %v4027 = vpack.c.b16 %v4017, %v4016
        %v4028 = vpack.c.b16 %v4019, %v4018
        %v4029 = vpack.c.b16 %v4021, %v4020
        %4038 = vmatprep.subr.bf16.mxu0 0
        %4039 = vmatpush1.bf16.msra.mxu0 %v4029
        %4040 = vmatprep.subr.bf16.mxu0 0
        %4041 = vmatpush1.bf16.msra.mxu0 %v4028
        %4042 = vmatprep.subr.bf16.mxu0 0
        %4043 = vmatpush1.bf16.msra.mxu0 %v4027
        %4044 = vmatprep.subr.bf16.mxu0 0
        %4045 = vmatpush1.bf16.msra.mxu0 %v4026
        %4046 = vmatprep.subr.bf16.mxu0 0
        %4047 = vmatpush1.bf16.msra.mxu0 %v4025
        %4048 = vmatprep.subr.bf16.mxu0 0
        %4049 = vmatpush1.bf16.msra.mxu0 %v4024
        %4050 = vmatprep.subr.bf16.mxu0 0
        %4051 = vmatpush1.bf16.msra.mxu0 %v4023
        %4052 = vmatprep.subr.bf16.mxu0 0
        %4053 = vmatpush1.bf16.msra.mxu0 %v4022
        %4054 = vmatprep.subr.bf16.mxu0 0
        %4055 = vmatpush2.bf16.msra.mxu0 0
        %4056 = vmatprep.subr.bf16.mxu0 0
        %4057 = vmatpush2.bf16.msra.mxu0 0
        %4058 = vmatprep.subr.bf16.mxu0 0
        %4059 = vmatpush2.bf16.msra.mxu0 0
        %4060 = vmatprep.subr.bf16.mxu0 0
        %4061 = vmatpush2.bf16.msra.mxu0 0
        %4062 = vmatprep.subr.bf16.mxu0 0
        %4063 = vmatpush2.bf16.msra.mxu0 0
        %4064 = vmatprep.subr.bf16.mxu0 0
        %4065 = vmatpush2.bf16.msra.mxu0 0
        %4066 = vmatprep.subr.bf16.mxu0 0
        %4067 = vmatpush2.bf16.msra.mxu0 0
        %4068 = vmatprep.subr.bf16.mxu0 0
        %4069 = vmatpush2.bf16.msra.mxu0 0
        %4070 = vmatprep.mubr.bf16.mxu0 0
        %4071 = vmatmul.mubr.bf16.gmra.mxu0 %v3982
        %v4072 = vpop.f32.mrf.mxu0
        %v4073 = vadd.f32 0.0, %v4072
        %v4074 = vpop.f32.mrf.mxu0
        %v4075 = vpop.f32.mrf.mxu0
        %v4076 = vadd.f32 0.0, %v4075
        %v4077 = vpop.f32.mrf.mxu0
        %4078 = vmatprep.mubr.bf16.mxu0 0
        %4079 = vmatmul.mubr.bf16.gmra.mxu0 %v3983
        %v4080 = vpop.f32.mrf.mxu0
        %v4081 = vadd.f32 0.0, %v4080
        %v4082 = vpop.f32.mrf.mxu0
        %v4083 = vpop.f32.mrf.mxu0
        %v4084 = vadd.f32 0.0, %v4083
        %v4085 = vpop.f32.mrf.mxu0
        %4086 = vmatprep.mubr.bf16.mxu0 0
        %4087 = vmatmul.mubr.bf16.gmra.mxu0 %v3984
        %v4088 = vpop.f32.mrf.mxu0
        %v4089 = vadd.f32 0.0, %v4088
        %v4090 = vpop.f32.mrf.mxu0
        %v4091 = vpop.f32.mrf.mxu0
        %v4092 = vadd.f32 0.0, %v4091
        %v4093 = vpop.f32.mrf.mxu0
        %4094 = vmatprep.mubr.bf16.mxu0 0
        %4095 = vmatmul.mubr.bf16.gmra.mxu0 %v3985
        %v4096 = vpop.f32.mrf.mxu0
        %v4097 = vadd.f32 0.0, %v4096
        %v4098 = vpop.f32.mrf.mxu0
        %v4099 = vpop.f32.mrf.mxu0
        %v4100 = vadd.f32 0.0, %v4099
        %v4101 = vpop.f32.mrf.mxu0
        %4102 = vmatprep.mubr.bf16.mxu0 0
        %4103 = vmatmul.mubr.bf16.gmra.mxu0 %v3986
        %v4104 = vpop.f32.mrf.mxu0
        %v4105 = vadd.f32 0.0, %v4104
        %v4106 = vpop.f32.mrf.mxu0
        %v4107 = vpop.f32.mrf.mxu0
        %v4108 = vadd.f32 0.0, %v4107
        %v4109 = vpop.f32.mrf.mxu0
        %4110 = vmatprep.mubr.bf16.mxu0 0
        %4111 = vmatmul.mubr.bf16.gmra.mxu0 %v3987
        %v4112 = vpop.f32.mrf.mxu0
        %v4113 = vadd.f32 0.0, %v4112
        %v4114 = vpop.f32.mrf.mxu0
        %v4115 = vpop.f32.mrf.mxu0
        %v4116 = vadd.f32 0.0, %v4115
        %v4117 = vpop.f32.mrf.mxu0
        %4118 = vmatprep.mubr.bf16.mxu0 0
        %4119 = vmatmul.mubr.bf16.gmra.mxu0 %v3988
        %v4120 = vpop.f32.mrf.mxu0
        %v4121 = vadd.f32 0.0, %v4120
        %v4122 = vpop.f32.mrf.mxu0
        %v4123 = vpop.f32.mrf.mxu0
        %v4124 = vadd.f32 0.0, %v4123
        %v4125 = vpop.f32.mrf.mxu0
        %4126 = vmatprep.mubr.bf16.mxu0 0
        %4127 = vmatmul.mubr.bf16.gmra.mxu0 %v3989
        %v4128 = vpop.f32.mrf.mxu0
        %v4129 = vadd.f32 0.0, %v4128
        %v4130 = vpop.f32.mrf.mxu0
        %v4131 = vpop.f32.mrf.mxu0
        %v4132 = vadd.f32 0.0, %v4131
        %v4133 = vpop.f32.mrf.mxu0
        %4134 = vdwg.mxu0
        %v4135 = vadd.f32 %v3918, %v4073
        %v4136 = vadd.f32 %v3919, %v4076
        %v4137 = vadd.f32 %v3920, %v4081
        %v4138 = vadd.f32 %v3921, %v4084
        %v4139 = vadd.f32 %v3922, %v4089
        %v4140 = vadd.f32 %v3923, %v4092
        %v4141 = vadd.f32 %v3924, %v4097
        %v4142 = vadd.f32 %v3925, %v4100
        %v4143 = vadd.f32 %v3926, %v4105
        %v4144 = vadd.f32 %v3927, %v4108
        %v4145 = vadd.f32 %v3928, %v4113
        %v4146 = vadd.f32 %v3929, %v4116
        %v4147 = vadd.f32 %v3930, %v4121
        %v4148 = vadd.f32 %v3931, %v4124
        %v4149 = vadd.f32 %v3932, %v4129
        %v4150 = vadd.f32 %v3933, %v4132
        %v4151 = vrcp.pop %v3966
        %v4152 = vrcp.pop %v3967
        %v4153 = vrcp.pop %v3968
        %v4154 = vrcp.pop %v3969
        %v4155 = vrcp.pop %v3970
        %v4156 = vrcp.pop %v3971
        %v4157 = vrcp.pop %v3972
        %v4158 = vrcp.pop %v3973
        %v4159 = vrcp.pop %v3974
        %v4160 = vrcp.pop %v3975
        %v4161 = vrcp.pop %v3976
        %v4162 = vrcp.pop %v3977
        %v4163 = vrcp.pop %v3978
        %v4164 = vrcp.pop %v3979
        %v4165 = vrcp.pop %v3980
        %v4166 = vrcp.pop %v3981
        %v4167 = vmul.f32 %v4135, %v4151
        %v4168 = vmul.f32 %v4136, %v4152
        %v4169 = vmul.f32 %v4137, %v4153
        %v4170 = vmul.f32 %v4138, %v4154
        %v4171 = vmul.f32 %v4139, %v4155
        %v4172 = vmul.f32 %v4140, %v4156
        %v4173 = vmul.f32 %v4141, %v4157
        %v4174 = vmul.f32 %v4142, %v4158
        %v4175 = vmul.f32 %v4143, %v4159
        %v4176 = vmul.f32 %v4144, %v4160
        %v4177 = vmul.f32 %v4145, %v4161
        %v4178 = vmul.f32 %v4146, %v4162
        %v4179 = vmul.f32 %v4147, %v4163
        %v4180 = vmul.f32 %v4148, %v4164
        %v4181 = vmul.f32 %v4149, %v4165
        %v4182 = vmul.f32 %v4150, %v4166
        %v4183 = vpack.c.bf16 %v4168, %v4167
        %v4184 = vpack.c.bf16 %v4170, %v4169
        %v4185 = vpack.c.bf16 %v4172, %v4171
        %v4186 = vpack.c.bf16 %v4174, %v4173
        %v4187 = vpack.c.bf16 %v4176, %v4175
        %v4188 = vpack.c.bf16 %v4178, %v4177
        %v4189 = vpack.c.bf16 %v4180, %v4179
        %v4190 = vpack.c.bf16 %v4182, %v4181
        %v4199 = vunpack.c.l.b16 %v4183
        %v4200 = vunpack.c.h.b16 %v4183
        %v4201 = vunpack.c.l.b16 %v4184
        %v4202 = vunpack.c.h.b16 %v4184
        %v4203 = vunpack.c.l.b16 %v4185
        %v4204 = vunpack.c.h.b16 %v4185
        %v4205 = vunpack.c.l.b16 %v4186
        %v4206 = vunpack.c.h.b16 %v4186
        %v4207 = vunpack.c.l.b16 %v4187
        %v4208 = vunpack.c.h.b16 %v4187
        %v4209 = vunpack.c.l.b16 %v4188
        %v4210 = vunpack.c.h.b16 %v4188
        %v4211 = vunpack.c.l.b16 %v4189
        %v4212 = vunpack.c.h.b16 %v4189
        %v4213 = vunpack.c.l.b16 %v4190
        %v4214 = vunpack.c.h.b16 %v4190
        %v4215 = vpack.c.b16 %v4199, %v4199
        %v4216 = vpack.c.b16 %v4200, %v4200
        %v4217 = vpack.c.b16 %v4201, %v4201
        %v4218 = vpack.c.b16 %v4202, %v4202
        %v4219 = vpack.c.b16 %v4203, %v4203
        %v4220 = vpack.c.b16 %v4204, %v4204
        %v4221 = vpack.c.b16 %v4205, %v4205
        %v4222 = vpack.c.b16 %v4206, %v4206
        %v4223 = vpack.c.b16 %v4207, %v4207
        %v4224 = vpack.c.b16 %v4208, %v4208
        %v4225 = vpack.c.b16 %v4209, %v4209
        %v4226 = vpack.c.b16 %v4210, %v4210
        %v4227 = vpack.c.b16 %v4211, %v4211
        %v4228 = vpack.c.b16 %v4212, %v4212
        %v4229 = vpack.c.b16 %v4213, %v4213
        %v4230 = vpack.c.b16 %v4214, %v4214
        %vm4247 = vcmask 519168
        %4248 = vst.msk [vmem:[#allocation4] sm:$0xf] %vm4247, %v4215
        %4249 = vst.msk [vmem:[#allocation4 + $0xc] sm:$0xf] %vm4247, %v4216
        %4250 = vst.msk [vmem:[#allocation4 + $0x18] sm:$0xf] %vm4247, %v4217
        %4251 = vst.msk [vmem:[#allocation4 + $0x24] sm:$0xf] %vm4247, %v4218
        %4252 = vst.msk [vmem:[#allocation4 + $0x30] sm:$0xf] %vm4247, %v4219
        %4253 = vst.msk [vmem:[#allocation4 + $0x3c] sm:$0xf] %vm4247, %v4220
        %4254 = vst.msk [vmem:[#allocation4 + $0x48] sm:$0xf] %vm4247, %v4221
        %4255 = vst.msk [vmem:[#allocation4 + $0x54] sm:$0xf] %vm4247, %v4222
        %4256 = vst.msk [vmem:[#allocation4 + $0x60] sm:$0xf] %vm4247, %v4223
        %4257 = vst.msk [vmem:[#allocation4 + $0x6c] sm:$0xf] %vm4247, %v4224
        %4258 = vst.msk [vmem:[#allocation4 + $0x78] sm:$0xf] %vm4247, %v4225
        %4259 = vst.msk [vmem:[#allocation4 + $0x84] sm:$0xf] %vm4247, %v4226
        %4260 = vst.msk [vmem:[#allocation4 + $0x90] sm:$0xf] %vm4247, %v4227
        %4261 = vst.msk [vmem:[#allocation4 + $0x9c] sm:$0xf] %vm4247, %v4228
        %4262 = vst.msk [vmem:[#allocation4 + $0xa8] sm:$0xf] %vm4247, %v4229
        %4263 = vst.msk [vmem:[#allocation4 + $0xb4] sm:$0xf] %vm4247, %v4230
        %v4264 = vld [vmem:[#allocation3] sm:$0xf]
        %v4265 = vld [vmem:[#allocation3 + $0xc] sm:$0xf]
        %v4266 = vld [vmem:[#allocation3 + $0x18] sm:$0xf]
        %v4267 = vld [vmem:[#allocation3 + $0x24] sm:$0xf]
        %v4268 = vld [vmem:[#allocation3 + $0x30] sm:$0xf]
        %v4269 = vld [vmem:[#allocation3 + $0x3c] sm:$0xf]
        %v4270 = vld [vmem:[#allocation3 + $0x48] sm:$0xf]
        %v4271 = vld [vmem:[#allocation3 + $0x54] sm:$0xf]
        %v4272 = vld [vmem:[#allocation3 + $0x60] sm:$0xf]
        %v4273 = vld [vmem:[#allocation3 + $0x6c] sm:$0xf]
        %v4274 = vld [vmem:[#allocation3 + $0x78] sm:$0xf]
        %v4275 = vld [vmem:[#allocation3 + $0x84] sm:$0xf]
        %v4276 = vld [vmem:[#allocation3 + $0x90] sm:$0xf]
        %v4277 = vld [vmem:[#allocation3 + $0x9c] sm:$0xf]
        %v4278 = vld [vmem:[#allocation3 + $0xa8] sm:$0xf]
        %v4279 = vld [vmem:[#allocation3 + $0xb4] sm:$0xf]
        %v4280 = vld [vmem:[%s3481] sm:$0xf]
        %v4281 = vld [vmem:[%s3481 + $0x18] sm:$0xf]
        %v4282 = vld [vmem:[%s3481 + $0x30] sm:$0xf]
        %v4283 = vld [vmem:[%s3481 + $0x48] sm:$0xf]
        %v4284 = vld [vmem:[%s3481 + $0x60] sm:$0xf]
        %v4285 = vld [vmem:[%s3481 + $0x78] sm:$0xf]
        %v4286 = vld [vmem:[%s3481 + $0x90] sm:$0xf]
        %v4287 = vld [vmem:[%s3481 + $0xa8] sm:$0xf]
        %v4288 = vld [vmem:[%s3481 + $0xc0] sm:$0xf]
        %v4289 = vld [vmem:[%s3481 + $0xd8] sm:$0xf]
        %v4290 = vld [vmem:[%s3481 + $0xf0] sm:$0xf]
        %v4291 = vld [vmem:[%s3481 + $0x108] sm:$0xf]
        %v4292 = vld [vmem:[%s3481 + $0x120] sm:$0xf]
        %v4293 = vld [vmem:[%s3481 + $0x138] sm:$0xf]
        %v4294 = vld [vmem:[%s3481 + $0x150] sm:$0xf]
        %v4295 = vld [vmem:[%s3481 + $0x168] sm:$0xf]
        %v4296 = vld [vmem:[%s3481 + $0xc] sm:$0xf]
        %v4297 = vld [vmem:[%s3481 + $0x24] sm:$0xf]
        %v4298 = vld [vmem:[%s3481 + $0x3c] sm:$0xf]
        %v4299 = vld [vmem:[%s3481 + $0x54] sm:$0xf]
        %v4300 = vld [vmem:[%s3481 + $0x6c] sm:$0xf]
        %v4301 = vld [vmem:[%s3481 + $0x84] sm:$0xf]
        %v4302 = vld [vmem:[%s3481 + $0x9c] sm:$0xf]
        %v4303 = vld [vmem:[%s3481 + $0xb4] sm:$0xf]
        %v4304 = vld [vmem:[%s3481 + $0xcc] sm:$0xf]
        %v4305 = vld [vmem:[%s3481 + $0xe4] sm:$0xf]
        %v4306 = vld [vmem:[%s3481 + $0xfc] sm:$0xf]
        %v4307 = vld [vmem:[%s3481 + $0x114] sm:$0xf]
        %v4308 = vld [vmem:[%s3481 + $0x12c] sm:$0xf]
        %v4309 = vld [vmem:[%s3481 + $0x144] sm:$0xf]
        %v4310 = vld [vmem:[%s3481 + $0x15c] sm:$0xf]
        %v4311 = vld [vmem:[%s3481 + $0x174] sm:$0xf]
        %v4328 = vunpack.c.l.b16 %v4264
        %v4329 = vunpack.c.l.b16 %v4265
        %v4330 = vunpack.c.l.b16 %v4266
        %v4331 = vunpack.c.l.b16 %v4267
        %v4332 = vunpack.c.l.b16 %v4268
        %v4333 = vunpack.c.l.b16 %v4269
        %v4334 = vunpack.c.l.b16 %v4270
        %v4335 = vunpack.c.l.b16 %v4271
        %v4336 = vunpack.c.l.b16 %v4272
        %v4337 = vunpack.c.l.b16 %v4273
        %v4338 = vunpack.c.l.b16 %v4274
        %v4339 = vunpack.c.l.b16 %v4275
        %v4340 = vunpack.c.l.b16 %v4276
        %v4341 = vunpack.c.l.b16 %v4277
        %v4342 = vunpack.c.l.b16 %v4278
        %v4343 = vunpack.c.l.b16 %v4279
        %v4344 = vpack.c.b16 %v4329, %v4328
        %v4345 = vpack.c.b16 %v4331, %v4330
        %v4346 = vpack.c.b16 %v4333, %v4332
        %v4347 = vpack.c.b16 %v4335, %v4334
        %v4348 = vpack.c.b16 %v4337, %v4336
        %v4349 = vpack.c.b16 %v4339, %v4338
        %v4350 = vpack.c.b16 %v4341, %v4340
        %v4351 = vpack.c.b16 %v4343, %v4342
        %4352 = vrot.lane.b32.xlu0 %v4344, 64
        %v4353 = vpop.permute.xlu0 %4352
        %4354 = vrot.lane.b32.xlu0 %v4345, 64
        %v4355 = vpop.permute.xlu0 %4354
        %4356 = vrot.lane.b32.xlu0 %v4346, 64
        %v4357 = vpop.permute.xlu0 %4356
        %4358 = vrot.lane.b32.xlu0 %v4347, 64
        %v4359 = vpop.permute.xlu0 %4358
        %4360 = vrot.lane.b32.xlu0 %v4348, 64
        %v4361 = vpop.permute.xlu0 %4360
        %4362 = vrot.lane.b32.xlu0 %v4349, 64
        %v4363 = vpop.permute.xlu0 %4362
        %4364 = vrot.lane.b32.xlu0 %v4350, 64
        %v4365 = vpop.permute.xlu0 %4364
        %4366 = vrot.lane.b32.xlu0 %v4351, 64
        %v4367 = vpop.permute.xlu0 %4366
        %v4384 = vunpack.c.l.b16 %v4280
        %v4385 = vunpack.c.l.b16 %v4281
        %v4386 = vunpack.c.l.b16 %v4282
        %v4387 = vunpack.c.l.b16 %v4283
        %v4388 = vunpack.c.l.b16 %v4284
        %v4389 = vunpack.c.l.b16 %v4285
        %v4390 = vunpack.c.l.b16 %v4286
        %v4391 = vunpack.c.l.b16 %v4287
        %v4392 = vunpack.c.l.b16 %v4288
        %v4393 = vunpack.c.l.b16 %v4289
        %v4394 = vunpack.c.l.b16 %v4290
        %v4395 = vunpack.c.l.b16 %v4291
        %v4396 = vunpack.c.l.b16 %v4292
        %v4397 = vunpack.c.l.b16 %v4293
        %v4398 = vunpack.c.l.b16 %v4294
        %v4399 = vunpack.c.l.b16 %v4295
        %v4400 = vpack.c.b16 %v4385, %v4384
        %v4401 = vpack.c.b16 %v4387, %v4386
        %v4402 = vpack.c.b16 %v4389, %v4388
        %v4403 = vpack.c.b16 %v4391, %v4390
        %v4404 = vpack.c.b16 %v4393, %v4392
        %v4405 = vpack.c.b16 %v4395, %v4394
        %v4406 = vpack.c.b16 %v4397, %v4396
        %v4407 = vpack.c.b16 %v4399, %v4398
        %4408 = vrot.lane.b32.xlu0 %v4400, 64
        %v4409 = vpop.permute.xlu0 %4408
        %4410 = vrot.lane.b32.xlu0 %v4401, 64
        %v4411 = vpop.permute.xlu0 %4410
        %4412 = vrot.lane.b32.xlu0 %v4402, 64
        %v4413 = vpop.permute.xlu0 %4412
        %4414 = vrot.lane.b32.xlu0 %v4403, 64
        %v4415 = vpop.permute.xlu0 %4414
        %4416 = vrot.lane.b32.xlu0 %v4404, 64
        %v4417 = vpop.permute.xlu0 %4416
        %4418 = vrot.lane.b32.xlu0 %v4405, 64
        %v4419 = vpop.permute.xlu0 %4418
        %4420 = vrot.lane.b32.xlu0 %v4406, 64
        %v4421 = vpop.permute.xlu0 %4420
        %4422 = vrot.lane.b32.xlu0 %v4407, 64
        %v4423 = vpop.permute.xlu0 %4422
        %v4425 = vsel %vm3594, %v4353, 0
        %v4428 = vsel %vm3594, %v4355, 0
        %v4431 = vsel %vm3594, %v4357, 0
        %v4434 = vsel %vm3594, %v4359, 0
        %v4437 = vsel %vm3594, %v4361, 0
        %v4440 = vsel %vm3594, %v4363, 0
        %v4443 = vsel %vm3594, %v4365, 0
        %v4446 = vsel %vm3594, %v4367, 0
        %v4449 = vsel %vm3594, %v4409, 0
        %v4452 = vsel %vm3594, %v4411, 0
        %v4455 = vsel %vm3594, %v4413, 0
        %v4458 = vsel %vm3594, %v4415, 0
        %v4461 = vsel %vm3594, %v4417, 0
        %v4464 = vsel %vm3594, %v4419, 0
        %v4467 = vsel %vm3594, %v4421, 0
        %v4470 = vsel %vm3594, %v4423, 0
        %4472 = vmatprep.subr.bf16.mxu0 0
        %4473 = vmatpush1.bf16.xpose.msra.mxu0 %v4470
        %4474 = vmatprep.subr.bf16.mxu0 0
        %4475 = vmatpush1.bf16.xpose.msra.mxu0 %v4467
        %4476 = vmatprep.subr.bf16.mxu0 0
        %4477 = vmatpush1.bf16.xpose.msra.mxu0 %v4464
        %4478 = vmatprep.subr.bf16.mxu0 0
        %4479 = vmatpush1.bf16.xpose.msra.mxu0 %v4461
        %4480 = vmatprep.subr.bf16.mxu0 0
        %4481 = vmatpush1.bf16.xpose.msra.mxu0 %v4458
        %4482 = vmatprep.subr.bf16.mxu0 0
        %4483 = vmatpush1.bf16.xpose.msra.mxu0 %v4455
        %4484 = vmatprep.subr.bf16.mxu0 0
        %4485 = vmatpush1.bf16.xpose.msra.mxu0 %v4452
        %4486 = vmatprep.subr.bf16.mxu0 0
        %4487 = vmatpush1.bf16.xpose.msra.mxu0 %v4449
        %4488 = vmatprep.subr.bf16.mxu0 0
        %4489 = vmatpush2.bf16.xpose.msra.mxu0 0
        %4490 = vmatprep.subr.bf16.mxu0 0
        %4491 = vmatpush2.bf16.xpose.msra.mxu0 0
        %4492 = vmatprep.subr.bf16.mxu0 0
        %4493 = vmatpush2.bf16.xpose.msra.mxu0 0
        %4494 = vmatprep.subr.bf16.mxu0 0
        %4495 = vmatpush2.bf16.xpose.msra.mxu0 0
        %4496 = vmatprep.subr.bf16.mxu0 0
        %4497 = vmatpush2.bf16.xpose.msra.mxu0 0
        %4498 = vmatprep.subr.bf16.mxu0 0
        %4499 = vmatpush2.bf16.xpose.msra.mxu0 0
        %4500 = vmatprep.subr.bf16.mxu0 0
        %4501 = vmatpush2.bf16.xpose.msra.mxu0 0
        %4502 = vmatprep.subr.bf16.mxu0 0
        %4503 = vmatpush2.bf16.xpose.msra.mxu0 0
        %4504 = vmatprep.mubr.bf16.mxu0 0
        %4505 = vmatmul.mubr.bf16.gmra.mxu0 %v4425
        %v4506 = vpop.f32.mrf.mxu0
        %v4507 = vadd.f32 0.0, %v4506
        %v4508 = vpop.f32.mrf.mxu0
        %v4509 = vpop.f32.mrf.mxu0
        %v4510 = vadd.f32 0.0, %v4509
        %v4511 = vpop.f32.mrf.mxu0
        %4512 = vmatprep.mubr.bf16.mxu0 0
        %4513 = vmatmul.mubr.bf16.gmra.mxu0 %v4428
        %v4514 = vpop.f32.mrf.mxu0
        %v4515 = vadd.f32 0.0, %v4514
        %v4516 = vpop.f32.mrf.mxu0
        %v4517 = vpop.f32.mrf.mxu0
        %v4518 = vadd.f32 0.0, %v4517
        %v4519 = vpop.f32.mrf.mxu0
        %4520 = vmatprep.mubr.bf16.mxu0 0
        %4521 = vmatmul.mubr.bf16.gmra.mxu0 %v4431
        %v4522 = vpop.f32.mrf.mxu0
        %v4523 = vadd.f32 0.0, %v4522
        %v4524 = vpop.f32.mrf.mxu0
        %v4525 = vpop.f32.mrf.mxu0
        %v4526 = vadd.f32 0.0, %v4525
        %v4527 = vpop.f32.mrf.mxu0
        %4528 = vmatprep.mubr.bf16.mxu0 0
        %4529 = vmatmul.mubr.bf16.gmra.mxu0 %v4434
        %v4530 = vpop.f32.mrf.mxu0
        %v4531 = vadd.f32 0.0, %v4530
        %v4532 = vpop.f32.mrf.mxu0
        %v4533 = vpop.f32.mrf.mxu0
        %v4534 = vadd.f32 0.0, %v4533
        %v4535 = vpop.f32.mrf.mxu0
        %4536 = vmatprep.mubr.bf16.mxu0 0
        %4537 = vmatmul.mubr.bf16.gmra.mxu0 %v4437
        %v4538 = vpop.f32.mrf.mxu0
        %v4539 = vadd.f32 0.0, %v4538
        %v4540 = vpop.f32.mrf.mxu0
        %v4541 = vpop.f32.mrf.mxu0
        %v4542 = vadd.f32 0.0, %v4541
        %v4543 = vpop.f32.mrf.mxu0
        %4544 = vmatprep.mubr.bf16.mxu0 0
        %4545 = vmatmul.mubr.bf16.gmra.mxu0 %v4440
        %v4546 = vpop.f32.mrf.mxu0
        %v4547 = vadd.f32 0.0, %v4546
        %v4548 = vpop.f32.mrf.mxu0
        %v4549 = vpop.f32.mrf.mxu0
        %v4550 = vadd.f32 0.0, %v4549
        %v4551 = vpop.f32.mrf.mxu0
        %4552 = vmatprep.mubr.bf16.mxu0 0
        %4553 = vmatmul.mubr.bf16.gmra.mxu0 %v4443
        %v4554 = vpop.f32.mrf.mxu0
        %v4555 = vadd.f32 0.0, %v4554
        %v4556 = vpop.f32.mrf.mxu0
        %v4557 = vpop.f32.mrf.mxu0
        %v4558 = vadd.f32 0.0, %v4557
        %v4559 = vpop.f32.mrf.mxu0
        %4560 = vmatprep.mubr.bf16.mxu0 0
        %4561 = vmatmul.mubr.bf16.gmra.mxu0 %v4446
        %v4562 = vpop.f32.mrf.mxu0
        %v4563 = vadd.f32 0.0, %v4562
        %v4564 = vpop.f32.mrf.mxu0
        %v4565 = vpop.f32.mrf.mxu0
        %v4566 = vadd.f32 0.0, %v4565
        %v4567 = vpop.f32.mrf.mxu0
        %4568 = vdwg.mxu0
        %v4569 = vsel %vm3742, %v4507, -1e+30
        %v4570 = vsel %vm3743, %v4510, -1e+30
        %v4571 = vsel %vm3744, %v4515, -1e+30
        %v4572 = vsel %vm3745, %v4518, -1e+30
        %v4573 = vsel %vm3746, %v4523, -1e+30
        %v4574 = vsel %vm3747, %v4526, -1e+30
        %v4575 = vsel %vm3748, %v4531, -1e+30
        %v4576 = vsel %vm3749, %v4534, -1e+30
        %v4577 = vsel %vm3750, %v4539, -1e+30
        %v4578 = vsel %vm3751, %v4542, -1e+30
        %v4579 = vsel %vm3752, %v4547, -1e+30
        %v4580 = vsel %vm3753, %v4550, -1e+30
        %v4581 = vsel %vm3754, %v4555, -1e+30
        %v4582 = vsel %vm3755, %v4558, -1e+30
        %v4583 = vsel %vm3756, %v4563, -1e+30
        %v4584 = vsel %vm3757, %v4566, -1e+30
        %4585 = vmax.xlane.f32.xlu0 %v4569
        %v4586 = vpop.xlane.xlu0 %4585
        %4587 = vmax.xlane.f32.xlu0 %v4570
        %v4588 = vpop.xlane.xlu0 %4587
        %4589 = vmax.xlane.f32.xlu0 %v4571
        %v4590 = vpop.xlane.xlu0 %4589
        %4591 = vmax.xlane.f32.xlu0 %v4572
        %v4592 = vpop.xlane.xlu0 %4591
        %4593 = vmax.xlane.f32.xlu0 %v4573
        %v4594 = vpop.xlane.xlu0 %4593
        %4595 = vmax.xlane.f32.xlu0 %v4574
        %v4596 = vpop.xlane.xlu0 %4595
        %4597 = vmax.xlane.f32.xlu0 %v4575
        %v4598 = vpop.xlane.xlu0 %4597
        %4599 = vmax.xlane.f32.xlu0 %v4576
        %v4600 = vpop.xlane.xlu0 %4599
        %4601 = vmax.xlane.f32.xlu0 %v4577
        %v4602 = vpop.xlane.xlu0 %4601
        %4603 = vmax.xlane.f32.xlu0 %v4578
        %v4604 = vpop.xlane.xlu0 %4603
        %4605 = vmax.xlane.f32.xlu0 %v4579
        %v4606 = vpop.xlane.xlu0 %4605
        %4607 = vmax.xlane.f32.xlu0 %v4580
        %v4608 = vpop.xlane.xlu0 %4607
        %4609 = vmax.xlane.f32.xlu0 %v4581
        %v4610 = vpop.xlane.xlu0 %4609
        %4611 = vmax.xlane.f32.xlu0 %v4582
        %v4612 = vpop.xlane.xlu0 %4611
        %4613 = vmax.xlane.f32.xlu0 %v4583
        %v4614 = vpop.xlane.xlu0 %4613
        %4615 = vmax.xlane.f32.xlu0 %v4584
        %v4616 = vpop.xlane.xlu0 %4615
        %v4617 = vmax.f32 %v4586, -1e+30
        %v4618 = vmax.f32 %v4588, -1e+30
        %v4619 = vmax.f32 %v4590, -1e+30
        %v4620 = vmax.f32 %v4592, -1e+30
        %v4621 = vmax.f32 %v4594, -1e+30
        %v4622 = vmax.f32 %v4596, -1e+30
        %v4623 = vmax.f32 %v4598, -1e+30
        %v4624 = vmax.f32 %v4600, -1e+30
        %v4625 = vmax.f32 %v4602, -1e+30
        %v4626 = vmax.f32 %v4604, -1e+30
        %v4627 = vmax.f32 %v4606, -1e+30
        %v4628 = vmax.f32 %v4608, -1e+30
        %v4629 = vmax.f32 %v4610, -1e+30
        %v4630 = vmax.f32 %v4612, -1e+30
        %v4631 = vmax.f32 %v4614, -1e+30
        %v4632 = vmax.f32 %v4616, -1e+30
        %v4633 = vsub.f32 -1e+30, %v4617
        %v4634 = vsub.f32 -1e+30, %v4618
        %v4635 = vsub.f32 -1e+30, %v4619
        %v4636 = vsub.f32 -1e+30, %v4620
        %v4637 = vsub.f32 -1e+30, %v4621
        %v4638 = vsub.f32 -1e+30, %v4622
        %v4639 = vsub.f32 -1e+30, %v4623
        %v4640 = vsub.f32 -1e+30, %v4624
        %v4641 = vsub.f32 -1e+30, %v4625
        %v4642 = vsub.f32 -1e+30, %v4626
        %v4643 = vsub.f32 -1e+30, %v4627
        %v4644 = vsub.f32 -1e+30, %v4628
        %v4645 = vsub.f32 -1e+30, %v4629
        %v4646 = vsub.f32 -1e+30, %v4630
        %v4647 = vsub.f32 -1e+30, %v4631
        %v4648 = vsub.f32 -1e+30, %v4632
        %v4649 = vmul.f32 %v4633, 1.442695
        %v4650 = vpow.pop %v4649
        %v4651 = vmul.f32 %v4634, 1.442695
        %v4652 = vpow.pop %v4651
        %v4653 = vmul.f32 %v4635, 1.442695
        %v4654 = vpow.pop %v4653
        %v4655 = vmul.f32 %v4636, 1.442695
        %v4656 = vpow.pop %v4655
        %v4657 = vmul.f32 %v4637, 1.442695
        %v4658 = vpow.pop %v4657
        %v4659 = vmul.f32 %v4638, 1.442695
        %v4660 = vpow.pop %v4659
        %v4661 = vmul.f32 %v4639, 1.442695
        %v4662 = vpow.pop %v4661
        %v4663 = vmul.f32 %v4640, 1.442695
        %v4664 = vpow.pop %v4663
        %v4665 = vmul.f32 %v4641, 1.442695
        %v4666 = vpow.pop %v4665
        %v4667 = vmul.f32 %v4642, 1.442695
        %v4668 = vpow.pop %v4667
        %v4669 = vmul.f32 %v4643, 1.442695
        %v4670 = vpow.pop %v4669
        %v4671 = vmul.f32 %v4644, 1.442695
        %v4672 = vpow.pop %v4671
        %v4673 = vmul.f32 %v4645, 1.442695
        %v4674 = vpow.pop %v4673
        %v4675 = vmul.f32 %v4646, 1.442695
        %v4676 = vpow.pop %v4675
        %v4677 = vmul.f32 %v4647, 1.442695
        %v4678 = vpow.pop %v4677
        %v4679 = vmul.f32 %v4648, 1.442695
        %v4680 = vpow.pop %v4679
        %v4681 = vsub.f32 %v4569, %v4617
        %v4682 = vsub.f32 %v4570, %v4618
        %v4683 = vsub.f32 %v4571, %v4619
        %v4684 = vsub.f32 %v4572, %v4620
        %v4685 = vsub.f32 %v4573, %v4621
        %v4686 = vsub.f32 %v4574, %v4622
        %v4687 = vsub.f32 %v4575, %v4623
        %v4688 = vsub.f32 %v4576, %v4624
        %v4689 = vsub.f32 %v4577, %v4625
        %v4690 = vsub.f32 %v4578, %v4626
        %v4691 = vsub.f32 %v4579, %v4627
        %v4692 = vsub.f32 %v4580, %v4628
        %v4693 = vsub.f32 %v4581, %v4629
        %v4694 = vsub.f32 %v4582, %v4630
        %v4695 = vsub.f32 %v4583, %v4631
        %v4696 = vsub.f32 %v4584, %v4632
        %v4697 = vmul.f32 %v4681, 1.442695
        %v4698 = vpow.pop %v4697
        %v4699 = vmul.f32 %v4682, 1.442695
        %v4700 = vpow.pop %v4699
        %v4701 = vmul.f32 %v4683, 1.442695
        %v4702 = vpow.pop %v4701
        %v4703 = vmul.f32 %v4684, 1.442695
        %v4704 = vpow.pop %v4703
        %v4705 = vmul.f32 %v4685, 1.442695
        %v4706 = vpow.pop %v4705
        %v4707 = vmul.f32 %v4686, 1.442695
        %v4708 = vpow.pop %v4707
        %v4709 = vmul.f32 %v4687, 1.442695
        %v4710 = vpow.pop %v4709
        %v4711 = vmul.f32 %v4688, 1.442695
        %v4712 = vpow.pop %v4711
        %v4713 = vmul.f32 %v4689, 1.442695
        %v4714 = vpow.pop %v4713
        %v4715 = vmul.f32 %v4690, 1.442695
        %v4716 = vpow.pop %v4715
        %v4717 = vmul.f32 %v4691, 1.442695
        %v4718 = vpow.pop %v4717
        %v4719 = vmul.f32 %v4692, 1.442695
        %v4720 = vpow.pop %v4719
        %v4721 = vmul.f32 %v4693, 1.442695
        %v4722 = vpow.pop %v4721
        %v4723 = vmul.f32 %v4694, 1.442695
        %v4724 = vpow.pop %v4723
        %v4725 = vmul.f32 %v4695, 1.442695
        %v4726 = vpow.pop %v4725
        %v4727 = vmul.f32 %v4696, 1.442695
        %v4728 = vpow.pop %v4727
        %v4729 = vmul.f32 %v4650, 0.0
        %v4730 = vmul.f32 %v4652, 0.0
        %v4731 = vmul.f32 %v4654, 0.0
        %v4732 = vmul.f32 %v4656, 0.0
        %v4733 = vmul.f32 %v4658, 0.0
        %v4734 = vmul.f32 %v4660, 0.0
        %v4735 = vmul.f32 %v4662, 0.0
        %v4736 = vmul.f32 %v4664, 0.0
        %v4737 = vmul.f32 %v4666, 0.0
        %v4738 = vmul.f32 %v4668, 0.0
        %v4739 = vmul.f32 %v4670, 0.0
        %v4740 = vmul.f32 %v4672, 0.0
        %v4741 = vmul.f32 %v4674, 0.0
        %v4742 = vmul.f32 %v4676, 0.0
        %v4743 = vmul.f32 %v4678, 0.0
        %v4744 = vmul.f32 %v4680, 0.0
        %4745 = vadd.xlane.f32.xlu0 %v4698
        %v4746 = vpop.xlane.xlu0 %4745
        %4747 = vadd.xlane.f32.xlu0 %v4700
        %v4748 = vpop.xlane.xlu0 %4747
        %4749 = vadd.xlane.f32.xlu0 %v4702
        %v4750 = vpop.xlane.xlu0 %4749
        %4751 = vadd.xlane.f32.xlu0 %v4704
        %v4752 = vpop.xlane.xlu0 %4751
        %4753 = vadd.xlane.f32.xlu0 %v4706
        %v4754 = vpop.xlane.xlu0 %4753
        %4755 = vadd.xlane.f32.xlu0 %v4708
        %v4756 = vpop.xlane.xlu0 %4755
        %4757 = vadd.xlane.f32.xlu0 %v4710
        %v4758 = vpop.xlane.xlu0 %4757
        %4759 = vadd.xlane.f32.xlu0 %v4712
        %v4760 = vpop.xlane.xlu0 %4759
        %4761 = vadd.xlane.f32.xlu0 %v4714
        %v4762 = vpop.xlane.xlu0 %4761
        %4763 = vadd.xlane.f32.xlu0 %v4716
        %v4764 = vpop.xlane.xlu0 %4763
        %4765 = vadd.xlane.f32.xlu0 %v4718
        %v4766 = vpop.xlane.xlu0 %4765
        %4767 = vadd.xlane.f32.xlu0 %v4720
        %v4768 = vpop.xlane.xlu0 %4767
        %4769 = vadd.xlane.f32.xlu0 %v4722
        %v4770 = vpop.xlane.xlu0 %4769
        %4771 = vadd.xlane.f32.xlu0 %v4724
        %v4772 = vpop.xlane.xlu0 %4771
        %4773 = vadd.xlane.f32.xlu0 %v4726
        %v4774 = vpop.xlane.xlu0 %4773
        %4775 = vadd.xlane.f32.xlu0 %v4728
        %v4776 = vpop.xlane.xlu0 %4775
        %v4777 = vadd.f32 %v4729, %v4746
        %v4778 = vadd.f32 %v4730, %v4748
        %v4779 = vadd.f32 %v4731, %v4750
        %v4780 = vadd.f32 %v4732, %v4752
        %v4781 = vadd.f32 %v4733, %v4754
        %v4782 = vadd.f32 %v4734, %v4756
        %v4783 = vadd.f32 %v4735, %v4758
        %v4784 = vadd.f32 %v4736, %v4760
        %v4785 = vadd.f32 %v4737, %v4762
        %v4786 = vadd.f32 %v4738, %v4764
        %v4787 = vadd.f32 %v4739, %v4766
        %v4788 = vadd.f32 %v4740, %v4768
        %v4789 = vadd.f32 %v4741, %v4770
        %v4790 = vadd.f32 %v4742, %v4772
        %v4791 = vadd.f32 %v4743, %v4774
        %v4792 = vadd.f32 %v4744, %v4776
        %v4793 = vpack.c.bf16 %v4700, %v4698
        %v4794 = vpack.c.bf16 %v4704, %v4702
        %v4795 = vpack.c.bf16 %v4708, %v4706
        %v4796 = vpack.c.bf16 %v4712, %v4710
        %v4797 = vpack.c.bf16 %v4716, %v4714
        %v4798 = vpack.c.bf16 %v4720, %v4718
        %v4799 = vpack.c.bf16 %v4724, %v4722
        %v4800 = vpack.c.bf16 %v4728, %v4726
        %v4817 = vunpack.c.l.b16 %v4296
        %v4818 = vunpack.c.l.b16 %v4297
        %v4819 = vunpack.c.l.b16 %v4298
        %v4820 = vunpack.c.l.b16 %v4299
        %v4821 = vunpack.c.l.b16 %v4300
        %v4822 = vunpack.c.l.b16 %v4301
        %v4823 = vunpack.c.l.b16 %v4302
        %v4824 = vunpack.c.l.b16 %v4303
        %v4825 = vunpack.c.l.b16 %v4304
        %v4826 = vunpack.c.l.b16 %v4305
        %v4827 = vunpack.c.l.b16 %v4306
        %v4828 = vunpack.c.l.b16 %v4307
        %v4829 = vunpack.c.l.b16 %v4308
        %v4830 = vunpack.c.l.b16 %v4309
        %v4831 = vunpack.c.l.b16 %v4310
        %v4832 = vunpack.c.l.b16 %v4311
        %v4833 = vpack.c.b16 %v4818, %v4817
        %v4834 = vpack.c.b16 %v4820, %v4819
        %v4835 = vpack.c.b16 %v4822, %v4821
        %v4836 = vpack.c.b16 %v4824, %v4823
        %v4837 = vpack.c.b16 %v4826, %v4825
        %v4838 = vpack.c.b16 %v4828, %v4827
        %v4839 = vpack.c.b16 %v4830, %v4829
        %v4840 = vpack.c.b16 %v4832, %v4831
        %4841 = vrot.lane.b32.xlu0 %v4833, 64
        %v4842 = vpop.permute.xlu0 %4841
        %4843 = vrot.lane.b32.xlu0 %v4834, 64
        %v4844 = vpop.permute.xlu0 %4843
        %4845 = vrot.lane.b32.xlu0 %v4835, 64
        %v4846 = vpop.permute.xlu0 %4845
        %4847 = vrot.lane.b32.xlu0 %v4836, 64
        %v4848 = vpop.permute.xlu0 %4847
        %4849 = vrot.lane.b32.xlu0 %v4837, 64
        %v4850 = vpop.permute.xlu0 %4849
        %4851 = vrot.lane.b32.xlu0 %v4838, 64
        %v4852 = vpop.permute.xlu0 %4851
        %4853 = vrot.lane.b32.xlu0 %v4839, 64
        %v4854 = vpop.permute.xlu0 %4853
        %4855 = vrot.lane.b32.xlu0 %v4840, 64
        %v4856 = vpop.permute.xlu0 %4855
        %4865 = vmatprep.subr.bf16.mxu0 0
        %4866 = vmatpush1.bf16.msra.mxu0 %v4856
        %4867 = vmatprep.subr.bf16.mxu0 0
        %4868 = vmatpush1.bf16.msra.mxu0 %v4854
        %4869 = vmatprep.subr.bf16.mxu0 0
        %4870 = vmatpush1.bf16.msra.mxu0 %v4852
        %4871 = vmatprep.subr.bf16.mxu0 0
        %4872 = vmatpush1.bf16.msra.mxu0 %v4850
        %4873 = vmatprep.subr.bf16.mxu0 0
        %4874 = vmatpush1.bf16.msra.mxu0 %v4848
        %4875 = vmatprep.subr.bf16.mxu0 0
        %4876 = vmatpush1.bf16.msra.mxu0 %v4846
        %4877 = vmatprep.subr.bf16.mxu0 0
        %4878 = vmatpush1.bf16.msra.mxu0 %v4844
        %4879 = vmatprep.subr.bf16.mxu0 0
        %4880 = vmatpush1.bf16.msra.mxu0 %v4842
        %4881 = vmatprep.subr.bf16.mxu0 0
        %4882 = vmatpush2.bf16.msra.mxu0 0
        %4883 = vmatprep.subr.bf16.mxu0 0
        %4884 = vmatpush2.bf16.msra.mxu0 0
        %4885 = vmatprep.subr.bf16.mxu0 0
        %4886 = vmatpush2.bf16.msra.mxu0 0
        %4887 = vmatprep.subr.bf16.mxu0 0
        %4888 = vmatpush2.bf16.msra.mxu0 0
        %4889 = vmatprep.subr.bf16.mxu0 0
        %4890 = vmatpush2.bf16.msra.mxu0 0
        %4891 = vmatprep.subr.bf16.mxu0 0
        %4892 = vmatpush2.bf16.msra.mxu0 0
        %4893 = vmatprep.subr.bf16.mxu0 0
        %4894 = vmatpush2.bf16.msra.mxu0 0
        %4895 = vmatprep.subr.bf16.mxu0 0
        %4896 = vmatpush2.bf16.msra.mxu0 0
        %4897 = vmatprep.mubr.bf16.mxu0 0
        %4898 = vmatmul.mubr.bf16.gmra.mxu0 %v4793
        %v4899 = vpop.f32.mrf.mxu0
        %v4900 = vadd.f32 0.0, %v4899
        %v4901 = vpop.f32.mrf.mxu0
        %v4902 = vpop.f32.mrf.mxu0
        %v4903 = vadd.f32 0.0, %v4902
        %v4904 = vpop.f32.mrf.mxu0
        %4905 = vmatprep.mubr.bf16.mxu0 0
        %4906 = vmatmul.mubr.bf16.gmra.mxu0 %v4794
        %v4907 = vpop.f32.mrf.mxu0
        %v4908 = vadd.f32 0.0, %v4907
        %v4909 = vpop.f32.mrf.mxu0
        %v4910 = vpop.f32.mrf.mxu0
        %v4911 = vadd.f32 0.0, %v4910
        %v4912 = vpop.f32.mrf.mxu0
        %4913 = vmatprep.mubr.bf16.mxu0 0
        %4914 = vmatmul.mubr.bf16.gmra.mxu0 %v4795
        %v4915 = vpop.f32.mrf.mxu0
        %v4916 = vadd.f32 0.0, %v4915
        %v4917 = vpop.f32.mrf.mxu0
        %v4918 = vpop.f32.mrf.mxu0
        %v4919 = vadd.f32 0.0, %v4918
        %v4920 = vpop.f32.mrf.mxu0
        %4921 = vmatprep.mubr.bf16.mxu0 0
        %4922 = vmatmul.mubr.bf16.gmra.mxu0 %v4796
        %v4923 = vpop.f32.mrf.mxu0
        %v4924 = vadd.f32 0.0, %v4923
        %v4925 = vpop.f32.mrf.mxu0
        %v4926 = vpop.f32.mrf.mxu0
        %v4927 = vadd.f32 0.0, %v4926
        %v4928 = vpop.f32.mrf.mxu0
        %4929 = vmatprep.mubr.bf16.mxu0 0
        %4930 = vmatmul.mubr.bf16.gmra.mxu0 %v4797
        %v4931 = vpop.f32.mrf.mxu0
        %v4932 = vadd.f32 0.0, %v4931
        %v4933 = vpop.f32.mrf.mxu0
        %v4934 = vpop.f32.mrf.mxu0
        %v4935 = vadd.f32 0.0, %v4934
        %v4936 = vpop.f32.mrf.mxu0
        %4937 = vmatprep.mubr.bf16.mxu0 0
        %4938 = vmatmul.mubr.bf16.gmra.mxu0 %v4798
        %v4939 = vpop.f32.mrf.mxu0
        %v4940 = vadd.f32 0.0, %v4939
        %v4941 = vpop.f32.mrf.mxu0
        %v4942 = vpop.f32.mrf.mxu0
        %v4943 = vadd.f32 0.0, %v4942
        %v4944 = vpop.f32.mrf.mxu0
        %4945 = vmatprep.mubr.bf16.mxu0 0
        %4946 = vmatmul.mubr.bf16.gmra.mxu0 %v4799
        %v4947 = vpop.f32.mrf.mxu0
        %v4948 = vadd.f32 0.0, %v4947
        %v4949 = vpop.f32.mrf.mxu0
        %v4950 = vpop.f32.mrf.mxu0
        %v4951 = vadd.f32 0.0, %v4950
        %v4952 = vpop.f32.mrf.mxu0
        %4953 = vmatprep.mubr.bf16.mxu0 0
        %4954 = vmatmul.mubr.bf16.gmra.mxu0 %v4800
        %v4955 = vpop.f32.mrf.mxu0
        %v4956 = vadd.f32 0.0, %v4955
        %v4957 = vpop.f32.mrf.mxu0
        %v4958 = vpop.f32.mrf.mxu0
        %v4959 = vadd.f32 0.0, %v4958
        %v4960 = vpop.f32.mrf.mxu0
        %4961 = vdwg.mxu0
        %v4962 = vadd.f32 %v4729, %v4900
        %v4963 = vadd.f32 %v4730, %v4903
        %v4964 = vadd.f32 %v4731, %v4908
        %v4965 = vadd.f32 %v4732, %v4911
        %v4966 = vadd.f32 %v4733, %v4916
        %v4967 = vadd.f32 %v4734, %v4919
        %v4968 = vadd.f32 %v4735, %v4924
        %v4969 = vadd.f32 %v4736, %v4927
        %v4970 = vadd.f32 %v4737, %v4932
        %v4971 = vadd.f32 %v4738, %v4935
        %v4972 = vadd.f32 %v4739, %v4940
        %v4973 = vadd.f32 %v4740, %v4943
        %v4974 = vadd.f32 %v4741, %v4948
        %v4975 = vadd.f32 %v4742, %v4951
        %v4976 = vadd.f32 %v4743, %v4956
        %v4977 = vadd.f32 %v4744, %v4959
        %v4978 = vrcp.pop %v4777
        %v4979 = vrcp.pop %v4778
        %v4980 = vrcp.pop %v4779
        %v4981 = vrcp.pop %v4780
        %v4982 = vrcp.pop %v4781
        %v4983 = vrcp.pop %v4782
        %v4984 = vrcp.pop %v4783
        %v4985 = vrcp.pop %v4784
        %v4986 = vrcp.pop %v4785
        %v4987 = vrcp.pop %v4786
        %v4988 = vrcp.pop %v4787
        %v4989 = vrcp.pop %v4788
        %v4990 = vrcp.pop %v4789
        %v4991 = vrcp.pop %v4790
        %v4992 = vrcp.pop %v4791
        %v4993 = vrcp.pop %v4792
        %v4994 = vmul.f32 %v4962, %v4978
        %v4995 = vmul.f32 %v4963, %v4979
        %v4996 = vmul.f32 %v4964, %v4980
        %v4997 = vmul.f32 %v4965, %v4981
        %v4998 = vmul.f32 %v4966, %v4982
        %v4999 = vmul.f32 %v4967, %v4983
        %v5000 = vmul.f32 %v4968, %v4984
        %v5001 = vmul.f32 %v4969, %v4985
        %v5002 = vmul.f32 %v4970, %v4986
        %v5003 = vmul.f32 %v4971, %v4987
        %v5004 = vmul.f32 %v4972, %v4988
        %v5005 = vmul.f32 %v4973, %v4989
        %v5006 = vmul.f32 %v4974, %v4990
        %v5007 = vmul.f32 %v4975, %v4991
        %v5008 = vmul.f32 %v4976, %v4992
        %v5009 = vmul.f32 %v4977, %v4993
        %v5010 = vpack.c.bf16 %v4995, %v4994
        %v5011 = vpack.c.bf16 %v4997, %v4996
        %v5012 = vpack.c.bf16 %v4999, %v4998
        %v5013 = vpack.c.bf16 %v5001, %v5000
        %v5014 = vpack.c.bf16 %v5003, %v5002
        %v5015 = vpack.c.bf16 %v5005, %v5004
        %v5016 = vpack.c.bf16 %v5007, %v5006
        %v5017 = vpack.c.bf16 %v5009, %v5008
        %v5026 = vunpack.c.l.b16 %v5010
        %v5027 = vunpack.c.h.b16 %v5010
        %v5028 = vunpack.c.l.b16 %v5011
        %v5029 = vunpack.c.h.b16 %v5011
        %v5030 = vunpack.c.l.b16 %v5012
        %v5031 = vunpack.c.h.b16 %v5012
        %v5032 = vunpack.c.l.b16 %v5013
        %v5033 = vunpack.c.h.b16 %v5013
        %v5034 = vunpack.c.l.b16 %v5014
        %v5035 = vunpack.c.h.b16 %v5014
        %v5036 = vunpack.c.l.b16 %v5015
        %v5037 = vunpack.c.h.b16 %v5015
        %v5038 = vunpack.c.l.b16 %v5016
        %v5039 = vunpack.c.h.b16 %v5016
        %v5040 = vunpack.c.l.b16 %v5017
        %v5041 = vunpack.c.h.b16 %v5017
        %v5042 = vpack.c.b16 %v5026, %v5026
        %v5043 = vpack.c.b16 %v5027, %v5027
        %v5044 = vpack.c.b16 %v5028, %v5028
        %v5045 = vpack.c.b16 %v5029, %v5029
        %v5046 = vpack.c.b16 %v5030, %v5030
        %v5047 = vpack.c.b16 %v5031, %v5031
        %v5048 = vpack.c.b16 %v5032, %v5032
        %v5049 = vpack.c.b16 %v5033, %v5033
        %v5050 = vpack.c.b16 %v5034, %v5034
        %v5051 = vpack.c.b16 %v5035, %v5035
        %v5052 = vpack.c.b16 %v5036, %v5036
        %v5053 = vpack.c.b16 %v5037, %v5037
        %v5054 = vpack.c.b16 %v5038, %v5038
        %v5055 = vpack.c.b16 %v5039, %v5039
        %v5056 = vpack.c.b16 %v5040, %v5040
        %v5057 = vpack.c.b16 %v5041, %v5041
        %5058 = vrot.lane.b32.xlu0 %v5042, 64
        %v5059 = vpop.permute.xlu0 %5058
        %5060 = vrot.lane.b32.xlu0 %v5043, 64
        %v5061 = vpop.permute.xlu0 %5060
        %5062 = vrot.lane.b32.xlu0 %v5044, 64
        %v5063 = vpop.permute.xlu0 %5062
        %5064 = vrot.lane.b32.xlu0 %v5045, 64
        %v5065 = vpop.permute.xlu0 %5064
        %5066 = vrot.lane.b32.xlu0 %v5046, 64
        %v5067 = vpop.permute.xlu0 %5066
        %5068 = vrot.lane.b32.xlu0 %v5047, 64
        %v5069 = vpop.permute.xlu0 %5068
        %5070 = vrot.lane.b32.xlu0 %v5048, 64
        %v5071 = vpop.permute.xlu0 %5070
        %5072 = vrot.lane.b32.xlu0 %v5049, 64
        %v5073 = vpop.permute.xlu0 %5072
        %5074 = vrot.lane.b32.xlu0 %v5050, 64
        %v5075 = vpop.permute.xlu0 %5074
        %5076 = vrot.lane.b32.xlu0 %v5051, 64
        %v5077 = vpop.permute.xlu0 %5076
        %5078 = vrot.lane.b32.xlu0 %v5052, 64
        %v5079 = vpop.permute.xlu0 %5078
        %5080 = vrot.lane.b32.xlu0 %v5053, 64
        %v5081 = vpop.permute.xlu0 %5080
        %5082 = vrot.lane.b32.xlu0 %v5054, 64
        %v5083 = vpop.permute.xlu0 %5082
        %5084 = vrot.lane.b32.xlu0 %v5055, 64
        %v5085 = vpop.permute.xlu0 %5084
        %5086 = vrot.lane.b32.xlu0 %v5056, 64
        %v5087 = vpop.permute.xlu0 %5086
        %5088 = vrot.lane.b32.xlu0 %v5057, 64
        %v5089 = vpop.permute.xlu0 %5088
        %vm5106 = vcmask 1043968
        %5107 = vst.msk [vmem:[#allocation4] sm:$0xf] %vm5106, %v5059
        %5108 = vst.msk [vmem:[#allocation4 + $0xc] sm:$0xf] %vm5106, %v5061
        %5109 = vst.msk [vmem:[#allocation4 + $0x18] sm:$0xf] %vm5106, %v5063
        %5110 = vst.msk [vmem:[#allocation4 + $0x24] sm:$0xf] %vm5106, %v5065
        %5111 = vst.msk [vmem:[#allocation4 + $0x30] sm:$0xf] %vm5106, %v5067
        %5112 = vst.msk [vmem:[#allocation4 + $0x3c] sm:$0xf] %vm5106, %v5069
        %5113 = vst.msk [vmem:[#allocation4 + $0x48] sm:$0xf] %vm5106, %v5071
        %5114 = vst.msk [vmem:[#allocation4 + $0x54] sm:$0xf] %vm5106, %v5073
        %5115 = vst.msk [vmem:[#allocation4 + $0x60] sm:$0xf] %vm5106, %v5075
        %5116 = vst.msk [vmem:[#allocation4 + $0x6c] sm:$0xf] %vm5106, %v5077
        %5117 = vst.msk [vmem:[#allocation4 + $0x78] sm:$0xf] %vm5106, %v5079
        %5118 = vst.msk [vmem:[#allocation4 + $0x84] sm:$0xf] %vm5106, %v5081
        %5119 = vst.msk [vmem:[#allocation4 + $0x90] sm:$0xf] %vm5106, %v5083
        %5120 = vst.msk [vmem:[#allocation4 + $0x9c] sm:$0xf] %vm5106, %v5085
        %5121 = vst.msk [vmem:[#allocation4 + $0xa8] sm:$0xf] %vm5106, %v5087
        %5122 = vst.msk [vmem:[#allocation4 + $0xb4] sm:$0xf] %vm5106, %v5089
        %v5123 = vld [vmem:[#allocation3 + $0x4] sm:$0xf]
        %v5124 = vld [vmem:[#allocation3 + $0x10] sm:$0xf]
        %v5125 = vld [vmem:[#allocation3 + $0x1c] sm:$0xf]
        %v5126 = vld [vmem:[#allocation3 + $0x28] sm:$0xf]
        %v5127 = vld [vmem:[#allocation3 + $0x34] sm:$0xf]
        %v5128 = vld [vmem:[#allocation3 + $0x40] sm:$0xf]
        %v5129 = vld [vmem:[#allocation3 + $0x4c] sm:$0xf]
        %v5130 = vld [vmem:[#allocation3 + $0x58] sm:$0xf]
        %v5131 = vld [vmem:[#allocation3 + $0x64] sm:$0xf]
        %v5132 = vld [vmem:[#allocation3 + $0x70] sm:$0xf]
        %v5133 = vld [vmem:[#allocation3 + $0x7c] sm:$0xf]
        %v5134 = vld [vmem:[#allocation3 + $0x88] sm:$0xf]
        %v5135 = vld [vmem:[#allocation3 + $0x94] sm:$0xf]
        %v5136 = vld [vmem:[#allocation3 + $0xa0] sm:$0xf]
        %v5137 = vld [vmem:[#allocation3 + $0xac] sm:$0xf]
        %v5138 = vld [vmem:[#allocation3 + $0xb8] sm:$0xf]
        %v5139 = vld [vmem:[%s3481 + $0x4] sm:$0xf]
        %v5140 = vld [vmem:[%s3481 + $0x1c] sm:$0xf]
        %v5141 = vld [vmem:[%s3481 + $0x34] sm:$0xf]
        %v5142 = vld [vmem:[%s3481 + $0x4c] sm:$0xf]
        %v5143 = vld [vmem:[%s3481 + $0x64] sm:$0xf]
        %v5144 = vld [vmem:[%s3481 + $0x7c] sm:$0xf]
        %v5145 = vld [vmem:[%s3481 + $0x94] sm:$0xf]
        %v5146 = vld [vmem:[%s3481 + $0xac] sm:$0xf]
        %v5147 = vld [vmem:[%s3481 + $0xc4] sm:$0xf]
        %v5148 = vld [vmem:[%s3481 + $0xdc] sm:$0xf]
        %v5149 = vld [vmem:[%s3481 + $0xf4] sm:$0xf]
        %v5150 = vld [vmem:[%s3481 + $0x10c] sm:$0xf]
        %v5151 = vld [vmem:[%s3481 + $0x124] sm:$0xf]
        %v5152 = vld [vmem:[%s3481 + $0x13c] sm:$0xf]
        %v5153 = vld [vmem:[%s3481 + $0x154] sm:$0xf]
        %v5154 = vld [vmem:[%s3481 + $0x16c] sm:$0xf]
        %v5155 = vld [vmem:[%s3481 + $0x10] sm:$0xf]
        %v5156 = vld [vmem:[%s3481 + $0x28] sm:$0xf]
        %v5157 = vld [vmem:[%s3481 + $0x40] sm:$0xf]
        %v5158 = vld [vmem:[%s3481 + $0x58] sm:$0xf]
        %v5159 = vld [vmem:[%s3481 + $0x70] sm:$0xf]
        %v5160 = vld [vmem:[%s3481 + $0x88] sm:$0xf]
        %v5161 = vld [vmem:[%s3481 + $0xa0] sm:$0xf]
        %v5162 = vld [vmem:[%s3481 + $0xb8] sm:$0xf]
        %v5163 = vld [vmem:[%s3481 + $0xd0] sm:$0xf]
        %v5164 = vld [vmem:[%s3481 + $0xe8] sm:$0xf]
        %v5165 = vld [vmem:[%s3481 + $0x100] sm:$0xf]
        %v5166 = vld [vmem:[%s3481 + $0x118] sm:$0xf]
        %v5167 = vld [vmem:[%s3481 + $0x130] sm:$0xf]
        %v5168 = vld [vmem:[%s3481 + $0x148] sm:$0xf]
        %v5169 = vld [vmem:[%s3481 + $0x160] sm:$0xf]
        %v5170 = vld [vmem:[%s3481 + $0x178] sm:$0xf]
        %v5187 = vunpack.c.l.b16 %v5123
        %v5188 = vunpack.c.l.b16 %v5124
        %v5189 = vunpack.c.l.b16 %v5125
        %v5190 = vunpack.c.l.b16 %v5126
        %v5191 = vunpack.c.l.b16 %v5127
        %v5192 = vunpack.c.l.b16 %v5128
        %v5193 = vunpack.c.l.b16 %v5129
        %v5194 = vunpack.c.l.b16 %v5130
        %v5195 = vunpack.c.l.b16 %v5131
        %v5196 = vunpack.c.l.b16 %v5132
        %v5197 = vunpack.c.l.b16 %v5133
        %v5198 = vunpack.c.l.b16 %v5134
        %v5199 = vunpack.c.l.b16 %v5135
        %v5200 = vunpack.c.l.b16 %v5136
        %v5201 = vunpack.c.l.b16 %v5137
        %v5202 = vunpack.c.l.b16 %v5138
        %v5203 = vpack.c.b16 %v5188, %v5187
        %v5204 = vpack.c.b16 %v5190, %v5189
        %v5205 = vpack.c.b16 %v5192, %v5191
        %v5206 = vpack.c.b16 %v5194, %v5193
        %v5207 = vpack.c.b16 %v5196, %v5195
        %v5208 = vpack.c.b16 %v5198, %v5197
        %v5209 = vpack.c.b16 %v5200, %v5199
        %v5210 = vpack.c.b16 %v5202, %v5201
        %v5227 = vunpack.c.l.b16 %v5139
        %v5228 = vunpack.c.l.b16 %v5140
        %v5229 = vunpack.c.l.b16 %v5141
        %v5230 = vunpack.c.l.b16 %v5142
        %v5231 = vunpack.c.l.b16 %v5143
        %v5232 = vunpack.c.l.b16 %v5144
        %v5233 = vunpack.c.l.b16 %v5145
        %v5234 = vunpack.c.l.b16 %v5146
        %v5235 = vunpack.c.l.b16 %v5147
        %v5236 = vunpack.c.l.b16 %v5148
        %v5237 = vunpack.c.l.b16 %v5149
        %v5238 = vunpack.c.l.b16 %v5150
        %v5239 = vunpack.c.l.b16 %v5151
        %v5240 = vunpack.c.l.b16 %v5152
        %v5241 = vunpack.c.l.b16 %v5153
        %v5242 = vunpack.c.l.b16 %v5154
        %v5243 = vpack.c.b16 %v5228, %v5227
        %v5244 = vpack.c.b16 %v5230, %v5229
        %v5245 = vpack.c.b16 %v5232, %v5231
        %v5246 = vpack.c.b16 %v5234, %v5233
        %v5247 = vpack.c.b16 %v5236, %v5235
        %v5248 = vpack.c.b16 %v5238, %v5237
        %v5249 = vpack.c.b16 %v5240, %v5239
        %v5250 = vpack.c.b16 %v5242, %v5241
        %v5252 = vsel %vm3594, %v5203, 0
        %v5255 = vsel %vm3594, %v5204, 0
        %v5258 = vsel %vm3594, %v5205, 0
        %v5261 = vsel %vm3594, %v5206, 0
        %v5264 = vsel %vm3594, %v5207, 0
        %v5267 = vsel %vm3594, %v5208, 0
        %v5270 = vsel %vm3594, %v5209, 0
        %v5273 = vsel %vm3594, %v5210, 0
        %v5276 = vsel %vm3594, %v5243, 0
        %v5279 = vsel %vm3594, %v5244, 0
        %v5282 = vsel %vm3594, %v5245, 0
        %v5285 = vsel %vm3594, %v5246, 0
        %v5288 = vsel %vm3594, %v5247, 0
        %v5291 = vsel %vm3594, %v5248, 0
        %v5294 = vsel %vm3594, %v5249, 0
        %v5297 = vsel %vm3594, %v5250, 0
        %5299 = vmatprep.subr.bf16.mxu0 0
        %5300 = vmatpush1.bf16.xpose.msra.mxu0 %v5297
        %5301 = vmatprep.subr.bf16.mxu0 0
        %5302 = vmatpush1.bf16.xpose.msra.mxu0 %v5294
        %5303 = vmatprep.subr.bf16.mxu0 0
        %5304 = vmatpush1.bf16.xpose.msra.mxu0 %v5291
        %5305 = vmatprep.subr.bf16.mxu0 0
        %5306 = vmatpush1.bf16.xpose.msra.mxu0 %v5288
        %5307 = vmatprep.subr.bf16.mxu0 0
        %5308 = vmatpush1.bf16.xpose.msra.mxu0 %v5285
        %5309 = vmatprep.subr.bf16.mxu0 0
        %5310 = vmatpush1.bf16.xpose.msra.mxu0 %v5282
        %5311 = vmatprep.subr.bf16.mxu0 0
        %5312 = vmatpush1.bf16.xpose.msra.mxu0 %v5279
        %5313 = vmatprep.subr.bf16.mxu0 0
        %5314 = vmatpush1.bf16.xpose.msra.mxu0 %v5276
        %5315 = vmatprep.subr.bf16.mxu0 0
        %5316 = vmatpush2.bf16.xpose.msra.mxu0 0
        %5317 = vmatprep.subr.bf16.mxu0 0
        %5318 = vmatpush2.bf16.xpose.msra.mxu0 0
        %5319 = vmatprep.subr.bf16.mxu0 0
        %5320 = vmatpush2.bf16.xpose.msra.mxu0 0
        %5321 = vmatprep.subr.bf16.mxu0 0
        %5322 = vmatpush2.bf16.xpose.msra.mxu0 0
        %5323 = vmatprep.subr.bf16.mxu0 0
        %5324 = vmatpush2.bf16.xpose.msra.mxu0 0
        %5325 = vmatprep.subr.bf16.mxu0 0
        %5326 = vmatpush2.bf16.xpose.msra.mxu0 0
        %5327 = vmatprep.subr.bf16.mxu0 0
        %5328 = vmatpush2.bf16.xpose.msra.mxu0 0
        %5329 = vmatprep.subr.bf16.mxu0 0
        %5330 = vmatpush2.bf16.xpose.msra.mxu0 0
        %5331 = vmatprep.mubr.bf16.mxu0 0
        %5332 = vmatmul.mubr.bf16.gmra.mxu0 %v5252
        %v5333 = vpop.f32.mrf.mxu0
        %v5334 = vadd.f32 0.0, %v5333
        %v5335 = vpop.f32.mrf.mxu0
        %v5336 = vpop.f32.mrf.mxu0
        %v5337 = vadd.f32 0.0, %v5336
        %v5338 = vpop.f32.mrf.mxu0
        %5339 = vmatprep.mubr.bf16.mxu0 0
        %5340 = vmatmul.mubr.bf16.gmra.mxu0 %v5255
        %v5341 = vpop.f32.mrf.mxu0
        %v5342 = vadd.f32 0.0, %v5341
        %v5343 = vpop.f32.mrf.mxu0
        %v5344 = vpop.f32.mrf.mxu0
        %v5345 = vadd.f32 0.0, %v5344
        %v5346 = vpop.f32.mrf.mxu0
        %5347 = vmatprep.mubr.bf16.mxu0 0
        %5348 = vmatmul.mubr.bf16.gmra.mxu0 %v5258
        %v5349 = vpop.f32.mrf.mxu0
        %v5350 = vadd.f32 0.0, %v5349
        %v5351 = vpop.f32.mrf.mxu0
        %v5352 = vpop.f32.mrf.mxu0
        %v5353 = vadd.f32 0.0, %v5352
        %v5354 = vpop.f32.mrf.mxu0
        %5355 = vmatprep.mubr.bf16.mxu0 0
        %5356 = vmatmul.mubr.bf16.gmra.mxu0 %v5261
        %v5357 = vpop.f32.mrf.mxu0
        %v5358 = vadd.f32 0.0, %v5357
        %v5359 = vpop.f32.mrf.mxu0
        %v5360 = vpop.f32.mrf.mxu0
        %v5361 = vadd.f32 0.0, %v5360
        %v5362 = vpop.f32.mrf.mxu0
        %5363 = vmatprep.mubr.bf16.mxu0 0
        %5364 = vmatmul.mubr.bf16.gmra.mxu0 %v5264
        %v5365 = vpop.f32.mrf.mxu0
        %v5366 = vadd.f32 0.0, %v5365
        %v5367 = vpop.f32.mrf.mxu0
        %v5368 = vpop.f32.mrf.mxu0
        %v5369 = vadd.f32 0.0, %v5368
        %v5370 = vpop.f32.mrf.mxu0
        %5371 = vmatprep.mubr.bf16.mxu0 0
        %5372 = vmatmul.mubr.bf16.gmra.mxu0 %v5267
        %v5373 = vpop.f32.mrf.mxu0
        %v5374 = vadd.f32 0.0, %v5373
        %v5375 = vpop.f32.mrf.mxu0
        %v5376 = vpop.f32.mrf.mxu0
        %v5377 = vadd.f32 0.0, %v5376
        %v5378 = vpop.f32.mrf.mxu0
        %5379 = vmatprep.mubr.bf16.mxu0 0
        %5380 = vmatmul.mubr.bf16.gmra.mxu0 %v5270
        %v5381 = vpop.f32.mrf.mxu0
        %v5382 = vadd.f32 0.0, %v5381
        %v5383 = vpop.f32.mrf.mxu0
        %v5384 = vpop.f32.mrf.mxu0
        %v5385 = vadd.f32 0.0, %v5384
        %v5386 = vpop.f32.mrf.mxu0
        %5387 = vmatprep.mubr.bf16.mxu0 0
        %5388 = vmatmul.mubr.bf16.gmra.mxu0 %v5273
        %v5389 = vpop.f32.mrf.mxu0
        %v5390 = vadd.f32 0.0, %v5389
        %v5391 = vpop.f32.mrf.mxu0
        %v5392 = vpop.f32.mrf.mxu0
        %v5393 = vadd.f32 0.0, %v5392
        %v5394 = vpop.f32.mrf.mxu0
        %5395 = vdwg.mxu0
        %v5396 = vsel %vm3742, %v5334, -1e+30
        %v5397 = vsel %vm3743, %v5337, -1e+30
        %v5398 = vsel %vm3744, %v5342, -1e+30
        %v5399 = vsel %vm3745, %v5345, -1e+30
        %v5400 = vsel %vm3746, %v5350, -1e+30
        %v5401 = vsel %vm3747, %v5353, -1e+30
        %v5402 = vsel %vm3748, %v5358, -1e+30
        %v5403 = vsel %vm3749, %v5361, -1e+30
        %v5404 = vsel %vm3750, %v5366, -1e+30
        %v5405 = vsel %vm3751, %v5369, -1e+30
        %v5406 = vsel %vm3752, %v5374, -1e+30
        %v5407 = vsel %vm3753, %v5377, -1e+30
        %v5408 = vsel %vm3754, %v5382, -1e+30
        %v5409 = vsel %vm3755, %v5385, -1e+30
        %v5410 = vsel %vm3756, %v5390, -1e+30
        %v5411 = vsel %vm3757, %v5393, -1e+30
        %5412 = vmax.xlane.f32.xlu0 %v5396
        %v5413 = vpop.xlane.xlu0 %5412
        %5414 = vmax.xlane.f32.xlu0 %v5397
        %v5415 = vpop.xlane.xlu0 %5414
        %5416 = vmax.xlane.f32.xlu0 %v5398
        %v5417 = vpop.xlane.xlu0 %5416
        %5418 = vmax.xlane.f32.xlu0 %v5399
        %v5419 = vpop.xlane.xlu0 %5418
        %5420 = vmax.xlane.f32.xlu0 %v5400
        %v5421 = vpop.xlane.xlu0 %5420
        %5422 = vmax.xlane.f32.xlu0 %v5401
        %v5423 = vpop.xlane.xlu0 %5422
        %5424 = vmax.xlane.f32.xlu0 %v5402
        %v5425 = vpop.xlane.xlu0 %5424
        %5426 = vmax.xlane.f32.xlu0 %v5403
        %v5427 = vpop.xlane.xlu0 %5426
        %5428 = vmax.xlane.f32.xlu0 %v5404
        %v5429 = vpop.xlane.xlu0 %5428
        %5430 = vmax.xlane.f32.xlu0 %v5405
        %v5431 = vpop.xlane.xlu0 %5430
        %5432 = vmax.xlane.f32.xlu0 %v5406
        %v5433 = vpop.xlane.xlu0 %5432
        %5434 = vmax.xlane.f32.xlu0 %v5407
        %v5435 = vpop.xlane.xlu0 %5434
        %5436 = vmax.xlane.f32.xlu0 %v5408
        %v5437 = vpop.xlane.xlu0 %5436
        %5438 = vmax.xlane.f32.xlu0 %v5409
        %v5439 = vpop.xlane.xlu0 %5438
        %5440 = vmax.xlane.f32.xlu0 %v5410
        %v5441 = vpop.xlane.xlu0 %5440
        %5442 = vmax.xlane.f32.xlu0 %v5411
        %v5443 = vpop.xlane.xlu0 %5442
        %v5444 = vmax.f32 %v5413, -1e+30
        %v5445 = vmax.f32 %v5415, -1e+30
        %v5446 = vmax.f32 %v5417, -1e+30
        %v5447 = vmax.f32 %v5419, -1e+30
        %v5448 = vmax.f32 %v5421, -1e+30
        %v5449 = vmax.f32 %v5423, -1e+30
        %v5450 = vmax.f32 %v5425, -1e+30
        %v5451 = vmax.f32 %v5427, -1e+30
        %v5452 = vmax.f32 %v5429, -1e+30
        %v5453 = vmax.f32 %v5431, -1e+30
        %v5454 = vmax.f32 %v5433, -1e+30
        %v5455 = vmax.f32 %v5435, -1e+30
        %v5456 = vmax.f32 %v5437, -1e+30
        %v5457 = vmax.f32 %v5439, -1e+30
        %v5458 = vmax.f32 %v5441, -1e+30
        %v5459 = vmax.f32 %v5443, -1e+30
        %v5460 = vsub.f32 -1e+30, %v5444
        %v5461 = vsub.f32 -1e+30, %v5445
        %v5462 = vsub.f32 -1e+30, %v5446
        %v5463 = vsub.f32 -1e+30, %v5447
        %v5464 = vsub.f32 -1e+30, %v5448
        %v5465 = vsub.f32 -1e+30, %v5449
        %v5466 = vsub.f32 -1e+30, %v5450
        %v5467 = vsub.f32 -1e+30, %v5451
        %v5468 = vsub.f32 -1e+30, %v5452
        %v5469 = vsub.f32 -1e+30, %v5453
        %v5470 = vsub.f32 -1e+30, %v5454
        %v5471 = vsub.f32 -1e+30, %v5455
        %v5472 = vsub.f32 -1e+30, %v5456
        %v5473 = vsub.f32 -1e+30, %v5457
        %v5474 = vsub.f32 -1e+30, %v5458
        %v5475 = vsub.f32 -1e+30, %v5459
        %v5476 = vmul.f32 %v5460, 1.442695
        %v5477 = vpow.pop %v5476
        %v5478 = vmul.f32 %v5461, 1.442695
        %v5479 = vpow.pop %v5478
        %v5480 = vmul.f32 %v5462, 1.442695
        %v5481 = vpow.pop %v5480
        %v5482 = vmul.f32 %v5463, 1.442695
        %v5483 = vpow.pop %v5482
        %v5484 = vmul.f32 %v5464, 1.442695
        %v5485 = vpow.pop %v5484
        %v5486 = vmul.f32 %v5465, 1.442695
        %v5487 = vpow.pop %v5486
        %v5488 = vmul.f32 %v5466, 1.442695
        %v5489 = vpow.pop %v5488
        %v5490 = vmul.f32 %v5467, 1.442695
        %v5491 = vpow.pop %v5490
        %v5492 = vmul.f32 %v5468, 1.442695
        %v5493 = vpow.pop %v5492
        %v5494 = vmul.f32 %v5469, 1.442695
        %v5495 = vpow.pop %v5494
        %v5496 = vmul.f32 %v5470, 1.442695
        %v5497 = vpow.pop %v5496
        %v5498 = vmul.f32 %v5471, 1.442695
        %v5499 = vpow.pop %v5498
        %v5500 = vmul.f32 %v5472, 1.442695
        %v5501 = vpow.pop %v5500
        %v5502 = vmul.f32 %v5473, 1.442695
        %v5503 = vpow.pop %v5502
        %v5504 = vmul.f32 %v5474, 1.442695
        %v5505 = vpow.pop %v5504
        %v5506 = vmul.f32 %v5475, 1.442695
        %v5507 = vpow.pop %v5506
        %v5508 = vsub.f32 %v5396, %v5444
        %v5509 = vsub.f32 %v5397, %v5445
        %v5510 = vsub.f32 %v5398, %v5446
        %v5511 = vsub.f32 %v5399, %v5447
        %v5512 = vsub.f32 %v5400, %v5448
        %v5513 = vsub.f32 %v5401, %v5449
        %v5514 = vsub.f32 %v5402, %v5450
        %v5515 = vsub.f32 %v5403, %v5451
        %v5516 = vsub.f32 %v5404, %v5452
        %v5517 = vsub.f32 %v5405, %v5453
        %v5518 = vsub.f32 %v5406, %v5454
        %v5519 = vsub.f32 %v5407, %v5455
        %v5520 = vsub.f32 %v5408, %v5456
        %v5521 = vsub.f32 %v5409, %v5457
        %v5522 = vsub.f32 %v5410, %v5458
        %v5523 = vsub.f32 %v5411, %v5459
        %v5524 = vmul.f32 %v5508, 1.442695
        %v5525 = vpow.pop %v5524
        %v5526 = vmul.f32 %v5509, 1.442695
        %v5527 = vpow.pop %v5526
        %v5528 = vmul.f32 %v5510, 1.442695
        %v5529 = vpow.pop %v5528
        %v5530 = vmul.f32 %v5511, 1.442695
        %v5531 = vpow.pop %v5530
        %v5532 = vmul.f32 %v5512, 1.442695
        %v5533 = vpow.pop %v5532
        %v5534 = vmul.f32 %v5513, 1.442695
        %v5535 = vpow.pop %v5534
        %v5536 = vmul.f32 %v5514, 1.442695
        %v5537 = vpow.pop %v5536
        %v5538 = vmul.f32 %v5515, 1.442695
        %v5539 = vpow.pop %v5538
        %v5540 = vmul.f32 %v5516, 1.442695
        %v5541 = vpow.pop %v5540
        %v5542 = vmul.f32 %v5517, 1.442695
        %v5543 = vpow.pop %v5542
        %v5544 = vmul.f32 %v5518, 1.442695
        %v5545 = vpow.pop %v5544
        %v5546 = vmul.f32 %v5519, 1.442695
        %v5547 = vpow.pop %v5546
        %v5548 = vmul.f32 %v5520, 1.442695
        %v5549 = vpow.pop %v5548
        %v5550 = vmul.f32 %v5521, 1.442695
        %v5551 = vpow.pop %v5550
        %v5552 = vmul.f32 %v5522, 1.442695
        %v5553 = vpow.pop %v5552
        %v5554 = vmul.f32 %v5523, 1.442695
        %v5555 = vpow.pop %v5554
        %v5556 = vmul.f32 %v5477, 0.0
        %v5557 = vmul.f32 %v5479, 0.0
        %v5558 = vmul.f32 %v5481, 0.0
        %v5559 = vmul.f32 %v5483, 0.0
        %v5560 = vmul.f32 %v5485, 0.0
        %v5561 = vmul.f32 %v5487, 0.0
        %v5562 = vmul.f32 %v5489, 0.0
        %v5563 = vmul.f32 %v5491, 0.0
        %v5564 = vmul.f32 %v5493, 0.0
        %v5565 = vmul.f32 %v5495, 0.0
        %v5566 = vmul.f32 %v5497, 0.0
        %v5567 = vmul.f32 %v5499, 0.0
        %v5568 = vmul.f32 %v5501, 0.0
        %v5569 = vmul.f32 %v5503, 0.0
        %v5570 = vmul.f32 %v5505, 0.0
        %v5571 = vmul.f32 %v5507, 0.0
        %5572 = vadd.xlane.f32.xlu0 %v5525
        %v5573 = vpop.xlane.xlu0 %5572
        %5574 = vadd.xlane.f32.xlu0 %v5527
        %v5575 = vpop.xlane.xlu0 %5574
        %5576 = vadd.xlane.f32.xlu0 %v5529
        %v5577 = vpop.xlane.xlu0 %5576
        %5578 = vadd.xlane.f32.xlu0 %v5531
        %v5579 = vpop.xlane.xlu0 %5578
        %5580 = vadd.xlane.f32.xlu0 %v5533
        %v5581 = vpop.xlane.xlu0 %5580
        %5582 = vadd.xlane.f32.xlu0 %v5535
        %v5583 = vpop.xlane.xlu0 %5582
        %5584 = vadd.xlane.f32.xlu0 %v5537
        %v5585 = vpop.xlane.xlu0 %5584
        %5586 = vadd.xlane.f32.xlu0 %v5539
        %v5587 = vpop.xlane.xlu0 %5586
        %5588 = vadd.xlane.f32.xlu0 %v5541
        %v5589 = vpop.xlane.xlu0 %5588
        %5590 = vadd.xlane.f32.xlu0 %v5543
        %v5591 = vpop.xlane.xlu0 %5590
        %5592 = vadd.xlane.f32.xlu0 %v5545
        %v5593 = vpop.xlane.xlu0 %5592
        %5594 = vadd.xlane.f32.xlu0 %v5547
        %v5595 = vpop.xlane.xlu0 %5594
        %5596 = vadd.xlane.f32.xlu0 %v5549
        %v5597 = vpop.xlane.xlu0 %5596
        %5598 = vadd.xlane.f32.xlu0 %v5551
        %v5599 = vpop.xlane.xlu0 %5598
        %5600 = vadd.xlane.f32.xlu0 %v5553
        %v5601 = vpop.xlane.xlu0 %5600
        %5602 = vadd.xlane.f32.xlu0 %v5555
        %v5603 = vpop.xlane.xlu0 %5602
        %v5604 = vadd.f32 %v5556, %v5573
        %v5605 = vadd.f32 %v5557, %v5575
        %v5606 = vadd.f32 %v5558, %v5577
        %v5607 = vadd.f32 %v5559, %v5579
        %v5608 = vadd.f32 %v5560, %v5581
        %v5609 = vadd.f32 %v5561, %v5583
        %v5610 = vadd.f32 %v5562, %v5585
        %v5611 = vadd.f32 %v5563, %v5587
        %v5612 = vadd.f32 %v5564, %v5589
        %v5613 = vadd.f32 %v5565, %v5591
        %v5614 = vadd.f32 %v5566, %v5593
        %v5615 = vadd.f32 %v5567, %v5595
        %v5616 = vadd.f32 %v5568, %v5597
        %v5617 = vadd.f32 %v5569, %v5599
        %v5618 = vadd.f32 %v5570, %v5601
        %v5619 = vadd.f32 %v5571, %v5603
        %v5620 = vpack.c.bf16 %v5527, %v5525
        %v5621 = vpack.c.bf16 %v5531, %v5529
        %v5622 = vpack.c.bf16 %v5535, %v5533
        %v5623 = vpack.c.bf16 %v5539, %v5537
        %v5624 = vpack.c.bf16 %v5543, %v5541
        %v5625 = vpack.c.bf16 %v5547, %v5545
        %v5626 = vpack.c.bf16 %v5551, %v5549
        %v5627 = vpack.c.bf16 %v5555, %v5553
        %v5644 = vunpack.c.l.b16 %v5155
        %v5645 = vunpack.c.l.b16 %v5156
        %v5646 = vunpack.c.l.b16 %v5157
        %v5647 = vunpack.c.l.b16 %v5158
        %v5648 = vunpack.c.l.b16 %v5159
        %v5649 = vunpack.c.l.b16 %v5160
        %v5650 = vunpack.c.l.b16 %v5161
        %v5651 = vunpack.c.l.b16 %v5162
        %v5652 = vunpack.c.l.b16 %v5163
        %v5653 = vunpack.c.l.b16 %v5164
        %v5654 = vunpack.c.l.b16 %v5165
        %v5655 = vunpack.c.l.b16 %v5166
        %v5656 = vunpack.c.l.b16 %v5167
        %v5657 = vunpack.c.l.b16 %v5168
        %v5658 = vunpack.c.l.b16 %v5169
        %v5659 = vunpack.c.l.b16 %v5170
        %v5660 = vpack.c.b16 %v5645, %v5644
        %v5661 = vpack.c.b16 %v5647, %v5646
        %v5662 = vpack.c.b16 %v5649, %v5648
        %v5663 = vpack.c.b16 %v5651, %v5650
        %v5664 = vpack.c.b16 %v5653, %v5652
        %v5665 = vpack.c.b16 %v5655, %v5654
        %v5666 = vpack.c.b16 %v5657, %v5656
        %v5667 = vpack.c.b16 %v5659, %v5658
        %5676 = vmatprep.subr.bf16.mxu0 0
        %5677 = vmatpush1.bf16.msra.mxu0 %v5667
        %5678 = vmatprep.subr.bf16.mxu0 0
        %5679 = vmatpush1.bf16.msra.mxu0 %v5666
        %5680 = vmatprep.subr.bf16.mxu0 0
        %5681 = vmatpush1.bf16.msra.mxu0 %v5665
        %5682 = vmatprep.subr.bf16.mxu0 0
        %5683 = vmatpush1.bf16.msra.mxu0 %v5664
        %5684 = vmatprep.subr.bf16.mxu0 0
        %5685 = vmatpush1.bf16.msra.mxu0 %v5663
        %5686 = vmatprep.subr.bf16.mxu0 0
        %5687 = vmatpush1.bf16.msra.mxu0 %v5662
        %5688 = vmatprep.subr.bf16.mxu0 0
        %5689 = vmatpush1.bf16.msra.mxu0 %v5661
        %5690 = vmatprep.subr.bf16.mxu0 0
        %5691 = vmatpush1.bf16.msra.mxu0 %v5660
        %5692 = vmatprep.subr.bf16.mxu0 0
        %5693 = vmatpush2.bf16.msra.mxu0 0
        %5694 = vmatprep.subr.bf16.mxu0 0
        %5695 = vmatpush2.bf16.msra.mxu0 0
        %5696 = vmatprep.subr.bf16.mxu0 0
        %5697 = vmatpush2.bf16.msra.mxu0 0
        %5698 = vmatprep.subr.bf16.mxu0 0
        %5699 = vmatpush2.bf16.msra.mxu0 0
        %5700 = vmatprep.subr.bf16.mxu0 0
        %5701 = vmatpush2.bf16.msra.mxu0 0
        %5702 = vmatprep.subr.bf16.mxu0 0
        %5703 = vmatpush2.bf16.msra.mxu0 0
        %5704 = vmatprep.subr.bf16.mxu0 0
        %5705 = vmatpush2.bf16.msra.mxu0 0
        %5706 = vmatprep.subr.bf16.mxu0 0
        %5707 = vmatpush2.bf16.msra.mxu0 0
        %5708 = vmatprep.mubr.bf16.mxu0 0
        %5709 = vmatmul.mubr.bf16.gmra.mxu0 %v5620
        %v5710 = vpop.f32.mrf.mxu0
        %v5711 = vadd.f32 0.0, %v5710
        %v5712 = vpop.f32.mrf.mxu0
        %v5713 = vpop.f32.mrf.mxu0
        %v5714 = vadd.f32 0.0, %v5713
        %v5715 = vpop.f32.mrf.mxu0
        %5716 = vmatprep.mubr.bf16.mxu0 0
        %5717 = vmatmul.mubr.bf16.gmra.mxu0 %v5621
        %v5718 = vpop.f32.mrf.mxu0
        %v5719 = vadd.f32 0.0, %v5718
        %v5720 = vpop.f32.mrf.mxu0
        %v5721 = vpop.f32.mrf.mxu0
        %v5722 = vadd.f32 0.0, %v5721
        %v5723 = vpop.f32.mrf.mxu0
        %5724 = vmatprep.mubr.bf16.mxu0 0
        %5725 = vmatmul.mubr.bf16.gmra.mxu0 %v5622
        %v5726 = vpop.f32.mrf.mxu0
        %v5727 = vadd.f32 0.0, %v5726
        %v5728 = vpop.f32.mrf.mxu0
        %v5729 = vpop.f32.mrf.mxu0
        %v5730 = vadd.f32 0.0, %v5729
        %v5731 = vpop.f32.mrf.mxu0
        %5732 = vmatprep.mubr.bf16.mxu0 0
        %5733 = vmatmul.mubr.bf16.gmra.mxu0 %v5623
        %v5734 = vpop.f32.mrf.mxu0
        %v5735 = vadd.f32 0.0, %v5734
        %v5736 = vpop.f32.mrf.mxu0
        %v5737 = vpop.f32.mrf.mxu0
        %v5738 = vadd.f32 0.0, %v5737
        %v5739 = vpop.f32.mrf.mxu0
        %5740 = vmatprep.mubr.bf16.mxu0 0
        %5741 = vmatmul.mubr.bf16.gmra.mxu0 %v5624
        %v5742 = vpop.f32.mrf.mxu0
        %v5743 = vadd.f32 0.0, %v5742
        %v5744 = vpop.f32.mrf.mxu0
        %v5745 = vpop.f32.mrf.mxu0
        %v5746 = vadd.f32 0.0, %v5745
        %v5747 = vpop.f32.mrf.mxu0
        %5748 = vmatprep.mubr.bf16.mxu0 0
        %5749 = vmatmul.mubr.bf16.gmra.mxu0 %v5625
        %v5750 = vpop.f32.mrf.mxu0
        %v5751 = vadd.f32 0.0, %v5750
        %v5752 = vpop.f32.mrf.mxu0
        %v5753 = vpop.f32.mrf.mxu0
        %v5754 = vadd.f32 0.0, %v5753
        %v5755 = vpop.f32.mrf.mxu0
        %5756 = vmatprep.mubr.bf16.mxu0 0
        %5757 = vmatmul.mubr.bf16.gmra.mxu0 %v5626
        %v5758 = vpop.f32.mrf.mxu0
        %v5759 = vadd.f32 0.0, %v5758
        %v5760 = vpop.f32.mrf.mxu0
        %v5761 = vpop.f32.mrf.mxu0
        %v5762 = vadd.f32 0.0, %v5761
        %v5763 = vpop.f32.mrf.mxu0
        %5764 = vmatprep.mubr.bf16.mxu0 0
        %5765 = vmatmul.mubr.bf16.gmra.mxu0 %v5627
        %v5766 = vpop.f32.mrf.mxu0
        %v5767 = vadd.f32 0.0, %v5766
        %v5768 = vpop.f32.mrf.mxu0
        %v5769 = vpop.f32.mrf.mxu0
        %v5770 = vadd.f32 0.0, %v5769
        %v5771 = vpop.f32.mrf.mxu0
        %5772 = vdwg.mxu0
        %v5773 = vadd.f32 %v5556, %v5711
        %v5774 = vadd.f32 %v5557, %v5714
        %v5775 = vadd.f32 %v5558, %v5719
        %v5776 = vadd.f32 %v5559, %v5722
        %v5777 = vadd.f32 %v5560, %v5727
        %v5778 = vadd.f32 %v5561, %v5730
        %v5779 = vadd.f32 %v5562, %v5735
        %v5780 = vadd.f32 %v5563, %v5738
        %v5781 = vadd.f32 %v5564, %v5743
        %v5782 = vadd.f32 %v5565, %v5746
        %v5783 = vadd.f32 %v5566, %v5751
        %v5784 = vadd.f32 %v5567, %v5754
        %v5785 = vadd.f32 %v5568, %v5759
        %v5786 = vadd.f32 %v5569, %v5762
        %v5787 = vadd.f32 %v5570, %v5767
        %v5788 = vadd.f32 %v5571, %v5770
        %v5789 = vrcp.pop %v5604
        %v5790 = vrcp.pop %v5605
        %v5791 = vrcp.pop %v5606
        %v5792 = vrcp.pop %v5607
        %v5793 = vrcp.pop %v5608
        %v5794 = vrcp.pop %v5609
        %v5795 = vrcp.pop %v5610
        %v5796 = vrcp.pop %v5611
        %v5797 = vrcp.pop %v5612
        %v5798 = vrcp.pop %v5613
        %v5799 = vrcp.pop %v5614
        %v5800 = vrcp.pop %v5615
        %v5801 = vrcp.pop %v5616
        %v5802 = vrcp.pop %v5617
        %v5803 = vrcp.pop %v5618
        %v5804 = vrcp.pop %v5619
        %v5805 = vmul.f32 %v5773, %v5789
        %v5806 = vmul.f32 %v5774, %v5790
        %v5807 = vmul.f32 %v5775, %v5791
        %v5808 = vmul.f32 %v5776, %v5792
        %v5809 = vmul.f32 %v5777, %v5793
        %v5810 = vmul.f32 %v5778, %v5794
        %v5811 = vmul.f32 %v5779, %v5795
        %v5812 = vmul.f32 %v5780, %v5796
        %v5813 = vmul.f32 %v5781, %v5797
        %v5814 = vmul.f32 %v5782, %v5798
        %v5815 = vmul.f32 %v5783, %v5799
        %v5816 = vmul.f32 %v5784, %v5800
        %v5817 = vmul.f32 %v5785, %v5801
        %v5818 = vmul.f32 %v5786, %v5802
        %v5819 = vmul.f32 %v5787, %v5803
        %v5820 = vmul.f32 %v5788, %v5804
        %v5821 = vpack.c.bf16 %v5806, %v5805
        %v5822 = vpack.c.bf16 %v5808, %v5807
        %v5823 = vpack.c.bf16 %v5810, %v5809
        %v5824 = vpack.c.bf16 %v5812, %v5811
        %v5825 = vpack.c.bf16 %v5814, %v5813
        %v5826 = vpack.c.bf16 %v5816, %v5815
        %v5827 = vpack.c.bf16 %v5818, %v5817
        %v5828 = vpack.c.bf16 %v5820, %v5819
        %v5837 = vunpack.c.l.b16 %v5821
        %v5838 = vunpack.c.h.b16 %v5821
        %v5839 = vunpack.c.l.b16 %v5822
        %v5840 = vunpack.c.h.b16 %v5822
        %v5841 = vunpack.c.l.b16 %v5823
        %v5842 = vunpack.c.h.b16 %v5823
        %v5843 = vunpack.c.l.b16 %v5824
        %v5844 = vunpack.c.h.b16 %v5824
        %v5845 = vunpack.c.l.b16 %v5825
        %v5846 = vunpack.c.h.b16 %v5825
        %v5847 = vunpack.c.l.b16 %v5826
        %v5848 = vunpack.c.h.b16 %v5826
        %v5849 = vunpack.c.l.b16 %v5827
        %v5850 = vunpack.c.h.b16 %v5827
        %v5851 = vunpack.c.l.b16 %v5828
        %v5852 = vunpack.c.h.b16 %v5828
        %v5853 = vpack.c.b16 %v5837, %v5837
        %v5854 = vpack.c.b16 %v5838, %v5838
        %v5855 = vpack.c.b16 %v5839, %v5839
        %v5856 = vpack.c.b16 %v5840, %v5840
        %v5857 = vpack.c.b16 %v5841, %v5841
        %v5858 = vpack.c.b16 %v5842, %v5842
        %v5859 = vpack.c.b16 %v5843, %v5843
        %v5860 = vpack.c.b16 %v5844, %v5844
        %v5861 = vpack.c.b16 %v5845, %v5845
        %v5862 = vpack.c.b16 %v5846, %v5846
        %v5863 = vpack.c.b16 %v5847, %v5847
        %v5864 = vpack.c.b16 %v5848, %v5848
        %v5865 = vpack.c.b16 %v5849, %v5849
        %v5866 = vpack.c.b16 %v5850, %v5850
        %v5867 = vpack.c.b16 %v5851, %v5851
        %v5868 = vpack.c.b16 %v5852, %v5852
        %5885 = vst.msk [vmem:[#allocation4 + $0x4] sm:$0xf] %vm4247, %v5853
        %5886 = vst.msk [vmem:[#allocation4 + $0x10] sm:$0xf] %vm4247, %v5854
        %5887 = vst.msk [vmem:[#allocation4 + $0x1c] sm:$0xf] %vm4247, %v5855
        %5888 = vst.msk [vmem:[#allocation4 + $0x28] sm:$0xf] %vm4247, %v5856
        %5889 = vst.msk [vmem:[#allocation4 + $0x34] sm:$0xf] %vm4247, %v5857
        %5890 = vst.msk [vmem:[#allocation4 + $0x40] sm:$0xf] %vm4247, %v5858
        %5891 = vst.msk [vmem:[#allocation4 + $0x4c] sm:$0xf] %vm4247, %v5859
        %5892 = vst.msk [vmem:[#allocation4 + $0x58] sm:$0xf] %vm4247, %v5860
        %5893 = vst.msk [vmem:[#allocation4 + $0x64] sm:$0xf] %vm4247, %v5861
        %5894 = vst.msk [vmem:[#allocation4 + $0x70] sm:$0xf] %vm4247, %v5862
        %5895 = vst.msk [vmem:[#allocation4 + $0x7c] sm:$0xf] %vm4247, %v5863
        %5896 = vst.msk [vmem:[#allocation4 + $0x88] sm:$0xf] %vm4247, %v5864
        %5897 = vst.msk [vmem:[#allocation4 + $0x94] sm:$0xf] %vm4247, %v5865
        %5898 = vst.msk [vmem:[#allocation4 + $0xa0] sm:$0xf] %vm4247, %v5866
        %5899 = vst.msk [vmem:[#allocation4 + $0xac] sm:$0xf] %vm4247, %v5867
        %5900 = vst.msk [vmem:[#allocation4 + $0xb8] sm:$0xf] %vm4247, %v5868
        %v5901 = vld [vmem:[#allocation3 + $0x4] sm:$0xf]
        %v5902 = vld [vmem:[#allocation3 + $0x10] sm:$0xf]
        %v5903 = vld [vmem:[#allocation3 + $0x1c] sm:$0xf]
        %v5904 = vld [vmem:[#allocation3 + $0x28] sm:$0xf]
        %v5905 = vld [vmem:[#allocation3 + $0x34] sm:$0xf]
        %v5906 = vld [vmem:[#allocation3 + $0x40] sm:$0xf]
        %v5907 = vld [vmem:[#allocation3 + $0x4c] sm:$0xf]
        %v5908 = vld [vmem:[#allocation3 + $0x58] sm:$0xf]
        %v5909 = vld [vmem:[#allocation3 + $0x64] sm:$0xf]
        %v5910 = vld [vmem:[#allocation3 + $0x70] sm:$0xf]
        %v5911 = vld [vmem:[#allocation3 + $0x7c] sm:$0xf]
        %v5912 = vld [vmem:[#allocation3 + $0x88] sm:$0xf]
        %v5913 = vld [vmem:[#allocation3 + $0x94] sm:$0xf]
        %v5914 = vld [vmem:[#allocation3 + $0xa0] sm:$0xf]
        %v5915 = vld [vmem:[#allocation3 + $0xac] sm:$0xf]
        %v5916 = vld [vmem:[#allocation3 + $0xb8] sm:$0xf]
        %v5917 = vld [vmem:[%s3481 + $0x4] sm:$0xf]
        %v5918 = vld [vmem:[%s3481 + $0x1c] sm:$0xf]
        %v5919 = vld [vmem:[%s3481 + $0x34] sm:$0xf]
        %v5920 = vld [vmem:[%s3481 + $0x4c] sm:$0xf]
        %v5921 = vld [vmem:[%s3481 + $0x64] sm:$0xf]
        %v5922 = vld [vmem:[%s3481 + $0x7c] sm:$0xf]
        %v5923 = vld [vmem:[%s3481 + $0x94] sm:$0xf]
        %v5924 = vld [vmem:[%s3481 + $0xac] sm:$0xf]
        %v5925 = vld [vmem:[%s3481 + $0xc4] sm:$0xf]
        %v5926 = vld [vmem:[%s3481 + $0xdc] sm:$0xf]
        %v5927 = vld [vmem:[%s3481 + $0xf4] sm:$0xf]
        %v5928 = vld [vmem:[%s3481 + $0x10c] sm:$0xf]
        %v5929 = vld [vmem:[%s3481 + $0x124] sm:$0xf]
        %v5930 = vld [vmem:[%s3481 + $0x13c] sm:$0xf]
        %v5931 = vld [vmem:[%s3481 + $0x154] sm:$0xf]
        %v5932 = vld [vmem:[%s3481 + $0x16c] sm:$0xf]
        %v5933 = vld [vmem:[%s3481 + $0x10] sm:$0xf]
        %v5934 = vld [vmem:[%s3481 + $0x28] sm:$0xf]
        %v5935 = vld [vmem:[%s3481 + $0x40] sm:$0xf]
        %v5936 = vld [vmem:[%s3481 + $0x58] sm:$0xf]
        %v5937 = vld [vmem:[%s3481 + $0x70] sm:$0xf]
        %v5938 = vld [vmem:[%s3481 + $0x88] sm:$0xf]
        %v5939 = vld [vmem:[%s3481 + $0xa0] sm:$0xf]
        %v5940 = vld [vmem:[%s3481 + $0xb8] sm:$0xf]
        %v5941 = vld [vmem:[%s3481 + $0xd0] sm:$0xf]
        %v5942 = vld [vmem:[%s3481 + $0xe8] sm:$0xf]
        %v5943 = vld [vmem:[%s3481 + $0x100] sm:$0xf]
        %v5944 = vld [vmem:[%s3481 + $0x118] sm:$0xf]
        %v5945 = vld [vmem:[%s3481 + $0x130] sm:$0xf]
        %v5946 = vld [vmem:[%s3481 + $0x148] sm:$0xf]
        %v5947 = vld [vmem:[%s3481 + $0x160] sm:$0xf]
        %v5948 = vld [vmem:[%s3481 + $0x178] sm:$0xf]
        %v5965 = vunpack.c.l.b16 %v5901
        %v5966 = vunpack.c.l.b16 %v5902
        %v5967 = vunpack.c.l.b16 %v5903
        %v5968 = vunpack.c.l.b16 %v5904
        %v5969 = vunpack.c.l.b16 %v5905
        %v5970 = vunpack.c.l.b16 %v5906
        %v5971 = vunpack.c.l.b16 %v5907
        %v5972 = vunpack.c.l.b16 %v5908
        %v5973 = vunpack.c.l.b16 %v5909
        %v5974 = vunpack.c.l.b16 %v5910
        %v5975 = vunpack.c.l.b16 %v5911
        %v5976 = vunpack.c.l.b16 %v5912
        %v5977 = vunpack.c.l.b16 %v5913
        %v5978 = vunpack.c.l.b16 %v5914
        %v5979 = vunpack.c.l.b16 %v5915
        %v5980 = vunpack.c.l.b16 %v5916
        %v5981 = vpack.c.b16 %v5966, %v5965
        %v5982 = vpack.c.b16 %v5968, %v5967
        %v5983 = vpack.c.b16 %v5970, %v5969
        %v5984 = vpack.c.b16 %v5972, %v5971
        %v5985 = vpack.c.b16 %v5974, %v5973
        %v5986 = vpack.c.b16 %v5976, %v5975
        %v5987 = vpack.c.b16 %v5978, %v5977
        %v5988 = vpack.c.b16 %v5980, %v5979
        %5989 = vrot.lane.b32.xlu0 %v5981, 64
        %v5990 = vpop.permute.xlu0 %5989
        %5991 = vrot.lane.b32.xlu0 %v5982, 64
        %v5992 = vpop.permute.xlu0 %5991
        %5993 = vrot.lane.b32.xlu0 %v5983, 64
        %v5994 = vpop.permute.xlu0 %5993
        %5995 = vrot.lane.b32.xlu0 %v5984, 64
        %v5996 = vpop.permute.xlu0 %5995
        %5997 = vrot.lane.b32.xlu0 %v5985, 64
        %v5998 = vpop.permute.xlu0 %5997
        %5999 = vrot.lane.b32.xlu0 %v5986, 64
        %v6000 = vpop.permute.xlu0 %5999
        %6001 = vrot.lane.b32.xlu0 %v5987, 64
        %v6002 = vpop.permute.xlu0 %6001
        %6003 = vrot.lane.b32.xlu0 %v5988, 64
        %v6004 = vpop.permute.xlu0 %6003
        %v6021 = vunpack.c.l.b16 %v5917
        %v6022 = vunpack.c.l.b16 %v5918
        %v6023 = vunpack.c.l.b16 %v5919
        %v6024 = vunpack.c.l.b16 %v5920
        %v6025 = vunpack.c.l.b16 %v5921
        %v6026 = vunpack.c.l.b16 %v5922
        %v6027 = vunpack.c.l.b16 %v5923
        %v6028 = vunpack.c.l.b16 %v5924
        %v6029 = vunpack.c.l.b16 %v5925
        %v6030 = vunpack.c.l.b16 %v5926
        %v6031 = vunpack.c.l.b16 %v5927
        %v6032 = vunpack.c.l.b16 %v5928
        %v6033 = vunpack.c.l.b16 %v5929
        %v6034 = vunpack.c.l.b16 %v5930
        %v6035 = vunpack.c.l.b16 %v5931
        %v6036 = vunpack.c.l.b16 %v5932
        %v6037 = vpack.c.b16 %v6022, %v6021
        %v6038 = vpack.c.b16 %v6024, %v6023
        %v6039 = vpack.c.b16 %v6026, %v6025
        %v6040 = vpack.c.b16 %v6028, %v6027
        %v6041 = vpack.c.b16 %v6030, %v6029
        %v6042 = vpack.c.b16 %v6032, %v6031
        %v6043 = vpack.c.b16 %v6034, %v6033
        %v6044 = vpack.c.b16 %v6036, %v6035
        %6045 = vrot.lane.b32.xlu0 %v6037, 64
        %v6046 = vpop.permute.xlu0 %6045
        %6047 = vrot.lane.b32.xlu0 %v6038, 64
        %v6048 = vpop.permute.xlu0 %6047
        %6049 = vrot.lane.b32.xlu0 %v6039, 64
        %v6050 = vpop.permute.xlu0 %6049
        %6051 = vrot.lane.b32.xlu0 %v6040, 64
        %v6052 = vpop.permute.xlu0 %6051
        %6053 = vrot.lane.b32.xlu0 %v6041, 64
        %v6054 = vpop.permute.xlu0 %6053
        %6055 = vrot.lane.b32.xlu0 %v6042, 64
        %v6056 = vpop.permute.xlu0 %6055
        %6057 = vrot.lane.b32.xlu0 %v6043, 64
        %v6058 = vpop.permute.xlu0 %6057
        %6059 = vrot.lane.b32.xlu0 %v6044, 64
        %v6060 = vpop.permute.xlu0 %6059
        %v6062 = vsel %vm3594, %v5990, 0
        %v6065 = vsel %vm3594, %v5992, 0
        %v6068 = vsel %vm3594, %v5994, 0
        %v6071 = vsel %vm3594, %v5996, 0
        %v6074 = vsel %vm3594, %v5998, 0
        %v6077 = vsel %vm3594, %v6000, 0
        %v6080 = vsel %vm3594, %v6002, 0
        %v6083 = vsel %vm3594, %v6004, 0
        %v6086 = vsel %vm3594, %v6046, 0
        %v6089 = vsel %vm3594, %v6048, 0
        %v6092 = vsel %vm3594, %v6050, 0
        %v6095 = vsel %vm3594, %v6052, 0
        %v6098 = vsel %vm3594, %v6054, 0
        %v6101 = vsel %vm3594, %v6056, 0
        %v6104 = vsel %vm3594, %v6058, 0
        %v6107 = vsel %vm3594, %v6060, 0
        %6109 = vmatprep.subr.bf16.mxu0 0
        %6110 = vmatpush1.bf16.xpose.msra.mxu0 %v6107
        %6111 = vmatprep.subr.bf16.mxu0 0
        %6112 = vmatpush1.bf16.xpose.msra.mxu0 %v6104
        %6113 = vmatprep.subr.bf16.mxu0 0
        %6114 = vmatpush1.bf16.xpose.msra.mxu0 %v6101
        %6115 = vmatprep.subr.bf16.mxu0 0
        %6116 = vmatpush1.bf16.xpose.msra.mxu0 %v6098
        %6117 = vmatprep.subr.bf16.mxu0 0
        %6118 = vmatpush1.bf16.xpose.msra.mxu0 %v6095
        %6119 = vmatprep.subr.bf16.mxu0 0
        %6120 = vmatpush1.bf16.xpose.msra.mxu0 %v6092
        %6121 = vmatprep.subr.bf16.mxu0 0
        %6122 = vmatpush1.bf16.xpose.msra.mxu0 %v6089
        %6123 = vmatprep.subr.bf16.mxu0 0
        %6124 = vmatpush1.bf16.xpose.msra.mxu0 %v6086
        %6125 = vmatprep.subr.bf16.mxu0 0
        %6126 = vmatpush2.bf16.xpose.msra.mxu0 0
        %6127 = vmatprep.subr.bf16.mxu0 0
        %6128 = vmatpush2.bf16.xpose.msra.mxu0 0
        %6129 = vmatprep.subr.bf16.mxu0 0
        %6130 = vmatpush2.bf16.xpose.msra.mxu0 0
        %6131 = vmatprep.subr.bf16.mxu0 0
        %6132 = vmatpush2.bf16.xpose.msra.mxu0 0
        %6133 = vmatprep.subr.bf16.mxu0 0
        %6134 = vmatpush2.bf16.xpose.msra.mxu0 0
        %6135 = vmatprep.subr.bf16.mxu0 0
        %6136 = vmatpush2.bf16.xpose.msra.mxu0 0
        %6137 = vmatprep.subr.bf16.mxu0 0
        %6138 = vmatpush2.bf16.xpose.msra.mxu0 0
        %6139 = vmatprep.subr.bf16.mxu0 0
        %6140 = vmatpush2.bf16.xpose.msra.mxu0 0
        %6141 = vmatprep.mubr.bf16.mxu0 0
        %6142 = vmatmul.mubr.bf16.gmra.mxu0 %v6062
        %v6143 = vpop.f32.mrf.mxu0
        %v6144 = vadd.f32 0.0, %v6143
        %v6145 = vpop.f32.mrf.mxu0
        %v6146 = vpop.f32.mrf.mxu0
        %v6147 = vadd.f32 0.0, %v6146
        %v6148 = vpop.f32.mrf.mxu0
        %6149 = vmatprep.mubr.bf16.mxu0 0
        %6150 = vmatmul.mubr.bf16.gmra.mxu0 %v6065
        %v6151 = vpop.f32.mrf.mxu0
        %v6152 = vadd.f32 0.0, %v6151
        %v6153 = vpop.f32.mrf.mxu0
        %v6154 = vpop.f32.mrf.mxu0
        %v6155 = vadd.f32 0.0, %v6154
        %v6156 = vpop.f32.mrf.mxu0
        %6157 = vmatprep.mubr.bf16.mxu0 0
        %6158 = vmatmul.mubr.bf16.gmra.mxu0 %v6068
        %v6159 = vpop.f32.mrf.mxu0
        %v6160 = vadd.f32 0.0, %v6159
        %v6161 = vpop.f32.mrf.mxu0
        %v6162 = vpop.f32.mrf.mxu0
        %v6163 = vadd.f32 0.0, %v6162
        %v6164 = vpop.f32.mrf.mxu0
        %6165 = vmatprep.mubr.bf16.mxu0 0
        %6166 = vmatmul.mubr.bf16.gmra.mxu0 %v6071
        %v6167 = vpop.f32.mrf.mxu0
        %v6168 = vadd.f32 0.0, %v6167
        %v6169 = vpop.f32.mrf.mxu0
        %v6170 = vpop.f32.mrf.mxu0
        %v6171 = vadd.f32 0.0, %v6170
        %v6172 = vpop.f32.mrf.mxu0
        %6173 = vmatprep.mubr.bf16.mxu0 0
        %6174 = vmatmul.mubr.bf16.gmra.mxu0 %v6074
        %v6175 = vpop.f32.mrf.mxu0
        %v6176 = vadd.f32 0.0, %v6175
        %v6177 = vpop.f32.mrf.mxu0
        %v6178 = vpop.f32.mrf.mxu0
        %v6179 = vadd.f32 0.0, %v6178
        %v6180 = vpop.f32.mrf.mxu0
        %6181 = vmatprep.mubr.bf16.mxu0 0
        %6182 = vmatmul.mubr.bf16.gmra.mxu0 %v6077
        %v6183 = vpop.f32.mrf.mxu0
        %v6184 = vadd.f32 0.0, %v6183
        %v6185 = vpop.f32.mrf.mxu0
        %v6186 = vpop.f32.mrf.mxu0
        %v6187 = vadd.f32 0.0, %v6186
        %v6188 = vpop.f32.mrf.mxu0
        %6189 = vmatprep.mubr.bf16.mxu0 0
        %6190 = vmatmul.mubr.bf16.gmra.mxu0 %v6080
        %v6191 = vpop.f32.mrf.mxu0
        %v6192 = vadd.f32 0.0, %v6191
        %v6193 = vpop.f32.mrf.mxu0
        %v6194 = vpop.f32.mrf.mxu0
        %v6195 = vadd.f32 0.0, %v6194
        %v6196 = vpop.f32.mrf.mxu0
        %6197 = vmatprep.mubr.bf16.mxu0 0
        %6198 = vmatmul.mubr.bf16.gmra.mxu0 %v6083
        %v6199 = vpop.f32.mrf.mxu0
        %v6200 = vadd.f32 0.0, %v6199
        %v6201 = vpop.f32.mrf.mxu0
        %v6202 = vpop.f32.mrf.mxu0
        %v6203 = vadd.f32 0.0, %v6202
        %v6204 = vpop.f32.mrf.mxu0
        %6205 = vdwg.mxu0
        %v6206 = vsel %vm3742, %v6144, -1e+30
        %v6207 = vsel %vm3743, %v6147, -1e+30
        %v6208 = vsel %vm3744, %v6152, -1e+30
        %v6209 = vsel %vm3745, %v6155, -1e+30
        %v6210 = vsel %vm3746, %v6160, -1e+30
        %v6211 = vsel %vm3747, %v6163, -1e+30
        %v6212 = vsel %vm3748, %v6168, -1e+30
        %v6213 = vsel %vm3749, %v6171, -1e+30
        %v6214 = vsel %vm3750, %v6176, -1e+30
        %v6215 = vsel %vm3751, %v6179, -1e+30
        %v6216 = vsel %vm3752, %v6184, -1e+30
        %v6217 = vsel %vm3753, %v6187, -1e+30
        %v6218 = vsel %vm3754, %v6192, -1e+30
        %v6219 = vsel %vm3755, %v6195, -1e+30
        %v6220 = vsel %vm3756, %v6200, -1e+30
        %v6221 = vsel %vm3757, %v6203, -1e+30
        %6222 = vmax.xlane.f32.xlu0 %v6206
        %v6223 = vpop.xlane.xlu0 %6222
        %6224 = vmax.xlane.f32.xlu0 %v6207
        %v6225 = vpop.xlane.xlu0 %6224
        %6226 = vmax.xlane.f32.xlu0 %v6208
        %v6227 = vpop.xlane.xlu0 %6226
        %6228 = vmax.xlane.f32.xlu0 %v6209
        %v6229 = vpop.xlane.xlu0 %6228
        %6230 = vmax.xlane.f32.xlu0 %v6210
        %v6231 = vpop.xlane.xlu0 %6230
        %6232 = vmax.xlane.f32.xlu0 %v6211
        %v6233 = vpop.xlane.xlu0 %6232
        %6234 = vmax.xlane.f32.xlu0 %v6212
        %v6235 = vpop.xlane.xlu0 %6234
        %6236 = vmax.xlane.f32.xlu0 %v6213
        %v6237 = vpop.xlane.xlu0 %6236
        %6238 = vmax.xlane.f32.xlu0 %v6214
        %v6239 = vpop.xlane.xlu0 %6238
        %6240 = vmax.xlane.f32.xlu0 %v6215
        %v6241 = vpop.xlane.xlu0 %6240
        %6242 = vmax.xlane.f32.xlu0 %v6216
        %v6243 = vpop.xlane.xlu0 %6242
        %6244 = vmax.xlane.f32.xlu0 %v6217
        %v6245 = vpop.xlane.xlu0 %6244
        %6246 = vmax.xlane.f32.xlu0 %v6218
        %v6247 = vpop.xlane.xlu0 %6246
        %6248 = vmax.xlane.f32.xlu0 %v6219
        %v6249 = vpop.xlane.xlu0 %6248
        %6250 = vmax.xlane.f32.xlu0 %v6220
        %v6251 = vpop.xlane.xlu0 %6250
        %6252 = vmax.xlane.f32.xlu0 %v6221
        %v6253 = vpop.xlane.xlu0 %6252
        %v6254 = vmax.f32 %v6223, -1e+30
        %v6255 = vmax.f32 %v6225, -1e+30
        %v6256 = vmax.f32 %v6227, -1e+30
        %v6257 = vmax.f32 %v6229, -1e+30
        %v6258 = vmax.f32 %v6231, -1e+30
        %v6259 = vmax.f32 %v6233, -1e+30
        %v6260 = vmax.f32 %v6235, -1e+30
        %v6261 = vmax.f32 %v6237, -1e+30
        %v6262 = vmax.f32 %v6239, -1e+30
        %v6263 = vmax.f32 %v6241, -1e+30
        %v6264 = vmax.f32 %v6243, -1e+30
        %v6265 = vmax.f32 %v6245, -1e+30
        %v6266 = vmax.f32 %v6247, -1e+30
        %v6267 = vmax.f32 %v6249, -1e+30
        %v6268 = vmax.f32 %v6251, -1e+30
        %v6269 = vmax.f32 %v6253, -1e+30
        %v6270 = vsub.f32 -1e+30, %v6254
        %v6271 = vsub.f32 -1e+30, %v6255
        %v6272 = vsub.f32 -1e+30, %v6256
        %v6273 = vsub.f32 -1e+30, %v6257
        %v6274 = vsub.f32 -1e+30, %v6258
        %v6275 = vsub.f32 -1e+30, %v6259
        %v6276 = vsub.f32 -1e+30, %v6260
        %v6277 = vsub.f32 -1e+30, %v6261
        %v6278 = vsub.f32 -1e+30, %v6262
        %v6279 = vsub.f32 -1e+30, %v6263
        %v6280 = vsub.f32 -1e+30, %v6264
        %v6281 = vsub.f32 -1e+30, %v6265
        %v6282 = vsub.f32 -1e+30, %v6266
        %v6283 = vsub.f32 -1e+30, %v6267
        %v6284 = vsub.f32 -1e+30, %v6268
        %v6285 = vsub.f32 -1e+30, %v6269
        %v6286 = vmul.f32 %v6270, 1.442695
        %v6287 = vpow.pop %v6286
        %v6288 = vmul.f32 %v6271, 1.442695
        %v6289 = vpow.pop %v6288
        %v6290 = vmul.f32 %v6272, 1.442695
        %v6291 = vpow.pop %v6290
        %v6292 = vmul.f32 %v6273, 1.442695
        %v6293 = vpow.pop %v6292
        %v6294 = vmul.f32 %v6274, 1.442695
        %v6295 = vpow.pop %v6294
        %v6296 = vmul.f32 %v6275, 1.442695
        %v6297 = vpow.pop %v6296
        %v6298 = vmul.f32 %v6276, 1.442695
        %v6299 = vpow.pop %v6298
        %v6300 = vmul.f32 %v6277, 1.442695
        %v6301 = vpow.pop %v6300
        %v6302 = vmul.f32 %v6278, 1.442695
        %v6303 = vpow.pop %v6302
        %v6304 = vmul.f32 %v6279, 1.442695
        %v6305 = vpow.pop %v6304
        %v6306 = vmul.f32 %v6280, 1.442695
        %v6307 = vpow.pop %v6306
        %v6308 = vmul.f32 %v6281, 1.442695
        %v6309 = vpow.pop %v6308
        %v6310 = vmul.f32 %v6282, 1.442695
        %v6311 = vpow.pop %v6310
        %v6312 = vmul.f32 %v6283, 1.442695
        %v6313 = vpow.pop %v6312
        %v6314 = vmul.f32 %v6284, 1.442695
        %v6315 = vpow.pop %v6314
        %v6316 = vmul.f32 %v6285, 1.442695
        %v6317 = vpow.pop %v6316
        %v6318 = vsub.f32 %v6206, %v6254
        %v6319 = vsub.f32 %v6207, %v6255
        %v6320 = vsub.f32 %v6208, %v6256
        %v6321 = vsub.f32 %v6209, %v6257
        %v6322 = vsub.f32 %v6210, %v6258
        %v6323 = vsub.f32 %v6211, %v6259
        %v6324 = vsub.f32 %v6212, %v6260
        %v6325 = vsub.f32 %v6213, %v6261
        %v6326 = vsub.f32 %v6214, %v6262
        %v6327 = vsub.f32 %v6215, %v6263
        %v6328 = vsub.f32 %v6216, %v6264
        %v6329 = vsub.f32 %v6217, %v6265
        %v6330 = vsub.f32 %v6218, %v6266
        %v6331 = vsub.f32 %v6219, %v6267
        %v6332 = vsub.f32 %v6220, %v6268
        %v6333 = vsub.f32 %v6221, %v6269
        %v6334 = vmul.f32 %v6318, 1.442695
        %v6335 = vpow.pop %v6334
        %v6336 = vmul.f32 %v6319, 1.442695
        %v6337 = vpow.pop %v6336
        %v6338 = vmul.f32 %v6320, 1.442695
        %v6339 = vpow.pop %v6338
        %v6340 = vmul.f32 %v6321, 1.442695
        %v6341 = vpow.pop %v6340
        %v6342 = vmul.f32 %v6322, 1.442695
        %v6343 = vpow.pop %v6342
        %v6344 = vmul.f32 %v6323, 1.442695
        %v6345 = vpow.pop %v6344
        %v6346 = vmul.f32 %v6324, 1.442695
        %v6347 = vpow.pop %v6346
        %v6348 = vmul.f32 %v6325, 1.442695
        %v6349 = vpow.pop %v6348
        %v6350 = vmul.f32 %v6326, 1.442695
        %v6351 = vpow.pop %v6350
        %v6352 = vmul.f32 %v6327, 1.442695
        %v6353 = vpow.pop %v6352
        %v6354 = vmul.f32 %v6328, 1.442695
        %v6355 = vpow.pop %v6354
        %v6356 = vmul.f32 %v6329, 1.442695
        %v6357 = vpow.pop %v6356
        %v6358 = vmul.f32 %v6330, 1.442695
        %v6359 = vpow.pop %v6358
        %v6360 = vmul.f32 %v6331, 1.442695
        %v6361 = vpow.pop %v6360
        %v6362 = vmul.f32 %v6332, 1.442695
        %v6363 = vpow.pop %v6362
        %v6364 = vmul.f32 %v6333, 1.442695
        %v6365 = vpow.pop %v6364
        %v6366 = vmul.f32 %v6287, 0.0
        %v6367 = vmul.f32 %v6289, 0.0
        %v6368 = vmul.f32 %v6291, 0.0
        %v6369 = vmul.f32 %v6293, 0.0
        %v6370 = vmul.f32 %v6295, 0.0
        %v6371 = vmul.f32 %v6297, 0.0
        %v6372 = vmul.f32 %v6299, 0.0
        %v6373 = vmul.f32 %v6301, 0.0
        %v6374 = vmul.f32 %v6303, 0.0
        %v6375 = vmul.f32 %v6305, 0.0
        %v6376 = vmul.f32 %v6307, 0.0
        %v6377 = vmul.f32 %v6309, 0.0
        %v6378 = vmul.f32 %v6311, 0.0
        %v6379 = vmul.f32 %v6313, 0.0
        %v6380 = vmul.f32 %v6315, 0.0
        %v6381 = vmul.f32 %v6317, 0.0
        %6382 = vadd.xlane.f32.xlu0 %v6335
        %v6383 = vpop.xlane.xlu0 %6382
        %6384 = vadd.xlane.f32.xlu0 %v6337
        %v6385 = vpop.xlane.xlu0 %6384
        %6386 = vadd.xlane.f32.xlu0 %v6339
        %v6387 = vpop.xlane.xlu0 %6386
        %6388 = vadd.xlane.f32.xlu0 %v6341
        %v6389 = vpop.xlane.xlu0 %6388
        %6390 = vadd.xlane.f32.xlu0 %v6343
        %v6391 = vpop.xlane.xlu0 %6390
        %6392 = vadd.xlane.f32.xlu0 %v6345
        %v6393 = vpop.xlane.xlu0 %6392
        %6394 = vadd.xlane.f32.xlu0 %v6347
        %v6395 = vpop.xlane.xlu0 %6394
        %6396 = vadd.xlane.f32.xlu0 %v6349
        %v6397 = vpop.xlane.xlu0 %6396
        %6398 = vadd.xlane.f32.xlu0 %v6351
        %v6399 = vpop.xlane.xlu0 %6398
        %6400 = vadd.xlane.f32.xlu0 %v6353
        %v6401 = vpop.xlane.xlu0 %6400
        %6402 = vadd.xlane.f32.xlu0 %v6355
        %v6403 = vpop.xlane.xlu0 %6402
        %6404 = vadd.xlane.f32.xlu0 %v6357
        %v6405 = vpop.xlane.xlu0 %6404
        %6406 = vadd.xlane.f32.xlu0 %v6359
        %v6407 = vpop.xlane.xlu0 %6406
        %6408 = vadd.xlane.f32.xlu0 %v6361
        %v6409 = vpop.xlane.xlu0 %6408
        %6410 = vadd.xlane.f32.xlu0 %v6363
        %v6411 = vpop.xlane.xlu0 %6410
        %6412 = vadd.xlane.f32.xlu0 %v6365
        %v6413 = vpop.xlane.xlu0 %6412
        %v6414 = vadd.f32 %v6366, %v6383
        %v6415 = vadd.f32 %v6367, %v6385
        %v6416 = vadd.f32 %v6368, %v6387
        %v6417 = vadd.f32 %v6369, %v6389
        %v6418 = vadd.f32 %v6370, %v6391
        %v6419 = vadd.f32 %v6371, %v6393
        %v6420 = vadd.f32 %v6372, %v6395
        %v6421 = vadd.f32 %v6373, %v6397
        %v6422 = vadd.f32 %v6374, %v6399
        %v6423 = vadd.f32 %v6375, %v6401
        %v6424 = vadd.f32 %v6376, %v6403
        %v6425 = vadd.f32 %v6377, %v6405
        %v6426 = vadd.f32 %v6378, %v6407
        %v6427 = vadd.f32 %v6379, %v6409
        %v6428 = vadd.f32 %v6380, %v6411
        %v6429 = vadd.f32 %v6381, %v6413
        %v6430 = vpack.c.bf16 %v6337, %v6335
        %v6431 = vpack.c.bf16 %v6341, %v6339
        %v6432 = vpack.c.bf16 %v6345, %v6343
        %v6433 = vpack.c.bf16 %v6349, %v6347
        %v6434 = vpack.c.bf16 %v6353, %v6351
        %v6435 = vpack.c.bf16 %v6357, %v6355
        %v6436 = vpack.c.bf16 %v6361, %v6359
        %v6437 = vpack.c.bf16 %v6365, %v6363
        %v6454 = vunpack.c.l.b16 %v5933
        %v6455 = vunpack.c.l.b16 %v5934
        %v6456 = vunpack.c.l.b16 %v5935
        %v6457 = vunpack.c.l.b16 %v5936
        %v6458 = vunpack.c.l.b16 %v5937
        %v6459 = vunpack.c.l.b16 %v5938
        %v6460 = vunpack.c.l.b16 %v5939
        %v6461 = vunpack.c.l.b16 %v5940
        %v6462 = vunpack.c.l.b16 %v5941
        %v6463 = vunpack.c.l.b16 %v5942
        %v6464 = vunpack.c.l.b16 %v5943
        %v6465 = vunpack.c.l.b16 %v5944
        %v6466 = vunpack.c.l.b16 %v5945
        %v6467 = vunpack.c.l.b16 %v5946
        %v6468 = vunpack.c.l.b16 %v5947
        %v6469 = vunpack.c.l.b16 %v5948
        %v6470 = vpack.c.b16 %v6455, %v6454
        %v6471 = vpack.c.b16 %v6457, %v6456
        %v6472 = vpack.c.b16 %v6459, %v6458
        %v6473 = vpack.c.b16 %v6461, %v6460
        %v6474 = vpack.c.b16 %v6463, %v6462
        %v6475 = vpack.c.b16 %v6465, %v6464
        %v6476 = vpack.c.b16 %v6467, %v6466
        %v6477 = vpack.c.b16 %v6469, %v6468
        %6478 = vrot.lane.b32.xlu0 %v6470, 64
        %v6479 = vpop.permute.xlu0 %6478
        %6480 = vrot.lane.b32.xlu0 %v6471, 64
        %v6481 = vpop.permute.xlu0 %6480
        %6482 = vrot.lane.b32.xlu0 %v6472, 64
        %v6483 = vpop.permute.xlu0 %6482
        %6484 = vrot.lane.b32.xlu0 %v6473, 64
        %v6485 = vpop.permute.xlu0 %6484
        %6486 = vrot.lane.b32.xlu0 %v6474, 64
        %v6487 = vpop.permute.xlu0 %6486
        %6488 = vrot.lane.b32.xlu0 %v6475, 64
        %v6489 = vpop.permute.xlu0 %6488
        %6490 = vrot.lane.b32.xlu0 %v6476, 64
        %v6491 = vpop.permute.xlu0 %6490
        %6492 = vrot.lane.b32.xlu0 %v6477, 64
        %v6493 = vpop.permute.xlu0 %6492
        %6502 = vmatprep.subr.bf16.mxu0 0
        %6503 = vmatpush1.bf16.msra.mxu0 %v6493
        %6504 = vmatprep.subr.bf16.mxu0 0
        %6505 = vmatpush1.bf16.msra.mxu0 %v6491
        %6506 = vmatprep.subr.bf16.mxu0 0
        %6507 = vmatpush1.bf16.msra.mxu0 %v6489
        %6508 = vmatprep.subr.bf16.mxu0 0
        %6509 = vmatpush1.bf16.msra.mxu0 %v6487
        %6510 = vmatprep.subr.bf16.mxu0 0
        %6511 = vmatpush1.bf16.msra.mxu0 %v6485
        %6512 = vmatprep.subr.bf16.mxu0 0
        %6513 = vmatpush1.bf16.msra.mxu0 %v6483
        %6514 = vmatprep.subr.bf16.mxu0 0
        %6515 = vmatpush1.bf16.msra.mxu0 %v6481
        %6516 = vmatprep.subr.bf16.mxu0 0
        %6517 = vmatpush1.bf16.msra.mxu0 %v6479
        %6518 = vmatprep.subr.bf16.mxu0 0
        %6519 = vmatpush2.bf16.msra.mxu0 0
        %6520 = vmatprep.subr.bf16.mxu0 0
        %6521 = vmatpush2.bf16.msra.mxu0 0
        %6522 = vmatprep.subr.bf16.mxu0 0
        %6523 = vmatpush2.bf16.msra.mxu0 0
        %6524 = vmatprep.subr.bf16.mxu0 0
        %6525 = vmatpush2.bf16.msra.mxu0 0
        %6526 = vmatprep.subr.bf16.mxu0 0
        %6527 = vmatpush2.bf16.msra.mxu0 0
        %6528 = vmatprep.subr.bf16.mxu0 0
        %6529 = vmatpush2.bf16.msra.mxu0 0
        %6530 = vmatprep.subr.bf16.mxu0 0
        %6531 = vmatpush2.bf16.msra.mxu0 0
        %6532 = vmatprep.subr.bf16.mxu0 0
        %6533 = vmatpush2.bf16.msra.mxu0 0
        %6534 = vmatprep.mubr.bf16.mxu0 0
        %6535 = vmatmul.mubr.bf16.gmra.mxu0 %v6430
        %v6536 = vpop.f32.mrf.mxu0
        %v6537 = vadd.f32 0.0, %v6536
        %v6538 = vpop.f32.mrf.mxu0
        %v6539 = vpop.f32.mrf.mxu0
        %v6540 = vadd.f32 0.0, %v6539
        %v6541 = vpop.f32.mrf.mxu0
        %6542 = vmatprep.mubr.bf16.mxu0 0
        %6543 = vmatmul.mubr.bf16.gmra.mxu0 %v6431
        %v6544 = vpop.f32.mrf.mxu0
        %v6545 = vadd.f32 0.0, %v6544
        %v6546 = vpop.f32.mrf.mxu0
        %v6547 = vpop.f32.mrf.mxu0
        %v6548 = vadd.f32 0.0, %v6547
        %v6549 = vpop.f32.mrf.mxu0
        %6550 = vmatprep.mubr.bf16.mxu0 0
        %6551 = vmatmul.mubr.bf16.gmra.mxu0 %v6432
        %v6552 = vpop.f32.mrf.mxu0
        %v6553 = vadd.f32 0.0, %v6552
        %v6554 = vpop.f32.mrf.mxu0
        %v6555 = vpop.f32.mrf.mxu0
        %v6556 = vadd.f32 0.0, %v6555
        %v6557 = vpop.f32.mrf.mxu0
        %6558 = vmatprep.mubr.bf16.mxu0 0
        %6559 = vmatmul.mubr.bf16.gmra.mxu0 %v6433
        %v6560 = vpop.f32.mrf.mxu0
        %v6561 = vadd.f32 0.0, %v6560
        %v6562 = vpop.f32.mrf.mxu0
        %v6563 = vpop.f32.mrf.mxu0
        %v6564 = vadd.f32 0.0, %v6563
        %v6565 = vpop.f32.mrf.mxu0
        %6566 = vmatprep.mubr.bf16.mxu0 0
        %6567 = vmatmul.mubr.bf16.gmra.mxu0 %v6434
        %v6568 = vpop.f32.mrf.mxu0
        %v6569 = vadd.f32 0.0, %v6568
        %v6570 = vpop.f32.mrf.mxu0
        %v6571 = vpop.f32.mrf.mxu0
        %v6572 = vadd.f32 0.0, %v6571
        %v6573 = vpop.f32.mrf.mxu0
        %6574 = vmatprep.mubr.bf16.mxu0 0
        %6575 = vmatmul.mubr.bf16.gmra.mxu0 %v6435
        %v6576 = vpop.f32.mrf.mxu0
        %v6577 = vadd.f32 0.0, %v6576
        %v6578 = vpop.f32.mrf.mxu0
        %v6579 = vpop.f32.mrf.mxu0
        %v6580 = vadd.f32 0.0, %v6579
        %v6581 = vpop.f32.mrf.mxu0
        %6582 = vmatprep.mubr.bf16.mxu0 0
        %6583 = vmatmul.mubr.bf16.gmra.mxu0 %v6436
        %v6584 = vpop.f32.mrf.mxu0
        %v6585 = vadd.f32 0.0, %v6584
        %v6586 = vpop.f32.mrf.mxu0
        %v6587 = vpop.f32.mrf.mxu0
        %v6588 = vadd.f32 0.0, %v6587
        %v6589 = vpop.f32.mrf.mxu0
        %6590 = vmatprep.mubr.bf16.mxu0 0
        %6591 = vmatmul.mubr.bf16.gmra.mxu0 %v6437
        %v6592 = vpop.f32.mrf.mxu0
        %v6593 = vadd.f32 0.0, %v6592
        %v6594 = vpop.f32.mrf.mxu0
        %v6595 = vpop.f32.mrf.mxu0
        %v6596 = vadd.f32 0.0, %v6595
        %v6597 = vpop.f32.mrf.mxu0
        %6598 = vdwg.mxu0
        %v6599 = vadd.f32 %v6366, %v6537
        %v6600 = vadd.f32 %v6367, %v6540
        %v6601 = vadd.f32 %v6368, %v6545
        %v6602 = vadd.f32 %v6369, %v6548
        %v6603 = vadd.f32 %v6370, %v6553
        %v6604 = vadd.f32 %v6371, %v6556
        %v6605 = vadd.f32 %v6372, %v6561
        %v6606 = vadd.f32 %v6373, %v6564
        %v6607 = vadd.f32 %v6374, %v6569
        %v6608 = vadd.f32 %v6375, %v6572
        %v6609 = vadd.f32 %v6376, %v6577
        %v6610 = vadd.f32 %v6377, %v6580
        %v6611 = vadd.f32 %v6378, %v6585
        %v6612 = vadd.f32 %v6379, %v6588
        %v6613 = vadd.f32 %v6380, %v6593
        %v6614 = vadd.f32 %v6381, %v6596
        %v6615 = vrcp.pop %v6414
        %v6616 = vrcp.pop %v6415
        %v6617 = vrcp.pop %v6416
        %v6618 = vrcp.pop %v6417
        %v6619 = vrcp.pop %v6418
        %v6620 = vrcp.pop %v6419
        %v6621 = vrcp.pop %v6420
        %v6622 = vrcp.pop %v6421
        %v6623 = vrcp.pop %v6422
        %v6624 = vrcp.pop %v6423
        %v6625 = vrcp.pop %v6424
        %v6626 = vrcp.pop %v6425
        %v6627 = vrcp.pop %v6426
        %v6628 = vrcp.pop %v6427
        %v6629 = vrcp.pop %v6428
        %v6630 = vrcp.pop %v6429
        %v6631 = vmul.f32 %v6599, %v6615
        %v6632 = vmul.f32 %v6600, %v6616
        %v6633 = vmul.f32 %v6601, %v6617
        %v6634 = vmul.f32 %v6602, %v6618
        %v6635 = vmul.f32 %v6603, %v6619
        %v6636 = vmul.f32 %v6604, %v6620
        %v6637 = vmul.f32 %v6605, %v6621
        %v6638 = vmul.f32 %v6606, %v6622
        %v6639 = vmul.f32 %v6607, %v6623
        %v6640 = vmul.f32 %v6608, %v6624
        %v6641 = vmul.f32 %v6609, %v6625
        %v6642 = vmul.f32 %v6610, %v6626
        %v6643 = vmul.f32 %v6611, %v6627
        %v6644 = vmul.f32 %v6612, %v6628
        %v6645 = vmul.f32 %v6613, %v6629
        %v6646 = vmul.f32 %v6614, %v6630
        %v6647 = vpack.c.bf16 %v6632, %v6631
        %v6648 = vpack.c.bf16 %v6634, %v6633
        %v6649 = vpack.c.bf16 %v6636, %v6635
        %v6650 = vpack.c.bf16 %v6638, %v6637
        %v6651 = vpack.c.bf16 %v6640, %v6639
        %v6652 = vpack.c.bf16 %v6642, %v6641
        %v6653 = vpack.c.bf16 %v6644, %v6643
        %v6654 = vpack.c.bf16 %v6646, %v6645
        %v6663 = vunpack.c.l.b16 %v6647
        %v6664 = vunpack.c.h.b16 %v6647
        %v6665 = vunpack.c.l.b16 %v6648
        %v6666 = vunpack.c.h.b16 %v6648
        %v6667 = vunpack.c.l.b16 %v6649
        %v6668 = vunpack.c.h.b16 %v6649
        %v6669 = vunpack.c.l.b16 %v6650
        %v6670 = vunpack.c.h.b16 %v6650
        %v6671 = vunpack.c.l.b16 %v6651
        %v6672 = vunpack.c.h.b16 %v6651
        %v6673 = vunpack.c.l.b16 %v6652
        %v6674 = vunpack.c.h.b16 %v6652
        %v6675 = vunpack.c.l.b16 %v6653
        %v6676 = vunpack.c.h.b16 %v6653
        %v6677 = vunpack.c.l.b16 %v6654
        %v6678 = vunpack.c.h.b16 %v6654
        %v6679 = vpack.c.b16 %v6663, %v6663
        %v6680 = vpack.c.b16 %v6664, %v6664
        %v6681 = vpack.c.b16 %v6665, %v6665
        %v6682 = vpack.c.b16 %v6666, %v6666
        %v6683 = vpack.c.b16 %v6667, %v6667
        %v6684 = vpack.c.b16 %v6668, %v6668
        %v6685 = vpack.c.b16 %v6669, %v6669
        %v6686 = vpack.c.b16 %v6670, %v6670
        %v6687 = vpack.c.b16 %v6671, %v6671
        %v6688 = vpack.c.b16 %v6672, %v6672
        %v6689 = vpack.c.b16 %v6673, %v6673
        %v6690 = vpack.c.b16 %v6674, %v6674
        %v6691 = vpack.c.b16 %v6675, %v6675
        %v6692 = vpack.c.b16 %v6676, %v6676
        %v6693 = vpack.c.b16 %v6677, %v6677
        %v6694 = vpack.c.b16 %v6678, %v6678
        %6695 = vrot.lane.b32.xlu0 %v6679, 64
        %v6696 = vpop.permute.xlu0 %6695
        %6697 = vrot.lane.b32.xlu0 %v6680, 64
        %v6698 = vpop.permute.xlu0 %6697
        %6699 = vrot.lane.b32.xlu0 %v6681, 64
        %v6700 = vpop.permute.xlu0 %6699
        %6701 = vrot.lane.b32.xlu0 %v6682, 64
        %v6702 = vpop.permute.xlu0 %6701
        %6703 = vrot.lane.b32.xlu0 %v6683, 64
        %v6704 = vpop.permute.xlu0 %6703
        %6705 = vrot.lane.b32.xlu0 %v6684, 64
        %v6706 = vpop.permute.xlu0 %6705
        %6707 = vrot.lane.b32.xlu0 %v6685, 64
        %v6708 = vpop.permute.xlu0 %6707
        %6709 = vrot.lane.b32.xlu0 %v6686, 64
        %v6710 = vpop.permute.xlu0 %6709
        %6711 = vrot.lane.b32.xlu0 %v6687, 64
        %v6712 = vpop.permute.xlu0 %6711
        %6713 = vrot.lane.b32.xlu0 %v6688, 64
        %v6714 = vpop.permute.xlu0 %6713
        %6715 = vrot.lane.b32.xlu0 %v6689, 64
        %v6716 = vpop.permute.xlu0 %6715
        %6717 = vrot.lane.b32.xlu0 %v6690, 64
        %v6718 = vpop.permute.xlu0 %6717
        %6719 = vrot.lane.b32.xlu0 %v6691, 64
        %v6720 = vpop.permute.xlu0 %6719
        %6721 = vrot.lane.b32.xlu0 %v6692, 64
        %v6722 = vpop.permute.xlu0 %6721
        %6723 = vrot.lane.b32.xlu0 %v6693, 64
        %v6724 = vpop.permute.xlu0 %6723
        %6725 = vrot.lane.b32.xlu0 %v6694, 64
        %v6726 = vpop.permute.xlu0 %6725
        %6743 = vst.msk [vmem:[#allocation4 + $0x4] sm:$0xf] %vm5106, %v6696
        %6744 = vst.msk [vmem:[#allocation4 + $0x10] sm:$0xf] %vm5106, %v6698
        %6745 = vst.msk [vmem:[#allocation4 + $0x1c] sm:$0xf] %vm5106, %v6700
        %6746 = vst.msk [vmem:[#allocation4 + $0x28] sm:$0xf] %vm5106, %v6702
        %6747 = vst.msk [vmem:[#allocation4 + $0x34] sm:$0xf] %vm5106, %v6704
        %6748 = vst.msk [vmem:[#allocation4 + $0x40] sm:$0xf] %vm5106, %v6706
        %6749 = vst.msk [vmem:[#allocation4 + $0x4c] sm:$0xf] %vm5106, %v6708
        %6750 = vst.msk [vmem:[#allocation4 + $0x58] sm:$0xf] %vm5106, %v6710
        %6751 = vst.msk [vmem:[#allocation4 + $0x64] sm:$0xf] %vm5106, %v6712
        %6752 = vst.msk [vmem:[#allocation4 + $0x70] sm:$0xf] %vm5106, %v6714
        %6753 = vst.msk [vmem:[#allocation4 + $0x7c] sm:$0xf] %vm5106, %v6716
        %6754 = vst.msk [vmem:[#allocation4 + $0x88] sm:$0xf] %vm5106, %v6718
        %6755 = vst.msk [vmem:[#allocation4 + $0x94] sm:$0xf] %vm5106, %v6720
        %6756 = vst.msk [vmem:[#allocation4 + $0xa0] sm:$0xf] %vm5106, %v6722
        %6757 = vst.msk [vmem:[#allocation4 + $0xac] sm:$0xf] %vm5106, %v6724
        %6758 = vst.msk [vmem:[#allocation4 + $0xb8] sm:$0xf] %vm5106, %v6726
        %v6759 = vld [vmem:[#allocation3 + $0x8] sm:$0xf]
        %v6760 = vld [vmem:[#allocation3 + $0x14] sm:$0xf]
        %v6761 = vld [vmem:[#allocation3 + $0x20] sm:$0xf]
        %v6762 = vld [vmem:[#allocation3 + $0x2c] sm:$0xf]
        %v6763 = vld [vmem:[#allocation3 + $0x38] sm:$0xf]
        %v6764 = vld [vmem:[#allocation3 + $0x44] sm:$0xf]
        %v6765 = vld [vmem:[#allocation3 + $0x50] sm:$0xf]
        %v6766 = vld [vmem:[#allocation3 + $0x5c] sm:$0xf]
        %v6767 = vld [vmem:[#allocation3 + $0x68] sm:$0xf]
        %v6768 = vld [vmem:[#allocation3 + $0x74] sm:$0xf]
        %v6769 = vld [vmem:[#allocation3 + $0x80] sm:$0xf]
        %v6770 = vld [vmem:[#allocation3 + $0x8c] sm:$0xf]
        %v6771 = vld [vmem:[#allocation3 + $0x98] sm:$0xf]
        %v6772 = vld [vmem:[#allocation3 + $0xa4] sm:$0xf]
        %v6773 = vld [vmem:[#allocation3 + $0xb0] sm:$0xf]
        %v6774 = vld [vmem:[#allocation3 + $0xbc] sm:$0xf]
        %v6775 = vld [vmem:[%s3481 + $0x8] sm:$0xf]
        %v6776 = vld [vmem:[%s3481 + $0x20] sm:$0xf]
        %v6777 = vld [vmem:[%s3481 + $0x38] sm:$0xf]
        %v6778 = vld [vmem:[%s3481 + $0x50] sm:$0xf]
        %v6779 = vld [vmem:[%s3481 + $0x68] sm:$0xf]
        %v6780 = vld [vmem:[%s3481 + $0x80] sm:$0xf]
        %v6781 = vld [vmem:[%s3481 + $0x98] sm:$0xf]
        %v6782 = vld [vmem:[%s3481 + $0xb0] sm:$0xf]
        %v6783 = vld [vmem:[%s3481 + $0xc8] sm:$0xf]
        %v6784 = vld [vmem:[%s3481 + $0xe0] sm:$0xf]
        %v6785 = vld [vmem:[%s3481 + $0xf8] sm:$0xf]
        %v6786 = vld [vmem:[%s3481 + $0x110] sm:$0xf]
        %v6787 = vld [vmem:[%s3481 + $0x128] sm:$0xf]
        %v6788 = vld [vmem:[%s3481 + $0x140] sm:$0xf]
        %v6789 = vld [vmem:[%s3481 + $0x158] sm:$0xf]
        %v6790 = vld [vmem:[%s3481 + $0x170] sm:$0xf]
        %v6791 = vld [vmem:[%s3481 + $0x14] sm:$0xf]
        %v6792 = vld [vmem:[%s3481 + $0x2c] sm:$0xf]
        %v6793 = vld [vmem:[%s3481 + $0x44] sm:$0xf]
        %v6794 = vld [vmem:[%s3481 + $0x5c] sm:$0xf]
        %v6795 = vld [vmem:[%s3481 + $0x74] sm:$0xf]
        %v6796 = vld [vmem:[%s3481 + $0x8c] sm:$0xf]
        %v6797 = vld [vmem:[%s3481 + $0xa4] sm:$0xf]
        %v6798 = vld [vmem:[%s3481 + $0xbc] sm:$0xf]
        %v6799 = vld [vmem:[%s3481 + $0xd4] sm:$0xf]
        %v6800 = vld [vmem:[%s3481 + $0xec] sm:$0xf]
        %v6801 = vld [vmem:[%s3481 + $0x104] sm:$0xf]
        %v6802 = vld [vmem:[%s3481 + $0x11c] sm:$0xf]
        %v6803 = vld [vmem:[%s3481 + $0x134] sm:$0xf]
        %v6804 = vld [vmem:[%s3481 + $0x14c] sm:$0xf]
        %v6805 = vld [vmem:[%s3481 + $0x164] sm:$0xf]
        %v6806 = vld [vmem:[%s3481 + $0x17c] sm:$0xf]
        %v6823 = vunpack.c.l.b16 %v6759
        %v6824 = vunpack.c.l.b16 %v6760
        %v6825 = vunpack.c.l.b16 %v6761
        %v6826 = vunpack.c.l.b16 %v6762
        %v6827 = vunpack.c.l.b16 %v6763
        %v6828 = vunpack.c.l.b16 %v6764
        %v6829 = vunpack.c.l.b16 %v6765
        %v6830 = vunpack.c.l.b16 %v6766
        %v6831 = vunpack.c.l.b16 %v6767
        %v6832 = vunpack.c.l.b16 %v6768
        %v6833 = vunpack.c.l.b16 %v6769
        %v6834 = vunpack.c.l.b16 %v6770
        %v6835 = vunpack.c.l.b16 %v6771
        %v6836 = vunpack.c.l.b16 %v6772
        %v6837 = vunpack.c.l.b16 %v6773
        %v6838 = vunpack.c.l.b16 %v6774
        %v6839 = vpack.c.b16 %v6824, %v6823
        %v6840 = vpack.c.b16 %v6826, %v6825
        %v6841 = vpack.c.b16 %v6828, %v6827
        %v6842 = vpack.c.b16 %v6830, %v6829
        %v6843 = vpack.c.b16 %v6832, %v6831
        %v6844 = vpack.c.b16 %v6834, %v6833
        %v6845 = vpack.c.b16 %v6836, %v6835
        %v6846 = vpack.c.b16 %v6838, %v6837
        %v6863 = vunpack.c.l.b16 %v6775
        %v6864 = vunpack.c.l.b16 %v6776
        %v6865 = vunpack.c.l.b16 %v6777
        %v6866 = vunpack.c.l.b16 %v6778
        %v6867 = vunpack.c.l.b16 %v6779
        %v6868 = vunpack.c.l.b16 %v6780
        %v6869 = vunpack.c.l.b16 %v6781
        %v6870 = vunpack.c.l.b16 %v6782
        %v6871 = vunpack.c.l.b16 %v6783
        %v6872 = vunpack.c.l.b16 %v6784
        %v6873 = vunpack.c.l.b16 %v6785
        %v6874 = vunpack.c.l.b16 %v6786
        %v6875 = vunpack.c.l.b16 %v6787
        %v6876 = vunpack.c.l.b16 %v6788
        %v6877 = vunpack.c.l.b16 %v6789
        %v6878 = vunpack.c.l.b16 %v6790
        %v6879 = vpack.c.b16 %v6864, %v6863
        %v6880 = vpack.c.b16 %v6866, %v6865
        %v6881 = vpack.c.b16 %v6868, %v6867
        %v6882 = vpack.c.b16 %v6870, %v6869
        %v6883 = vpack.c.b16 %v6872, %v6871
        %v6884 = vpack.c.b16 %v6874, %v6873
        %v6885 = vpack.c.b16 %v6876, %v6875
        %v6886 = vpack.c.b16 %v6878, %v6877
        %v6888 = vsel %vm3594, %v6839, 0
        %v6891 = vsel %vm3594, %v6840, 0
        %v6894 = vsel %vm3594, %v6841, 0
        %v6897 = vsel %vm3594, %v6842, 0
        %v6900 = vsel %vm3594, %v6843, 0
        %v6903 = vsel %vm3594, %v6844, 0
        %v6906 = vsel %vm3594, %v6845, 0
        %v6909 = vsel %vm3594, %v6846, 0
        %v6912 = vsel %vm3594, %v6879, 0
        %v6915 = vsel %vm3594, %v6880, 0
        %v6918 = vsel %vm3594, %v6881, 0
        %v6921 = vsel %vm3594, %v6882, 0
        %v6924 = vsel %vm3594, %v6883, 0
        %v6927 = vsel %vm3594, %v6884, 0
        %v6930 = vsel %vm3594, %v6885, 0
        %v6933 = vsel %vm3594, %v6886, 0
        %6935 = vmatprep.subr.bf16.mxu0 0
        %6936 = vmatpush1.bf16.xpose.msra.mxu0 %v6933
        %6937 = vmatprep.subr.bf16.mxu0 0
        %6938 = vmatpush1.bf16.xpose.msra.mxu0 %v6930
        %6939 = vmatprep.subr.bf16.mxu0 0
        %6940 = vmatpush1.bf16.xpose.msra.mxu0 %v6927
        %6941 = vmatprep.subr.bf16.mxu0 0
        %6942 = vmatpush1.bf16.xpose.msra.mxu0 %v6924
        %6943 = vmatprep.subr.bf16.mxu0 0
        %6944 = vmatpush1.bf16.xpose.msra.mxu0 %v6921
        %6945 = vmatprep.subr.bf16.mxu0 0
        %6946 = vmatpush1.bf16.xpose.msra.mxu0 %v6918
        %6947 = vmatprep.subr.bf16.mxu0 0
        %6948 = vmatpush1.bf16.xpose.msra.mxu0 %v6915
        %6949 = vmatprep.subr.bf16.mxu0 0
        %6950 = vmatpush1.bf16.xpose.msra.mxu0 %v6912
        %6951 = vmatprep.subr.bf16.mxu0 0
        %6952 = vmatpush2.bf16.xpose.msra.mxu0 0
        %6953 = vmatprep.subr.bf16.mxu0 0
        %6954 = vmatpush2.bf16.xpose.msra.mxu0 0
        %6955 = vmatprep.subr.bf16.mxu0 0
        %6956 = vmatpush2.bf16.xpose.msra.mxu0 0
        %6957 = vmatprep.subr.bf16.mxu0 0
        %6958 = vmatpush2.bf16.xpose.msra.mxu0 0
        %6959 = vmatprep.subr.bf16.mxu0 0
        %6960 = vmatpush2.bf16.xpose.msra.mxu0 0
        %6961 = vmatprep.subr.bf16.mxu0 0
        %6962 = vmatpush2.bf16.xpose.msra.mxu0 0
        %6963 = vmatprep.subr.bf16.mxu0 0
        %6964 = vmatpush2.bf16.xpose.msra.mxu0 0
        %6965 = vmatprep.subr.bf16.mxu0 0
        %6966 = vmatpush2.bf16.xpose.msra.mxu0 0
        %6967 = vmatprep.mubr.bf16.mxu0 0
        %6968 = vmatmul.mubr.bf16.gmra.mxu0 %v6888
        %v6969 = vpop.f32.mrf.mxu0
        %v6970 = vadd.f32 0.0, %v6969
        %v6971 = vpop.f32.mrf.mxu0
        %v6972 = vpop.f32.mrf.mxu0
        %v6973 = vadd.f32 0.0, %v6972
        %v6974 = vpop.f32.mrf.mxu0
        %6975 = vmatprep.mubr.bf16.mxu0 0
        %6976 = vmatmul.mubr.bf16.gmra.mxu0 %v6891
        %v6977 = vpop.f32.mrf.mxu0
        %v6978 = vadd.f32 0.0, %v6977
        %v6979 = vpop.f32.mrf.mxu0
        %v6980 = vpop.f32.mrf.mxu0
        %v6981 = vadd.f32 0.0, %v6980
        %v6982 = vpop.f32.mrf.mxu0
        %6983 = vmatprep.mubr.bf16.mxu0 0
        %6984 = vmatmul.mubr.bf16.gmra.mxu0 %v6894
        %v6985 = vpop.f32.mrf.mxu0
        %v6986 = vadd.f32 0.0, %v6985
        %v6987 = vpop.f32.mrf.mxu0
        %v6988 = vpop.f32.mrf.mxu0
        %v6989 = vadd.f32 0.0, %v6988
        %v6990 = vpop.f32.mrf.mxu0
        %6991 = vmatprep.mubr.bf16.mxu0 0
        %6992 = vmatmul.mubr.bf16.gmra.mxu0 %v6897
        %v6993 = vpop.f32.mrf.mxu0
        %v6994 = vadd.f32 0.0, %v6993
        %v6995 = vpop.f32.mrf.mxu0
        %v6996 = vpop.f32.mrf.mxu0
        %v6997 = vadd.f32 0.0, %v6996
        %v6998 = vpop.f32.mrf.mxu0
        %6999 = vmatprep.mubr.bf16.mxu0 0
        %7000 = vmatmul.mubr.bf16.gmra.mxu0 %v6900
        %v7001 = vpop.f32.mrf.mxu0
        %v7002 = vadd.f32 0.0, %v7001
        %v7003 = vpop.f32.mrf.mxu0
        %v7004 = vpop.f32.mrf.mxu0
        %v7005 = vadd.f32 0.0, %v7004
        %v7006 = vpop.f32.mrf.mxu0
        %7007 = vmatprep.mubr.bf16.mxu0 0
        %7008 = vmatmul.mubr.bf16.gmra.mxu0 %v6903
        %v7009 = vpop.f32.mrf.mxu0
        %v7010 = vadd.f32 0.0, %v7009
        %v7011 = vpop.f32.mrf.mxu0
        %v7012 = vpop.f32.mrf.mxu0
        %v7013 = vadd.f32 0.0, %v7012
        %v7014 = vpop.f32.mrf.mxu0
        %7015 = vmatprep.mubr.bf16.mxu0 0
        %7016 = vmatmul.mubr.bf16.gmra.mxu0 %v6906
        %v7017 = vpop.f32.mrf.mxu0
        %v7018 = vadd.f32 0.0, %v7017
        %v7019 = vpop.f32.mrf.mxu0
        %v7020 = vpop.f32.mrf.mxu0
        %v7021 = vadd.f32 0.0, %v7020
        %v7022 = vpop.f32.mrf.mxu0
        %7023 = vmatprep.mubr.bf16.mxu0 0
        %7024 = vmatmul.mubr.bf16.gmra.mxu0 %v6909
        %v7025 = vpop.f32.mrf.mxu0
        %v7026 = vadd.f32 0.0, %v7025
        %v7027 = vpop.f32.mrf.mxu0
        %v7028 = vpop.f32.mrf.mxu0
        %v7029 = vadd.f32 0.0, %v7028
        %v7030 = vpop.f32.mrf.mxu0
        %7031 = vdwg.mxu0
        %v7032 = vsel %vm3742, %v6970, -1e+30
        %v7033 = vsel %vm3743, %v6973, -1e+30
        %v7034 = vsel %vm3744, %v6978, -1e+30
        %v7035 = vsel %vm3745, %v6981, -1e+30
        %v7036 = vsel %vm3746, %v6986, -1e+30
        %v7037 = vsel %vm3747, %v6989, -1e+30
        %v7038 = vsel %vm3748, %v6994, -1e+30
        %v7039 = vsel %vm3749, %v6997, -1e+30
        %v7040 = vsel %vm3750, %v7002, -1e+30
        %v7041 = vsel %vm3751, %v7005, -1e+30
        %v7042 = vsel %vm3752, %v7010, -1e+30
        %v7043 = vsel %vm3753, %v7013, -1e+30
        %v7044 = vsel %vm3754, %v7018, -1e+30
        %v7045 = vsel %vm3755, %v7021, -1e+30
        %v7046 = vsel %vm3756, %v7026, -1e+30
        %v7047 = vsel %vm3757, %v7029, -1e+30
        %7048 = vmax.xlane.f32.xlu0 %v7032
        %v7049 = vpop.xlane.xlu0 %7048
        %7050 = vmax.xlane.f32.xlu0 %v7033
        %v7051 = vpop.xlane.xlu0 %7050
        %7052 = vmax.xlane.f32.xlu0 %v7034
        %v7053 = vpop.xlane.xlu0 %7052
        %7054 = vmax.xlane.f32.xlu0 %v7035
        %v7055 = vpop.xlane.xlu0 %7054
        %7056 = vmax.xlane.f32.xlu0 %v7036
        %v7057 = vpop.xlane.xlu0 %7056
        %7058 = vmax.xlane.f32.xlu0 %v7037
        %v7059 = vpop.xlane.xlu0 %7058
        %7060 = vmax.xlane.f32.xlu0 %v7038
        %v7061 = vpop.xlane.xlu0 %7060
        %7062 = vmax.xlane.f32.xlu0 %v7039
        %v7063 = vpop.xlane.xlu0 %7062
        %7064 = vmax.xlane.f32.xlu0 %v7040
        %v7065 = vpop.xlane.xlu0 %7064
        %7066 = vmax.xlane.f32.xlu0 %v7041
        %v7067 = vpop.xlane.xlu0 %7066
        %7068 = vmax.xlane.f32.xlu0 %v7042
        %v7069 = vpop.xlane.xlu0 %7068
        %7070 = vmax.xlane.f32.xlu0 %v7043
        %v7071 = vpop.xlane.xlu0 %7070
        %7072 = vmax.xlane.f32.xlu0 %v7044
        %v7073 = vpop.xlane.xlu0 %7072
        %7074 = vmax.xlane.f32.xlu0 %v7045
        %v7075 = vpop.xlane.xlu0 %7074
        %7076 = vmax.xlane.f32.xlu0 %v7046
        %v7077 = vpop.xlane.xlu0 %7076
        %7078 = vmax.xlane.f32.xlu0 %v7047
        %v7079 = vpop.xlane.xlu0 %7078
        %v7080 = vmax.f32 %v7049, -1e+30
        %v7081 = vmax.f32 %v7051, -1e+30
        %v7082 = vmax.f32 %v7053, -1e+30
        %v7083 = vmax.f32 %v7055, -1e+30
        %v7084 = vmax.f32 %v7057, -1e+30
        %v7085 = vmax.f32 %v7059, -1e+30
        %v7086 = vmax.f32 %v7061, -1e+30
        %v7087 = vmax.f32 %v7063, -1e+30
        %v7088 = vmax.f32 %v7065, -1e+30
        %v7089 = vmax.f32 %v7067, -1e+30
        %v7090 = vmax.f32 %v7069, -1e+30
        %v7091 = vmax.f32 %v7071, -1e+30
        %v7092 = vmax.f32 %v7073, -1e+30
        %v7093 = vmax.f32 %v7075, -1e+30
        %v7094 = vmax.f32 %v7077, -1e+30
        %v7095 = vmax.f32 %v7079, -1e+30
        %v7096 = vsub.f32 -1e+30, %v7080
        %v7097 = vsub.f32 -1e+30, %v7081
        %v7098 = vsub.f32 -1e+30, %v7082
        %v7099 = vsub.f32 -1e+30, %v7083
        %v7100 = vsub.f32 -1e+30, %v7084
        %v7101 = vsub.f32 -1e+30, %v7085
        %v7102 = vsub.f32 -1e+30, %v7086
        %v7103 = vsub.f32 -1e+30, %v7087
        %v7104 = vsub.f32 -1e+30, %v7088
        %v7105 = vsub.f32 -1e+30, %v7089
        %v7106 = vsub.f32 -1e+30, %v7090
        %v7107 = vsub.f32 -1e+30, %v7091
        %v7108 = vsub.f32 -1e+30, %v7092
        %v7109 = vsub.f32 -1e+30, %v7093
        %v7110 = vsub.f32 -1e+30, %v7094
        %v7111 = vsub.f32 -1e+30, %v7095
        %v7112 = vmul.f32 %v7096, 1.442695
        %v7113 = vpow.pop %v7112
        %v7114 = vmul.f32 %v7097, 1.442695
        %v7115 = vpow.pop %v7114
        %v7116 = vmul.f32 %v7098, 1.442695
        %v7117 = vpow.pop %v7116
        %v7118 = vmul.f32 %v7099, 1.442695
        %v7119 = vpow.pop %v7118
        %v7120 = vmul.f32 %v7100, 1.442695
        %v7121 = vpow.pop %v7120
        %v7122 = vmul.f32 %v7101, 1.442695
        %v7123 = vpow.pop %v7122
        %v7124 = vmul.f32 %v7102, 1.442695
        %v7125 = vpow.pop %v7124
        %v7126 = vmul.f32 %v7103, 1.442695
        %v7127 = vpow.pop %v7126
        %v7128 = vmul.f32 %v7104, 1.442695
        %v7129 = vpow.pop %v7128
        %v7130 = vmul.f32 %v7105, 1.442695
        %v7131 = vpow.pop %v7130
        %v7132 = vmul.f32 %v7106, 1.442695
        %v7133 = vpow.pop %v7132
        %v7134 = vmul.f32 %v7107, 1.442695
        %v7135 = vpow.pop %v7134
        %v7136 = vmul.f32 %v7108, 1.442695
        %v7137 = vpow.pop %v7136
        %v7138 = vmul.f32 %v7109, 1.442695
        %v7139 = vpow.pop %v7138
        %v7140 = vmul.f32 %v7110, 1.442695
        %v7141 = vpow.pop %v7140
        %v7142 = vmul.f32 %v7111, 1.442695
        %v7143 = vpow.pop %v7142
        %v7144 = vsub.f32 %v7032, %v7080
        %v7145 = vsub.f32 %v7033, %v7081
        %v7146 = vsub.f32 %v7034, %v7082
        %v7147 = vsub.f32 %v7035, %v7083
        %v7148 = vsub.f32 %v7036, %v7084
        %v7149 = vsub.f32 %v7037, %v7085
        %v7150 = vsub.f32 %v7038, %v7086
        %v7151 = vsub.f32 %v7039, %v7087
        %v7152 = vsub.f32 %v7040, %v7088
        %v7153 = vsub.f32 %v7041, %v7089
        %v7154 = vsub.f32 %v7042, %v7090
        %v7155 = vsub.f32 %v7043, %v7091
        %v7156 = vsub.f32 %v7044, %v7092
        %v7157 = vsub.f32 %v7045, %v7093
        %v7158 = vsub.f32 %v7046, %v7094
        %v7159 = vsub.f32 %v7047, %v7095
        %v7160 = vmul.f32 %v7144, 1.442695
        %v7161 = vpow.pop %v7160
        %v7162 = vmul.f32 %v7145, 1.442695
        %v7163 = vpow.pop %v7162
        %v7164 = vmul.f32 %v7146, 1.442695
        %v7165 = vpow.pop %v7164
        %v7166 = vmul.f32 %v7147, 1.442695
        %v7167 = vpow.pop %v7166
        %v7168 = vmul.f32 %v7148, 1.442695
        %v7169 = vpow.pop %v7168
        %v7170 = vmul.f32 %v7149, 1.442695
        %v7171 = vpow.pop %v7170
        %v7172 = vmul.f32 %v7150, 1.442695
        %v7173 = vpow.pop %v7172
        %v7174 = vmul.f32 %v7151, 1.442695
        %v7175 = vpow.pop %v7174
        %v7176 = vmul.f32 %v7152, 1.442695
        %v7177 = vpow.pop %v7176
        %v7178 = vmul.f32 %v7153, 1.442695
        %v7179 = vpow.pop %v7178
        %v7180 = vmul.f32 %v7154, 1.442695
        %v7181 = vpow.pop %v7180
        %v7182 = vmul.f32 %v7155, 1.442695
        %v7183 = vpow.pop %v7182
        %v7184 = vmul.f32 %v7156, 1.442695
        %v7185 = vpow.pop %v7184
        %v7186 = vmul.f32 %v7157, 1.442695
        %v7187 = vpow.pop %v7186
        %v7188 = vmul.f32 %v7158, 1.442695
        %v7189 = vpow.pop %v7188
        %v7190 = vmul.f32 %v7159, 1.442695
        %v7191 = vpow.pop %v7190
        %v7192 = vmul.f32 %v7113, 0.0
        %v7193 = vmul.f32 %v7115, 0.0
        %v7194 = vmul.f32 %v7117, 0.0
        %v7195 = vmul.f32 %v7119, 0.0
        %v7196 = vmul.f32 %v7121, 0.0
        %v7197 = vmul.f32 %v7123, 0.0
        %v7198 = vmul.f32 %v7125, 0.0
        %v7199 = vmul.f32 %v7127, 0.0
        %v7200 = vmul.f32 %v7129, 0.0
        %v7201 = vmul.f32 %v7131, 0.0
        %v7202 = vmul.f32 %v7133, 0.0
        %v7203 = vmul.f32 %v7135, 0.0
        %v7204 = vmul.f32 %v7137, 0.0
        %v7205 = vmul.f32 %v7139, 0.0
        %v7206 = vmul.f32 %v7141, 0.0
        %v7207 = vmul.f32 %v7143, 0.0
        %7208 = vadd.xlane.f32.xlu0 %v7161
        %v7209 = vpop.xlane.xlu0 %7208
        %7210 = vadd.xlane.f32.xlu0 %v7163
        %v7211 = vpop.xlane.xlu0 %7210
        %7212 = vadd.xlane.f32.xlu0 %v7165
        %v7213 = vpop.xlane.xlu0 %7212
        %7214 = vadd.xlane.f32.xlu0 %v7167
        %v7215 = vpop.xlane.xlu0 %7214
        %7216 = vadd.xlane.f32.xlu0 %v7169
        %v7217 = vpop.xlane.xlu0 %7216
        %7218 = vadd.xlane.f32.xlu0 %v7171
        %v7219 = vpop.xlane.xlu0 %7218
        %7220 = vadd.xlane.f32.xlu0 %v7173
        %v7221 = vpop.xlane.xlu0 %7220
        %7222 = vadd.xlane.f32.xlu0 %v7175
        %v7223 = vpop.xlane.xlu0 %7222
        %7224 = vadd.xlane.f32.xlu0 %v7177
        %v7225 = vpop.xlane.xlu0 %7224
        %7226 = vadd.xlane.f32.xlu0 %v7179
        %v7227 = vpop.xlane.xlu0 %7226
        %7228 = vadd.xlane.f32.xlu0 %v7181
        %v7229 = vpop.xlane.xlu0 %7228
        %7230 = vadd.xlane.f32.xlu0 %v7183
        %v7231 = vpop.xlane.xlu0 %7230
        %7232 = vadd.xlane.f32.xlu0 %v7185
        %v7233 = vpop.xlane.xlu0 %7232
        %7234 = vadd.xlane.f32.xlu0 %v7187
        %v7235 = vpop.xlane.xlu0 %7234
        %7236 = vadd.xlane.f32.xlu0 %v7189
        %v7237 = vpop.xlane.xlu0 %7236
        %7238 = vadd.xlane.f32.xlu0 %v7191
        %v7239 = vpop.xlane.xlu0 %7238
        %v7240 = vadd.f32 %v7192, %v7209
        %v7241 = vadd.f32 %v7193, %v7211
        %v7242 = vadd.f32 %v7194, %v7213
        %v7243 = vadd.f32 %v7195, %v7215
        %v7244 = vadd.f32 %v7196, %v7217
        %v7245 = vadd.f32 %v7197, %v7219
        %v7246 = vadd.f32 %v7198, %v7221
        %v7247 = vadd.f32 %v7199, %v7223
        %v7248 = vadd.f32 %v7200, %v7225
        %v7249 = vadd.f32 %v7201, %v7227
        %v7250 = vadd.f32 %v7202, %v7229
        %v7251 = vadd.f32 %v7203, %v7231
        %v7252 = vadd.f32 %v7204, %v7233
        %v7253 = vadd.f32 %v7205, %v7235
        %v7254 = vadd.f32 %v7206, %v7237
        %v7255 = vadd.f32 %v7207, %v7239
        %v7256 = vpack.c.bf16 %v7163, %v7161
        %v7257 = vpack.c.bf16 %v7167, %v7165
        %v7258 = vpack.c.bf16 %v7171, %v7169
        %v7259 = vpack.c.bf16 %v7175, %v7173
        %v7260 = vpack.c.bf16 %v7179, %v7177
        %v7261 = vpack.c.bf16 %v7183, %v7181
        %v7262 = vpack.c.bf16 %v7187, %v7185
        %v7263 = vpack.c.bf16 %v7191, %v7189
        %v7280 = vunpack.c.l.b16 %v6791
        %v7281 = vunpack.c.l.b16 %v6792
        %v7282 = vunpack.c.l.b16 %v6793
        %v7283 = vunpack.c.l.b16 %v6794
        %v7284 = vunpack.c.l.b16 %v6795
        %v7285 = vunpack.c.l.b16 %v6796
        %v7286 = vunpack.c.l.b16 %v6797
        %v7287 = vunpack.c.l.b16 %v6798
        %v7288 = vunpack.c.l.b16 %v6799
        %v7289 = vunpack.c.l.b16 %v6800
        %v7290 = vunpack.c.l.b16 %v6801
        %v7291 = vunpack.c.l.b16 %v6802
        %v7292 = vunpack.c.l.b16 %v6803
        %v7293 = vunpack.c.l.b16 %v6804
        %v7294 = vunpack.c.l.b16 %v6805
        %v7295 = vunpack.c.l.b16 %v6806
        %v7296 = vpack.c.b16 %v7281, %v7280
        %v7297 = vpack.c.b16 %v7283, %v7282
        %v7298 = vpack.c.b16 %v7285, %v7284
        %v7299 = vpack.c.b16 %v7287, %v7286
        %v7300 = vpack.c.b16 %v7289, %v7288
        %v7301 = vpack.c.b16 %v7291, %v7290
        %v7302 = vpack.c.b16 %v7293, %v7292
        %v7303 = vpack.c.b16 %v7295, %v7294
        %7312 = vmatprep.subr.bf16.mxu0 0
        %7313 = vmatpush1.bf16.msra.mxu0 %v7303
        %7314 = vmatprep.subr.bf16.mxu0 0
        %7315 = vmatpush1.bf16.msra.mxu0 %v7302
        %7316 = vmatprep.subr.bf16.mxu0 0
        %7317 = vmatpush1.bf16.msra.mxu0 %v7301
        %7318 = vmatprep.subr.bf16.mxu0 0
        %7319 = vmatpush1.bf16.msra.mxu0 %v7300
        %7320 = vmatprep.subr.bf16.mxu0 0
        %7321 = vmatpush1.bf16.msra.mxu0 %v7299
        %7322 = vmatprep.subr.bf16.mxu0 0
        %7323 = vmatpush1.bf16.msra.mxu0 %v7298
        %7324 = vmatprep.subr.bf16.mxu0 0
        %7325 = vmatpush1.bf16.msra.mxu0 %v7297
        %7326 = vmatprep.subr.bf16.mxu0 0
        %7327 = vmatpush1.bf16.msra.mxu0 %v7296
        %7328 = vmatprep.subr.bf16.mxu0 0
        %7329 = vmatpush2.bf16.msra.mxu0 0
        %7330 = vmatprep.subr.bf16.mxu0 0
        %7331 = vmatpush2.bf16.msra.mxu0 0
        %7332 = vmatprep.subr.bf16.mxu0 0
        %7333 = vmatpush2.bf16.msra.mxu0 0
        %7334 = vmatprep.subr.bf16.mxu0 0
        %7335 = vmatpush2.bf16.msra.mxu0 0
        %7336 = vmatprep.subr.bf16.mxu0 0
        %7337 = vmatpush2.bf16.msra.mxu0 0
        %7338 = vmatprep.subr.bf16.mxu0 0
        %7339 = vmatpush2.bf16.msra.mxu0 0
        %7340 = vmatprep.subr.bf16.mxu0 0
        %7341 = vmatpush2.bf16.msra.mxu0 0
        %7342 = vmatprep.subr.bf16.mxu0 0
        %7343 = vmatpush2.bf16.msra.mxu0 0
        %7344 = vmatprep.mubr.bf16.mxu0 0
        %7345 = vmatmul.mubr.bf16.gmra.mxu0 %v7256
        %v7346 = vpop.f32.mrf.mxu0
        %v7347 = vadd.f32 0.0, %v7346
        %v7348 = vpop.f32.mrf.mxu0
        %v7349 = vpop.f32.mrf.mxu0
        %v7350 = vadd.f32 0.0, %v7349
        %v7351 = vpop.f32.mrf.mxu0
        %7352 = vmatprep.mubr.bf16.mxu0 0
        %7353 = vmatmul.mubr.bf16.gmra.mxu0 %v7257
        %v7354 = vpop.f32.mrf.mxu0
        %v7355 = vadd.f32 0.0, %v7354
        %v7356 = vpop.f32.mrf.mxu0
        %v7357 = vpop.f32.mrf.mxu0
        %v7358 = vadd.f32 0.0, %v7357
        %v7359 = vpop.f32.mrf.mxu0
        %7360 = vmatprep.mubr.bf16.mxu0 0
        %7361 = vmatmul.mubr.bf16.gmra.mxu0 %v7258
        %v7362 = vpop.f32.mrf.mxu0
        %v7363 = vadd.f32 0.0, %v7362
        %v7364 = vpop.f32.mrf.mxu0
        %v7365 = vpop.f32.mrf.mxu0
        %v7366 = vadd.f32 0.0, %v7365
        %v7367 = vpop.f32.mrf.mxu0
        %7368 = vmatprep.mubr.bf16.mxu0 0
        %7369 = vmatmul.mubr.bf16.gmra.mxu0 %v7259
        %v7370 = vpop.f32.mrf.mxu0
        %v7371 = vadd.f32 0.0, %v7370
        %v7372 = vpop.f32.mrf.mxu0
        %v7373 = vpop.f32.mrf.mxu0
        %v7374 = vadd.f32 0.0, %v7373
        %v7375 = vpop.f32.mrf.mxu0
        %7376 = vmatprep.mubr.bf16.mxu0 0
        %7377 = vmatmul.mubr.bf16.gmra.mxu0 %v7260
        %v7378 = vpop.f32.mrf.mxu0
        %v7379 = vadd.f32 0.0, %v7378
        %v7380 = vpop.f32.mrf.mxu0
        %v7381 = vpop.f32.mrf.mxu0
        %v7382 = vadd.f32 0.0, %v7381
        %v7383 = vpop.f32.mrf.mxu0
        %7384 = vmatprep.mubr.bf16.mxu0 0
        %7385 = vmatmul.mubr.bf16.gmra.mxu0 %v7261
        %v7386 = vpop.f32.mrf.mxu0
        %v7387 = vadd.f32 0.0, %v7386
        %v7388 = vpop.f32.mrf.mxu0
        %v7389 = vpop.f32.mrf.mxu0
        %v7390 = vadd.f32 0.0, %v7389
        %v7391 = vpop.f32.mrf.mxu0
        %7392 = vmatprep.mubr.bf16.mxu0 0
        %7393 = vmatmul.mubr.bf16.gmra.mxu0 %v7262
        %v7394 = vpop.f32.mrf.mxu0
        %v7395 = vadd.f32 0.0, %v7394
        %v7396 = vpop.f32.mrf.mxu0
        %v7397 = vpop.f32.mrf.mxu0
        %v7398 = vadd.f32 0.0, %v7397
        %v7399 = vpop.f32.mrf.mxu0
        %7400 = vmatprep.mubr.bf16.mxu0 0
        %7401 = vmatmul.mubr.bf16.gmra.mxu0 %v7263
        %v7402 = vpop.f32.mrf.mxu0
        %v7403 = vadd.f32 0.0, %v7402
        %v7404 = vpop.f32.mrf.mxu0
        %v7405 = vpop.f32.mrf.mxu0
        %v7406 = vadd.f32 0.0, %v7405
        %v7407 = vpop.f32.mrf.mxu0
        %7408 = vdwg.mxu0
        %v7409 = vadd.f32 %v7192, %v7347
        %v7410 = vadd.f32 %v7193, %v7350
        %v7411 = vadd.f32 %v7194, %v7355
        %v7412 = vadd.f32 %v7195, %v7358
        %v7413 = vadd.f32 %v7196, %v7363
        %v7414 = vadd.f32 %v7197, %v7366
        %v7415 = vadd.f32 %v7198, %v7371
        %v7416 = vadd.f32 %v7199, %v7374
        %v7417 = vadd.f32 %v7200, %v7379
        %v7418 = vadd.f32 %v7201, %v7382
        %v7419 = vadd.f32 %v7202, %v7387
        %v7420 = vadd.f32 %v7203, %v7390
        %v7421 = vadd.f32 %v7204, %v7395
        %v7422 = vadd.f32 %v7205, %v7398
        %v7423 = vadd.f32 %v7206, %v7403
        %v7424 = vadd.f32 %v7207, %v7406
        %v7425 = vrcp.pop %v7240
        %v7426 = vrcp.pop %v7241
        %v7427 = vrcp.pop %v7242
        %v7428 = vrcp.pop %v7243
        %v7429 = vrcp.pop %v7244
        %v7430 = vrcp.pop %v7245
        %v7431 = vrcp.pop %v7246
        %v7432 = vrcp.pop %v7247
        %v7433 = vrcp.pop %v7248
        %v7434 = vrcp.pop %v7249
        %v7435 = vrcp.pop %v7250
        %v7436 = vrcp.pop %v7251
        %v7437 = vrcp.pop %v7252
        %v7438 = vrcp.pop %v7253
        %v7439 = vrcp.pop %v7254
        %v7440 = vrcp.pop %v7255
        %v7441 = vmul.f32 %v7409, %v7425
        %v7442 = vmul.f32 %v7410, %v7426
        %v7443 = vmul.f32 %v7411, %v7427
        %v7444 = vmul.f32 %v7412, %v7428
        %v7445 = vmul.f32 %v7413, %v7429
        %v7446 = vmul.f32 %v7414, %v7430
        %v7447 = vmul.f32 %v7415, %v7431
        %v7448 = vmul.f32 %v7416, %v7432
        %v7449 = vmul.f32 %v7417, %v7433
        %v7450 = vmul.f32 %v7418, %v7434
        %v7451 = vmul.f32 %v7419, %v7435
        %v7452 = vmul.f32 %v7420, %v7436
        %v7453 = vmul.f32 %v7421, %v7437
        %v7454 = vmul.f32 %v7422, %v7438
        %v7455 = vmul.f32 %v7423, %v7439
        %v7456 = vmul.f32 %v7424, %v7440
        %v7457 = vpack.c.bf16 %v7442, %v7441
        %v7458 = vpack.c.bf16 %v7444, %v7443
        %v7459 = vpack.c.bf16 %v7446, %v7445
        %v7460 = vpack.c.bf16 %v7448, %v7447
        %v7461 = vpack.c.bf16 %v7450, %v7449
        %v7462 = vpack.c.bf16 %v7452, %v7451
        %v7463 = vpack.c.bf16 %v7454, %v7453
        %v7464 = vpack.c.bf16 %v7456, %v7455
        %v7473 = vunpack.c.l.b16 %v7457
        %v7474 = vunpack.c.h.b16 %v7457
        %v7475 = vunpack.c.l.b16 %v7458
        %v7476 = vunpack.c.h.b16 %v7458
        %v7477 = vunpack.c.l.b16 %v7459
        %v7478 = vunpack.c.h.b16 %v7459
        %v7479 = vunpack.c.l.b16 %v7460
        %v7480 = vunpack.c.h.b16 %v7460
        %v7481 = vunpack.c.l.b16 %v7461
        %v7482 = vunpack.c.h.b16 %v7461
        %v7483 = vunpack.c.l.b16 %v7462
        %v7484 = vunpack.c.h.b16 %v7462
        %v7485 = vunpack.c.l.b16 %v7463
        %v7486 = vunpack.c.h.b16 %v7463
        %v7487 = vunpack.c.l.b16 %v7464
        %v7488 = vunpack.c.h.b16 %v7464
        %v7489 = vpack.c.b16 %v7473, %v7473
        %v7490 = vpack.c.b16 %v7474, %v7474
        %v7491 = vpack.c.b16 %v7475, %v7475
        %v7492 = vpack.c.b16 %v7476, %v7476
        %v7493 = vpack.c.b16 %v7477, %v7477
        %v7494 = vpack.c.b16 %v7478, %v7478
        %v7495 = vpack.c.b16 %v7479, %v7479
        %v7496 = vpack.c.b16 %v7480, %v7480
        %v7497 = vpack.c.b16 %v7481, %v7481
        %v7498 = vpack.c.b16 %v7482, %v7482
        %v7499 = vpack.c.b16 %v7483, %v7483
        %v7500 = vpack.c.b16 %v7484, %v7484
        %v7501 = vpack.c.b16 %v7485, %v7485
        %v7502 = vpack.c.b16 %v7486, %v7486
        %v7503 = vpack.c.b16 %v7487, %v7487
        %v7504 = vpack.c.b16 %v7488, %v7488
        %7521 = vst.msk [vmem:[#allocation4 + $0x8] sm:$0xf] %vm4247, %v7489
        %7522 = vst.msk [vmem:[#allocation4 + $0x14] sm:$0xf] %vm4247, %v7490
        %7523 = vst.msk [vmem:[#allocation4 + $0x20] sm:$0xf] %vm4247, %v7491
        %7524 = vst.msk [vmem:[#allocation4 + $0x2c] sm:$0xf] %vm4247, %v7492
        %7525 = vst.msk [vmem:[#allocation4 + $0x38] sm:$0xf] %vm4247, %v7493
        %7526 = vst.msk [vmem:[#allocation4 + $0x44] sm:$0xf] %vm4247, %v7494
        %7527 = vst.msk [vmem:[#allocation4 + $0x50] sm:$0xf] %vm4247, %v7495
        %7528 = vst.msk [vmem:[#allocation4 + $0x5c] sm:$0xf] %vm4247, %v7496
        %7529 = vst.msk [vmem:[#allocation4 + $0x68] sm:$0xf] %vm4247, %v7497
        %7530 = vst.msk [vmem:[#allocation4 + $0x74] sm:$0xf] %vm4247, %v7498
        %7531 = vst.msk [vmem:[#allocation4 + $0x80] sm:$0xf] %vm4247, %v7499
        %7532 = vst.msk [vmem:[#allocation4 + $0x8c] sm:$0xf] %vm4247, %v7500
        %7533 = vst.msk [vmem:[#allocation4 + $0x98] sm:$0xf] %vm4247, %v7501
        %7534 = vst.msk [vmem:[#allocation4 + $0xa4] sm:$0xf] %vm4247, %v7502
        %7535 = vst.msk [vmem:[#allocation4 + $0xb0] sm:$0xf] %vm4247, %v7503
        %7536 = vst.msk [vmem:[#allocation4 + $0xbc] sm:$0xf] %vm4247, %v7504
        %v7537 = vld [vmem:[#allocation3 + $0x8] sm:$0xf]
        %v7538 = vld [vmem:[#allocation3 + $0x14] sm:$0xf]
        %v7539 = vld [vmem:[#allocation3 + $0x20] sm:$0xf]
        %v7540 = vld [vmem:[#allocation3 + $0x2c] sm:$0xf]
        %v7541 = vld [vmem:[#allocation3 + $0x38] sm:$0xf]
        %v7542 = vld [vmem:[#allocation3 + $0x44] sm:$0xf]
        %v7543 = vld [vmem:[#allocation3 + $0x50] sm:$0xf]
        %v7544 = vld [vmem:[#allocation3 + $0x5c] sm:$0xf]
        %v7545 = vld [vmem:[#allocation3 + $0x68] sm:$0xf]
        %v7546 = vld [vmem:[#allocation3 + $0x74] sm:$0xf]
        %v7547 = vld [vmem:[#allocation3 + $0x80] sm:$0xf]
        %v7548 = vld [vmem:[#allocation3 + $0x8c] sm:$0xf]
        %v7549 = vld [vmem:[#allocation3 + $0x98] sm:$0xf]
        %v7550 = vld [vmem:[#allocation3 + $0xa4] sm:$0xf]
        %v7551 = vld [vmem:[#allocation3 + $0xb0] sm:$0xf]
        %v7552 = vld [vmem:[#allocation3 + $0xbc] sm:$0xf]
        %v7553 = vld [vmem:[%s3481 + $0x8] sm:$0xf]
        %v7554 = vld [vmem:[%s3481 + $0x20] sm:$0xf]
        %v7555 = vld [vmem:[%s3481 + $0x38] sm:$0xf]
        %v7556 = vld [vmem:[%s3481 + $0x50] sm:$0xf]
        %v7557 = vld [vmem:[%s3481 + $0x68] sm:$0xf]
        %v7558 = vld [vmem:[%s3481 + $0x80] sm:$0xf]
        %v7559 = vld [vmem:[%s3481 + $0x98] sm:$0xf]
        %v7560 = vld [vmem:[%s3481 + $0xb0] sm:$0xf]
        %v7561 = vld [vmem:[%s3481 + $0xc8] sm:$0xf]
        %v7562 = vld [vmem:[%s3481 + $0xe0] sm:$0xf]
        %v7563 = vld [vmem:[%s3481 + $0xf8] sm:$0xf]
        %v7564 = vld [vmem:[%s3481 + $0x110] sm:$0xf]
        %v7565 = vld [vmem:[%s3481 + $0x128] sm:$0xf]
        %v7566 = vld [vmem:[%s3481 + $0x140] sm:$0xf]
        %v7567 = vld [vmem:[%s3481 + $0x158] sm:$0xf]
        %v7568 = vld [vmem:[%s3481 + $0x170] sm:$0xf]
        %v7569 = vld [vmem:[%s3481 + $0x14] sm:$0xf]
        %v7570 = vld [vmem:[%s3481 + $0x2c] sm:$0xf]
        %v7571 = vld [vmem:[%s3481 + $0x44] sm:$0xf]
        %v7572 = vld [vmem:[%s3481 + $0x5c] sm:$0xf]
        %v7573 = vld [vmem:[%s3481 + $0x74] sm:$0xf]
        %v7574 = vld [vmem:[%s3481 + $0x8c] sm:$0xf]
        %v7575 = vld [vmem:[%s3481 + $0xa4] sm:$0xf]
        %v7576 = vld [vmem:[%s3481 + $0xbc] sm:$0xf]
        %v7577 = vld [vmem:[%s3481 + $0xd4] sm:$0xf]
        %v7578 = vld [vmem:[%s3481 + $0xec] sm:$0xf]
        %v7579 = vld [vmem:[%s3481 + $0x104] sm:$0xf]
        %v7580 = vld [vmem:[%s3481 + $0x11c] sm:$0xf]
        %v7581 = vld [vmem:[%s3481 + $0x134] sm:$0xf]
        %v7582 = vld [vmem:[%s3481 + $0x14c] sm:$0xf]
        %v7583 = vld [vmem:[%s3481 + $0x164] sm:$0xf]
        %v7584 = vld [vmem:[%s3481 + $0x17c] sm:$0xf]
        %v7601 = vunpack.c.l.b16 %v7537
        %v7602 = vunpack.c.l.b16 %v7538
        %v7603 = vunpack.c.l.b16 %v7539
        %v7604 = vunpack.c.l.b16 %v7540
        %v7605 = vunpack.c.l.b16 %v7541
        %v7606 = vunpack.c.l.b16 %v7542
        %v7607 = vunpack.c.l.b16 %v7543
        %v7608 = vunpack.c.l.b16 %v7544
        %v7609 = vunpack.c.l.b16 %v7545
        %v7610 = vunpack.c.l.b16 %v7546
        %v7611 = vunpack.c.l.b16 %v7547
        %v7612 = vunpack.c.l.b16 %v7548
        %v7613 = vunpack.c.l.b16 %v7549
        %v7614 = vunpack.c.l.b16 %v7550
        %v7615 = vunpack.c.l.b16 %v7551
        %v7616 = vunpack.c.l.b16 %v7552
        %v7617 = vpack.c.b16 %v7602, %v7601
        %v7618 = vpack.c.b16 %v7604, %v7603
        %v7619 = vpack.c.b16 %v7606, %v7605
        %v7620 = vpack.c.b16 %v7608, %v7607
        %v7621 = vpack.c.b16 %v7610, %v7609
        %v7622 = vpack.c.b16 %v7612, %v7611
        %v7623 = vpack.c.b16 %v7614, %v7613
        %v7624 = vpack.c.b16 %v7616, %v7615
        %7625 = vrot.lane.b32.xlu0 %v7617, 64
        %v7626 = vpop.permute.xlu0 %7625
        %7627 = vrot.lane.b32.xlu0 %v7618, 64
        %v7628 = vpop.permute.xlu0 %7627
        %7629 = vrot.lane.b32.xlu0 %v7619, 64
        %v7630 = vpop.permute.xlu0 %7629
        %7631 = vrot.lane.b32.xlu0 %v7620, 64
        %v7632 = vpop.permute.xlu0 %7631
        %7633 = vrot.lane.b32.xlu0 %v7621, 64
        %v7634 = vpop.permute.xlu0 %7633
        %7635 = vrot.lane.b32.xlu0 %v7622, 64
        %v7636 = vpop.permute.xlu0 %7635
        %7637 = vrot.lane.b32.xlu0 %v7623, 64
        %v7638 = vpop.permute.xlu0 %7637
        %7639 = vrot.lane.b32.xlu0 %v7624, 64
        %v7640 = vpop.permute.xlu0 %7639
        %v7657 = vunpack.c.l.b16 %v7553
        %v7658 = vunpack.c.l.b16 %v7554
        %v7659 = vunpack.c.l.b16 %v7555
        %v7660 = vunpack.c.l.b16 %v7556
        %v7661 = vunpack.c.l.b16 %v7557
        %v7662 = vunpack.c.l.b16 %v7558
        %v7663 = vunpack.c.l.b16 %v7559
        %v7664 = vunpack.c.l.b16 %v7560
        %v7665 = vunpack.c.l.b16 %v7561
        %v7666 = vunpack.c.l.b16 %v7562
        %v7667 = vunpack.c.l.b16 %v7563
        %v7668 = vunpack.c.l.b16 %v7564
        %v7669 = vunpack.c.l.b16 %v7565
        %v7670 = vunpack.c.l.b16 %v7566
        %v7671 = vunpack.c.l.b16 %v7567
        %v7672 = vunpack.c.l.b16 %v7568
        %v7673 = vpack.c.b16 %v7658, %v7657
        %v7674 = vpack.c.b16 %v7660, %v7659
        %v7675 = vpack.c.b16 %v7662, %v7661
        %v7676 = vpack.c.b16 %v7664, %v7663
        %v7677 = vpack.c.b16 %v7666, %v7665
        %v7678 = vpack.c.b16 %v7668, %v7667
        %v7679 = vpack.c.b16 %v7670, %v7669
        %v7680 = vpack.c.b16 %v7672, %v7671
        %7681 = vrot.lane.b32.xlu0 %v7673, 64
        %v7682 = vpop.permute.xlu0 %7681
        %7683 = vrot.lane.b32.xlu0 %v7674, 64
        %v7684 = vpop.permute.xlu0 %7683
        %7685 = vrot.lane.b32.xlu0 %v7675, 64
        %v7686 = vpop.permute.xlu0 %7685
        %7687 = vrot.lane.b32.xlu0 %v7676, 64
        %v7688 = vpop.permute.xlu0 %7687
        %7689 = vrot.lane.b32.xlu0 %v7677, 64
        %v7690 = vpop.permute.xlu0 %7689
        %7691 = vrot.lane.b32.xlu0 %v7678, 64
        %v7692 = vpop.permute.xlu0 %7691
        %7693 = vrot.lane.b32.xlu0 %v7679, 64
        %v7694 = vpop.permute.xlu0 %7693
        %7695 = vrot.lane.b32.xlu0 %v7680, 64
        %v7696 = vpop.permute.xlu0 %7695
        %v7698 = vsel %vm3594, %v7626, 0
        %v7701 = vsel %vm3594, %v7628, 0
        %v7704 = vsel %vm3594, %v7630, 0
        %v7707 = vsel %vm3594, %v7632, 0
        %v7710 = vsel %vm3594, %v7634, 0
        %v7713 = vsel %vm3594, %v7636, 0
        %v7716 = vsel %vm3594, %v7638, 0
        %v7719 = vsel %vm3594, %v7640, 0
        %v7722 = vsel %vm3594, %v7682, 0
        %v7725 = vsel %vm3594, %v7684, 0
        %v7728 = vsel %vm3594, %v7686, 0
        %v7731 = vsel %vm3594, %v7688, 0
        %v7734 = vsel %vm3594, %v7690, 0
        %v7737 = vsel %vm3594, %v7692, 0
        %v7740 = vsel %vm3594, %v7694, 0
        %v7743 = vsel %vm3594, %v7696, 0
        %7745 = vmatprep.subr.bf16.mxu0 0
        %7746 = vmatpush1.bf16.xpose.msra.mxu0 %v7743
        %7747 = vmatprep.subr.bf16.mxu0 0
        %7748 = vmatpush1.bf16.xpose.msra.mxu0 %v7740
        %7749 = vmatprep.subr.bf16.mxu0 0
        %7750 = vmatpush1.bf16.xpose.msra.mxu0 %v7737
        %7751 = vmatprep.subr.bf16.mxu0 0
        %7752 = vmatpush1.bf16.xpose.msra.mxu0 %v7734
        %7753 = vmatprep.subr.bf16.mxu0 0
        %7754 = vmatpush1.bf16.xpose.msra.mxu0 %v7731
        %7755 = vmatprep.subr.bf16.mxu0 0
        %7756 = vmatpush1.bf16.xpose.msra.mxu0 %v7728
        %7757 = vmatprep.subr.bf16.mxu0 0
        %7758 = vmatpush1.bf16.xpose.msra.mxu0 %v7725
        %7759 = vmatprep.subr.bf16.mxu0 0
        %7760 = vmatpush1.bf16.xpose.msra.mxu0 %v7722
        %7761 = vmatprep.subr.bf16.mxu0 0
        %7762 = vmatpush2.bf16.xpose.msra.mxu0 0
        %7763 = vmatprep.subr.bf16.mxu0 0
        %7764 = vmatpush2.bf16.xpose.msra.mxu0 0
        %7765 = vmatprep.subr.bf16.mxu0 0
        %7766 = vmatpush2.bf16.xpose.msra.mxu0 0
        %7767 = vmatprep.subr.bf16.mxu0 0
        %7768 = vmatpush2.bf16.xpose.msra.mxu0 0
        %7769 = vmatprep.subr.bf16.mxu0 0
        %7770 = vmatpush2.bf16.xpose.msra.mxu0 0
        %7771 = vmatprep.subr.bf16.mxu0 0
        %7772 = vmatpush2.bf16.xpose.msra.mxu0 0
        %7773 = vmatprep.subr.bf16.mxu0 0
        %7774 = vmatpush2.bf16.xpose.msra.mxu0 0
        %7775 = vmatprep.subr.bf16.mxu0 0
        %7776 = vmatpush2.bf16.xpose.msra.mxu0 0
        %7777 = vmatprep.mubr.bf16.mxu0 0
        %7778 = vmatmul.mubr.bf16.gmra.mxu0 %v7698
        %v7779 = vpop.f32.mrf.mxu0
        %v7780 = vadd.f32 0.0, %v7779
        %v7781 = vpop.f32.mrf.mxu0
        %v7782 = vpop.f32.mrf.mxu0
        %v7783 = vadd.f32 0.0, %v7782
        %v7784 = vpop.f32.mrf.mxu0
        %7785 = vmatprep.mubr.bf16.mxu0 0
        %7786 = vmatmul.mubr.bf16.gmra.mxu0 %v7701
        %v7787 = vpop.f32.mrf.mxu0
        %v7788 = vadd.f32 0.0, %v7787
        %v7789 = vpop.f32.mrf.mxu0
        %v7790 = vpop.f32.mrf.mxu0
        %v7791 = vadd.f32 0.0, %v7790
        %v7792 = vpop.f32.mrf.mxu0
        %7793 = vmatprep.mubr.bf16.mxu0 0
        %7794 = vmatmul.mubr.bf16.gmra.mxu0 %v7704
        %v7795 = vpop.f32.mrf.mxu0
        %v7796 = vadd.f32 0.0, %v7795
        %v7797 = vpop.f32.mrf.mxu0
        %v7798 = vpop.f32.mrf.mxu0
        %v7799 = vadd.f32 0.0, %v7798
        %v7800 = vpop.f32.mrf.mxu0
        %7801 = vmatprep.mubr.bf16.mxu0 0
        %7802 = vmatmul.mubr.bf16.gmra.mxu0 %v7707
        %v7803 = vpop.f32.mrf.mxu0
        %v7804 = vadd.f32 0.0, %v7803
        %v7805 = vpop.f32.mrf.mxu0
        %v7806 = vpop.f32.mrf.mxu0
        %v7807 = vadd.f32 0.0, %v7806
        %v7808 = vpop.f32.mrf.mxu0
        %7809 = vmatprep.mubr.bf16.mxu0 0
        %7810 = vmatmul.mubr.bf16.gmra.mxu0 %v7710
        %v7811 = vpop.f32.mrf.mxu0
        %v7812 = vadd.f32 0.0, %v7811
        %v7813 = vpop.f32.mrf.mxu0
        %v7814 = vpop.f32.mrf.mxu0
        %v7815 = vadd.f32 0.0, %v7814
        %v7816 = vpop.f32.mrf.mxu0
        %7817 = vmatprep.mubr.bf16.mxu0 0
        %7818 = vmatmul.mubr.bf16.gmra.mxu0 %v7713
        %v7819 = vpop.f32.mrf.mxu0
        %v7820 = vadd.f32 0.0, %v7819
        %v7821 = vpop.f32.mrf.mxu0
        %v7822 = vpop.f32.mrf.mxu0
        %v7823 = vadd.f32 0.0, %v7822
        %v7824 = vpop.f32.mrf.mxu0
        %7825 = vmatprep.mubr.bf16.mxu0 0
        %7826 = vmatmul.mubr.bf16.gmra.mxu0 %v7716
        %v7827 = vpop.f32.mrf.mxu0
        %v7828 = vadd.f32 0.0, %v7827
        %v7829 = vpop.f32.mrf.mxu0
        %v7830 = vpop.f32.mrf.mxu0
        %v7831 = vadd.f32 0.0, %v7830
        %v7832 = vpop.f32.mrf.mxu0
        %7833 = vmatprep.mubr.bf16.mxu0 0
        %7834 = vmatmul.mubr.bf16.gmra.mxu0 %v7719
        %v7835 = vpop.f32.mrf.mxu0
        %v7836 = vadd.f32 0.0, %v7835
        %v7837 = vpop.f32.mrf.mxu0
        %v7838 = vpop.f32.mrf.mxu0
        %v7839 = vadd.f32 0.0, %v7838
        %v7840 = vpop.f32.mrf.mxu0
        %7841 = vdwg.mxu0
        %v7842 = vsel %vm3742, %v7780, -1e+30
        %v7843 = vsel %vm3743, %v7783, -1e+30
        %v7844 = vsel %vm3744, %v7788, -1e+30
        %v7845 = vsel %vm3745, %v7791, -1e+30
        %v7846 = vsel %vm3746, %v7796, -1e+30
        %v7847 = vsel %vm3747, %v7799, -1e+30
        %v7848 = vsel %vm3748, %v7804, -1e+30
        %v7849 = vsel %vm3749, %v7807, -1e+30
        %v7850 = vsel %vm3750, %v7812, -1e+30
        %v7851 = vsel %vm3751, %v7815, -1e+30
        %v7852 = vsel %vm3752, %v7820, -1e+30
        %v7853 = vsel %vm3753, %v7823, -1e+30
        %v7854 = vsel %vm3754, %v7828, -1e+30
        %v7855 = vsel %vm3755, %v7831, -1e+30
        %v7856 = vsel %vm3756, %v7836, -1e+30
        %v7857 = vsel %vm3757, %v7839, -1e+30
        %7858 = vmax.xlane.f32.xlu0 %v7842
        %v7859 = vpop.xlane.xlu0 %7858
        %7860 = vmax.xlane.f32.xlu0 %v7843
        %v7861 = vpop.xlane.xlu0 %7860
        %7862 = vmax.xlane.f32.xlu0 %v7844
        %v7863 = vpop.xlane.xlu0 %7862
        %7864 = vmax.xlane.f32.xlu0 %v7845
        %v7865 = vpop.xlane.xlu0 %7864
        %7866 = vmax.xlane.f32.xlu0 %v7846
        %v7867 = vpop.xlane.xlu0 %7866
        %7868 = vmax.xlane.f32.xlu0 %v7847
        %v7869 = vpop.xlane.xlu0 %7868
        %7870 = vmax.xlane.f32.xlu0 %v7848
        %v7871 = vpop.xlane.xlu0 %7870
        %7872 = vmax.xlane.f32.xlu0 %v7849
        %v7873 = vpop.xlane.xlu0 %7872
        %7874 = vmax.xlane.f32.xlu0 %v7850
        %v7875 = vpop.xlane.xlu0 %7874
        %7876 = vmax.xlane.f32.xlu0 %v7851
        %v7877 = vpop.xlane.xlu0 %7876
        %7878 = vmax.xlane.f32.xlu0 %v7852
        %v7879 = vpop.xlane.xlu0 %7878
        %7880 = vmax.xlane.f32.xlu0 %v7853
        %v7881 = vpop.xlane.xlu0 %7880
        %7882 = vmax.xlane.f32.xlu0 %v7854
        %v7883 = vpop.xlane.xlu0 %7882
        %7884 = vmax.xlane.f32.xlu0 %v7855
        %v7885 = vpop.xlane.xlu0 %7884
        %7886 = vmax.xlane.f32.xlu0 %v7856
        %v7887 = vpop.xlane.xlu0 %7886
        %7888 = vmax.xlane.f32.xlu0 %v7857
        %v7889 = vpop.xlane.xlu0 %7888
        %v7890 = vmax.f32 %v7859, -1e+30
        %v7891 = vmax.f32 %v7861, -1e+30
        %v7892 = vmax.f32 %v7863, -1e+30
        %v7893 = vmax.f32 %v7865, -1e+30
        %v7894 = vmax.f32 %v7867, -1e+30
        %v7895 = vmax.f32 %v7869, -1e+30
        %v7896 = vmax.f32 %v7871, -1e+30
        %v7897 = vmax.f32 %v7873, -1e+30
        %v7898 = vmax.f32 %v7875, -1e+30
        %v7899 = vmax.f32 %v7877, -1e+30
        %v7900 = vmax.f32 %v7879, -1e+30
        %v7901 = vmax.f32 %v7881, -1e+30
        %v7902 = vmax.f32 %v7883, -1e+30
        %v7903 = vmax.f32 %v7885, -1e+30
        %v7904 = vmax.f32 %v7887, -1e+30
        %v7905 = vmax.f32 %v7889, -1e+30
        %v7906 = vsub.f32 -1e+30, %v7890
        %v7907 = vsub.f32 -1e+30, %v7891
        %v7908 = vsub.f32 -1e+30, %v7892
        %v7909 = vsub.f32 -1e+30, %v7893
        %v7910 = vsub.f32 -1e+30, %v7894
        %v7911 = vsub.f32 -1e+30, %v7895
        %v7912 = vsub.f32 -1e+30, %v7896
        %v7913 = vsub.f32 -1e+30, %v7897
        %v7914 = vsub.f32 -1e+30, %v7898
        %v7915 = vsub.f32 -1e+30, %v7899
        %v7916 = vsub.f32 -1e+30, %v7900
        %v7917 = vsub.f32 -1e+30, %v7901
        %v7918 = vsub.f32 -1e+30, %v7902
        %v7919 = vsub.f32 -1e+30, %v7903
        %v7920 = vsub.f32 -1e+30, %v7904
        %v7921 = vsub.f32 -1e+30, %v7905
        %v7922 = vmul.f32 %v7906, 1.442695
        %v7923 = vpow.pop %v7922
        %v7924 = vmul.f32 %v7907, 1.442695
        %v7925 = vpow.pop %v7924
        %v7926 = vmul.f32 %v7908, 1.442695
        %v7927 = vpow.pop %v7926
        %v7928 = vmul.f32 %v7909, 1.442695
        %v7929 = vpow.pop %v7928
        %v7930 = vmul.f32 %v7910, 1.442695
        %v7931 = vpow.pop %v7930
        %v7932 = vmul.f32 %v7911, 1.442695
        %v7933 = vpow.pop %v7932
        %v7934 = vmul.f32 %v7912, 1.442695
        %v7935 = vpow.pop %v7934
        %v7936 = vmul.f32 %v7913, 1.442695
        %v7937 = vpow.pop %v7936
        %v7938 = vmul.f32 %v7914, 1.442695
        %v7939 = vpow.pop %v7938
        %v7940 = vmul.f32 %v7915, 1.442695
        %v7941 = vpow.pop %v7940
        %v7942 = vmul.f32 %v7916, 1.442695
        %v7943 = vpow.pop %v7942
        %v7944 = vmul.f32 %v7917, 1.442695
        %v7945 = vpow.pop %v7944
        %v7946 = vmul.f32 %v7918, 1.442695
        %v7947 = vpow.pop %v7946
        %v7948 = vmul.f32 %v7919, 1.442695
        %v7949 = vpow.pop %v7948
        %v7950 = vmul.f32 %v7920, 1.442695
        %v7951 = vpow.pop %v7950
        %v7952 = vmul.f32 %v7921, 1.442695
        %v7953 = vpow.pop %v7952
        %v7954 = vsub.f32 %v7842, %v7890
        %v7955 = vsub.f32 %v7843, %v7891
        %v7956 = vsub.f32 %v7844, %v7892
        %v7957 = vsub.f32 %v7845, %v7893
        %v7958 = vsub.f32 %v7846, %v7894
        %v7959 = vsub.f32 %v7847, %v7895
        %v7960 = vsub.f32 %v7848, %v7896
        %v7961 = vsub.f32 %v7849, %v7897
        %v7962 = vsub.f32 %v7850, %v7898
        %v7963 = vsub.f32 %v7851, %v7899
        %v7964 = vsub.f32 %v7852, %v7900
        %v7965 = vsub.f32 %v7853, %v7901
        %v7966 = vsub.f32 %v7854, %v7902
        %v7967 = vsub.f32 %v7855, %v7903
        %v7968 = vsub.f32 %v7856, %v7904
        %v7969 = vsub.f32 %v7857, %v7905
        %v7970 = vmul.f32 %v7954, 1.442695
        %v7971 = vpow.pop %v7970
        %v7972 = vmul.f32 %v7955, 1.442695
        %v7973 = vpow.pop %v7972
        %v7974 = vmul.f32 %v7956, 1.442695
        %v7975 = vpow.pop %v7974
        %v7976 = vmul.f32 %v7957, 1.442695
        %v7977 = vpow.pop %v7976
        %v7978 = vmul.f32 %v7958, 1.442695
        %v7979 = vpow.pop %v7978
        %v7980 = vmul.f32 %v7959, 1.442695
        %v7981 = vpow.pop %v7980
        %v7982 = vmul.f32 %v7960, 1.442695
        %v7983 = vpow.pop %v7982
        %v7984 = vmul.f32 %v7961, 1.442695
        %v7985 = vpow.pop %v7984
        %v7986 = vmul.f32 %v7962, 1.442695
        %v7987 = vpow.pop %v7986
        %v7988 = vmul.f32 %v7963, 1.442695
        %v7989 = vpow.pop %v7988
        %v7990 = vmul.f32 %v7964, 1.442695
        %v7991 = vpow.pop %v7990
        %v7992 = vmul.f32 %v7965, 1.442695
        %v7993 = vpow.pop %v7992
        %v7994 = vmul.f32 %v7966, 1.442695
        %v7995 = vpow.pop %v7994
        %v7996 = vmul.f32 %v7967, 1.442695
        %v7997 = vpow.pop %v7996
        %v7998 = vmul.f32 %v7968, 1.442695
        %v7999 = vpow.pop %v7998
        %v8000 = vmul.f32 %v7969, 1.442695
        %v8001 = vpow.pop %v8000
        %v8002 = vmul.f32 %v7923, 0.0
        %v8003 = vmul.f32 %v7925, 0.0
        %v8004 = vmul.f32 %v7927, 0.0
        %v8005 = vmul.f32 %v7929, 0.0
        %v8006 = vmul.f32 %v7931, 0.0
        %v8007 = vmul.f32 %v7933, 0.0
        %v8008 = vmul.f32 %v7935, 0.0
        %v8009 = vmul.f32 %v7937, 0.0
        %v8010 = vmul.f32 %v7939, 0.0
        %v8011 = vmul.f32 %v7941, 0.0
        %v8012 = vmul.f32 %v7943, 0.0
        %v8013 = vmul.f32 %v7945, 0.0
        %v8014 = vmul.f32 %v7947, 0.0
        %v8015 = vmul.f32 %v7949, 0.0
        %v8016 = vmul.f32 %v7951, 0.0
        %v8017 = vmul.f32 %v7953, 0.0
        %8018 = vadd.xlane.f32.xlu0 %v7971
        %v8019 = vpop.xlane.xlu0 %8018
        %8020 = vadd.xlane.f32.xlu0 %v7973
        %v8021 = vpop.xlane.xlu0 %8020
        %8022 = vadd.xlane.f32.xlu0 %v7975
        %v8023 = vpop.xlane.xlu0 %8022
        %8024 = vadd.xlane.f32.xlu0 %v7977
        %v8025 = vpop.xlane.xlu0 %8024
        %8026 = vadd.xlane.f32.xlu0 %v7979
        %v8027 = vpop.xlane.xlu0 %8026
        %8028 = vadd.xlane.f32.xlu0 %v7981
        %v8029 = vpop.xlane.xlu0 %8028
        %8030 = vadd.xlane.f32.xlu0 %v7983
        %v8031 = vpop.xlane.xlu0 %8030
        %8032 = vadd.xlane.f32.xlu0 %v7985
        %v8033 = vpop.xlane.xlu0 %8032
        %8034 = vadd.xlane.f32.xlu0 %v7987
        %v8035 = vpop.xlane.xlu0 %8034
        %8036 = vadd.xlane.f32.xlu0 %v7989
        %v8037 = vpop.xlane.xlu0 %8036
        %8038 = vadd.xlane.f32.xlu0 %v7991
        %v8039 = vpop.xlane.xlu0 %8038
        %8040 = vadd.xlane.f32.xlu0 %v7993
        %v8041 = vpop.xlane.xlu0 %8040
        %8042 = vadd.xlane.f32.xlu0 %v7995
        %v8043 = vpop.xlane.xlu0 %8042
        %8044 = vadd.xlane.f32.xlu0 %v7997
        %v8045 = vpop.xlane.xlu0 %8044
        %8046 = vadd.xlane.f32.xlu0 %v7999
        %v8047 = vpop.xlane.xlu0 %8046
        %8048 = vadd.xlane.f32.xlu0 %v8001
        %v8049 = vpop.xlane.xlu0 %8048
        %v8050 = vadd.f32 %v8002, %v8019
        %v8051 = vadd.f32 %v8003, %v8021
        %v8052 = vadd.f32 %v8004, %v8023
        %v8053 = vadd.f32 %v8005, %v8025
        %v8054 = vadd.f32 %v8006, %v8027
        %v8055 = vadd.f32 %v8007, %v8029
        %v8056 = vadd.f32 %v8008, %v8031
        %v8057 = vadd.f32 %v8009, %v8033
        %v8058 = vadd.f32 %v8010, %v8035
        %v8059 = vadd.f32 %v8011, %v8037
        %v8060 = vadd.f32 %v8012, %v8039
        %v8061 = vadd.f32 %v8013, %v8041
        %v8062 = vadd.f32 %v8014, %v8043
        %v8063 = vadd.f32 %v8015, %v8045
        %v8064 = vadd.f32 %v8016, %v8047
        %v8065 = vadd.f32 %v8017, %v8049
        %v8066 = vpack.c.bf16 %v7973, %v7971
        %v8067 = vpack.c.bf16 %v7977, %v7975
        %v8068 = vpack.c.bf16 %v7981, %v7979
        %v8069 = vpack.c.bf16 %v7985, %v7983
        %v8070 = vpack.c.bf16 %v7989, %v7987
        %v8071 = vpack.c.bf16 %v7993, %v7991
        %v8072 = vpack.c.bf16 %v7997, %v7995
        %v8073 = vpack.c.bf16 %v8001, %v7999
        %v8090 = vunpack.c.l.b16 %v7569
        %v8091 = vunpack.c.l.b16 %v7570
        %v8092 = vunpack.c.l.b16 %v7571
        %v8093 = vunpack.c.l.b16 %v7572
        %v8094 = vunpack.c.l.b16 %v7573
        %v8095 = vunpack.c.l.b16 %v7574
        %v8096 = vunpack.c.l.b16 %v7575
        %v8097 = vunpack.c.l.b16 %v7576
        %v8098 = vunpack.c.l.b16 %v7577
        %v8099 = vunpack.c.l.b16 %v7578
        %v8100 = vunpack.c.l.b16 %v7579
        %v8101 = vunpack.c.l.b16 %v7580
        %v8102 = vunpack.c.l.b16 %v7581
        %v8103 = vunpack.c.l.b16 %v7582
        %v8104 = vunpack.c.l.b16 %v7583
        %v8105 = vunpack.c.l.b16 %v7584
        %v8106 = vpack.c.b16 %v8091, %v8090
        %v8107 = vpack.c.b16 %v8093, %v8092
        %v8108 = vpack.c.b16 %v8095, %v8094
        %v8109 = vpack.c.b16 %v8097, %v8096
        %v8110 = vpack.c.b16 %v8099, %v8098
        %v8111 = vpack.c.b16 %v8101, %v8100
        %v8112 = vpack.c.b16 %v8103, %v8102
        %v8113 = vpack.c.b16 %v8105, %v8104
        %8114 = vrot.lane.b32.xlu0 %v8106, 64
        %v8115 = vpop.permute.xlu0 %8114
        %8116 = vrot.lane.b32.xlu0 %v8107, 64
        %v8117 = vpop.permute.xlu0 %8116
        %8118 = vrot.lane.b32.xlu0 %v8108, 64
        %v8119 = vpop.permute.xlu0 %8118
        %8120 = vrot.lane.b32.xlu0 %v8109, 64
        %v8121 = vpop.permute.xlu0 %8120
        %8122 = vrot.lane.b32.xlu0 %v8110, 64
        %v8123 = vpop.permute.xlu0 %8122
        %8124 = vrot.lane.b32.xlu0 %v8111, 64
        %v8125 = vpop.permute.xlu0 %8124
        %8126 = vrot.lane.b32.xlu0 %v8112, 64
        %v8127 = vpop.permute.xlu0 %8126
        %8128 = vrot.lane.b32.xlu0 %v8113, 64
        %v8129 = vpop.permute.xlu0 %8128
        %8138 = vmatprep.subr.bf16.mxu0 0
        %8139 = vmatpush1.bf16.msra.mxu0 %v8129
        %8140 = vmatprep.subr.bf16.mxu0 0
        %8141 = vmatpush1.bf16.msra.mxu0 %v8127
        %8142 = vmatprep.subr.bf16.mxu0 0
        %8143 = vmatpush1.bf16.msra.mxu0 %v8125
        %8144 = vmatprep.subr.bf16.mxu0 0
        %8145 = vmatpush1.bf16.msra.mxu0 %v8123
        %8146 = vmatprep.subr.bf16.mxu0 0
        %8147 = vmatpush1.bf16.msra.mxu0 %v8121
        %8148 = vmatprep.subr.bf16.mxu0 0
        %8149 = vmatpush1.bf16.msra.mxu0 %v8119
        %8150 = vmatprep.subr.bf16.mxu0 0
        %8151 = vmatpush1.bf16.msra.mxu0 %v8117
        %8152 = vmatprep.subr.bf16.mxu0 0
        %8153 = vmatpush1.bf16.msra.mxu0 %v8115
        %8154 = vmatprep.subr.bf16.mxu0 0
        %8155 = vmatpush2.bf16.msra.mxu0 0
        %8156 = vmatprep.subr.bf16.mxu0 0
        %8157 = vmatpush2.bf16.msra.mxu0 0
        %8158 = vmatprep.subr.bf16.mxu0 0
        %8159 = vmatpush2.bf16.msra.mxu0 0
        %8160 = vmatprep.subr.bf16.mxu0 0
        %8161 = vmatpush2.bf16.msra.mxu0 0
        %8162 = vmatprep.subr.bf16.mxu0 0
        %8163 = vmatpush2.bf16.msra.mxu0 0
        %8164 = vmatprep.subr.bf16.mxu0 0
        %8165 = vmatpush2.bf16.msra.mxu0 0
        %8166 = vmatprep.subr.bf16.mxu0 0
        %8167 = vmatpush2.bf16.msra.mxu0 0
        %8168 = vmatprep.subr.bf16.mxu0 0
        %8169 = vmatpush2.bf16.msra.mxu0 0
        %8170 = vmatprep.mubr.bf16.mxu0 0
        %8171 = vmatmul.mubr.bf16.gmra.mxu0 %v8066
        %v8172 = vpop.f32.mrf.mxu0
        %v8173 = vadd.f32 0.0, %v8172
        %v8174 = vpop.f32.mrf.mxu0
        %v8175 = vpop.f32.mrf.mxu0
        %v8176 = vadd.f32 0.0, %v8175
        %v8177 = vpop.f32.mrf.mxu0
        %8178 = vmatprep.mubr.bf16.mxu0 0
        %8179 = vmatmul.mubr.bf16.gmra.mxu0 %v8067
        %v8180 = vpop.f32.mrf.mxu0
        %v8181 = vadd.f32 0.0, %v8180
        %v8182 = vpop.f32.mrf.mxu0
        %v8183 = vpop.f32.mrf.mxu0
        %v8184 = vadd.f32 0.0, %v8183
        %v8185 = vpop.f32.mrf.mxu0
        %8186 = vmatprep.mubr.bf16.mxu0 0
        %8187 = vmatmul.mubr.bf16.gmra.mxu0 %v8068
        %v8188 = vpop.f32.mrf.mxu0
        %v8189 = vadd.f32 0.0, %v8188
        %v8190 = vpop.f32.mrf.mxu0
        %v8191 = vpop.f32.mrf.mxu0
        %v8192 = vadd.f32 0.0, %v8191
        %v8193 = vpop.f32.mrf.mxu0
        %8194 = vmatprep.mubr.bf16.mxu0 0
        %8195 = vmatmul.mubr.bf16.gmra.mxu0 %v8069
        %v8196 = vpop.f32.mrf.mxu0
        %v8197 = vadd.f32 0.0, %v8196
        %v8198 = vpop.f32.mrf.mxu0
        %v8199 = vpop.f32.mrf.mxu0
        %v8200 = vadd.f32 0.0, %v8199
        %v8201 = vpop.f32.mrf.mxu0
        %8202 = vmatprep.mubr.bf16.mxu0 0
        %8203 = vmatmul.mubr.bf16.gmra.mxu0 %v8070
        %v8204 = vpop.f32.mrf.mxu0
        %v8205 = vadd.f32 0.0, %v8204
        %v8206 = vpop.f32.mrf.mxu0
        %v8207 = vpop.f32.mrf.mxu0
        %v8208 = vadd.f32 0.0, %v8207
        %v8209 = vpop.f32.mrf.mxu0
        %8210 = vmatprep.mubr.bf16.mxu0 0
        %8211 = vmatmul.mubr.bf16.gmra.mxu0 %v8071
        %v8212 = vpop.f32.mrf.mxu0
        %v8213 = vadd.f32 0.0, %v8212
        %v8214 = vpop.f32.mrf.mxu0
        %v8215 = vpop.f32.mrf.mxu0
        %v8216 = vadd.f32 0.0, %v8215
        %v8217 = vpop.f32.mrf.mxu0
        %8218 = vmatprep.mubr.bf16.mxu0 0
        %8219 = vmatmul.mubr.bf16.gmra.mxu0 %v8072
        %v8220 = vpop.f32.mrf.mxu0
        %v8221 = vadd.f32 0.0, %v8220
        %v8222 = vpop.f32.mrf.mxu0
        %v8223 = vpop.f32.mrf.mxu0
        %v8224 = vadd.f32 0.0, %v8223
        %v8225 = vpop.f32.mrf.mxu0
        %8226 = vmatprep.mubr.bf16.mxu0 0
        %8227 = vmatmul.mubr.bf16.gmra.mxu0 %v8073
        %v8228 = vpop.f32.mrf.mxu0
        %v8229 = vadd.f32 0.0, %v8228
        %v8230 = vpop.f32.mrf.mxu0
        %v8231 = vpop.f32.mrf.mxu0
        %v8232 = vadd.f32 0.0, %v8231
        %v8233 = vpop.f32.mrf.mxu0
        %8234 = vdwg.mxu0
        %v8235 = vadd.f32 %v8002, %v8173
        %v8236 = vadd.f32 %v8003, %v8176
        %v8237 = vadd.f32 %v8004, %v8181
        %v8238 = vadd.f32 %v8005, %v8184
        %v8239 = vadd.f32 %v8006, %v8189
        %v8240 = vadd.f32 %v8007, %v8192
        %v8241 = vadd.f32 %v8008, %v8197
        %v8242 = vadd.f32 %v8009, %v8200
        %v8243 = vadd.f32 %v8010, %v8205
        %v8244 = vadd.f32 %v8011, %v8208
        %v8245 = vadd.f32 %v8012, %v8213
        %v8246 = vadd.f32 %v8013, %v8216
        %v8247 = vadd.f32 %v8014, %v8221
        %v8248 = vadd.f32 %v8015, %v8224
        %v8249 = vadd.f32 %v8016, %v8229
        %v8250 = vadd.f32 %v8017, %v8232
        %v8251 = vrcp.pop %v8050
        %v8252 = vrcp.pop %v8051
        %v8253 = vrcp.pop %v8052
        %v8254 = vrcp.pop %v8053
        %v8255 = vrcp.pop %v8054
        %v8256 = vrcp.pop %v8055
        %v8257 = vrcp.pop %v8056
        %v8258 = vrcp.pop %v8057
        %v8259 = vrcp.pop %v8058
        %v8260 = vrcp.pop %v8059
        %v8261 = vrcp.pop %v8060
        %v8262 = vrcp.pop %v8061
        %v8263 = vrcp.pop %v8062
        %v8264 = vrcp.pop %v8063
        %v8265 = vrcp.pop %v8064
        %v8266 = vrcp.pop %v8065
        %v8267 = vmul.f32 %v8235, %v8251
        %v8268 = vmul.f32 %v8236, %v8252
        %v8269 = vmul.f32 %v8237, %v8253
        %v8270 = vmul.f32 %v8238, %v8254
        %v8271 = vmul.f32 %v8239, %v8255
        %v8272 = vmul.f32 %v8240, %v8256
        %v8273 = vmul.f32 %v8241, %v8257
        %v8274 = vmul.f32 %v8242, %v8258
        %v8275 = vmul.f32 %v8243, %v8259
        %v8276 = vmul.f32 %v8244, %v8260
        %v8277 = vmul.f32 %v8245, %v8261
        %v8278 = vmul.f32 %v8246, %v8262
        %v8279 = vmul.f32 %v8247, %v8263
        %v8280 = vmul.f32 %v8248, %v8264
        %v8281 = vmul.f32 %v8249, %v8265
        %v8282 = vmul.f32 %v8250, %v8266
        %v8283 = vpack.c.bf16 %v8268, %v8267
        %v8284 = vpack.c.bf16 %v8270, %v8269
        %v8285 = vpack.c.bf16 %v8272, %v8271
        %v8286 = vpack.c.bf16 %v8274, %v8273
        %v8287 = vpack.c.bf16 %v8276, %v8275
        %v8288 = vpack.c.bf16 %v8278, %v8277
        %v8289 = vpack.c.bf16 %v8280, %v8279
        %v8290 = vpack.c.bf16 %v8282, %v8281
        %v8299 = vunpack.c.l.b16 %v8283
        %v8300 = vunpack.c.h.b16 %v8283
        %v8301 = vunpack.c.l.b16 %v8284
        %v8302 = vunpack.c.h.b16 %v8284
        %v8303 = vunpack.c.l.b16 %v8285
        %v8304 = vunpack.c.h.b16 %v8285
        %v8305 = vunpack.c.l.b16 %v8286
        %v8306 = vunpack.c.h.b16 %v8286
        %v8307 = vunpack.c.l.b16 %v8287
        %v8308 = vunpack.c.h.b16 %v8287
        %v8309 = vunpack.c.l.b16 %v8288
        %v8310 = vunpack.c.h.b16 %v8288
        %v8311 = vunpack.c.l.b16 %v8289
        %v8312 = vunpack.c.h.b16 %v8289
        %v8313 = vunpack.c.l.b16 %v8290
        %v8314 = vunpack.c.h.b16 %v8290
        %v8315 = vpack.c.b16 %v8299, %v8299
        %v8316 = vpack.c.b16 %v8300, %v8300
        %v8317 = vpack.c.b16 %v8301, %v8301
        %v8318 = vpack.c.b16 %v8302, %v8302
        %v8319 = vpack.c.b16 %v8303, %v8303
        %v8320 = vpack.c.b16 %v8304, %v8304
        %v8321 = vpack.c.b16 %v8305, %v8305
        %v8322 = vpack.c.b16 %v8306, %v8306
        %v8323 = vpack.c.b16 %v8307, %v8307
        %v8324 = vpack.c.b16 %v8308, %v8308
        %v8325 = vpack.c.b16 %v8309, %v8309
        %v8326 = vpack.c.b16 %v8310, %v8310
        %v8327 = vpack.c.b16 %v8311, %v8311
        %v8328 = vpack.c.b16 %v8312, %v8312
        %v8329 = vpack.c.b16 %v8313, %v8313
        %v8330 = vpack.c.b16 %v8314, %v8314
        %8331 = vrot.lane.b32.xlu0 %v8315, 64
        %v8332 = vpop.permute.xlu0 %8331
        %8333 = vrot.lane.b32.xlu0 %v8316, 64
        %v8334 = vpop.permute.xlu0 %8333
        %8335 = vrot.lane.b32.xlu0 %v8317, 64
        %v8336 = vpop.permute.xlu0 %8335
        %8337 = vrot.lane.b32.xlu0 %v8318, 64
        %v8338 = vpop.permute.xlu0 %8337
        %8339 = vrot.lane.b32.xlu0 %v8319, 64
        %v8340 = vpop.permute.xlu0 %8339
        %8341 = vrot.lane.b32.xlu0 %v8320, 64
        %v8342 = vpop.permute.xlu0 %8341
        %8343 = vrot.lane.b32.xlu0 %v8321, 64
        %v8344 = vpop.permute.xlu0 %8343
        %8345 = vrot.lane.b32.xlu0 %v8322, 64
        %v8346 = vpop.permute.xlu0 %8345
        %8347 = vrot.lane.b32.xlu0 %v8323, 64
        %v8348 = vpop.permute.xlu0 %8347
        %8349 = vrot.lane.b32.xlu0 %v8324, 64
        %v8350 = vpop.permute.xlu0 %8349
        %8351 = vrot.lane.b32.xlu0 %v8325, 64
        %v8352 = vpop.permute.xlu0 %8351
        %8353 = vrot.lane.b32.xlu0 %v8326, 64
        %v8354 = vpop.permute.xlu0 %8353
        %8355 = vrot.lane.b32.xlu0 %v8327, 64
        %v8356 = vpop.permute.xlu0 %8355
        %8357 = vrot.lane.b32.xlu0 %v8328, 64
        %v8358 = vpop.permute.xlu0 %8357
        %8359 = vrot.lane.b32.xlu0 %v8329, 64
        %v8360 = vpop.permute.xlu0 %8359
        %8361 = vrot.lane.b32.xlu0 %v8330, 64
        %v8362 = vpop.permute.xlu0 %8361
        %8379 = vst.msk [vmem:[#allocation4 + $0x8] sm:$0xf] %vm5106, %v8332
        %8380 = vst.msk [vmem:[#allocation4 + $0x14] sm:$0xf] %vm5106, %v8334
        %8381 = vst.msk [vmem:[#allocation4 + $0x20] sm:$0xf] %vm5106, %v8336
        %8382 = vst.msk [vmem:[#allocation4 + $0x2c] sm:$0xf] %vm5106, %v8338
        %8383 = vst.msk [vmem:[#allocation4 + $0x38] sm:$0xf] %vm5106, %v8340
        %8384 = vst.msk [vmem:[#allocation4 + $0x44] sm:$0xf] %vm5106, %v8342
        %8385 = vst.msk [vmem:[#allocation4 + $0x50] sm:$0xf] %vm5106, %v8344
        %8386 = vst.msk [vmem:[#allocation4 + $0x5c] sm:$0xf] %vm5106, %v8346
        %8387 = vst.msk [vmem:[#allocation4 + $0x68] sm:$0xf] %vm5106, %v8348
        %8388 = vst.msk [vmem:[#allocation4 + $0x74] sm:$0xf] %vm5106, %v8350
        %8389 = vst.msk [vmem:[#allocation4 + $0x80] sm:$0xf] %vm5106, %v8352
        %8390 = vst.msk [vmem:[#allocation4 + $0x8c] sm:$0xf] %vm5106, %v8354
        %8391 = vst.msk [vmem:[#allocation4 + $0x98] sm:$0xf] %vm5106, %v8356
        %8392 = vst.msk [vmem:[#allocation4 + $0xa4] sm:$0xf] %vm5106, %v8358
        %8393 = vst.msk [vmem:[#allocation4 + $0xb0] sm:$0xf] %vm5106, %v8360
        %8394 = vst.msk [vmem:[#allocation4 + $0xbc] sm:$0xf] %vm5106, %v8362
        %v8395 = vld [vmem:[#allocation4] sm:$0xff]
        %v8396 = vld [vmem:[#allocation4 + $0x8] sm:$0xf]
        %v8397 = vld [vmem:[#allocation4 + $0xc] sm:$0xff]
        %v8398 = vld [vmem:[#allocation4 + $0x14] sm:$0xf]
        %v8399 = vld [vmem:[#allocation4 + $0x18] sm:$0xff]
        %v8400 = vld [vmem:[#allocation4 + $0x20] sm:$0xf]
        %v8401 = vld [vmem:[#allocation4 + $0x24] sm:$0xff]
        %v8402 = vld [vmem:[#allocation4 + $0x2c] sm:$0xf]
        %v8403 = vld [vmem:[#allocation4 + $0x30] sm:$0xff]
        %v8404 = vld [vmem:[#allocation4 + $0x38] sm:$0xf]
        %v8405 = vld [vmem:[#allocation4 + $0x3c] sm:$0xff]
        %v8406 = vld [vmem:[#allocation4 + $0x44] sm:$0xf]
        %v8407 = vld [vmem:[#allocation4 + $0x48] sm:$0xff]
        %v8408 = vld [vmem:[#allocation4 + $0x50] sm:$0xf]
        %v8409 = vld [vmem:[#allocation4 + $0x54] sm:$0xff]
        %v8410 = vld [vmem:[#allocation4 + $0x5c] sm:$0xf]
        %v8411 = vld [vmem:[#allocation4 + $0x60] sm:$0xff]
        %v8412 = vld [vmem:[#allocation4 + $0x68] sm:$0xf]
        %v8413 = vld [vmem:[#allocation4 + $0x6c] sm:$0xff]
        %v8414 = vld [vmem:[#allocation4 + $0x74] sm:$0xf]
        %v8415 = vld [vmem:[#allocation4 + $0x78] sm:$0xff]
        %v8416 = vld [vmem:[#allocation4 + $0x80] sm:$0xf]
        %v8417 = vld [vmem:[#allocation4 + $0x84] sm:$0xff]
        %v8418 = vld [vmem:[#allocation4 + $0x8c] sm:$0xf]
        %v8419 = vld [vmem:[#allocation4 + $0x90] sm:$0xff]
        %v8420 = vld [vmem:[#allocation4 + $0x98] sm:$0xf]
        %v8421 = vld [vmem:[#allocation4 + $0x9c] sm:$0xff]
        %v8422 = vld [vmem:[#allocation4 + $0xa4] sm:$0xf]
        %v8423 = vld [vmem:[#allocation4 + $0xa8] sm:$0xff]
        %v8424 = vld [vmem:[#allocation4 + $0xb0] sm:$0xf]
        %v8425 = vld [vmem:[#allocation4 + $0xb4] sm:$0xff]
        %v8426 = vld [vmem:[#allocation4 + $0xbc] sm:$0xf]
        %v8427 = vld [vmem:[#allocation11] sm:$0xff]
        %v8428 = vld [vmem:[#allocation11 + $0x8] sm:$0xf]
        %v8429 = vld [vmem:[#allocation11 + $0xc] sm:$0xff]
        %v8430 = vld [vmem:[#allocation11 + $0x14] sm:$0xf]
        %v8431 = vld [vmem:[#allocation11 + $0x18] sm:$0xff]
        %v8432 = vld [vmem:[#allocation11 + $0x20] sm:$0xf]
        %v8433 = vld [vmem:[#allocation11 + $0x24] sm:$0xff]
        %v8434 = vld [vmem:[#allocation11 + $0x2c] sm:$0xf]
        %v8435 = vld [vmem:[#allocation11 + $0x30] sm:$0xff]
        %v8436 = vld [vmem:[#allocation11 + $0x38] sm:$0xf]
        %v8437 = vld [vmem:[#allocation11 + $0x3c] sm:$0xff]
        %v8438 = vld [vmem:[#allocation11 + $0x44] sm:$0xf]
        %v8439 = vld [vmem:[#allocation11 + $0x48] sm:$0xff]
        %v8440 = vld [vmem:[#allocation11 + $0x50] sm:$0xf]
        %v8441 = vld [vmem:[#allocation11 + $0x54] sm:$0xff]
        %v8442 = vld [vmem:[#allocation11 + $0x5c] sm:$0xf]
        %v8443 = vld [vmem:[#allocation11 + $0x60] sm:$0xff]
        %v8444 = vld [vmem:[#allocation11 + $0x68] sm:$0xf]
        %v8445 = vld [vmem:[#allocation11 + $0x6c] sm:$0xff]
        %v8446 = vld [vmem:[#allocation11 + $0x74] sm:$0xf]
        %v8447 = vld [vmem:[#allocation11 + $0x78] sm:$0xff]
        %v8448 = vld [vmem:[#allocation11 + $0x80] sm:$0xf]
        %v8449 = vld [vmem:[#allocation11 + $0x84] sm:$0xff]
        %v8450 = vld [vmem:[#allocation11 + $0x8c] sm:$0xf]
        %v8451 = vld [vmem:[#allocation11 + $0x90] sm:$0xff]
        %v8452 = vld [vmem:[#allocation11 + $0x98] sm:$0xf]
        %v8453 = vld [vmem:[#allocation11 + $0x9c] sm:$0xff]
        %v8454 = vld [vmem:[#allocation11 + $0xa4] sm:$0xf]
        %v8455 = vld [vmem:[#allocation11 + $0xa8] sm:$0xff]
        %v8456 = vld [vmem:[#allocation11 + $0xb0] sm:$0xf]
        %v8457 = vld [vmem:[#allocation11 + $0xb4] sm:$0xff]
        %v8458 = vld [vmem:[#allocation11 + $0xbc] sm:$0xf]
        %v8459 = vld [vmem:[#allocation11 + $0xc0] sm:$0xff]
        %v8460 = vld [vmem:[#allocation11 + $0xc8] sm:$0xf]
        %v8461 = vld [vmem:[#allocation11 + $0xcc] sm:$0xff]
        %v8462 = vld [vmem:[#allocation11 + $0xd4] sm:$0xf]
        %v8463 = vld [vmem:[#allocation11 + $0xd8] sm:$0xff]
        %v8464 = vld [vmem:[#allocation11 + $0xe0] sm:$0xf]
        %v8465 = vld [vmem:[#allocation11 + $0xe4] sm:$0xff]
        %v8466 = vld [vmem:[#allocation11 + $0xec] sm:$0xf]
        %v8467 = vld [vmem:[#allocation11 + $0xf0] sm:$0xff]
        %v8468 = vld [vmem:[#allocation11 + $0xf8] sm:$0xf]
        %v8469 = vld [vmem:[#allocation11 + $0xfc] sm:$0xff]
        %v8470 = vld [vmem:[#allocation11 + $0x104] sm:$0xf]
        %v8471 = vld [vmem:[#allocation11 + $0x108] sm:$0xff]
        %v8472 = vld [vmem:[#allocation11 + $0x110] sm:$0xf]
        %v8473 = vld [vmem:[#allocation11 + $0x114] sm:$0xff]
        %v8474 = vld [vmem:[#allocation11 + $0x11c] sm:$0xf]
        %v8475 = vld [vmem:[#allocation11 + $0x120] sm:$0xff]
        %v8476 = vld [vmem:[#allocation11 + $0x128] sm:$0xf]
        %v8477 = vld [vmem:[#allocation11 + $0x12c] sm:$0xff]
        %v8478 = vld [vmem:[#allocation11 + $0x134] sm:$0xf]
        %v8479 = vld [vmem:[#allocation11 + $0x138] sm:$0xff]
        %v8480 = vld [vmem:[#allocation11 + $0x140] sm:$0xf]
        %v8481 = vld [vmem:[#allocation11 + $0x144] sm:$0xff]
        %v8482 = vld [vmem:[#allocation11 + $0x14c] sm:$0xf]
        %v8483 = vld [vmem:[#allocation11 + $0x150] sm:$0xff]
        %v8484 = vld [vmem:[#allocation11 + $0x158] sm:$0xf]
        %v8485 = vld [vmem:[#allocation11 + $0x15c] sm:$0xff]
        %v8486 = vld [vmem:[#allocation11 + $0x164] sm:$0xf]
        %v8487 = vld [vmem:[#allocation11 + $0x168] sm:$0xff]
        %v8488 = vld [vmem:[#allocation11 + $0x170] sm:$0xf]
        %v8489 = vld [vmem:[#allocation11 + $0x174] sm:$0xff]
        %v8490 = vld [vmem:[#allocation11 + $0x17c] sm:$0xf]
        %v8491 = vld [vmem:[#allocation11 + $0x180] sm:$0xff]
        %v8492 = vld [vmem:[#allocation11 + $0x188] sm:$0xf]
        %v8493 = vld [vmem:[#allocation11 + $0x18c] sm:$0xff]
        %v8494 = vld [vmem:[#allocation11 + $0x194] sm:$0xf]
        %v8495 = vld [vmem:[#allocation11 + $0x198] sm:$0xff]
        %v8496 = vld [vmem:[#allocation11 + $0x1a0] sm:$0xf]
        %v8497 = vld [vmem:[#allocation11 + $0x1a4] sm:$0xff]
        %v8498 = vld [vmem:[#allocation11 + $0x1ac] sm:$0xf]
        %v8499 = vld [vmem:[#allocation11 + $0x1b0] sm:$0xff]
        %v8500 = vld [vmem:[#allocation11 + $0x1b8] sm:$0xf]
        %v8501 = vld [vmem:[#allocation11 + $0x1bc] sm:$0xff]
        %v8502 = vld [vmem:[#allocation11 + $0x1c4] sm:$0xf]
        %v8503 = vld [vmem:[#allocation11 + $0x1c8] sm:$0xff]
        %v8504 = vld [vmem:[#allocation11 + $0x1d0] sm:$0xf]
        %v8505 = vld [vmem:[#allocation11 + $0x1d4] sm:$0xff]
        %v8506 = vld [vmem:[#allocation11 + $0x1dc] sm:$0xf]
        %v8507 = vld [vmem:[#allocation11 + $0x1e0] sm:$0xff]
        %v8508 = vld [vmem:[#allocation11 + $0x1e8] sm:$0xf]
        %v8509 = vld [vmem:[#allocation11 + $0x1ec] sm:$0xff]
        %v8510 = vld [vmem:[#allocation11 + $0x1f4] sm:$0xf]
        %v8511 = vld [vmem:[#allocation11 + $0x1f8] sm:$0xff]
        %v8512 = vld [vmem:[#allocation11 + $0x200] sm:$0xf]
        %v8513 = vld [vmem:[#allocation11 + $0x204] sm:$0xff]
        %v8514 = vld [vmem:[#allocation11 + $0x20c] sm:$0xf]
        %v8515 = vld [vmem:[#allocation11 + $0x210] sm:$0xff]
        %v8516 = vld [vmem:[#allocation11 + $0x218] sm:$0xf]
        %v8517 = vld [vmem:[#allocation11 + $0x21c] sm:$0xff]
        %v8518 = vld [vmem:[#allocation11 + $0x224] sm:$0xf]
        %v8519 = vld [vmem:[#allocation11 + $0x228] sm:$0xff]
        %v8520 = vld [vmem:[#allocation11 + $0x230] sm:$0xf]
        %v8521 = vld [vmem:[#allocation11 + $0x234] sm:$0xff]
        %v8522 = vld [vmem:[#allocation11 + $0x23c] sm:$0xf]
        %v8523 = vld [vmem:[%s4] sm:$0x7]
        %v8525 = vlaneseq
        %v8526 = vshrl.u32 %v8525, 7
        %v8527 = vsub.s32 0, %v8526
        %v8528 = vrot.slane %v8523, %v8527
        %v8529 = vlaneseq
        %v8530 = vshrl.u32 %v8529, 7
        %v8531 = vsub.s32 1, %v8530
        %v8532 = vrot.slane %v8523, %v8531
        %v8533 = vlaneseq
        %v8534 = vshrl.u32 %v8533, 7
        %v8535 = vsub.s32 2, %v8534
        %v8536 = vrot.slane %v8523, %v8535
        %v8572 = vunpack.c.l.b16 %v8395
        %v8573 = vunpack.c.h.b16 %v8395
        %v8574 = vunpack.c.l.b16 %v8396
        %v8575 = vunpack.c.l.b16 %v8397
        %v8576 = vunpack.c.h.b16 %v8397
        %v8577 = vunpack.c.l.b16 %v8398
        %v8578 = vunpack.c.l.b16 %v8399
        %v8579 = vunpack.c.h.b16 %v8399
        %v8580 = vunpack.c.l.b16 %v8400
        %v8581 = vunpack.c.l.b16 %v8401
        %v8582 = vunpack.c.h.b16 %v8401
        %v8583 = vunpack.c.l.b16 %v8402
        %v8584 = vunpack.c.l.b16 %v8403
        %v8585 = vunpack.c.h.b16 %v8403
        %v8586 = vunpack.c.l.b16 %v8404
        %v8587 = vunpack.c.l.b16 %v8405
        %v8588 = vunpack.c.h.b16 %v8405
        %v8589 = vunpack.c.l.b16 %v8406
        %v8590 = vunpack.c.l.b16 %v8407
        %v8591 = vunpack.c.h.b16 %v8407
        %v8592 = vunpack.c.l.b16 %v8408
        %v8593 = vunpack.c.l.b16 %v8409
        %v8594 = vunpack.c.h.b16 %v8409
        %v8595 = vunpack.c.l.b16 %v8410
        %v8596 = vunpack.c.l.b16 %v8411
        %v8597 = vunpack.c.h.b16 %v8411
        %v8598 = vunpack.c.l.b16 %v8412
        %v8599 = vunpack.c.l.b16 %v8413
        %v8600 = vunpack.c.h.b16 %v8413
        %v8601 = vunpack.c.l.b16 %v8414
        %v8602 = vunpack.c.l.b16 %v8415
        %v8603 = vunpack.c.h.b16 %v8415
        %v8604 = vunpack.c.l.b16 %v8416
        %v8605 = vunpack.c.l.b16 %v8417
        %v8606 = vunpack.c.h.b16 %v8417
        %v8607 = vunpack.c.l.b16 %v8418
        %v8608 = vunpack.c.l.b16 %v8419
        %v8609 = vunpack.c.h.b16 %v8419
        %v8610 = vunpack.c.l.b16 %v8420
        %v8611 = vunpack.c.l.b16 %v8421
        %v8612 = vunpack.c.h.b16 %v8421
        %v8613 = vunpack.c.l.b16 %v8422
        %v8614 = vunpack.c.l.b16 %v8423
        %v8615 = vunpack.c.h.b16 %v8423
        %v8616 = vunpack.c.l.b16 %v8424
        %v8617 = vunpack.c.l.b16 %v8425
        %v8618 = vunpack.c.h.b16 %v8425
        %v8619 = vunpack.c.l.b16 %v8426
        %v8620 = vpack.c.b16 %v8575, %v8572
        %v8621 = vpack.c.b16 %v8576, %v8573
        %v8622 = vpack.c.b16 %v8577, %v8574
        %v8623 = vpack.c.b16 %v8581, %v8578
        %v8624 = vpack.c.b16 %v8582, %v8579
        %v8625 = vpack.c.b16 %v8583, %v8580
        %v8626 = vpack.c.b16 %v8587, %v8584
        %v8627 = vpack.c.b16 %v8588, %v8585
        %v8628 = vpack.c.b16 %v8589, %v8586
        %v8629 = vpack.c.b16 %v8593, %v8590
        %v8630 = vpack.c.b16 %v8594, %v8591
        %v8631 = vpack.c.b16 %v8595, %v8592
        %v8632 = vpack.c.b16 %v8599, %v8596
        %v8633 = vpack.c.b16 %v8600, %v8597
        %v8634 = vpack.c.b16 %v8601, %v8598
        %v8635 = vpack.c.b16 %v8605, %v8602
        %v8636 = vpack.c.b16 %v8606, %v8603
        %v8637 = vpack.c.b16 %v8607, %v8604
        %v8638 = vpack.c.b16 %v8611, %v8608
        %v8639 = vpack.c.b16 %v8612, %v8609
        %v8640 = vpack.c.b16 %v8613, %v8610
        %v8641 = vpack.c.b16 %v8617, %v8614
        %v8642 = vpack.c.b16 %v8618, %v8615
        %v8643 = vpack.c.b16 %v8619, %v8616
        %v8764 = vunpack.c.l.b16 %v8427
        %v8765 = vunpack.c.h.b16 %v8427
        %v8766 = vunpack.c.l.b16 %v8428
        %v8767 = vunpack.c.l.b16 %v8429
        %v8768 = vunpack.c.h.b16 %v8429
        %v8769 = vunpack.c.l.b16 %v8430
        %v8770 = vunpack.c.l.b16 %v8431
        %v8771 = vunpack.c.h.b16 %v8431
        %v8772 = vunpack.c.l.b16 %v8432
        %v8773 = vunpack.c.l.b16 %v8433
        %v8774 = vunpack.c.h.b16 %v8433
        %v8775 = vunpack.c.l.b16 %v8434
        %v8776 = vunpack.c.l.b16 %v8435
        %v8777 = vunpack.c.h.b16 %v8435
        %v8778 = vunpack.c.l.b16 %v8436
        %v8779 = vunpack.c.l.b16 %v8437
        %v8780 = vunpack.c.h.b16 %v8437
        %v8781 = vunpack.c.l.b16 %v8438
        %v8782 = vunpack.c.l.b16 %v8439
        %v8783 = vunpack.c.h.b16 %v8439
        %v8784 = vunpack.c.l.b16 %v8440
        %v8785 = vunpack.c.l.b16 %v8441
        %v8786 = vunpack.c.h.b16 %v8441
        %v8787 = vunpack.c.l.b16 %v8442
        %v8788 = vunpack.c.l.b16 %v8443
        %v8789 = vunpack.c.h.b16 %v8443
        %v8790 = vunpack.c.l.b16 %v8444
        %v8791 = vunpack.c.l.b16 %v8445
        %v8792 = vunpack.c.h.b16 %v8445
        %v8793 = vunpack.c.l.b16 %v8446
        %v8794 = vunpack.c.l.b16 %v8447
        %v8795 = vunpack.c.h.b16 %v8447
        %v8796 = vunpack.c.l.b16 %v8448
        %v8797 = vunpack.c.l.b16 %v8449
        %v8798 = vunpack.c.h.b16 %v8449
        %v8799 = vunpack.c.l.b16 %v8450
        %v8800 = vunpack.c.l.b16 %v8451
        %v8801 = vunpack.c.h.b16 %v8451
        %v8802 = vunpack.c.l.b16 %v8452
        %v8803 = vunpack.c.l.b16 %v8453
        %v8804 = vunpack.c.h.b16 %v8453
        %v8805 = vunpack.c.l.b16 %v8454
        %v8806 = vunpack.c.l.b16 %v8455
        %v8807 = vunpack.c.h.b16 %v8455
        %v8808 = vunpack.c.l.b16 %v8456
        %v8809 = vunpack.c.l.b16 %v8457
        %v8810 = vunpack.c.h.b16 %v8457
        %v8811 = vunpack.c.l.b16 %v8458
        %v8812 = vunpack.c.l.b16 %v8459
        %v8813 = vunpack.c.h.b16 %v8459
        %v8814 = vunpack.c.l.b16 %v8460
        %v8815 = vunpack.c.l.b16 %v8461
        %v8816 = vunpack.c.h.b16 %v8461
        %v8817 = vunpack.c.l.b16 %v8462
        %v8818 = vunpack.c.l.b16 %v8463
        %v8819 = vunpack.c.h.b16 %v8463
        %v8820 = vunpack.c.l.b16 %v8464
        %v8821 = vunpack.c.l.b16 %v8465
        %v8822 = vunpack.c.h.b16 %v8465
        %v8823 = vunpack.c.l.b16 %v8466
        %v8824 = vunpack.c.l.b16 %v8467
        %v8825 = vunpack.c.h.b16 %v8467
        %v8826 = vunpack.c.l.b16 %v8468
        %v8827 = vunpack.c.l.b16 %v8469
        %v8828 = vunpack.c.h.b16 %v8469
        %v8829 = vunpack.c.l.b16 %v8470
        %v8830 = vunpack.c.l.b16 %v8471
        %v8831 = vunpack.c.h.b16 %v8471
        %v8832 = vunpack.c.l.b16 %v8472
        %v8833 = vunpack.c.l.b16 %v8473
        %v8834 = vunpack.c.h.b16 %v8473
        %v8835 = vunpack.c.l.b16 %v8474
        %v8836 = vunpack.c.l.b16 %v8475
        %v8837 = vunpack.c.h.b16 %v8475
        %v8838 = vunpack.c.l.b16 %v8476
        %v8839 = vunpack.c.l.b16 %v8477
        %v8840 = vunpack.c.h.b16 %v8477
        %v8841 = vunpack.c.l.b16 %v8478
        %v8842 = vunpack.c.l.b16 %v8479
        %v8843 = vunpack.c.h.b16 %v8479
        %v8844 = vunpack.c.l.b16 %v8480
        %v8845 = vunpack.c.l.b16 %v8481
        %v8846 = vunpack.c.h.b16 %v8481
        %v8847 = vunpack.c.l.b16 %v8482
        %v8848 = vunpack.c.l.b16 %v8483
        %v8849 = vunpack.c.h.b16 %v8483
        %v8850 = vunpack.c.l.b16 %v8484
        %v8851 = vunpack.c.l.b16 %v8485
        %v8852 = vunpack.c.h.b16 %v8485
        %v8853 = vunpack.c.l.b16 %v8486
        %v8854 = vunpack.c.l.b16 %v8487
        %v8855 = vunpack.c.h.b16 %v8487
        %v8856 = vunpack.c.l.b16 %v8488
        %v8857 = vunpack.c.l.b16 %v8489
        %v8858 = vunpack.c.h.b16 %v8489
        %v8859 = vunpack.c.l.b16 %v8490
        %v8860 = vunpack.c.l.b16 %v8491
        %v8861 = vunpack.c.h.b16 %v8491
        %v8862 = vunpack.c.l.b16 %v8492
        %v8863 = vunpack.c.l.b16 %v8493
        %v8864 = vunpack.c.h.b16 %v8493
        %v8865 = vunpack.c.l.b16 %v8494
        %v8866 = vunpack.c.l.b16 %v8495
        %v8867 = vunpack.c.h.b16 %v8495
        %v8868 = vunpack.c.l.b16 %v8496
        %v8869 = vunpack.c.l.b16 %v8497
        %v8870 = vunpack.c.h.b16 %v8497
        %v8871 = vunpack.c.l.b16 %v8498
        %v8872 = vunpack.c.l.b16 %v8499
        %v8873 = vunpack.c.h.b16 %v8499
        %v8874 = vunpack.c.l.b16 %v8500
        %v8875 = vunpack.c.l.b16 %v8501
        %v8876 = vunpack.c.h.b16 %v8501
        %v8877 = vunpack.c.l.b16 %v8502
        %v8878 = vunpack.c.l.b16 %v8503
        %v8879 = vunpack.c.h.b16 %v8503
        %v8880 = vunpack.c.l.b16 %v8504
        %v8881 = vunpack.c.l.b16 %v8505
        %v8882 = vunpack.c.h.b16 %v8505
        %v8883 = vunpack.c.l.b16 %v8506
        %v8884 = vunpack.c.l.b16 %v8507
        %v8885 = vunpack.c.h.b16 %v8507
        %v8886 = vunpack.c.l.b16 %v8508
        %v8887 = vunpack.c.l.b16 %v8509
        %v8888 = vunpack.c.h.b16 %v8509
        %v8889 = vunpack.c.l.b16 %v8510
        %v8890 = vunpack.c.l.b16 %v8511
        %v8891 = vunpack.c.h.b16 %v8511
        %v8892 = vunpack.c.l.b16 %v8512
        %v8893 = vunpack.c.l.b16 %v8513
        %v8894 = vunpack.c.h.b16 %v8513
        %v8895 = vunpack.c.l.b16 %v8514
        %v8896 = vunpack.c.l.b16 %v8515
        %v8897 = vunpack.c.h.b16 %v8515
        %v8898 = vunpack.c.l.b16 %v8516
        %v8899 = vunpack.c.l.b16 %v8517
        %v8900 = vunpack.c.h.b16 %v8517
        %v8901 = vunpack.c.l.b16 %v8518
        %v8902 = vunpack.c.l.b16 %v8519
        %v8903 = vunpack.c.h.b16 %v8519
        %v8904 = vunpack.c.l.b16 %v8520
        %v8905 = vunpack.c.l.b16 %v8521
        %v8906 = vunpack.c.h.b16 %v8521
        %v8907 = vunpack.c.l.b16 %v8522
        %v8908 = vpack.c.b16 %v8767, %v8764
        %v8909 = vpack.c.b16 %v8768, %v8765
        %v8910 = vpack.c.b16 %v8769, %v8766
        %v8911 = vpack.c.b16 %v8773, %v8770
        %v8912 = vpack.c.b16 %v8774, %v8771
        %v8913 = vpack.c.b16 %v8775, %v8772
        %v8914 = vpack.c.b16 %v8779, %v8776
        %v8915 = vpack.c.b16 %v8780, %v8777
        %v8916 = vpack.c.b16 %v8781, %v8778
        %v8917 = vpack.c.b16 %v8785, %v8782
        %v8918 = vpack.c.b16 %v8786, %v8783
        %v8919 = vpack.c.b16 %v8787, %v8784
        %v8920 = vpack.c.b16 %v8791, %v8788
        %v8921 = vpack.c.b16 %v8792, %v8789
        %v8922 = vpack.c.b16 %v8793, %v8790
        %v8923 = vpack.c.b16 %v8797, %v8794
        %v8924 = vpack.c.b16 %v8798, %v8795
        %v8925 = vpack.c.b16 %v8799, %v8796
        %v8926 = vpack.c.b16 %v8803, %v8800
        %v8927 = vpack.c.b16 %v8804, %v8801
        %v8928 = vpack.c.b16 %v8805, %v8802
        %v8929 = vpack.c.b16 %v8809, %v8806
        %v8930 = vpack.c.b16 %v8810, %v8807
        %v8931 = vpack.c.b16 %v8811, %v8808
        %v8932 = vpack.c.b16 %v8815, %v8812
        %v8933 = vpack.c.b16 %v8816, %v8813
        %v8934 = vpack.c.b16 %v8817, %v8814
        %v8935 = vpack.c.b16 %v8821, %v8818
        %v8936 = vpack.c.b16 %v8822, %v8819
        %v8937 = vpack.c.b16 %v8823, %v8820
        %v8938 = vpack.c.b16 %v8827, %v8824
        %v8939 = vpack.c.b16 %v8828, %v8825
        %v8940 = vpack.c.b16 %v8829, %v8826
        %v8941 = vpack.c.b16 %v8833, %v8830
        %v8942 = vpack.c.b16 %v8834, %v8831
        %v8943 = vpack.c.b16 %v8835, %v8832
        %v8944 = vpack.c.b16 %v8839, %v8836
        %v8945 = vpack.c.b16 %v8840, %v8837
        %v8946 = vpack.c.b16 %v8841, %v8838
        %v8947 = vpack.c.b16 %v8845, %v8842
        %v8948 = vpack.c.b16 %v8846, %v8843
        %v8949 = vpack.c.b16 %v8847, %v8844
        %v8950 = vpack.c.b16 %v8851, %v8848
        %v8951 = vpack.c.b16 %v8852, %v8849
        %v8952 = vpack.c.b16 %v8853, %v8850
        %v8953 = vpack.c.b16 %v8857, %v8854
        %v8954 = vpack.c.b16 %v8858, %v8855
        %v8955 = vpack.c.b16 %v8859, %v8856
        %v8956 = vpack.c.b16 %v8863, %v8860
        %v8957 = vpack.c.b16 %v8864, %v8861
        %v8958 = vpack.c.b16 %v8865, %v8862
        %v8959 = vpack.c.b16 %v8869, %v8866
        %v8960 = vpack.c.b16 %v8870, %v8867
        %v8961 = vpack.c.b16 %v8871, %v8868
        %v8962 = vpack.c.b16 %v8875, %v8872
        %v8963 = vpack.c.b16 %v8876, %v8873
        %v8964 = vpack.c.b16 %v8877, %v8874
        %v8965 = vpack.c.b16 %v8881, %v8878
        %v8966 = vpack.c.b16 %v8882, %v8879
        %v8967 = vpack.c.b16 %v8883, %v8880
        %v8968 = vpack.c.b16 %v8887, %v8884
        %v8969 = vpack.c.b16 %v8888, %v8885
        %v8970 = vpack.c.b16 %v8889, %v8886
        %v8971 = vpack.c.b16 %v8893, %v8890
        %v8972 = vpack.c.b16 %v8894, %v8891
        %v8973 = vpack.c.b16 %v8895, %v8892
        %v8974 = vpack.c.b16 %v8899, %v8896
        %v8975 = vpack.c.b16 %v8900, %v8897
        %v8976 = vpack.c.b16 %v8901, %v8898
        %v8977 = vpack.c.b16 %v8905, %v8902
        %v8978 = vpack.c.b16 %v8906, %v8903
        %v8979 = vpack.c.b16 %v8907, %v8904
        %9052 = vmatprep.subr.bf16.mxu0 %v8930
        %9053 = vmatpush1.bf16.msra.mxu0 %v8929
        %9054 = vmatprep.subr.bf16.mxu0 %v8927
        %9055 = vmatpush1.bf16.msra.mxu0 %v8926
        %9056 = vmatprep.subr.bf16.mxu0 %v8924
        %9057 = vmatpush1.bf16.msra.mxu0 %v8923
        %9058 = vmatprep.subr.bf16.mxu0 %v8921
        %9059 = vmatpush1.bf16.msra.mxu0 %v8920
        %9060 = vmatprep.subr.bf16.mxu0 %v8918
        %9061 = vmatpush1.bf16.msra.mxu0 %v8917
        %9062 = vmatprep.subr.bf16.mxu0 %v8915
        %9063 = vmatpush1.bf16.msra.mxu0 %v8914
        %9064 = vmatprep.subr.bf16.mxu0 %v8912
        %9065 = vmatpush1.bf16.msra.mxu0 %v8911
        %9066 = vmatprep.subr.bf16.mxu0 %v8909
        %9067 = vmatpush1.bf16.msra.mxu0 %v8908
        %9068 = vmatprep.subr.bf16.mxu0 %v8954
        %9069 = vmatpush2.bf16.msra.mxu0 %v8953
        %9070 = vmatprep.subr.bf16.mxu0 %v8951
        %9071 = vmatpush2.bf16.msra.mxu0 %v8950
        %9072 = vmatprep.subr.bf16.mxu0 %v8948
        %9073 = vmatpush2.bf16.msra.mxu0 %v8947
        %9074 = vmatprep.subr.bf16.mxu0 %v8945
        %9075 = vmatpush2.bf16.msra.mxu0 %v8944
        %9076 = vmatprep.subr.bf16.mxu0 %v8942
        %9077 = vmatpush2.bf16.msra.mxu0 %v8941
        %9078 = vmatprep.subr.bf16.mxu0 %v8939
        %9079 = vmatpush2.bf16.msra.mxu0 %v8938
        %9080 = vmatprep.subr.bf16.mxu0 %v8936
        %9081 = vmatpush2.bf16.msra.mxu0 %v8935
        %9082 = vmatprep.subr.bf16.mxu0 %v8933
        %9083 = vmatpush2.bf16.msra.mxu0 %v8932
        %9084 = vmatprep.mubr.bf16.mxu0 %v8621
        %9085 = vmatmul.mubr.bf16.gmra.mxu0 %v8620
        %v9086 = vpop.f32.mrf.mxu0
        %v9087 = vadd.f32 %v8528, %v9086
        %v9088 = vpop.f32.mrf.mxu0
        %v9089 = vadd.f32 %v8532, %v9088
        %v9090 = vpop.f32.mrf.mxu0
        %v9091 = vadd.f32 %v8528, %v9090
        %v9092 = vpop.f32.mrf.mxu0
        %v9093 = vadd.f32 %v8532, %v9092
        %9094 = vmatprep.mubr.bf16.mxu0 %v8624
        %9095 = vmatmul.mubr.bf16.gmra.mxu0 %v8623
        %v9096 = vpop.f32.mrf.mxu0
        %v9097 = vadd.f32 %v8528, %v9096
        %v9098 = vpop.f32.mrf.mxu0
        %v9099 = vadd.f32 %v8532, %v9098
        %v9100 = vpop.f32.mrf.mxu0
        %v9101 = vadd.f32 %v8528, %v9100
        %v9102 = vpop.f32.mrf.mxu0
        %v9103 = vadd.f32 %v8532, %v9102
        %9104 = vmatprep.mubr.bf16.mxu0 %v8627
        %9105 = vmatmul.mubr.bf16.gmra.mxu0 %v8626
        %v9106 = vpop.f32.mrf.mxu0
        %v9107 = vadd.f32 %v8528, %v9106
        %v9108 = vpop.f32.mrf.mxu0
        %v9109 = vadd.f32 %v8532, %v9108
        %v9110 = vpop.f32.mrf.mxu0
        %v9111 = vadd.f32 %v8528, %v9110
        %v9112 = vpop.f32.mrf.mxu0
        %v9113 = vadd.f32 %v8532, %v9112
        %9114 = vmatprep.mubr.bf16.mxu0 %v8630
        %9115 = vmatmul.mubr.bf16.gmra.mxu0 %v8629
        %v9116 = vpop.f32.mrf.mxu0
        %v9117 = vadd.f32 %v8528, %v9116
        %v9118 = vpop.f32.mrf.mxu0
        %v9119 = vadd.f32 %v8532, %v9118
        %v9120 = vpop.f32.mrf.mxu0
        %v9121 = vadd.f32 %v8528, %v9120
        %v9122 = vpop.f32.mrf.mxu0
        %v9123 = vadd.f32 %v8532, %v9122
        %9124 = vmatprep.mubr.bf16.mxu0 %v8633
        %9125 = vmatmul.mubr.bf16.gmra.mxu0 %v8632
        %v9126 = vpop.f32.mrf.mxu0
        %v9127 = vadd.f32 %v8528, %v9126
        %v9128 = vpop.f32.mrf.mxu0
        %v9129 = vadd.f32 %v8532, %v9128
        %v9130 = vpop.f32.mrf.mxu0
        %v9131 = vadd.f32 %v8528, %v9130
        %v9132 = vpop.f32.mrf.mxu0
        %v9133 = vadd.f32 %v8532, %v9132
        %9134 = vmatprep.mubr.bf16.mxu0 %v8636
        %9135 = vmatmul.mubr.bf16.gmra.mxu0 %v8635
        %v9136 = vpop.f32.mrf.mxu0
        %v9137 = vadd.f32 %v8528, %v9136
        %v9138 = vpop.f32.mrf.mxu0
        %v9139 = vadd.f32 %v8532, %v9138
        %v9140 = vpop.f32.mrf.mxu0
        %v9141 = vadd.f32 %v8528, %v9140
        %v9142 = vpop.f32.mrf.mxu0
        %v9143 = vadd.f32 %v8532, %v9142
        %9144 = vmatprep.mubr.bf16.mxu0 %v8639
        %9145 = vmatmul.mubr.bf16.gmra.mxu0 %v8638
        %v9146 = vpop.f32.mrf.mxu0
        %v9147 = vadd.f32 %v8528, %v9146
        %v9148 = vpop.f32.mrf.mxu0
        %v9149 = vadd.f32 %v8532, %v9148
        %v9150 = vpop.f32.mrf.mxu0
        %v9151 = vadd.f32 %v8528, %v9150
        %v9152 = vpop.f32.mrf.mxu0
        %v9153 = vadd.f32 %v8532, %v9152
        %9154 = vmatprep.mubr.bf16.mxu0 %v8642
        %9155 = vmatmul.mubr.bf16.gmra.mxu0 %v8641
        %v9156 = vpop.f32.mrf.mxu0
        %v9157 = vadd.f32 %v8528, %v9156
        %v9158 = vpop.f32.mrf.mxu0
        %v9159 = vadd.f32 %v8532, %v9158
        %v9160 = vpop.f32.mrf.mxu0
        %v9161 = vadd.f32 %v8528, %v9160
        %v9162 = vpop.f32.mrf.mxu0
        %v9163 = vadd.f32 %v8532, %v9162
        %9164 = vdwg.mxu0
        %9165 = vmatprep.subr.bf16.mxu0 %v8978
        %9166 = vmatpush1.bf16.msra.mxu0 %v8977
        %9167 = vmatprep.subr.bf16.mxu0 %v8975
        %9168 = vmatpush1.bf16.msra.mxu0 %v8974
        %9169 = vmatprep.subr.bf16.mxu0 %v8972
        %9170 = vmatpush1.bf16.msra.mxu0 %v8971
        %9171 = vmatprep.subr.bf16.mxu0 %v8969
        %9172 = vmatpush1.bf16.msra.mxu0 %v8968
        %9173 = vmatprep.subr.bf16.mxu0 %v8966
        %9174 = vmatpush1.bf16.msra.mxu0 %v8965
        %9175 = vmatprep.subr.bf16.mxu0 %v8963
        %9176 = vmatpush1.bf16.msra.mxu0 %v8962
        %9177 = vmatprep.subr.bf16.mxu0 %v8960
        %9178 = vmatpush1.bf16.msra.mxu0 %v8959
        %9179 = vmatprep.subr.bf16.mxu0 %v8957
        %9180 = vmatpush1.bf16.msra.mxu0 %v8956
        %9181 = vmatprep.subr.bf16.mxu0 0
        %9182 = vmatpush2.bf16.msra.mxu0 0
        %9183 = vmatprep.subr.bf16.mxu0 0
        %9184 = vmatpush2.bf16.msra.mxu0 0
        %9185 = vmatprep.subr.bf16.mxu0 0
        %9186 = vmatpush2.bf16.msra.mxu0 0
        %9187 = vmatprep.subr.bf16.mxu0 0
        %9188 = vmatpush2.bf16.msra.mxu0 0
        %9189 = vmatprep.subr.bf16.mxu0 0
        %9190 = vmatpush2.bf16.msra.mxu0 0
        %9191 = vmatprep.subr.bf16.mxu0 0
        %9192 = vmatpush2.bf16.msra.mxu0 0
        %9193 = vmatprep.subr.bf16.mxu0 0
        %9194 = vmatpush2.bf16.msra.mxu0 0
        %9195 = vmatprep.subr.bf16.mxu0 0
        %9196 = vmatpush2.bf16.msra.mxu0 0
        %9197 = vmatprep.mubr.bf16.mxu0 0
        %9198 = vmatmul.mubr.bf16.gmra.mxu0 %v8622
        %v9199 = vpop.f32.mrf.mxu0
        %v9200 = vadd.f32 %v9087, %v9199
        %v9201 = vpop.f32.mrf.mxu0
        %v9202 = vadd.f32 %v9089, %v9201
        %v9203 = vpop.f32.mrf.mxu0
        %v9204 = vadd.f32 %v9091, %v9203
        %v9205 = vpop.f32.mrf.mxu0
        %v9206 = vadd.f32 %v9093, %v9205
        %9207 = vmatprep.mubr.bf16.mxu0 0
        %9208 = vmatmul.mubr.bf16.gmra.mxu0 %v8625
        %v9209 = vpop.f32.mrf.mxu0
        %v9210 = vadd.f32 %v9097, %v9209
        %v9211 = vpop.f32.mrf.mxu0
        %v9212 = vadd.f32 %v9099, %v9211
        %v9213 = vpop.f32.mrf.mxu0
        %v9214 = vadd.f32 %v9101, %v9213
        %v9215 = vpop.f32.mrf.mxu0
        %v9216 = vadd.f32 %v9103, %v9215
        %9217 = vmatprep.mubr.bf16.mxu0 0
        %9218 = vmatmul.mubr.bf16.gmra.mxu0 %v8628
        %v9219 = vpop.f32.mrf.mxu0
        %v9220 = vadd.f32 %v9107, %v9219
        %v9221 = vpop.f32.mrf.mxu0
        %v9222 = vadd.f32 %v9109, %v9221
        %v9223 = vpop.f32.mrf.mxu0
        %v9224 = vadd.f32 %v9111, %v9223
        %v9225 = vpop.f32.mrf.mxu0
        %v9226 = vadd.f32 %v9113, %v9225
        %9227 = vmatprep.mubr.bf16.mxu0 0
        %9228 = vmatmul.mubr.bf16.gmra.mxu0 %v8631
        %v9229 = vpop.f32.mrf.mxu0
        %v9230 = vadd.f32 %v9117, %v9229
        %v9231 = vpop.f32.mrf.mxu0
        %v9232 = vadd.f32 %v9119, %v9231
        %v9233 = vpop.f32.mrf.mxu0
        %v9234 = vadd.f32 %v9121, %v9233
        %v9235 = vpop.f32.mrf.mxu0
        %v9236 = vadd.f32 %v9123, %v9235
        %9237 = vmatprep.mubr.bf16.mxu0 0
        %9238 = vmatmul.mubr.bf16.gmra.mxu0 %v8634
        %v9239 = vpop.f32.mrf.mxu0
        %v9240 = vadd.f32 %v9127, %v9239
        %v9241 = vpop.f32.mrf.mxu0
        %v9242 = vadd.f32 %v9129, %v9241
        %v9243 = vpop.f32.mrf.mxu0
        %v9244 = vadd.f32 %v9131, %v9243
        %v9245 = vpop.f32.mrf.mxu0
        %v9246 = vadd.f32 %v9133, %v9245
        %9247 = vmatprep.mubr.bf16.mxu0 0
        %9248 = vmatmul.mubr.bf16.gmra.mxu0 %v8637
        %v9249 = vpop.f32.mrf.mxu0
        %v9250 = vadd.f32 %v9137, %v9249
        %v9251 = vpop.f32.mrf.mxu0
        %v9252 = vadd.f32 %v9139, %v9251
        %v9253 = vpop.f32.mrf.mxu0
        %v9254 = vadd.f32 %v9141, %v9253
        %v9255 = vpop.f32.mrf.mxu0
        %v9256 = vadd.f32 %v9143, %v9255
        %9257 = vmatprep.mubr.bf16.mxu0 0
        %9258 = vmatmul.mubr.bf16.gmra.mxu0 %v8640
        %v9259 = vpop.f32.mrf.mxu0
        %v9260 = vadd.f32 %v9147, %v9259
        %v9261 = vpop.f32.mrf.mxu0
        %v9262 = vadd.f32 %v9149, %v9261
        %v9263 = vpop.f32.mrf.mxu0
        %v9264 = vadd.f32 %v9151, %v9263
        %v9265 = vpop.f32.mrf.mxu0
        %v9266 = vadd.f32 %v9153, %v9265
        %9267 = vmatprep.mubr.bf16.mxu0 0
        %9268 = vmatmul.mubr.bf16.gmra.mxu0 %v8643
        %v9269 = vpop.f32.mrf.mxu0
        %v9270 = vadd.f32 %v9157, %v9269
        %v9271 = vpop.f32.mrf.mxu0
        %v9272 = vadd.f32 %v9159, %v9271
        %v9273 = vpop.f32.mrf.mxu0
        %v9274 = vadd.f32 %v9161, %v9273
        %v9275 = vpop.f32.mrf.mxu0
        %v9276 = vadd.f32 %v9163, %v9275
        %9277 = vdwg.mxu0
        %9278 = vmatprep.subr.bf16.mxu0 0
        %9279 = vmatpush1.bf16.msra.mxu0 %v8931
        %9280 = vmatprep.subr.bf16.mxu0 0
        %9281 = vmatpush1.bf16.msra.mxu0 %v8928
        %9282 = vmatprep.subr.bf16.mxu0 0
        %9283 = vmatpush1.bf16.msra.mxu0 %v8925
        %9284 = vmatprep.subr.bf16.mxu0 0
        %9285 = vmatpush1.bf16.msra.mxu0 %v8922
        %9286 = vmatprep.subr.bf16.mxu0 0
        %9287 = vmatpush1.bf16.msra.mxu0 %v8919
        %9288 = vmatprep.subr.bf16.mxu0 0
        %9289 = vmatpush1.bf16.msra.mxu0 %v8916
        %9290 = vmatprep.subr.bf16.mxu0 0
        %9291 = vmatpush1.bf16.msra.mxu0 %v8913
        %9292 = vmatprep.subr.bf16.mxu0 0
        %9293 = vmatpush1.bf16.msra.mxu0 %v8910
        %9294 = vmatprep.subr.bf16.mxu0 0
        %9295 = vmatpush2.bf16.msra.mxu0 %v8955
        %9296 = vmatprep.subr.bf16.mxu0 0
        %9297 = vmatpush2.bf16.msra.mxu0 %v8952
        %9298 = vmatprep.subr.bf16.mxu0 0
        %9299 = vmatpush2.bf16.msra.mxu0 %v8949
        %9300 = vmatprep.subr.bf16.mxu0 0
        %9301 = vmatpush2.bf16.msra.mxu0 %v8946
        %9302 = vmatprep.subr.bf16.mxu0 0
        %9303 = vmatpush2.bf16.msra.mxu0 %v8943
        %9304 = vmatprep.subr.bf16.mxu0 0
        %9305 = vmatpush2.bf16.msra.mxu0 %v8940
        %9306 = vmatprep.subr.bf16.mxu0 0
        %9307 = vmatpush2.bf16.msra.mxu0 %v8937
        %9308 = vmatprep.subr.bf16.mxu0 0
        %9309 = vmatpush2.bf16.msra.mxu0 %v8934
        %9310 = vmatprep.mubr.bf16.mxu0 %v8621
        %9311 = vmatmul.mubr.bf16.gmra.mxu0 %v8620
        %v9312 = vpop.f32.mrf.mxu0
        %v9313 = vadd.f32 %v8536, %v9312
        %v9314 = vpop.f32.mrf.mxu0
        %v9315 = vpop.f32.mrf.mxu0
        %v9316 = vadd.f32 %v8536, %v9315
        %v9317 = vpop.f32.mrf.mxu0
        %9318 = vmatprep.mubr.bf16.mxu0 %v8624
        %9319 = vmatmul.mubr.bf16.gmra.mxu0 %v8623
        %v9320 = vpop.f32.mrf.mxu0
        %v9321 = vadd.f32 %v8536, %v9320
        %v9322 = vpop.f32.mrf.mxu0
        %v9323 = vpop.f32.mrf.mxu0
        %v9324 = vadd.f32 %v8536, %v9323
        %v9325 = vpop.f32.mrf.mxu0
        %9326 = vmatprep.mubr.bf16.mxu0 %v8627
        %9327 = vmatmul.mubr.bf16.gmra.mxu0 %v8626
        %v9328 = vpop.f32.mrf.mxu0
        %v9329 = vadd.f32 %v8536, %v9328
        %v9330 = vpop.f32.mrf.mxu0
        %v9331 = vpop.f32.mrf.mxu0
        %v9332 = vadd.f32 %v8536, %v9331
        %v9333 = vpop.f32.mrf.mxu0
        %9334 = vmatprep.mubr.bf16.mxu0 %v8630
        %9335 = vmatmul.mubr.bf16.gmra.mxu0 %v8629
        %v9336 = vpop.f32.mrf.mxu0
        %v9337 = vadd.f32 %v8536, %v9336
        %v9338 = vpop.f32.mrf.mxu0
        %v9339 = vpop.f32.mrf.mxu0
        %v9340 = vadd.f32 %v8536, %v9339
        %v9341 = vpop.f32.mrf.mxu0
        %9342 = vmatprep.mubr.bf16.mxu0 %v8633
        %9343 = vmatmul.mubr.bf16.gmra.mxu0 %v8632
        %v9344 = vpop.f32.mrf.mxu0
        %v9345 = vadd.f32 %v8536, %v9344
        %v9346 = vpop.f32.mrf.mxu0
        %v9347 = vpop.f32.mrf.mxu0
        %v9348 = vadd.f32 %v8536, %v9347
        %v9349 = vpop.f32.mrf.mxu0
        %9350 = vmatprep.mubr.bf16.mxu0 %v8636
        %9351 = vmatmul.mubr.bf16.gmra.mxu0 %v8635
        %v9352 = vpop.f32.mrf.mxu0
        %v9353 = vadd.f32 %v8536, %v9352
        %v9354 = vpop.f32.mrf.mxu0
        %v9355 = vpop.f32.mrf.mxu0
        %v9356 = vadd.f32 %v8536, %v9355
        %v9357 = vpop.f32.mrf.mxu0
        %9358 = vmatprep.mubr.bf16.mxu0 %v8639
        %9359 = vmatmul.mubr.bf16.gmra.mxu0 %v8638
        %v9360 = vpop.f32.mrf.mxu0
        %v9361 = vadd.f32 %v8536, %v9360
        %v9362 = vpop.f32.mrf.mxu0
        %v9363 = vpop.f32.mrf.mxu0
        %v9364 = vadd.f32 %v8536, %v9363
        %v9365 = vpop.f32.mrf.mxu0
        %9366 = vmatprep.mubr.bf16.mxu0 %v8642
        %9367 = vmatmul.mubr.bf16.gmra.mxu0 %v8641
        %v9368 = vpop.f32.mrf.mxu0
        %v9369 = vadd.f32 %v8536, %v9368
        %v9370 = vpop.f32.mrf.mxu0
        %v9371 = vpop.f32.mrf.mxu0
        %v9372 = vadd.f32 %v8536, %v9371
        %v9373 = vpop.f32.mrf.mxu0
        %9374 = vdwg.mxu0
        %9375 = vmatprep.subr.bf16.mxu0 0
        %9376 = vmatpush1.bf16.msra.mxu0 %v8979
        %9377 = vmatprep.subr.bf16.mxu0 0
        %9378 = vmatpush1.bf16.msra.mxu0 %v8976
        %9379 = vmatprep.subr.bf16.mxu0 0
        %9380 = vmatpush1.bf16.msra.mxu0 %v8973
        %9381 = vmatprep.subr.bf16.mxu0 0
        %9382 = vmatpush1.bf16.msra.mxu0 %v8970
        %9383 = vmatprep.subr.bf16.mxu0 0
        %9384 = vmatpush1.bf16.msra.mxu0 %v8967
        %9385 = vmatprep.subr.bf16.mxu0 0
        %9386 = vmatpush1.bf16.msra.mxu0 %v8964
        %9387 = vmatprep.subr.bf16.mxu0 0
        %9388 = vmatpush1.bf16.msra.mxu0 %v8961
        %9389 = vmatprep.subr.bf16.mxu0 0
        %9390 = vmatpush1.bf16.msra.mxu0 %v8958
        %9391 = vmatprep.subr.bf16.mxu0 0
        %9392 = vmatpush2.bf16.msra.mxu0 0
        %9393 = vmatprep.subr.bf16.mxu0 0
        %9394 = vmatpush2.bf16.msra.mxu0 0
        %9395 = vmatprep.subr.bf16.mxu0 0
        %9396 = vmatpush2.bf16.msra.mxu0 0
        %9397 = vmatprep.subr.bf16.mxu0 0
        %9398 = vmatpush2.bf16.msra.mxu0 0
        %9399 = vmatprep.subr.bf16.mxu0 0
        %9400 = vmatpush2.bf16.msra.mxu0 0
        %9401 = vmatprep.subr.bf16.mxu0 0
        %9402 = vmatpush2.bf16.msra.mxu0 0
        %9403 = vmatprep.subr.bf16.mxu0 0
        %9404 = vmatpush2.bf16.msra.mxu0 0
        %9405 = vmatprep.subr.bf16.mxu0 0
        %9406 = vmatpush2.bf16.msra.mxu0 0
        %9407 = vmatprep.mubr.bf16.mxu0 0
        %9408 = vmatmul.mubr.bf16.gmra.mxu0 %v8622
        %v9409 = vpop.f32.mrf.mxu0
        %v9410 = vadd.f32 %v9313, %v9409
        %v9411 = vpop.f32.mrf.mxu0
        %v9412 = vpop.f32.mrf.mxu0
        %v9413 = vadd.f32 %v9316, %v9412
        %v9414 = vpop.f32.mrf.mxu0
        %9415 = vmatprep.mubr.bf16.mxu0 0
        %9416 = vmatmul.mubr.bf16.gmra.mxu0 %v8625
        %v9417 = vpop.f32.mrf.mxu0
        %v9418 = vadd.f32 %v9321, %v9417
        %v9419 = vpop.f32.mrf.mxu0
        %v9420 = vpop.f32.mrf.mxu0
        %v9421 = vadd.f32 %v9324, %v9420
        %v9422 = vpop.f32.mrf.mxu0
        %9423 = vmatprep.mubr.bf16.mxu0 0
        %9424 = vmatmul.mubr.bf16.gmra.mxu0 %v8628
        %v9425 = vpop.f32.mrf.mxu0
        %v9426 = vadd.f32 %v9329, %v9425
        %v9427 = vpop.f32.mrf.mxu0
        %v9428 = vpop.f32.mrf.mxu0
        %v9429 = vadd.f32 %v9332, %v9428
        %v9430 = vpop.f32.mrf.mxu0
        %9431 = vmatprep.mubr.bf16.mxu0 0
        %9432 = vmatmul.mubr.bf16.gmra.mxu0 %v8631
        %v9433 = vpop.f32.mrf.mxu0
        %v9434 = vadd.f32 %v9337, %v9433
        %v9435 = vpop.f32.mrf.mxu0
        %v9436 = vpop.f32.mrf.mxu0
        %v9437 = vadd.f32 %v9340, %v9436
        %v9438 = vpop.f32.mrf.mxu0
        %9439 = vmatprep.mubr.bf16.mxu0 0
        %9440 = vmatmul.mubr.bf16.gmra.mxu0 %v8634
        %v9441 = vpop.f32.mrf.mxu0
        %v9442 = vadd.f32 %v9345, %v9441
        %v9443 = vpop.f32.mrf.mxu0
        %v9444 = vpop.f32.mrf.mxu0
        %v9445 = vadd.f32 %v9348, %v9444
        %v9446 = vpop.f32.mrf.mxu0
        %9447 = vmatprep.mubr.bf16.mxu0 0
        %9448 = vmatmul.mubr.bf16.gmra.mxu0 %v8637
        %v9449 = vpop.f32.mrf.mxu0
        %v9450 = vadd.f32 %v9353, %v9449
        %v9451 = vpop.f32.mrf.mxu0
        %v9452 = vpop.f32.mrf.mxu0
        %v9453 = vadd.f32 %v9356, %v9452
        %v9454 = vpop.f32.mrf.mxu0
        %9455 = vmatprep.mubr.bf16.mxu0 0
        %9456 = vmatmul.mubr.bf16.gmra.mxu0 %v8640
        %v9457 = vpop.f32.mrf.mxu0
        %v9458 = vadd.f32 %v9361, %v9457
        %v9459 = vpop.f32.mrf.mxu0
        %v9460 = vpop.f32.mrf.mxu0
        %v9461 = vadd.f32 %v9364, %v9460
        %v9462 = vpop.f32.mrf.mxu0
        %9463 = vmatprep.mubr.bf16.mxu0 0
        %9464 = vmatmul.mubr.bf16.gmra.mxu0 %v8643
        %v9465 = vpop.f32.mrf.mxu0
        %v9466 = vadd.f32 %v9369, %v9465
        %v9467 = vpop.f32.mrf.mxu0
        %v9468 = vpop.f32.mrf.mxu0
        %v9469 = vadd.f32 %v9372, %v9468
        %v9470 = vpop.f32.mrf.mxu0
        %9471 = vdwg.mxu0
        %9472 = vst [vmem:[%s300] sm:$0xff] %v9200
        %9473 = vst [vmem:[%s300 + $0x8] sm:$0xff] %v9202
        %9474 = vst [vmem:[%s300 + $0x10] sm:$0xff] %v9410
        %9475 = vst [vmem:[%s300 + $0x18] sm:$0xff] %v9204
        %9476 = vst [vmem:[%s300 + $0x20] sm:$0xff] %v9206
        %9477 = vst [vmem:[%s300 + $0x28] sm:$0xff] %v9413
        %9478 = vst [vmem:[%s300 + $0x30] sm:$0xff] %v9210
        %9479 = vst [vmem:[%s300 + $0x38] sm:$0xff] %v9212
        %9480 = vst [vmem:[%s300 + $0x40] sm:$0xff] %v9418
        %9481 = vst [vmem:[%s300 + $0x48] sm:$0xff] %v9214
        %9482 = vst [vmem:[%s300 + $0x50] sm:$0xff] %v9216
        %9483 = vst [vmem:[%s300 + $0x58] sm:$0xff] %v9421
        %9484 = vst [vmem:[%s300 + $0x60] sm:$0xff] %v9220
        %9485 = vst [vmem:[%s300 + $0x68] sm:$0xff] %v9222
        %9486 = vst [vmem:[%s300 + $0x70] sm:$0xff] %v9426
        %9487 = vst [vmem:[%s300 + $0x78] sm:$0xff] %v9224
        %9488 = vst [vmem:[%s300 + $0x80] sm:$0xff] %v9226
        %9489 = vst [vmem:[%s300 + $0x88] sm:$0xff] %v9429
        %9490 = vst [vmem:[%s300 + $0x90] sm:$0xff] %v9230
        %9491 = vst [vmem:[%s300 + $0x98] sm:$0xff] %v9232
        %9492 = vst [vmem:[%s300 + $0xa0] sm:$0xff] %v9434
        %9493 = vst [vmem:[%s300 + $0xa8] sm:$0xff] %v9234
        %9494 = vst [vmem:[%s300 + $0xb0] sm:$0xff] %v9236
        %9495 = vst [vmem:[%s300 + $0xb8] sm:$0xff] %v9437
        %9496 = vst [vmem:[%s300 + $0xc0] sm:$0xff] %v9240
        %9497 = vst [vmem:[%s300 + $0xc8] sm:$0xff] %v9242
        %9498 = vst [vmem:[%s300 + $0xd0] sm:$0xff] %v9442
        %9499 = vst [vmem:[%s300 + $0xd8] sm:$0xff] %v9244
        %9500 = vst [vmem:[%s300 + $0xe0] sm:$0xff] %v9246
        %9501 = vst [vmem:[%s300 + $0xe8] sm:$0xff] %v9445
        %9502 = vst [vmem:[%s300 + $0xf0] sm:$0xff] %v9250
        %9503 = vst [vmem:[%s300 + $0xf8] sm:$0xff] %v9252
        %9504 = vst [vmem:[%s300 + $0x100] sm:$0xff] %v9450
        %9505 = vst [vmem:[%s300 + $0x108] sm:$0xff] %v9254
        %9506 = vst [vmem:[%s300 + $0x110] sm:$0xff] %v9256
        %9507 = vst [vmem:[%s300 + $0x118] sm:$0xff] %v9453
        %9508 = vst [vmem:[%s300 + $0x120] sm:$0xff] %v9260
        %9509 = vst [vmem:[%s300 + $0x128] sm:$0xff] %v9262
        %9510 = vst [vmem:[%s300 + $0x130] sm:$0xff] %v9458
        %9511 = vst [vmem:[%s300 + $0x138] sm:$0xff] %v9264
        %9512 = vst [vmem:[%s300 + $0x140] sm:$0xff] %v9266
        %9513 = vst [vmem:[%s300 + $0x148] sm:$0xff] %v9461
        %9514 = vst [vmem:[%s300 + $0x150] sm:$0xff] %v9270
        %9515 = vst [vmem:[%s300 + $0x158] sm:$0xff] %v9272
        %9516 = vst [vmem:[%s300 + $0x160] sm:$0xff] %v9466
        %9517 = vst [vmem:[%s300 + $0x168] sm:$0xff] %v9274
        %9518 = vst [vmem:[%s300 + $0x170] sm:$0xff] %v9276
        %9519 = vst [vmem:[%s300 + $0x178] sm:$0xff] %v9469
        %s9520 = sand.u32 %s156, 1
        %s9521 = scalar_lea.sflag [#allocation7], %s9520
        %s9522 = sand.u32 %s156, 1
        %s9523 = smul.addr %s9522, 384
        %s9524 = scalar_lea.vmem [#allocation13], %s9523
        // Predicated region
        $region61: #{tpu_custom_call.1} parent=39 // pred_check
          %p9525 = pneg %p166
        $region62: #{tpu_custom_call.1} parent=39 // pred_check_branch
          %9527 = sbr.rel (%p9525) target = $region64
        $region63: #{tpu_custom_call.1} parent=39 // pred_region
          %s9528 = smul.u32 16, %s29
          %s9530 = ssub.s32 6144, 6144
          %9531 = vsyncadd %s9521, %s9530
          %s9532 = smul.addr %s9528, 3
          %s9533 = smul.addr %s28, 48
          %s9534 = sadd.s32 %s9532, %s9533
          %s9535 = smul.addr %s9534, 128
          %s9536 = scalar_lea.hbm %s5, %s9535
          %s9537 = sshll.u32 %s9524, 4
          %s9538 = int_to_ptr.vmem [resolvable:$true] %s9537
          %9543 = dma.vmem_to_hbm [thread:$0]  %s9538, 6144, %s9536, %s9521, 384, 384, 24
        $region64: #{tpu_custom_call.1} parent=39 // pred_fallthru
          _
      $region40: #{tpu_custom_call.1} parent=5 // pred_fallthru
        _
      %p9544 = scmp.le.s32.totalorder 2, %s19
      // Predicated region
      $region65: #{tpu_custom_call.1} parent=5 // pred_check
        %p9545 = pneg %p9544
      $region66: #{tpu_custom_call.1} parent=5 // pred_check_branch
        %9547 = sbr.rel (%p9545) target = $region68
      $region67: #{tpu_custom_call.1} parent=5 // pred_region
        %s9548 = ssub.s32 %s19, 2
        // Predicated region
        $region69: #{tpu_custom_call.1} parent=67 // pred_check
          %p9549 = pneg %p172
        $region70: #{tpu_custom_call.1} parent=67 // pred_check_branch
          %9551 = sbr.rel (%p9549) target = $region72
        $region71: #{tpu_custom_call.1} parent=67 // pred_region
          %s9552 = sand.u32 %s157, 1
          %s9553 = scalar_lea.sflag [#allocation7], %s9552
          %s9554 = sand.u32 %s157, 1
          %s9555 = smul.addr %s9554, 384
          %s9556 = scalar_lea.vmem [#allocation13], %s9555
          %9557 = dma.done %s9553, 6144
        $region72: #{tpu_custom_call.1} parent=67 // pred_fallthru
          _
      $region68: #{tpu_custom_call.1} parent=5 // pred_fallthru
        _
    $region6: #{tpu_custom_call.1} parent=1 // loop_footer
      %s23 = sadd.s32 1, %s19
    $region7: #{tpu_custom_call.1} parent=1 // loop_footer_branch
      %18 = sbr.rel target = $region3
    $region8: #{tpu_custom_call.1} parent=1 // loop_exit
      _
    %9558 = vsyncpa [#allocation6], 1
    %s9559 = scalar_lea.sflag [#allocation6], 1
    %9560 = vsyncpa %s9559, 1
    %9561 = vsyncpa [#allocation9], 1
    %9562 = vsyncpa [#allocation12], 1
    %9563 = vsyncpa [#allocation7], 1
    %s9564 = scalar_lea.sflag [#allocation7], 1
    %9565 = vsyncpa %s9564, 1

</llo_original>
